<compile_context>
chip_gen: v7x
topology: tpu7x:2x2x1
jax: 0.10.0
libtpu: 0.0.40
codegen_flags: <defaults>
</compile_context>

<pallas_src>
import math

import jax
import jax.numpy as jnp
from jax import lax
from jax.experimental import pallas as pl
from jax.experimental.pallas import tpu as pltpu

BN_EPS = 1e-5


# ---------------------------------------------------------------------------
# Pallas kernel: one batch element per grid step, sequence-major layout.
# ---------------------------------------------------------------------------
def _fwd_kernel(xp_ref, w1_ref, s1_ref, t1_ref, d1_ref,
                w2_ref, s2_ref, t2_ref, d2_ref,
                w3_ref, s3_ref, t3_ref, a_ref,
                wbd_ref, b1l_ref, w2l_ref, b2l_ref, w3l_ref, b3l_ref,
                out_ref,
                c1_pad, p2_pad, c2_pad, p3_pad):
    f32 = jnp.float32
    L1, L = d1_ref.shape          # (L/4, L)
    L2 = d2_ref.shape[0]          # L/16
    T = a_ref.shape[0]            # 8
    H1 = b1l_ref.shape[1]         # 256

    def conv(read, w_ref):
        # sum_k  x_shift_k (Lc, Cin) @ W_k (Cin, Cout)   -- 'same' conv
        K = w_ref.shape[0]
        acc = jnp.dot(read(0), w_ref[0], preferred_element_type=f32)
        for k in range(1, K):
            acc = acc + jnp.dot(read(k), w_ref[k], preferred_element_type=f32)
        return acc

    def maxpool4(val, pad_ref, dsel_ref, Lc):
        # rolling max over 4 sublane-offset reads, then one 0/1 down-select.
        pad_ref[pl.ds(0, Lc), :] = val
        pad_ref[pl.ds(Lc, pad_ref.shape[0] - Lc), :] = jnp.zeros(
            (pad_ref.shape[0] - Lc, pad_ref.shape[1]), f32)
        rm = pad_ref[pl.ds(0, Lc), :]
        for j in range(1, 4):
            rm = jnp.maximum(rm, pad_ref[pl.ds(j, Lc), :])
        return jnp.dot(dsel_ref[...], rm, preferred_element_type=f32)

    # ---- layer 1: Conv1d(2,32,7,p=3) + BN + ReLU  (input pre-padded on host)
    c1 = conv(lambda k: xp_ref[0, pl.ds(k, L), :], w1_ref)
    c1 = jnp.maximum(c1 * s1_ref[...] + t1_ref[...], 0.0)            # (L, 32)
    p1 = maxpool4(c1, c1_pad, d1_ref, L)                             # (L1, 32)

    # ---- layer 2: Conv1d(32,64,5,p=2) + BN + ReLU (zero-padded VMEM scratch)
    p2_pad[...] = jnp.zeros(p2_pad.shape, f32)
    p2_pad[pl.ds(2, L1), :] = p1
    c2 = conv(lambda k: p2_pad[pl.ds(k, L1), :], w2_ref)
    c2 = jnp.maximum(c2 * s2_ref[...] + t2_ref[...], 0.0)            # (L1, 64)
    p2 = maxpool4(c2, c2_pad, d2_ref, L1)                            # (L2, 64)

    # ---- layer 3: Conv1d(64,128,3,p=1) + BN + ReLU
    p3_pad[...] = jnp.zeros(p3_pad.shape, f32)
    p3_pad[pl.ds(1, L2), :] = p2
    c3 = conv(lambda k: p3_pad[pl.ds(k, L2), :], w3_ref)
    c3 = jnp.maximum(c3 * s3_ref[...] + t3_ref[...], 0.0)            # (L2, 128)

    # ---- AdaptiveAvgPool1d(8)
    h = jnp.dot(a_ref[...], c3, preferred_element_type=f32)          # (8, 128)

    # ---- classifier: Linear(1024->256) fused into ONE matmul via a
    #      block-diagonal weight relayout; fold the T diagonal blocks.
    P = jnp.dot(h, wbd_ref[...], preferred_element_type=f32)         # (8, 2048)
    h1 = b1l_ref[...]                                                 # (1, 256)
    for t in range(T):
        h1 = h1 + P[t:t + 1, t * H1:(t + 1) * H1]
    h1 = jnp.maximum(h1, 0.0)
    h2 = jnp.maximum(
        jnp.dot(h1, w2l_ref[...], preferred_element_type=f32) + b2l_ref[...],
        0.0)                                                          # (1, 64)
    out = jnp.dot(h2, w3l_ref[...], preferred_element_type=f32) + b3l_ref[...]
    out_ref[0] = out.astype(out_ref.dtype)                            # (1, 128)


# ---------------------------------------------------------------------------
# Parameter init (mimics nn.Module shapes) and BN folding
# ---------------------------------------------------------------------------
def init_params(key, input_channels=2, num_classes=1):
    keys = iter(jax.random.split(key, 24))

    def uni(shape, fan_in):
        bound = 1.0 / math.sqrt(fan_in)
        return jax.random.uniform(next(keys), shape, jnp.float32, -bound, bound)

    def bn(c):
        return (jax.random.uniform(next(keys), (c,), jnp.float32, 0.8, 1.2),
                jax.random.uniform(next(keys), (c,), jnp.float32, -0.1, 0.1),
                jax.random.uniform(next(keys), (c,), jnp.float32, -0.1, 0.1),
                jax.random.uniform(next(keys), (c,), jnp.float32, 0.5, 1.5))

    p = {}
    p["w1"], p["b1"] = uni((32, input_channels, 7), input_channels * 7), uni((32,), input_channels * 7)
    p["g1"], p["be1"], p["m1"], p["v1"] = bn(32)
    p["w2"], p["b2"] = uni((64, 32, 5), 32 * 5), uni((64,), 32 * 5)
    p["g2"], p["be2"], p["m2"], p["v2"] = bn(64)
    p["w3"], p["b3"] = uni((128, 64, 3), 64 * 3), uni((128,), 64 * 3)
    p["g3"], p["be3"], p["m3"], p["v3"] = bn(128)
    p["wl1"], p["bl1"] = uni((256, 128 * 8), 128 * 8), uni((256,), 128 * 8)
    p["wl2"], p["bl2"] = uni((64, 256), 256), uni((64,), 256)
    p["wl3"], p["bl3"] = uni((num_classes, 64), 64), uni((num_classes,), 64)
    return p


def _fold_bn(gamma, beta, mean, var, conv_bias):
    scale = gamma / jnp.sqrt(var + BN_EPS)
    shift = beta + (conv_bias - mean) * scale
    return scale[None, :].astype(jnp.float32), shift[None, :].astype(jnp.float32)


# ---------------------------------------------------------------------------
# Wrapper: host-side layout plumbing + pallas_call
# ---------------------------------------------------------------------------
@jax.jit
def two_channel_classifier_forward(x, p):
    B, cin, L = x.shape
    assert L % 16 == 0 and (L // 16) % 8 == 0
    L1, L2, T = L // 4, L // 16, 8
    nc = p["wl3"].shape[0]
    NOUT = ((nc + 127) // 128) * 128
    f32 = jnp.float32

    # sequence-major layout (B, L, C), pre-padded for conv1's 'same' padding
    K1 = p["w1"].shape[2]
    xp = jnp.pad(jnp.transpose(x, (0, 2, 1)).astype(f32),
                 ((0, 0), (K1 // 2, K1 // 2), (0, 0)))

    s1, t1 = _fold_bn(p["g1"], p["be1"], p["m1"], p["v1"], p["b1"])
    s2, t2 = _fold_bn(p["g2"], p["be2"], p["m2"], p["v2"], p["b2"])
    s3, t3 = _fold_bn(p["g3"], p["be3"], p["m3"], p["v3"], p["b3"])

    # tap-major conv weights: (K, Cin, Cout)
    w1 = jnp.transpose(p["w1"], (2, 1, 0)).astype(f32)
    w2 = jnp.transpose(p["w2"], (2, 1, 0)).astype(f32)
    w3 = jnp.transpose(p["w3"], (2, 1, 0)).astype(f32)

    # host-built (once) pool down-select and adaptive-avgpool matrices
    d1 = (jnp.arange(L)[None, :] == 4 * jnp.arange(L1)[:, None]).astype(f32)
    d2 = (jnp.arange(L1)[None, :] == 4 * jnp.arange(L2)[:, None]).astype(f32)
    kb = L2 // T
    a = (jnp.arange(L2)[None, :] // kb == jnp.arange(T)[:, None]).astype(f32) / kb

    # first Linear re-laid-out block-diagonally: wbd[c, t*256 + o] = wl1[o, c*8 + t]
    H1 = p["wl1"].shape[0]                     # 256
    C3 = p["w3"].shape[0]                      # 128
    wbd = jnp.transpose(p["wl1"].reshape(H1, C3, T), (1, 2, 0)).reshape(C3, T * H1).astype(f32)
    b1l = p["bl1"][None, :].astype(f32)
    w2l = p["wl2"].T.astype(f32)
    b2l = p["bl2"][None, :].astype(f32)
    w3l = jnp.zeros((p["wl2"].shape[0], NOUT), f32).at[:, :nc].set(p["wl3"].T)
    b3l = jnp.zeros((1, NOUT), f32).at[:, :nc].set(p["bl3"][None, :])

    args = (xp, w1, s1, t1, d1, w2, s2, t2, d2, w3, s3, t3, a,
            wbd, b1l, w2l, b2l, w3l, b3l)
    in_specs = [pl.BlockSpec((1,) + xp.shape[1:], lambda b: (b, 0, 0))]
    in_specs += [pl.BlockSpec(arr.shape, (lambda b, n=arr.ndim: (0,) * n))
                 for arr in args[1:]]

    out = pl.pallas_call(
        _fwd_kernel,
        out_shape=jax.ShapeDtypeStruct((B, 1, NOUT), f32),
        grid=(B,),
        in_specs=in_specs,
        out_specs=pl.BlockSpec((1, 1, NOUT), lambda b: (b, 0, 0)),
        scratch_shapes=[
            pltpu.VMEM((L + 8, p["w1"].shape[0]), f32),    # conv1 out (tail-zeroed)
            pltpu.VMEM((L1 + 4, p["w1"].shape[0]), f32),   # pooled1, zero-padded
            pltpu.VMEM((L1 + 8, p["w2"].shape[0]), f32),   # conv2 out (tail-zeroed)
            pltpu.VMEM((L2 + 2, p["w2"].shape[0]), f32),   # pooled2, zero-padded
        ],
        compiler_params=pltpu.CompilerParams(
            dimension_semantics=("parallel",)),
    )(*args)
    return out[:, 0, :nc]


# ---------------------------------------------------------------------------
# Pure-JAX reference (eval-mode PyTorch semantics) for verification
# ---------------------------------------------------------------------------
def reference_forward(x, p):
    def conv1d(h, w, b, pad):
        o = lax.conv_general_dilated(h, w, (1,), [(pad, pad)],
                                     dimension_numbers=("NCH", "OIH", "NCH"))
        return o + b[None, :, None]

    def bn(h, i):
        g, be, m, v = p[f"g{i}"], p[f"be{i}"], p[f"m{i}"], p[f"v{i}"]
        return ((h - m[None, :, None]) / jnp.sqrt(v[None, :, None] + BN_EPS)
                * g[None, :, None] + be[None, :, None])

    def maxpool(h, k):
        B, C, L = h.shape
        return h.reshape(B, C, L // k, k).max(axis=-1)

    h = maxpool(jnp.maximum(bn(conv1d(x, p["w1"], p["b1"], 3), 1), 0.0), 4)
    h = maxpool(jnp.maximum(bn(conv1d(h, p["w2"], p["b2"], 2), 2), 0.0), 4)
    h = jnp.maximum(bn(conv1d(h, p["w3"], p["b3"], 1), 3), 0.0)
    B, C, L = h.shape
    h = h.reshape(B, C, 8, L // 8).mean(axis=-1)        # AdaptiveAvgPool1d(8)
    f = h.reshape(B, -1)
    h1 = jnp.maximum(f @ p["wl1"].T + p["bl1"], 0.0)
    h2 = jnp.maximum(h1 @ p["wl2"].T + p["bl2"], 0.0)
    return h2 @ p["wl3"].T + p["bl3"]


if __name__ == "__main__":
    key = jax.random.PRNGKey(0)
    pkey, xkey = jax.random.split(key)
    params = init_params(pkey, input_channels=2, num_classes=1)
    x = jax.random.normal(xkey, (2, 2, 256), jnp.float32)   # (B, C, L)

    out = jax.block_until_ready(two_channel_classifier_forward(x, params))
    ref = reference_forward(x, params)

    assert out.shape == (2, 1)
    assert bool(jnp.all(jnp.isfinite(out)))
    assert jnp.allclose(out, ref, atol=1e-2, rtol=1e-2)
    print("KERNEL_OK")
</pallas_src>

<mosaic_0001>
module attributes {stable_mosaic.version = 11 : i64} {
  func.func @_fwd_kernel(%arg0: i32, %arg1: memref<1x262x2xf32, #tpu.memory_space<vmem>>, %arg2: memref<7x2x32xf32, #tpu.memory_space<vmem>>, %arg3: memref<1x32xf32, #tpu.memory_space<vmem>>, %arg4: memref<1x32xf32, #tpu.memory_space<vmem>>, %arg5: memref<64x256xf32, #tpu.memory_space<vmem>>, %arg6: memref<5x32x64xf32, #tpu.memory_space<vmem>>, %arg7: memref<1x64xf32, #tpu.memory_space<vmem>>, %arg8: memref<1x64xf32, #tpu.memory_space<vmem>>, %arg9: memref<16x64xf32, #tpu.memory_space<vmem>>, %arg10: memref<3x64x128xf32, #tpu.memory_space<vmem>>, %arg11: memref<1x128xf32, #tpu.memory_space<vmem>>, %arg12: memref<1x128xf32, #tpu.memory_space<vmem>>, %arg13: memref<8x16xf32, #tpu.memory_space<vmem>>, %arg14: memref<128x2048xf32, #tpu.memory_space<vmem>>, %arg15: memref<1x256xf32, #tpu.memory_space<vmem>>, %arg16: memref<256x64xf32, #tpu.memory_space<vmem>>, %arg17: memref<1x64xf32, #tpu.memory_space<vmem>>, %arg18: memref<64x128xf32, #tpu.memory_space<vmem>>, %arg19: memref<1x128xf32, #tpu.memory_space<vmem>>, %arg20: memref<1x1x128xf32, #tpu.memory_space<vmem>>, %arg21: memref<264x32xf32, #tpu.memory_space<vmem>>, %arg22: memref<68x32xf32, #tpu.memory_space<vmem>>, %arg23: memref<72x64xf32, #tpu.memory_space<vmem>>, %arg24: memref<18x64xf32, #tpu.memory_space<vmem>>) attributes {dimension_semantics = [#tpu.dimension_semantics<parallel>], iteration_bounds = array<i64: 2>, scalar_prefetch = 0 : i64, scratch_operands = 4 : i64, tpu.core_type = #tpu.core_type<tc>, window_params = [{transform_indices = @transform_0, window_bounds = array<i64: 1, 262, 2>}, {pipeline_mode = #tpu.pipeline_mode<synchronous>, transform_indices = @transform_1, window_bounds = array<i64: 7, 2, 32>}, {pipeline_mode = #tpu.pipeline_mode<synchronous>, transform_indices = @transform_2, window_bounds = array<i64: 1, 32>}, {pipeline_mode = #tpu.pipeline_mode<synchronous>, transform_indices = @transform_3, window_bounds = array<i64: 1, 32>}, {pipeline_mode = #tpu.pipeline_mode<synchronous>, transform_indices = @transform_4, window_bounds = array<i64: 64, 256>}, {pipeline_mode = #tpu.pipeline_mode<synchronous>, transform_indices = @transform_5, window_bounds = array<i64: 5, 32, 64>}, {pipeline_mode = #tpu.pipeline_mode<synchronous>, transform_indices = @transform_6, window_bounds = array<i64: 1, 64>}, {pipeline_mode = #tpu.pipeline_mode<synchronous>, transform_indices = @transform_7, window_bounds = array<i64: 1, 64>}, {pipeline_mode = #tpu.pipeline_mode<synchronous>, transform_indices = @transform_8, window_bounds = array<i64: 16, 64>}, {pipeline_mode = #tpu.pipeline_mode<synchronous>, transform_indices = @transform_9, window_bounds = array<i64: 3, 64, 128>}, {pipeline_mode = #tpu.pipeline_mode<synchronous>, transform_indices = @transform_10, window_bounds = array<i64: 1, 128>}, {pipeline_mode = #tpu.pipeline_mode<synchronous>, transform_indices = @transform_11, window_bounds = array<i64: 1, 128>}, {pipeline_mode = #tpu.pipeline_mode<synchronous>, transform_indices = @transform_12, window_bounds = array<i64: 8, 16>}, {pipeline_mode = #tpu.pipeline_mode<synchronous>, transform_indices = @transform_13, window_bounds = array<i64: 128, 2048>}, {pipeline_mode = #tpu.pipeline_mode<synchronous>, transform_indices = @transform_14, window_bounds = array<i64: 1, 256>}, {pipeline_mode = #tpu.pipeline_mode<synchronous>, transform_indices = @transform_15, window_bounds = array<i64: 256, 64>}, {pipeline_mode = #tpu.pipeline_mode<synchronous>, transform_indices = @transform_16, window_bounds = array<i64: 1, 64>}, {pipeline_mode = #tpu.pipeline_mode<synchronous>, transform_indices = @transform_17, window_bounds = array<i64: 64, 128>}, {pipeline_mode = #tpu.pipeline_mode<synchronous>, transform_indices = @transform_18, window_bounds = array<i64: 1, 128>}, {transform_indices = @transform_19, window_bounds = array<i64: 1, 1, 128>}]} {
    %c0 = arith.constant 0 : index
    %c0_0 = arith.constant 0 : index
    %c0_1 = arith.constant 0 : index
    %0 = vector.load %arg1[%c0, %c0_0, %c0_1] : memref<1x262x2xf32, #tpu.memory_space<vmem>>, vector<1x256x2xf32>
    %1 = vector.shape_cast %0 : vector<1x256x2xf32> to vector<256x2xf32>
    %c0_2 = arith.constant 0 : index
    %c0_3 = arith.constant 0 : index
    %c0_4 = arith.constant 0 : index
    %2 = vector.load %arg2[%c0_2, %c0_3, %c0_4] : memref<7x2x32xf32, #tpu.memory_space<vmem>>, vector<1x2x32xf32>
    %3 = vector.shape_cast %2 : vector<1x2x32xf32> to vector<2x32xf32>
    %cst = arith.constant dense<0.000000e+00> : vector<256x32xf32>
    %4 = tpu.matmul %1, %3, %cst {dimension_numbers = #tpu.dot_dimension_numbers<[1], [0], [0], [1], [0, 0, 1, 1], [], []>} : vector<256x2xf32>, vector<2x32xf32>, vector<256x32xf32> -> vector<256x32xf32>
    %c0_5 = arith.constant 0 : index
    %c1 = arith.constant 1 : index
    %c0_6 = arith.constant 0 : index
    %5 = vector.load %arg1[%c0_5, %c1, %c0_6] : memref<1x262x2xf32, #tpu.memory_space<vmem>>, vector<1x256x2xf32>
    %6 = vector.shape_cast %5 : vector<1x256x2xf32> to vector<256x2xf32>
    %c1_7 = arith.constant 1 : index
    %c0_8 = arith.constant 0 : index
    %c0_9 = arith.constant 0 : index
    %7 = vector.load %arg2[%c1_7, %c0_8, %c0_9] : memref<7x2x32xf32, #tpu.memory_space<vmem>>, vector<1x2x32xf32>
    %8 = vector.shape_cast %7 : vector<1x2x32xf32> to vector<2x32xf32>
    %cst_10 = arith.constant dense<0.000000e+00> : vector<256x32xf32>
    %9 = tpu.matmul %6, %8, %cst_10 {dimension_numbers = #tpu.dot_dimension_numbers<[1], [0], [0], [1], [0, 0, 1, 1], [], []>} : vector<256x2xf32>, vector<2x32xf32>, vector<256x32xf32> -> vector<256x32xf32>
    %10 = arith.addf %4, %9 : vector<256x32xf32>
    %c0_11 = arith.constant 0 : index
    %c2 = arith.constant 2 : index
    %c0_12 = arith.constant 0 : index
    %11 = vector.load %arg1[%c0_11, %c2, %c0_12] : memref<1x262x2xf32, #tpu.memory_space<vmem>>, vector<1x256x2xf32>
    %12 = vector.shape_cast %11 : vector<1x256x2xf32> to vector<256x2xf32>
    %c2_13 = arith.constant 2 : index
    %c0_14 = arith.constant 0 : index
    %c0_15 = arith.constant 0 : index
    %13 = vector.load %arg2[%c2_13, %c0_14, %c0_15] : memref<7x2x32xf32, #tpu.memory_space<vmem>>, vector<1x2x32xf32>
    %14 = vector.shape_cast %13 : vector<1x2x32xf32> to vector<2x32xf32>
    %cst_16 = arith.constant dense<0.000000e+00> : vector<256x32xf32>
    %15 = tpu.matmul %12, %14, %cst_16 {dimension_numbers = #tpu.dot_dimension_numbers<[1], [0], [0], [1], [0, 0, 1, 1], [], []>} : vector<256x2xf32>, vector<2x32xf32>, vector<256x32xf32> -> vector<256x32xf32>
    %16 = arith.addf %10, %15 : vector<256x32xf32>
    %c0_17 = arith.constant 0 : index
    %c3 = arith.constant 3 : index
    %c0_18 = arith.constant 0 : index
    %17 = vector.load %arg1[%c0_17, %c3, %c0_18] : memref<1x262x2xf32, #tpu.memory_space<vmem>>, vector<1x256x2xf32>
    %18 = vector.shape_cast %17 : vector<1x256x2xf32> to vector<256x2xf32>
    %c3_19 = arith.constant 3 : index
    %c0_20 = arith.constant 0 : index
    %c0_21 = arith.constant 0 : index
    %19 = vector.load %arg2[%c3_19, %c0_20, %c0_21] : memref<7x2x32xf32, #tpu.memory_space<vmem>>, vector<1x2x32xf32>
    %20 = vector.shape_cast %19 : vector<1x2x32xf32> to vector<2x32xf32>
    %cst_22 = arith.constant dense<0.000000e+00> : vector<256x32xf32>
    %21 = tpu.matmul %18, %20, %cst_22 {dimension_numbers = #tpu.dot_dimension_numbers<[1], [0], [0], [1], [0, 0, 1, 1], [], []>} : vector<256x2xf32>, vector<2x32xf32>, vector<256x32xf32> -> vector<256x32xf32>
    %22 = arith.addf %16, %21 : vector<256x32xf32>
    %c0_23 = arith.constant 0 : index
    %c4 = arith.constant 4 : index
    %c0_24 = arith.constant 0 : index
    %23 = vector.load %arg1[%c0_23, %c4, %c0_24] : memref<1x262x2xf32, #tpu.memory_space<vmem>>, vector<1x256x2xf32>
    %24 = vector.shape_cast %23 : vector<1x256x2xf32> to vector<256x2xf32>
    %c4_25 = arith.constant 4 : index
    %c0_26 = arith.constant 0 : index
    %c0_27 = arith.constant 0 : index
    %25 = vector.load %arg2[%c4_25, %c0_26, %c0_27] : memref<7x2x32xf32, #tpu.memory_space<vmem>>, vector<1x2x32xf32>
    %26 = vector.shape_cast %25 : vector<1x2x32xf32> to vector<2x32xf32>
    %cst_28 = arith.constant dense<0.000000e+00> : vector<256x32xf32>
    %27 = tpu.matmul %24, %26, %cst_28 {dimension_numbers = #tpu.dot_dimension_numbers<[1], [0], [0], [1], [0, 0, 1, 1], [], []>} : vector<256x2xf32>, vector<2x32xf32>, vector<256x32xf32> -> vector<256x32xf32>
    %28 = arith.addf %22, %27 : vector<256x32xf32>
    %c0_29 = arith.constant 0 : index
    %c5 = arith.constant 5 : index
    %c0_30 = arith.constant 0 : index
    %29 = vector.load %arg1[%c0_29, %c5, %c0_30] : memref<1x262x2xf32, #tpu.memory_space<vmem>>, vector<1x256x2xf32>
    %30 = vector.shape_cast %29 : vector<1x256x2xf32> to vector<256x2xf32>
    %c5_31 = arith.constant 5 : index
    %c0_32 = arith.constant 0 : index
    %c0_33 = arith.constant 0 : index
    %31 = vector.load %arg2[%c5_31, %c0_32, %c0_33] : memref<7x2x32xf32, #tpu.memory_space<vmem>>, vector<1x2x32xf32>
    %32 = vector.shape_cast %31 : vector<1x2x32xf32> to vector<2x32xf32>
    %cst_34 = arith.constant dense<0.000000e+00> : vector<256x32xf32>
    %33 = tpu.matmul %30, %32, %cst_34 {dimension_numbers = #tpu.dot_dimension_numbers<[1], [0], [0], [1], [0, 0, 1, 1], [], []>} : vector<256x2xf32>, vector<2x32xf32>, vector<256x32xf32> -> vector<256x32xf32>
    %34 = arith.addf %28, %33 : vector<256x32xf32>
    %c0_35 = arith.constant 0 : index
    %c6 = arith.constant 6 : index
    %c0_36 = arith.constant 0 : index
    %35 = vector.load %arg1[%c0_35, %c6, %c0_36] : memref<1x262x2xf32, #tpu.memory_space<vmem>>, vector<1x256x2xf32>
    %36 = vector.shape_cast %35 : vector<1x256x2xf32> to vector<256x2xf32>
    %c6_37 = arith.constant 6 : index
    %c0_38 = arith.constant 0 : index
    %c0_39 = arith.constant 0 : index
    %37 = vector.load %arg2[%c6_37, %c0_38, %c0_39] : memref<7x2x32xf32, #tpu.memory_space<vmem>>, vector<1x2x32xf32>
    %38 = vector.shape_cast %37 : vector<1x2x32xf32> to vector<2x32xf32>
    %cst_40 = arith.constant dense<0.000000e+00> : vector<256x32xf32>
    %39 = tpu.matmul %36, %38, %cst_40 {dimension_numbers = #tpu.dot_dimension_numbers<[1], [0], [0], [1], [0, 0, 1, 1], [], []>} : vector<256x2xf32>, vector<2x32xf32>, vector<256x32xf32> -> vector<256x32xf32>
    %40 = arith.addf %34, %39 : vector<256x32xf32>
    %c0_41 = arith.constant 0 : index
    %c0_42 = arith.constant 0 : index
    %41 = vector.load %arg3[%c0_41, %c0_42] : memref<1x32xf32, #tpu.memory_space<vmem>>, vector<1x32xf32>
    %42 = vector.broadcast %41 : vector<1x32xf32> to vector<256x32xf32>
    %43 = arith.mulf %40, %42 : vector<256x32xf32>
    %c0_43 = arith.constant 0 : index
    %c0_44 = arith.constant 0 : index
    %44 = vector.load %arg4[%c0_43, %c0_44] : memref<1x32xf32, #tpu.memory_space<vmem>>, vector<1x32xf32>
    %45 = vector.broadcast %44 : vector<1x32xf32> to vector<256x32xf32>
    %46 = arith.addf %43, %45 : vector<256x32xf32>
    %cst_45 = arith.constant 0.000000e+00 : f32
    %47 = vector.broadcast %cst_45 : f32 to vector<256x32xf32>
    %48 = arith.maximumf %46, %47 : vector<256x32xf32>
    %c0_46 = arith.constant 0 : index
    %c0_47 = arith.constant 0 : index
    %49 = vector.load %arg21[%c0_46, %c0_47] : memref<264x32xf32, #tpu.memory_space<vmem>>, vector<256x32xf32>
    tpu.vector_store %arg21[%c0_46, %c0_47], %48 {strides = array<i32>} : memref<264x32xf32, #tpu.memory_space<vmem>>, vector<256x32xf32>,
    %cst_48 = arith.constant 0.000000e+00 : f32
    %50 = vector.broadcast %cst_48 : f32 to vector<8x32xf32>
    %c256 = arith.constant 256 : index
    %c0_49 = arith.constant 0 : index
    %51 = vector.load %arg21[%c256, %c0_49] : memref<264x32xf32, #tpu.memory_space<vmem>>, vector<8x32xf32>
    tpu.vector_store %arg21[%c256, %c0_49], %50 {strides = array<i32>} : memref<264x32xf32, #tpu.memory_space<vmem>>, vector<8x32xf32>,
    %c0_50 = arith.constant 0 : index
    %c0_51 = arith.constant 0 : index
    %52 = vector.load %arg21[%c0_50, %c0_51] : memref<264x32xf32, #tpu.memory_space<vmem>>, vector<256x32xf32>
    %c1_52 = arith.constant 1 : index
    %c0_53 = arith.constant 0 : index
    %53 = vector.load %arg21[%c1_52, %c0_53] : memref<264x32xf32, #tpu.memory_space<vmem>>, vector<256x32xf32>
    %54 = arith.maximumf %52, %53 : vector<256x32xf32>
    %c2_54 = arith.constant 2 : index
    %c0_55 = arith.constant 0 : index
    %55 = vector.load %arg21[%c2_54, %c0_55] : memref<264x32xf32, #tpu.memory_space<vmem>>, vector<256x32xf32>
    %56 = arith.maximumf %54, %55 : vector<256x32xf32>
    %c3_56 = arith.constant 3 : index
    %c0_57 = arith.constant 0 : index
    %57 = vector.load %arg21[%c3_56, %c0_57] : memref<264x32xf32, #tpu.memory_space<vmem>>, vector<256x32xf32>
    %58 = arith.maximumf %56, %57 : vector<256x32xf32>
    %c0_58 = arith.constant 0 : index
    %c0_59 = arith.constant 0 : index
    %59 = vector.load %arg5[%c0_58, %c0_59] : memref<64x256xf32, #tpu.memory_space<vmem>>, vector<64x256xf32>
    %cst_60 = arith.constant dense<0.000000e+00> : vector<64x32xf32>
    %60 = tpu.matmul %59, %58, %cst_60 {dimension_numbers = #tpu.dot_dimension_numbers<[1], [0], [0], [1], [0, 0, 1, 1], [], []>} : vector<64x256xf32>, vector<256x32xf32>, vector<64x32xf32> -> vector<64x32xf32>
    %cst_61 = arith.constant 0.000000e+00 : f32
    %61 = vector.broadcast %cst_61 : f32 to vector<68x32xf32>
    %c0_62 = arith.constant 0 : index
    %c0_63 = arith.constant 0 : index
    %62 = vector.load %arg22[%c0_62, %c0_63] : memref<68x32xf32, #tpu.memory_space<vmem>>, vector<68x32xf32>
    tpu.vector_store %arg22[%c0_62, %c0_63], %61 {strides = array<i32>} : memref<68x32xf32, #tpu.memory_space<vmem>>, vector<68x32xf32>,
    %c2_64 = arith.constant 2 : index
    %c0_65 = arith.constant 0 : index
    %63 = vector.load %arg22[%c2_64, %c0_65] : memref<68x32xf32, #tpu.memory_space<vmem>>, vector<64x32xf32>
    tpu.vector_store %arg22[%c2_64, %c0_65], %60 {strides = array<i32>} : memref<68x32xf32, #tpu.memory_space<vmem>>, vector<64x32xf32>,
    %c0_66 = arith.constant 0 : index
    %c0_67 = arith.constant 0 : index
    %64 = vector.load %arg22[%c0_66, %c0_67] : memref<68x32xf32, #tpu.memory_space<vmem>>, vector<64x32xf32>
    %c0_68 = arith.constant 0 : index
    %c0_69 = arith.constant 0 : index
    %c0_70 = arith.constant 0 : index
    %65 = vector.load %arg6[%c0_68, %c0_69, %c0_70] : memref<5x32x64xf32, #tpu.memory_space<vmem>>, vector<1x32x64xf32>
    %66 = vector.shape_cast %65 : vector<1x32x64xf32> to vector<32x64xf32>
    %cst_71 = arith.constant dense<0.000000e+00> : vector<64x64xf32>
    %67 = tpu.matmul %64, %66, %cst_71 {dimension_numbers = #tpu.dot_dimension_numbers<[1], [0], [0], [1], [0, 0, 1, 1], [], []>} : vector<64x32xf32>, vector<32x64xf32>, vector<64x64xf32> -> vector<64x64xf32>
    %c1_72 = arith.constant 1 : index
    %c0_73 = arith.constant 0 : index
    %68 = vector.load %arg22[%c1_72, %c0_73] : memref<68x32xf32, #tpu.memory_space<vmem>>, vector<64x32xf32>
    %c1_74 = arith.constant 1 : index
    %c0_75 = arith.constant 0 : index
    %c0_76 = arith.constant 0 : index
    %69 = vector.load %arg6[%c1_74, %c0_75, %c0_76] : memref<5x32x64xf32, #tpu.memory_space<vmem>>, vector<1x32x64xf32>
    %70 = vector.shape_cast %69 : vector<1x32x64xf32> to vector<32x64xf32>
    %cst_77 = arith.constant dense<0.000000e+00> : vector<64x64xf32>
    %71 = tpu.matmul %68, %70, %cst_77 {dimension_numbers = #tpu.dot_dimension_numbers<[1], [0], [0], [1], [0, 0, 1, 1], [], []>} : vector<64x32xf32>, vector<32x64xf32>, vector<64x64xf32> -> vector<64x64xf32>
    %72 = arith.addf %67, %71 : vector<64x64xf32>
    %c2_78 = arith.constant 2 : index
    %c0_79 = arith.constant 0 : index
    %73 = vector.load %arg22[%c2_78, %c0_79] : memref<68x32xf32, #tpu.memory_space<vmem>>, vector<64x32xf32>
    %c2_80 = arith.constant 2 : index
    %c0_81 = arith.constant 0 : index
    %c0_82 = arith.constant 0 : index
    %74 = vector.load %arg6[%c2_80, %c0_81, %c0_82] : memref<5x32x64xf32, #tpu.memory_space<vmem>>, vector<1x32x64xf32>
    %75 = vector.shape_cast %74 : vector<1x32x64xf32> to vector<32x64xf32>
    %cst_83 = arith.constant dense<0.000000e+00> : vector<64x64xf32>
    %76 = tpu.matmul %73, %75, %cst_83 {dimension_numbers = #tpu.dot_dimension_numbers<[1], [0], [0], [1], [0, 0, 1, 1], [], []>} : vector<64x32xf32>, vector<32x64xf32>, vector<64x64xf32> -> vector<64x64xf32>
    %77 = arith.addf %72, %76 : vector<64x64xf32>
    %c3_84 = arith.constant 3 : index
    %c0_85 = arith.constant 0 : index
    %78 = vector.load %arg22[%c3_84, %c0_85] : memref<68x32xf32, #tpu.memory_space<vmem>>, vector<64x32xf32>
    %c3_86 = arith.constant 3 : index
    %c0_87 = arith.constant 0 : index
    %c0_88 = arith.constant 0 : index
    %79 = vector.load %arg6[%c3_86, %c0_87, %c0_88] : memref<5x32x64xf32, #tpu.memory_space<vmem>>, vector<1x32x64xf32>
    %80 = vector.shape_cast %79 : vector<1x32x64xf32> to vector<32x64xf32>
    %cst_89 = arith.constant dense<0.000000e+00> : vector<64x64xf32>
    %81 = tpu.matmul %78, %80, %cst_89 {dimension_numbers = #tpu.dot_dimension_numbers<[1], [0], [0], [1], [0, 0, 1, 1], [], []>} : vector<64x32xf32>, vector<32x64xf32>, vector<64x64xf32> -> vector<64x64xf32>
    %82 = arith.addf %77, %81 : vector<64x64xf32>
    %c4_90 = arith.constant 4 : index
    %c0_91 = arith.constant 0 : index
    %83 = vector.load %arg22[%c4_90, %c0_91] : memref<68x32xf32, #tpu.memory_space<vmem>>, vector<64x32xf32>
    %c4_92 = arith.constant 4 : index
    %c0_93 = arith.constant 0 : index
    %c0_94 = arith.constant 0 : index
    %84 = vector.load %arg6[%c4_92, %c0_93, %c0_94] : memref<5x32x64xf32, #tpu.memory_space<vmem>>, vector<1x32x64xf32>
    %85 = vector.shape_cast %84 : vector<1x32x64xf32> to vector<32x64xf32>
    %cst_95 = arith.constant dense<0.000000e+00> : vector<64x64xf32>
    %86 = tpu.matmul %83, %85, %cst_95 {dimension_numbers = #tpu.dot_dimension_numbers<[1], [0], [0], [1], [0, 0, 1, 1], [], []>} : vector<64x32xf32>, vector<32x64xf32>, vector<64x64xf32> -> vector<64x64xf32>
    %87 = arith.addf %82, %86 : vector<64x64xf32>
    %c0_96 = arith.constant 0 : index
    %c0_97 = arith.constant 0 : index
    %88 = vector.load %arg7[%c0_96, %c0_97] : memref<1x64xf32, #tpu.memory_space<vmem>>, vector<1x64xf32>
    %89 = vector.broadcast %88 : vector<1x64xf32> to vector<64x64xf32>
    %90 = arith.mulf %87, %89 : vector<64x64xf32>
    %c0_98 = arith.constant 0 : index
    %c0_99 = arith.constant 0 : index
    %91 = vector.load %arg8[%c0_98, %c0_99] : memref<1x64xf32, #tpu.memory_space<vmem>>, vector<1x64xf32>
    %92 = vector.broadcast %91 : vector<1x64xf32> to vector<64x64xf32>
    %93 = arith.addf %90, %92 : vector<64x64xf32>
    %cst_100 = arith.constant 0.000000e+00 : f32
    %94 = vector.broadcast %cst_100 : f32 to vector<64x64xf32>
    %95 = arith.maximumf %93, %94 : vector<64x64xf32>
    %c0_101 = arith.constant 0 : index
    %c0_102 = arith.constant 0 : index
    %96 = vector.load %arg23[%c0_101, %c0_102] : memref<72x64xf32, #tpu.memory_space<vmem>>, vector<64x64xf32>
    tpu.vector_store %arg23[%c0_101, %c0_102], %95 {strides = array<i32>} : memref<72x64xf32, #tpu.memory_space<vmem>>, vector<64x64xf32>,
    %cst_103 = arith.constant 0.000000e+00 : f32
    %97 = vector.broadcast %cst_103 : f32 to vector<8x64xf32>
    %c64 = arith.constant 64 : index
    %c0_104 = arith.constant 0 : index
    %98 = vector.load %arg23[%c64, %c0_104] : memref<72x64xf32, #tpu.memory_space<vmem>>, vector<8x64xf32>
    tpu.vector_store %arg23[%c64, %c0_104], %97 {strides = array<i32>} : memref<72x64xf32, #tpu.memory_space<vmem>>, vector<8x64xf32>,
    %c0_105 = arith.constant 0 : index
    %c0_106 = arith.constant 0 : index
    %99 = vector.load %arg23[%c0_105, %c0_106] : memref<72x64xf32, #tpu.memory_space<vmem>>, vector<64x64xf32>
    %c1_107 = arith.constant 1 : index
    %c0_108 = arith.constant 0 : index
    %100 = vector.load %arg23[%c1_107, %c0_108] : memref<72x64xf32, #tpu.memory_space<vmem>>, vector<64x64xf32>
    %101 = arith.maximumf %99, %100 : vector<64x64xf32>
    %c2_109 = arith.constant 2 : index
    %c0_110 = arith.constant 0 : index
    %102 = vector.load %arg23[%c2_109, %c0_110] : memref<72x64xf32, #tpu.memory_space<vmem>>, vector<64x64xf32>
    %103 = arith.maximumf %101, %102 : vector<64x64xf32>
    %c3_111 = arith.constant 3 : index
    %c0_112 = arith.constant 0 : index
    %104 = vector.load %arg23[%c3_111, %c0_112] : memref<72x64xf32, #tpu.memory_space<vmem>>, vector<64x64xf32>
    %105 = arith.maximumf %103, %104 : vector<64x64xf32>
    %c0_113 = arith.constant 0 : index
    %c0_114 = arith.constant 0 : index
    %106 = vector.load %arg9[%c0_113, %c0_114] : memref<16x64xf32, #tpu.memory_space<vmem>>, vector<16x64xf32>
    %cst_115 = arith.constant dense<0.000000e+00> : vector<16x64xf32>
    %107 = tpu.matmul %106, %105, %cst_115 {dimension_numbers = #tpu.dot_dimension_numbers<[1], [0], [0], [1], [0, 0, 1, 1], [], []>} : vector<16x64xf32>, vector<64x64xf32>, vector<16x64xf32> -> vector<16x64xf32>
    %cst_116 = arith.constant 0.000000e+00 : f32
    %108 = vector.broadcast %cst_116 : f32 to vector<18x64xf32>
    %c0_117 = arith.constant 0 : index
    %c0_118 = arith.constant 0 : index
    %109 = vector.load %arg24[%c0_117, %c0_118] : memref<18x64xf32, #tpu.memory_space<vmem>>, vector<18x64xf32>
    tpu.vector_store %arg24[%c0_117, %c0_118], %108 {strides = array<i32>} : memref<18x64xf32, #tpu.memory_space<vmem>>, vector<18x64xf32>,
    %c1_119 = arith.constant 1 : index
    %c0_120 = arith.constant 0 : index
    %110 = vector.load %arg24[%c1_119, %c0_120] : memref<18x64xf32, #tpu.memory_space<vmem>>, vector<16x64xf32>
    tpu.vector_store %arg24[%c1_119, %c0_120], %107 {strides = array<i32>} : memref<18x64xf32, #tpu.memory_space<vmem>>, vector<16x64xf32>,
    %c0_121 = arith.constant 0 : index
    %c0_122 = arith.constant 0 : index
    %111 = vector.load %arg24[%c0_121, %c0_122] : memref<18x64xf32, #tpu.memory_space<vmem>>, vector<16x64xf32>
    %c0_123 = arith.constant 0 : index
    %c0_124 = arith.constant 0 : index
    %c0_125 = arith.constant 0 : index
    %112 = vector.load %arg10[%c0_123, %c0_124, %c0_125] : memref<3x64x128xf32, #tpu.memory_space<vmem>>, vector<1x64x128xf32>
    %113 = vector.shape_cast %112 : vector<1x64x128xf32> to vector<64x128xf32>
    %cst_126 = arith.constant dense<0.000000e+00> : vector<16x128xf32>
    %114 = tpu.matmul %111, %113, %cst_126 {dimension_numbers = #tpu.dot_dimension_numbers<[1], [0], [0], [1], [0, 0, 1, 1], [], []>} : vector<16x64xf32>, vector<64x128xf32>, vector<16x128xf32> -> vector<16x128xf32>
    %c1_127 = arith.constant 1 : index
    %c0_128 = arith.constant 0 : index
    %115 = vector.load %arg24[%c1_127, %c0_128] : memref<18x64xf32, #tpu.memory_space<vmem>>, vector<16x64xf32>
    %c1_129 = arith.constant 1 : index
    %c0_130 = arith.constant 0 : index
    %c0_131 = arith.constant 0 : index
    %116 = vector.load %arg10[%c1_129, %c0_130, %c0_131] : memref<3x64x128xf32, #tpu.memory_space<vmem>>, vector<1x64x128xf32>
    %117 = vector.shape_cast %116 : vector<1x64x128xf32> to vector<64x128xf32>
    %cst_132 = arith.constant dense<0.000000e+00> : vector<16x128xf32>
    %118 = tpu.matmul %115, %117, %cst_132 {dimension_numbers = #tpu.dot_dimension_numbers<[1], [0], [0], [1], [0, 0, 1, 1], [], []>} : vector<16x64xf32>, vector<64x128xf32>, vector<16x128xf32> -> vector<16x128xf32>
    %119 = arith.addf %114, %118 : vector<16x128xf32>
    %c2_133 = arith.constant 2 : index
    %c0_134 = arith.constant 0 : index
    %120 = vector.load %arg24[%c2_133, %c0_134] : memref<18x64xf32, #tpu.memory_space<vmem>>, vector<16x64xf32>
    %c2_135 = arith.constant 2 : index
    %c0_136 = arith.constant 0 : index
    %c0_137 = arith.constant 0 : index
    %121 = vector.load %arg10[%c2_135, %c0_136, %c0_137] : memref<3x64x128xf32, #tpu.memory_space<vmem>>, vector<1x64x128xf32>
    %122 = vector.shape_cast %121 : vector<1x64x128xf32> to vector<64x128xf32>
    %cst_138 = arith.constant dense<0.000000e+00> : vector<16x128xf32>
    %123 = tpu.matmul %120, %122, %cst_138 {dimension_numbers = #tpu.dot_dimension_numbers<[1], [0], [0], [1], [0, 0, 1, 1], [], []>} : vector<16x64xf32>, vector<64x128xf32>, vector<16x128xf32> -> vector<16x128xf32>
    %124 = arith.addf %119, %123 : vector<16x128xf32>
    %c0_139 = arith.constant 0 : index
    %c0_140 = arith.constant 0 : index
    %125 = vector.load %arg11[%c0_139, %c0_140] : memref<1x128xf32, #tpu.memory_space<vmem>>, vector<1x128xf32>
    %126 = vector.broadcast %125 : vector<1x128xf32> to vector<16x128xf32>
    %127 = arith.mulf %124, %126 : vector<16x128xf32>
    %c0_141 = arith.constant 0 : index
    %c0_142 = arith.constant 0 : index
    %128 = vector.load %arg12[%c0_141, %c0_142] : memref<1x128xf32, #tpu.memory_space<vmem>>, vector<1x128xf32>
    %129 = vector.broadcast %128 : vector<1x128xf32> to vector<16x128xf32>
    %130 = arith.addf %127, %129 : vector<16x128xf32>
    %cst_143 = arith.constant 0.000000e+00 : f32
    %131 = vector.broadcast %cst_143 : f32 to vector<16x128xf32>
    %132 = arith.maximumf %130, %131 : vector<16x128xf32>
    %c0_144 = arith.constant 0 : index
    %c0_145 = arith.constant 0 : index
    %133 = vector.load %arg13[%c0_144, %c0_145] : memref<8x16xf32, #tpu.memory_space<vmem>>, vector<8x16xf32>
    %cst_146 = arith.constant dense<0.000000e+00> : vector<8x128xf32>
    %134 = tpu.matmul %133, %132, %cst_146 {dimension_numbers = #tpu.dot_dimension_numbers<[1], [0], [0], [1], [0, 0, 1, 1], [], []>} : vector<8x16xf32>, vector<16x128xf32>, vector<8x128xf32> -> vector<8x128xf32>
    %c0_147 = arith.constant 0 : index
    %c0_148 = arith.constant 0 : index
    %135 = vector.load %arg14[%c0_147, %c0_148] : memref<128x2048xf32, #tpu.memory_space<vmem>>, vector<128x2048xf32>
    %cst_149 = arith.constant dense<0.000000e+00> : vector<8x2048xf32>
    %136 = tpu.matmul %134, %135, %cst_149 {dimension_numbers = #tpu.dot_dimension_numbers<[1], [0], [0], [1], [0, 0, 1, 1], [], []>} : vector<8x128xf32>, vector<128x2048xf32>, vector<8x2048xf32> -> vector<8x2048xf32>
    %c0_150 = arith.constant 0 : index
    %c0_151 = arith.constant 0 : index
    %137 = vector.load %arg15[%c0_150, %c0_151] : memref<1x256xf32, #tpu.memory_space<vmem>>, vector<1x256xf32>
    %138 = vector.extract_strided_slice %136 {offsets = [0, 0], sizes = [1, 256], strides = [1, 1]} : vector<8x2048xf32> to vector<1x256xf32>
    %139 = arith.addf %137, %138 : vector<1x256xf32>
    %140 = vector.extract_strided_slice %136 {offsets = [1, 256], sizes = [1, 256], strides = [1, 1]} : vector<8x2048xf32> to vector<1x256xf32>
    %141 = arith.addf %139, %140 : vector<1x256xf32>
    %142 = vector.extract_strided_slice %136 {offsets = [2, 512], sizes = [1, 256], strides = [1, 1]} : vector<8x2048xf32> to vector<1x256xf32>
    %143 = arith.addf %141, %142 : vector<1x256xf32>
    %144 = vector.extract_strided_slice %136 {offsets = [3, 768], sizes = [1, 256], strides = [1, 1]} : vector<8x2048xf32> to vector<1x256xf32>
    %145 = arith.addf %143, %144 : vector<1x256xf32>
    %146 = vector.extract_strided_slice %136 {offsets = [4, 1024], sizes = [1, 256], strides = [1, 1]} : vector<8x2048xf32> to vector<1x256xf32>
    %147 = arith.addf %145, %146 : vector<1x256xf32>
    %148 = vector.extract_strided_slice %136 {offsets = [5, 1280], sizes = [1, 256], strides = [1, 1]} : vector<8x2048xf32> to vector<1x256xf32>
    %149 = arith.addf %147, %148 : vector<1x256xf32>
    %150 = vector.extract_strided_slice %136 {offsets = [6, 1536], sizes = [1, 256], strides = [1, 1]} : vector<8x2048xf32> to vector<1x256xf32>
    %151 = arith.addf %149, %150 : vector<1x256xf32>
    %152 = vector.extract_strided_slice %136 {offsets = [7, 1792], sizes = [1, 256], strides = [1, 1]} : vector<8x2048xf32> to vector<1x256xf32>
    %153 = arith.addf %151, %152 : vector<1x256xf32>
    %cst_152 = arith.constant 0.000000e+00 : f32
    %154 = vector.broadcast %cst_152 : f32 to vector<1x256xf32>
    %155 = arith.maximumf %153, %154 : vector<1x256xf32>
    %c0_153 = arith.constant 0 : index
    %c0_154 = arith.constant 0 : index
    %156 = vector.load %arg16[%c0_153, %c0_154] : memref<256x64xf32, #tpu.memory_space<vmem>>, vector<256x64xf32>
    %cst_155 = arith.constant dense<0.000000e+00> : vector<1x64xf32>
    %157 = tpu.matmul %155, %156, %cst_155 {dimension_numbers = #tpu.dot_dimension_numbers<[1], [0], [0], [1], [0, 0, 1, 1], [], []>} : vector<1x256xf32>, vector<256x64xf32>, vector<1x64xf32> -> vector<1x64xf32>
    %c0_156 = arith.constant 0 : index
    %c0_157 = arith.constant 0 : index
    %158 = vector.load %arg17[%c0_156, %c0_157] : memref<1x64xf32, #tpu.memory_space<vmem>>, vector<1x64xf32>
    %159 = arith.addf %157, %158 : vector<1x64xf32>
    %cst_158 = arith.constant 0.000000e+00 : f32
    %160 = vector.broadcast %cst_158 : f32 to vector<1x64xf32>
    %161 = arith.maximumf %159, %160 : vector<1x64xf32>
    %c0_159 = arith.constant 0 : index
    %c0_160 = arith.constant 0 : index
    %162 = vector.load %arg18[%c0_159, %c0_160] : memref<64x128xf32, #tpu.memory_space<vmem>>, vector<64x128xf32>
    %cst_161 = arith.constant dense<0.000000e+00> : vector<1x128xf32>
    %163 = tpu.matmul %161, %162, %cst_161 {dimension_numbers = #tpu.dot_dimension_numbers<[1], [0], [0], [1], [0, 0, 1, 1], [], []>} : vector<1x64xf32>, vector<64x128xf32>, vector<1x128xf32> -> vector<1x128xf32>
    %c0_162 = arith.constant 0 : index
    %c0_163 = arith.constant 0 : index
    %164 = vector.load %arg19[%c0_162, %c0_163] : memref<1x128xf32, #tpu.memory_space<vmem>>, vector<1x128xf32>
    %165 = arith.addf %163, %164 : vector<1x128xf32>
    %c0_164 = arith.constant 0 : index
    %c0_165 = arith.constant 0 : index
    %c0_166 = arith.constant 0 : index
    %166 = vector.load %arg20[%c0_164, %c0_165, %c0_166] : memref<1x1x128xf32, #tpu.memory_space<vmem>>, vector<1x1x128xf32>
    %167 = vector.shape_cast %166 : vector<1x1x128xf32> to vector<1x128xf32>
    %168 = vector.shape_cast %165 : vector<1x128xf32> to vector<1x1x128xf32>
    tpu.vector_store %arg20[%c0_164, %c0_165, %c0_166], %168 {strides = array<i32>} : memref<1x1x128xf32, #tpu.memory_space<vmem>>, vector<1x1x128xf32>,
    return
  }
  func.func @transform_0(%arg0: i32) -> (i32, i32, i32) {
    %c0_i32 = arith.constant 0 : i32
    %c0_i32_0 = arith.constant 0 : i32
    %c0_i32_1 = arith.constant 0 : i32
    return %arg0, %c0_i32, %c0_i32_0 : i32, i32, i32
  }
  func.func @transform_1(%arg0: i32) -> (i32, i32, i32) {
    %c0_i32 = arith.constant 0 : i32
    %c0_i32_0 = arith.constant 0 : i32
    %c0_i32_1 = arith.constant 0 : i32
    %c0_i32_2 = arith.constant 0 : i32
    return %c0_i32, %c0_i32_0, %c0_i32_1 : i32, i32, i32
  }
  func.func @transform_2(%arg0: i32) -> (i32, i32) {
    %c0_i32 = arith.constant 0 : i32
    %c0_i32_0 = arith.constant 0 : i32
    %c0_i32_1 = arith.constant 0 : i32
    return %c0_i32, %c0_i32_0 : i32, i32
  }
  func.func @transform_3(%arg0: i32) -> (i32, i32) {
    %c0_i32 = arith.constant 0 : i32
    %c0_i32_0 = arith.constant 0 : i32
    %c0_i32_1 = arith.constant 0 : i32
    return %c0_i32, %c0_i32_0 : i32, i32
  }
  func.func @transform_4(%arg0: i32) -> (i32, i32) {
    %c0_i32 = arith.constant 0 : i32
    %c0_i32_0 = arith.constant 0 : i32
    %c0_i32_1 = arith.constant 0 : i32
    return %c0_i32, %c0_i32_0 : i32, i32
  }
  func.func @transform_5(%arg0: i32) -> (i32, i32, i32) {
    %c0_i32 = arith.constant 0 : i32
    %c0_i32_0 = arith.constant 0 : i32
    %c0_i32_1 = arith.constant 0 : i32
    %c0_i32_2 = arith.constant 0 : i32
    return %c0_i32, %c0_i32_0, %c0_i32_1 : i32, i32, i32
  }
  func.func @transform_6(%arg0: i32) -> (i32, i32) {
    %c0_i32 = arith.constant 0 : i32
    %c0_i32_0 = arith.constant 0 : i32
    %c0_i32_1 = arith.constant 0 : i32
    return %c0_i32, %c0_i32_0 : i32, i32
  }
  func.func @transform_7(%arg0: i32) -> (i32, i32) {
    %c0_i32 = arith.constant 0 : i32
    %c0_i32_0 = arith.constant 0 : i32
    %c0_i32_1 = arith.constant 0 : i32
    return %c0_i32, %c0_i32_0 : i32, i32
  }
  func.func @transform_8(%arg0: i32) -> (i32, i32) {
    %c0_i32 = arith.constant 0 : i32
    %c0_i32_0 = arith.constant 0 : i32
    %c0_i32_1 = arith.constant 0 : i32
    return %c0_i32, %c0_i32_0 : i32, i32
  }
  func.func @transform_9(%arg0: i32) -> (i32, i32, i32) {
    %c0_i32 = arith.constant 0 : i32
    %c0_i32_0 = arith.constant 0 : i32
    %c0_i32_1 = arith.constant 0 : i32
    %c0_i32_2 = arith.constant 0 : i32
    return %c0_i32, %c0_i32_0, %c0_i32_1 : i32, i32, i32
  }
  func.func @transform_10(%arg0: i32) -> (i32, i32) {
    %c0_i32 = arith.constant 0 : i32
    %c0_i32_0 = arith.constant 0 : i32
    %c0_i32_1 = arith.constant 0 : i32
    return %c0_i32, %c0_i32_0 : i32, i32
  }
  func.func @transform_11(%arg0: i32) -> (i32, i32) {
    %c0_i32 = arith.constant 0 : i32
    %c0_i32_0 = arith.constant 0 : i32
    %c0_i32_1 = arith.constant 0 : i32
    return %c0_i32, %c0_i32_0 : i32, i32
  }
  func.func @transform_12(%arg0: i32) -> (i32, i32) {
    %c0_i32 = arith.constant 0 : i32
    %c0_i32_0 = arith.constant 0 : i32
    %c0_i32_1 = arith.constant 0 : i32
    return %c0_i32, %c0_i32_0 : i32, i32
  }
  func.func @transform_13(%arg0: i32) -> (i32, i32) {
    %c0_i32 = arith.constant 0 : i32
    %c0_i32_0 = arith.constant 0 : i32
    %c0_i32_1 = arith.constant 0 : i32
    return %c0_i32, %c0_i32_0 : i32, i32
  }
  func.func @transform_14(%arg0: i32) -> (i32, i32) {
    %c0_i32 = arith.constant 0 : i32
    %c0_i32_0 = arith.constant 0 : i32
    %c0_i32_1 = arith.constant 0 : i32
    return %c0_i32, %c0_i32_0 : i32, i32
  }
  func.func @transform_15(%arg0: i32) -> (i32, i32) {
    %c0_i32 = arith.constant 0 : i32
    %c0_i32_0 = arith.constant 0 : i32
    %c0_i32_1 = arith.constant 0 : i32
    return %c0_i32, %c0_i32_0 : i32, i32
  }
  func.func @transform_16(%arg0: i32) -> (i32, i32) {
    %c0_i32 = arith.constant 0 : i32
    %c0_i32_0 = arith.constant 0 : i32
    %c0_i32_1 = arith.constant 0 : i32
    return %c0_i32, %c0_i32_0 : i32, i32
  }
  func.func @transform_17(%arg0: i32) -> (i32, i32) {
    %c0_i32 = arith.constant 0 : i32
    %c0_i32_0 = arith.constant 0 : i32
    %c0_i32_1 = arith.constant 0 : i32
    return %c0_i32, %c0_i32_0 : i32, i32
  }
  func.func @transform_18(%arg0: i32) -> (i32, i32) {
    %c0_i32 = arith.constant 0 : i32
    %c0_i32_0 = arith.constant 0 : i32
    %c0_i32_1 = arith.constant 0 : i32
    return %c0_i32, %c0_i32_0 : i32, i32
  }
  func.func @transform_19(%arg0: i32) -> (i32, i32, i32) {
    %c0_i32 = arith.constant 0 : i32
    %c0_i32_0 = arith.constant 0 : i32
    %c0_i32_1 = arith.constant 0 : i32
    return %arg0, %c0_i32, %c0_i32_0 : i32, i32, i32
  }
}

</mosaic_0001>

<llo_original>
// kernel: two_channel_classifier_forward.1
$region0: #{two_channel_classifier_forward.1}
  #allocation0 [shape = 'u32[]', space=smem, size = 0x4, offset = 0x4, fixed_abs, tag = 'smem constant byte address 0x4 - core index']
  #allocation1 [shape = 'u32[144,128]{1,0:T(1,128)}', space=vmem, size = 0x12000, scoped, tag = 'internal scratch']
  #allocation2 [shape = 'f32[264,32]{1,0:T(8,128)}', space=vmem, size = 0x21000, scoped, tag = 'scratch operand']
  #allocation3 [shape = 'f32[68,32]{1,0:T(8,128)}', space=vmem, size = 0x9000, scoped, tag = 'scratch operand']
  #allocation4 [shape = 'f32[72,64]{1,0:T(8,128)}', space=vmem, size = 0x9000, scoped, tag = 'scratch operand']
  #allocation5 [shape = 'f32[18,64]{1,0:T(8,128)}', space=vmem, size = 0x3000, scoped, tag = 'scratch operand']
  %s0 = inlined_call_operand.vmem [shape: f32[2,262,2], index: 0, kind: input, shape index: {}]
  %s1 = inlined_call_operand.vmem [shape: f32[7,2,32], index: 1, kind: input, shape index: {}]
  %s2 = inlined_call_operand.vmem [shape: f32[1,32], index: 2, kind: input, shape index: {}]
  %s3 = inlined_call_operand.vmem [shape: f32[1,32], index: 3, kind: input, shape index: {}]
  %s4 = inlined_call_operand.vmem [shape: f32[64,256], index: 4, kind: input, shape index: {}]
  %s5 = inlined_call_operand.vmem [shape: f32[5,32,64], index: 5, kind: input, shape index: {}]
  %s6 = inlined_call_operand.vmem [shape: f32[1,64], index: 6, kind: input, shape index: {}]
  %s7 = inlined_call_operand.vmem [shape: f32[1,64], index: 7, kind: input, shape index: {}]
  %s8 = inlined_call_operand.vmem [shape: f32[16,64], index: 8, kind: input, shape index: {}]
  %s9 = inlined_call_operand.vmem [shape: f32[3,64,128], index: 9, kind: input, shape index: {}]
  %s10 = inlined_call_operand.vmem [shape: f32[1,128], index: 10, kind: input, shape index: {}]
  %s11 = inlined_call_operand.vmem [shape: f32[1,128], index: 11, kind: input, shape index: {}]
  %s12 = inlined_call_operand.vmem [shape: f32[8,16], index: 12, kind: input, shape index: {}]
  %s13 = inlined_call_operand.vmem [shape: f32[128,2048], index: 13, kind: input, shape index: {}]
  %s14 = inlined_call_operand.vmem [shape: f32[1,256], index: 14, kind: input, shape index: {}]
  %s15 = inlined_call_operand.vmem [shape: f32[256,64], index: 15, kind: input, shape index: {}]
  %s16 = inlined_call_operand.vmem [shape: f32[1,64], index: 16, kind: input, shape index: {}]
  %s17 = inlined_call_operand.vmem [shape: f32[64,128], index: 17, kind: input, shape index: {}]
  %s18 = inlined_call_operand.vmem [shape: f32[1,128], index: 18, kind: input, shape index: {}]
  %s19 = inlined_call_operand.vmem [shape: f32[2,1,128], index: 19, kind: output, shape index: {}]
  %s20 = sld [smem:[#allocation0]]
  $region109: #{two_channel_classifier_forward.1} parent=0
    _
  %s22 = ssub.s32 1, %s20
  %s23 = scalar_select 0, %s22, %s20
  loop: start=0, step=1, limit=4
  $region2: #{two_channel_classifier_forward.1} parent=0 // loop_pre_header
    _
  $region3: #{two_channel_classifier_forward.1} parent=0 // loop_header
    %s25 = sphi 0, %s29
    %p26 = scmp.ge.s32.totalorder %s25, 4
    %s35 = sphi 0, %s37
    %s38 = sphi 0, %s35
    %s39 = sphi 0, %s38
    %s55 = sphi 0, %s39
    %s59 = sphi 0, %s59
    %s61 = sphi 0, %s59
    %s62 = sphi 0, %s61
    %s76 = sphi 0, %s62
    %s80 = sphi 0, %s80
    %s82 = sphi 0, %s80
    %s83 = sphi 0, %s82
    %s97 = sphi 0, %s83
    %s101 = sphi 0, %s101
    %s103 = sphi 0, %s101
    %s104 = sphi 0, %s103
    %s118 = sphi 0, %s104
    %s122 = sphi 0, %s122
    %s124 = sphi 0, %s122
    %s125 = sphi 0, %s124
    %s139 = sphi 0, %s125
    %s143 = sphi 0, %s143
    %s145 = sphi 0, %s143
    %s146 = sphi 0, %s145
    %s160 = sphi 0, %s146
    %s164 = sphi 0, %s164
    %s166 = sphi 0, %s164
    %s167 = sphi 0, %s166
    %s181 = sphi 0, %s167
    %s185 = sphi 0, %s185
    %s187 = sphi 0, %s185
    %s188 = sphi 0, %s187
    %s202 = sphi 0, %s188
    %s206 = sphi 0, %s206
    %s208 = sphi 0, %s206
    %s209 = sphi 0, %s208
    %s223 = sphi 0, %s209
    %s227 = sphi 0, %s227
    %s229 = sphi 0, %s227
    %s230 = sphi 0, %s229
    %s244 = sphi 0, %s230
    %s248 = sphi 0, %s248
    %s250 = sphi 0, %s248
    %s251 = sphi 0, %s250
    %s265 = sphi 0, %s251
    %s269 = sphi 0, %s269
    %s271 = sphi 0, %s269
    %s272 = sphi 0, %s271
    %s286 = sphi 0, %s272
    %s290 = sphi 0, %s290
    %s292 = sphi 0, %s290
    %s293 = sphi 0, %s292
    %s307 = sphi 0, %s293
    %s311 = sphi 0, %s311
    %s313 = sphi 0, %s311
    %s314 = sphi 0, %s313
    %s328 = sphi 0, %s314
    %s332 = sphi 0, %s332
    %s334 = sphi 0, %s332
    %s335 = sphi 0, %s334
    %s349 = sphi 0, %s335
    %s353 = sphi 0, %s353
    %s355 = sphi 0, %s353
    %s356 = sphi 0, %s355
    %s370 = sphi 0, %s356
    %s374 = sphi 0, %s374
    %s376 = sphi 0, %s374
    %s377 = sphi 0, %s376
    %s391 = sphi 0, %s377
    %s395 = sphi 0, %s395
    %s397 = sphi 0, %s395
    %s398 = sphi 0, %s397
    %s412 = sphi 0, %s398
    %s416 = sphi 0, %s416
    %s418 = sphi 0, %s416
    %s419 = sphi 0, %s418
    %s433 = sphi 0, %s419
    %s439 = sphi 0, %s441
    %s442 = sphi 0, %s439
    %s443 = sphi 0, %s442
    %s459 = sphi 0, %s443
  $region4: #{two_channel_classifier_forward.1} parent=0 // loop_header_branch
    %28 = sbr.rel (%p26) target = $region8
  $region5: #{two_channel_classifier_forward.1} parent=0 // loop_body
    %s30 = ssub.s32 %s25, 1
    %s31 = ssub.s32 %s25, 2
    %s32 = sadd.s32 %s25, 1
    %s33 = ssub.s32 %s25, %s32
    %p34 = scmp.eq.s32.totalorder %s33, 0
    %s36 = sadd.s32 %s35, 1
    %s37 = scalar_select %p34, %s35, %s36
    %p40 = pneg %p34
    %p41 = scmp.eq.s32.totalorder %s25, 1
    %p42 = por %p40, %p41
    %p43 = scmp.ne.s32.totalorder %s35, %s38
    %p44 = scmp.eq.s32.totalorder %s25, 0
    %p45 = por %p43, %p44
    %p46 = scmp.ne.s32.totalorder %s35, %s38
    %p47 = scmp.eq.s32.totalorder %s30, 1
    %p48 = por %p46, %p47
    %p49 = scmp.ne.s32.totalorder %s38, %s39
    %p50 = scmp.eq.s32.totalorder %s30, 0
    %p51 = por %p49, %p50
    %p52 = scmp.ne.s32.totalorder %s38, %s39
    %p53 = scmp.eq.s32.totalorder %s31, 1
    %p54 = por %p52, %p53
    %p56 = scmp.ne.s32.totalorder %s39, %s55
    %p57 = scmp.eq.s32.totalorder %s31, 0
    %p58 = por %p56, %p57
    %s60 = sadd.s32 %s59, 1
    %p63 = scmp.eq.s32.totalorder %s25, 1
    %p64 = scmp.ne.s32.totalorder %s59, %s61
    %p65 = scmp.eq.s32.totalorder %s25, 0
    %p66 = por %p64, %p65
    %p67 = scmp.ne.s32.totalorder %s59, %s61
    %p68 = scmp.eq.s32.totalorder %s30, 1
    %p69 = por %p67, %p68
    %p70 = scmp.ne.s32.totalorder %s61, %s62
    %p71 = scmp.eq.s32.totalorder %s30, 0
    %p72 = por %p70, %p71
    %p73 = scmp.ne.s32.totalorder %s61, %s62
    %p74 = scmp.eq.s32.totalorder %s31, 1
    %p75 = por %p73, %p74
    %p77 = scmp.ne.s32.totalorder %s62, %s76
    %p78 = scmp.eq.s32.totalorder %s31, 0
    %p79 = por %p77, %p78
    %s81 = sadd.s32 %s80, 1
    %p84 = scmp.eq.s32.totalorder %s25, 1
    %p85 = scmp.ne.s32.totalorder %s80, %s82
    %p86 = scmp.eq.s32.totalorder %s25, 0
    %p87 = por %p85, %p86
    %p88 = scmp.ne.s32.totalorder %s80, %s82
    %p89 = scmp.eq.s32.totalorder %s30, 1
    %p90 = por %p88, %p89
    %p91 = scmp.ne.s32.totalorder %s82, %s83
    %p92 = scmp.eq.s32.totalorder %s30, 0
    %p93 = por %p91, %p92
    %p94 = scmp.ne.s32.totalorder %s82, %s83
    %p95 = scmp.eq.s32.totalorder %s31, 1
    %p96 = por %p94, %p95
    %p98 = scmp.ne.s32.totalorder %s83, %s97
    %p99 = scmp.eq.s32.totalorder %s31, 0
    %p100 = por %p98, %p99
    %s102 = sadd.s32 %s101, 1
    %p105 = scmp.eq.s32.totalorder %s25, 1
    %p106 = scmp.ne.s32.totalorder %s101, %s103
    %p107 = scmp.eq.s32.totalorder %s25, 0
    %p108 = por %p106, %p107
    %p109 = scmp.ne.s32.totalorder %s101, %s103
    %p110 = scmp.eq.s32.totalorder %s30, 1
    %p111 = por %p109, %p110
    %p112 = scmp.ne.s32.totalorder %s103, %s104
    %p113 = scmp.eq.s32.totalorder %s30, 0
    %p114 = por %p112, %p113
    %p115 = scmp.ne.s32.totalorder %s103, %s104
    %p116 = scmp.eq.s32.totalorder %s31, 1
    %p117 = por %p115, %p116
    %p119 = scmp.ne.s32.totalorder %s104, %s118
    %p120 = scmp.eq.s32.totalorder %s31, 0
    %p121 = por %p119, %p120
    %s123 = sadd.s32 %s122, 1
    %p126 = scmp.eq.s32.totalorder %s25, 1
    %p127 = scmp.ne.s32.totalorder %s122, %s124
    %p128 = scmp.eq.s32.totalorder %s25, 0
    %p129 = por %p127, %p128
    %p130 = scmp.ne.s32.totalorder %s122, %s124
    %p131 = scmp.eq.s32.totalorder %s30, 1
    %p132 = por %p130, %p131
    %p133 = scmp.ne.s32.totalorder %s124, %s125
    %p134 = scmp.eq.s32.totalorder %s30, 0
    %p135 = por %p133, %p134
    %p136 = scmp.ne.s32.totalorder %s124, %s125
    %p137 = scmp.eq.s32.totalorder %s31, 1
    %p138 = por %p136, %p137
    %p140 = scmp.ne.s32.totalorder %s125, %s139
    %p141 = scmp.eq.s32.totalorder %s31, 0
    %p142 = por %p140, %p141
    %s144 = sadd.s32 %s143, 1
    %p147 = scmp.eq.s32.totalorder %s25, 1
    %p148 = scmp.ne.s32.totalorder %s143, %s145
    %p149 = scmp.eq.s32.totalorder %s25, 0
    %p150 = por %p148, %p149
    %p151 = scmp.ne.s32.totalorder %s143, %s145
    %p152 = scmp.eq.s32.totalorder %s30, 1
    %p153 = por %p151, %p152
    %p154 = scmp.ne.s32.totalorder %s145, %s146
    %p155 = scmp.eq.s32.totalorder %s30, 0
    %p156 = por %p154, %p155
    %p157 = scmp.ne.s32.totalorder %s145, %s146
    %p158 = scmp.eq.s32.totalorder %s31, 1
    %p159 = por %p157, %p158
    %p161 = scmp.ne.s32.totalorder %s146, %s160
    %p162 = scmp.eq.s32.totalorder %s31, 0
    %p163 = por %p161, %p162
    %s165 = sadd.s32 %s164, 1
    %p168 = scmp.eq.s32.totalorder %s25, 1
    %p169 = scmp.ne.s32.totalorder %s164, %s166
    %p170 = scmp.eq.s32.totalorder %s25, 0
    %p171 = por %p169, %p170
    %p172 = scmp.ne.s32.totalorder %s164, %s166
    %p173 = scmp.eq.s32.totalorder %s30, 1
    %p174 = por %p172, %p173
    %p175 = scmp.ne.s32.totalorder %s166, %s167
    %p176 = scmp.eq.s32.totalorder %s30, 0
    %p177 = por %p175, %p176
    %p178 = scmp.ne.s32.totalorder %s166, %s167
    %p179 = scmp.eq.s32.totalorder %s31, 1
    %p180 = por %p178, %p179
    %p182 = scmp.ne.s32.totalorder %s167, %s181
    %p183 = scmp.eq.s32.totalorder %s31, 0
    %p184 = por %p182, %p183
    %s186 = sadd.s32 %s185, 1
    %p189 = scmp.eq.s32.totalorder %s25, 1
    %p190 = scmp.ne.s32.totalorder %s185, %s187
    %p191 = scmp.eq.s32.totalorder %s25, 0
    %p192 = por %p190, %p191
    %p193 = scmp.ne.s32.totalorder %s185, %s187
    %p194 = scmp.eq.s32.totalorder %s30, 1
    %p195 = por %p193, %p194
    %p196 = scmp.ne.s32.totalorder %s187, %s188
    %p197 = scmp.eq.s32.totalorder %s30, 0
    %p198 = por %p196, %p197
    %p199 = scmp.ne.s32.totalorder %s187, %s188
    %p200 = scmp.eq.s32.totalorder %s31, 1
    %p201 = por %p199, %p200
    %p203 = scmp.ne.s32.totalorder %s188, %s202
    %p204 = scmp.eq.s32.totalorder %s31, 0
    %p205 = por %p203, %p204
    %s207 = sadd.s32 %s206, 1
    %p210 = scmp.eq.s32.totalorder %s25, 1
    %p211 = scmp.ne.s32.totalorder %s206, %s208
    %p212 = scmp.eq.s32.totalorder %s25, 0
    %p213 = por %p211, %p212
    %p214 = scmp.ne.s32.totalorder %s206, %s208
    %p215 = scmp.eq.s32.totalorder %s30, 1
    %p216 = por %p214, %p215
    %p217 = scmp.ne.s32.totalorder %s208, %s209
    %p218 = scmp.eq.s32.totalorder %s30, 0
    %p219 = por %p217, %p218
    %p220 = scmp.ne.s32.totalorder %s208, %s209
    %p221 = scmp.eq.s32.totalorder %s31, 1
    %p222 = por %p220, %p221
    %p224 = scmp.ne.s32.totalorder %s209, %s223
    %p225 = scmp.eq.s32.totalorder %s31, 0
    %p226 = por %p224, %p225
    %s228 = sadd.s32 %s227, 1
    %p231 = scmp.eq.s32.totalorder %s25, 1
    %p232 = scmp.ne.s32.totalorder %s227, %s229
    %p233 = scmp.eq.s32.totalorder %s25, 0
    %p234 = por %p232, %p233
    %p235 = scmp.ne.s32.totalorder %s227, %s229
    %p236 = scmp.eq.s32.totalorder %s30, 1
    %p237 = por %p235, %p236
    %p238 = scmp.ne.s32.totalorder %s229, %s230
    %p239 = scmp.eq.s32.totalorder %s30, 0
    %p240 = por %p238, %p239
    %p241 = scmp.ne.s32.totalorder %s229, %s230
    %p242 = scmp.eq.s32.totalorder %s31, 1
    %p243 = por %p241, %p242
    %p245 = scmp.ne.s32.totalorder %s230, %s244
    %p246 = scmp.eq.s32.totalorder %s31, 0
    %p247 = por %p245, %p246
    %s249 = sadd.s32 %s248, 1
    %p252 = scmp.eq.s32.totalorder %s25, 1
    %p253 = scmp.ne.s32.totalorder %s248, %s250
    %p254 = scmp.eq.s32.totalorder %s25, 0
    %p255 = por %p253, %p254
    %p256 = scmp.ne.s32.totalorder %s248, %s250
    %p257 = scmp.eq.s32.totalorder %s30, 1
    %p258 = por %p256, %p257
    %p259 = scmp.ne.s32.totalorder %s250, %s251
    %p260 = scmp.eq.s32.totalorder %s30, 0
    %p261 = por %p259, %p260
    %p262 = scmp.ne.s32.totalorder %s250, %s251
    %p263 = scmp.eq.s32.totalorder %s31, 1
    %p264 = por %p262, %p263
    %p266 = scmp.ne.s32.totalorder %s251, %s265
    %p267 = scmp.eq.s32.totalorder %s31, 0
    %p268 = por %p266, %p267
    %s270 = sadd.s32 %s269, 1
    %p273 = scmp.eq.s32.totalorder %s25, 1
    %p274 = scmp.ne.s32.totalorder %s269, %s271
    %p275 = scmp.eq.s32.totalorder %s25, 0
    %p276 = por %p274, %p275
    %p277 = scmp.ne.s32.totalorder %s269, %s271
    %p278 = scmp.eq.s32.totalorder %s30, 1
    %p279 = por %p277, %p278
    %p280 = scmp.ne.s32.totalorder %s271, %s272
    %p281 = scmp.eq.s32.totalorder %s30, 0
    %p282 = por %p280, %p281
    %p283 = scmp.ne.s32.totalorder %s271, %s272
    %p284 = scmp.eq.s32.totalorder %s31, 1
    %p285 = por %p283, %p284
    %p287 = scmp.ne.s32.totalorder %s272, %s286
    %p288 = scmp.eq.s32.totalorder %s31, 0
    %p289 = por %p287, %p288
    %s291 = sadd.s32 %s290, 1
    %p294 = scmp.eq.s32.totalorder %s25, 1
    %p295 = scmp.ne.s32.totalorder %s290, %s292
    %p296 = scmp.eq.s32.totalorder %s25, 0
    %p297 = por %p295, %p296
    %p298 = scmp.ne.s32.totalorder %s290, %s292
    %p299 = scmp.eq.s32.totalorder %s30, 1
    %p300 = por %p298, %p299
    %p301 = scmp.ne.s32.totalorder %s292, %s293
    %p302 = scmp.eq.s32.totalorder %s30, 0
    %p303 = por %p301, %p302
    %p304 = scmp.ne.s32.totalorder %s292, %s293
    %p305 = scmp.eq.s32.totalorder %s31, 1
    %p306 = por %p304, %p305
    %p308 = scmp.ne.s32.totalorder %s293, %s307
    %p309 = scmp.eq.s32.totalorder %s31, 0
    %p310 = por %p308, %p309
    %s312 = sadd.s32 %s311, 1
    %p315 = scmp.eq.s32.totalorder %s25, 1
    %p316 = scmp.ne.s32.totalorder %s311, %s313
    %p317 = scmp.eq.s32.totalorder %s25, 0
    %p318 = por %p316, %p317
    %p319 = scmp.ne.s32.totalorder %s311, %s313
    %p320 = scmp.eq.s32.totalorder %s30, 1
    %p321 = por %p319, %p320
    %p322 = scmp.ne.s32.totalorder %s313, %s314
    %p323 = scmp.eq.s32.totalorder %s30, 0
    %p324 = por %p322, %p323
    %p325 = scmp.ne.s32.totalorder %s313, %s314
    %p326 = scmp.eq.s32.totalorder %s31, 1
    %p327 = por %p325, %p326
    %p329 = scmp.ne.s32.totalorder %s314, %s328
    %p330 = scmp.eq.s32.totalorder %s31, 0
    %p331 = por %p329, %p330
    %s333 = sadd.s32 %s332, 1
    %p336 = scmp.eq.s32.totalorder %s25, 1
    %p337 = scmp.ne.s32.totalorder %s332, %s334
    %p338 = scmp.eq.s32.totalorder %s25, 0
    %p339 = por %p337, %p338
    %p340 = scmp.ne.s32.totalorder %s332, %s334
    %p341 = scmp.eq.s32.totalorder %s30, 1
    %p342 = por %p340, %p341
    %p343 = scmp.ne.s32.totalorder %s334, %s335
    %p344 = scmp.eq.s32.totalorder %s30, 0
    %p345 = por %p343, %p344
    %p346 = scmp.ne.s32.totalorder %s334, %s335
    %p347 = scmp.eq.s32.totalorder %s31, 1
    %p348 = por %p346, %p347
    %p350 = scmp.ne.s32.totalorder %s335, %s349
    %p351 = scmp.eq.s32.totalorder %s31, 0
    %p352 = por %p350, %p351
    %s354 = sadd.s32 %s353, 1
    %p357 = scmp.eq.s32.totalorder %s25, 1
    %p358 = scmp.ne.s32.totalorder %s353, %s355
    %p359 = scmp.eq.s32.totalorder %s25, 0
    %p360 = por %p358, %p359
    %p361 = scmp.ne.s32.totalorder %s353, %s355
    %p362 = scmp.eq.s32.totalorder %s30, 1
    %p363 = por %p361, %p362
    %p364 = scmp.ne.s32.totalorder %s355, %s356
    %p365 = scmp.eq.s32.totalorder %s30, 0
    %p366 = por %p364, %p365
    %p367 = scmp.ne.s32.totalorder %s355, %s356
    %p368 = scmp.eq.s32.totalorder %s31, 1
    %p369 = por %p367, %p368
    %p371 = scmp.ne.s32.totalorder %s356, %s370
    %p372 = scmp.eq.s32.totalorder %s31, 0
    %p373 = por %p371, %p372
    %s375 = sadd.s32 %s374, 1
    %p378 = scmp.eq.s32.totalorder %s25, 1
    %p379 = scmp.ne.s32.totalorder %s374, %s376
    %p380 = scmp.eq.s32.totalorder %s25, 0
    %p381 = por %p379, %p380
    %p382 = scmp.ne.s32.totalorder %s374, %s376
    %p383 = scmp.eq.s32.totalorder %s30, 1
    %p384 = por %p382, %p383
    %p385 = scmp.ne.s32.totalorder %s376, %s377
    %p386 = scmp.eq.s32.totalorder %s30, 0
    %p387 = por %p385, %p386
    %p388 = scmp.ne.s32.totalorder %s376, %s377
    %p389 = scmp.eq.s32.totalorder %s31, 1
    %p390 = por %p388, %p389
    %p392 = scmp.ne.s32.totalorder %s377, %s391
    %p393 = scmp.eq.s32.totalorder %s31, 0
    %p394 = por %p392, %p393
    %s396 = sadd.s32 %s395, 1
    %p399 = scmp.eq.s32.totalorder %s25, 1
    %p400 = scmp.ne.s32.totalorder %s395, %s397
    %p401 = scmp.eq.s32.totalorder %s25, 0
    %p402 = por %p400, %p401
    %p403 = scmp.ne.s32.totalorder %s395, %s397
    %p404 = scmp.eq.s32.totalorder %s30, 1
    %p405 = por %p403, %p404
    %p406 = scmp.ne.s32.totalorder %s397, %s398
    %p407 = scmp.eq.s32.totalorder %s30, 0
    %p408 = por %p406, %p407
    %p409 = scmp.ne.s32.totalorder %s397, %s398
    %p410 = scmp.eq.s32.totalorder %s31, 1
    %p411 = por %p409, %p410
    %p413 = scmp.ne.s32.totalorder %s398, %s412
    %p414 = scmp.eq.s32.totalorder %s31, 0
    %p415 = por %p413, %p414
    %s417 = sadd.s32 %s416, 1
    %p420 = scmp.eq.s32.totalorder %s25, 1
    %p421 = scmp.ne.s32.totalorder %s416, %s418
    %p422 = scmp.eq.s32.totalorder %s25, 0
    %p423 = por %p421, %p422
    %p424 = scmp.ne.s32.totalorder %s416, %s418
    %p425 = scmp.eq.s32.totalorder %s30, 1
    %p426 = por %p424, %p425
    %p427 = scmp.ne.s32.totalorder %s418, %s419
    %p428 = scmp.eq.s32.totalorder %s30, 0
    %p429 = por %p427, %p428
    %p430 = scmp.ne.s32.totalorder %s418, %s419
    %p431 = scmp.eq.s32.totalorder %s31, 1
    %p432 = por %p430, %p431
    %p434 = scmp.ne.s32.totalorder %s419, %s433
    %p435 = scmp.eq.s32.totalorder %s31, 0
    %p436 = por %p434, %p435
    %s437 = ssub.s32 %s25, %s32
    %p438 = scmp.eq.s32.totalorder %s437, 0
    %s440 = sadd.s32 %s439, 1
    %s441 = scalar_select %p438, %s439, %s440
    %p444 = pneg %p438
    %p445 = scmp.eq.s32.totalorder %s25, 1
    %p446 = por %p444, %p445
    %p447 = scmp.ne.s32.totalorder %s439, %s442
    %p448 = scmp.eq.s32.totalorder %s25, 0
    %p449 = por %p447, %p448
    %p450 = scmp.ne.s32.totalorder %s439, %s442
    %p451 = scmp.eq.s32.totalorder %s30, 1
    %p452 = por %p450, %p451
    %p453 = scmp.ne.s32.totalorder %s442, %s443
    %p454 = scmp.eq.s32.totalorder %s30, 0
    %p455 = por %p453, %p454
    %p456 = scmp.ne.s32.totalorder %s442, %s443
    %p457 = scmp.eq.s32.totalorder %s31, 1
    %p458 = por %p456, %p457
    %p460 = scmp.ne.s32.totalorder %s443, %s459
    %p461 = scmp.eq.s32.totalorder %s31, 0
    %p462 = por %p460, %p461
    %p463 = scmp.le.s32.totalorder 1, %s25
    %p464 = scmp.lt.s32.totalorder %s25, 3
    %p465 = pnand %p463, %p464
    %p466 = pneg %p465
    // Predicated region
    $region9: #{two_channel_classifier_forward.1} parent=5 // pred_check
      _
    $region10: #{two_channel_classifier_forward.1} parent=5 // pred_check_branch
      %468 = sbr.rel (%p465) target = $region12
    $region11: #{two_channel_classifier_forward.1} parent=5 // pred_region
      %s469 = ssub.s32 %s25, 1
      // Predicated region
      $region13: #{two_channel_classifier_forward.1} parent=11 // pred_check
        %p470 = pneg %p72
      $region14: #{two_channel_classifier_forward.1} parent=11 // pred_check_branch
        %472 = sbr.rel (%p470) target = $region16
      $region15: #{two_channel_classifier_forward.1} parent=11 // pred_region
        _
      $region16: #{two_channel_classifier_forward.1} parent=11 // pred_fallthru
        _
      // Predicated region
      $region17: #{two_channel_classifier_forward.1} parent=11 // pred_check
        %p473 = pneg %p93
      $region18: #{two_channel_classifier_forward.1} parent=11 // pred_check_branch
        %475 = sbr.rel (%p473) target = $region20
      $region19: #{two_channel_classifier_forward.1} parent=11 // pred_region
        _
      $region20: #{two_channel_classifier_forward.1} parent=11 // pred_fallthru
        _
      // Predicated region
      $region21: #{two_channel_classifier_forward.1} parent=11 // pred_check
        %p476 = pneg %p114
      $region22: #{two_channel_classifier_forward.1} parent=11 // pred_check_branch
        %478 = sbr.rel (%p476) target = $region24
      $region23: #{two_channel_classifier_forward.1} parent=11 // pred_region
        _
      $region24: #{two_channel_classifier_forward.1} parent=11 // pred_fallthru
        _
      // Predicated region
      $region25: #{two_channel_classifier_forward.1} parent=11 // pred_check
        %p479 = pneg %p135
      $region26: #{two_channel_classifier_forward.1} parent=11 // pred_check_branch
        %481 = sbr.rel (%p479) target = $region28
      $region27: #{two_channel_classifier_forward.1} parent=11 // pred_region
        _
      $region28: #{two_channel_classifier_forward.1} parent=11 // pred_fallthru
        _
      // Predicated region
      $region29: #{two_channel_classifier_forward.1} parent=11 // pred_check
        %p482 = pneg %p156
      $region30: #{two_channel_classifier_forward.1} parent=11 // pred_check_branch
        %484 = sbr.rel (%p482) target = $region32
      $region31: #{two_channel_classifier_forward.1} parent=11 // pred_region
        _
      $region32: #{two_channel_classifier_forward.1} parent=11 // pred_fallthru
        _
      // Predicated region
      $region33: #{two_channel_classifier_forward.1} parent=11 // pred_check
        %p485 = pneg %p177
      $region34: #{two_channel_classifier_forward.1} parent=11 // pred_check_branch
        %487 = sbr.rel (%p485) target = $region36
      $region35: #{two_channel_classifier_forward.1} parent=11 // pred_region
        _
      $region36: #{two_channel_classifier_forward.1} parent=11 // pred_fallthru
        _
      // Predicated region
      $region37: #{two_channel_classifier_forward.1} parent=11 // pred_check
        %p488 = pneg %p198
      $region38: #{two_channel_classifier_forward.1} parent=11 // pred_check_branch
        %490 = sbr.rel (%p488) target = $region40
      $region39: #{two_channel_classifier_forward.1} parent=11 // pred_region
        _
      $region40: #{two_channel_classifier_forward.1} parent=11 // pred_fallthru
        _
      // Predicated region
      $region41: #{two_channel_classifier_forward.1} parent=11 // pred_check
        %p491 = pneg %p219
      $region42: #{two_channel_classifier_forward.1} parent=11 // pred_check_branch
        %493 = sbr.rel (%p491) target = $region44
      $region43: #{two_channel_classifier_forward.1} parent=11 // pred_region
        _
      $region44: #{two_channel_classifier_forward.1} parent=11 // pred_fallthru
        _
      // Predicated region
      $region45: #{two_channel_classifier_forward.1} parent=11 // pred_check
        %p494 = pneg %p240
      $region46: #{two_channel_classifier_forward.1} parent=11 // pred_check_branch
        %496 = sbr.rel (%p494) target = $region48
      $region47: #{two_channel_classifier_forward.1} parent=11 // pred_region
        _
      $region48: #{two_channel_classifier_forward.1} parent=11 // pred_fallthru
        _
      // Predicated region
      $region49: #{two_channel_classifier_forward.1} parent=11 // pred_check
        %p497 = pneg %p261
      $region50: #{two_channel_classifier_forward.1} parent=11 // pred_check_branch
        %499 = sbr.rel (%p497) target = $region52
      $region51: #{two_channel_classifier_forward.1} parent=11 // pred_region
        _
      $region52: #{two_channel_classifier_forward.1} parent=11 // pred_fallthru
        _
      // Predicated region
      $region53: #{two_channel_classifier_forward.1} parent=11 // pred_check
        %p500 = pneg %p282
      $region54: #{two_channel_classifier_forward.1} parent=11 // pred_check_branch
        %502 = sbr.rel (%p500) target = $region56
      $region55: #{two_channel_classifier_forward.1} parent=11 // pred_region
        _
      $region56: #{two_channel_classifier_forward.1} parent=11 // pred_fallthru
        _
      // Predicated region
      $region57: #{two_channel_classifier_forward.1} parent=11 // pred_check
        %p503 = pneg %p303
      $region58: #{two_channel_classifier_forward.1} parent=11 // pred_check_branch
        %505 = sbr.rel (%p503) target = $region60
      $region59: #{two_channel_classifier_forward.1} parent=11 // pred_region
        _
      $region60: #{two_channel_classifier_forward.1} parent=11 // pred_fallthru
        _
      // Predicated region
      $region61: #{two_channel_classifier_forward.1} parent=11 // pred_check
        %p506 = pneg %p324
      $region62: #{two_channel_classifier_forward.1} parent=11 // pred_check_branch
        %508 = sbr.rel (%p506) target = $region64
      $region63: #{two_channel_classifier_forward.1} parent=11 // pred_region
        _
      $region64: #{two_channel_classifier_forward.1} parent=11 // pred_fallthru
        _
      // Predicated region
      $region65: #{two_channel_classifier_forward.1} parent=11 // pred_check
        %p509 = pneg %p345
      $region66: #{two_channel_classifier_forward.1} parent=11 // pred_check_branch
        %511 = sbr.rel (%p509) target = $region68
      $region67: #{two_channel_classifier_forward.1} parent=11 // pred_region
        _
      $region68: #{two_channel_classifier_forward.1} parent=11 // pred_fallthru
        _
      // Predicated region
      $region69: #{two_channel_classifier_forward.1} parent=11 // pred_check
        %p512 = pneg %p366
      $region70: #{two_channel_classifier_forward.1} parent=11 // pred_check_branch
        %514 = sbr.rel (%p512) target = $region72
      $region71: #{two_channel_classifier_forward.1} parent=11 // pred_region
        _
      $region72: #{two_channel_classifier_forward.1} parent=11 // pred_fallthru
        _
      // Predicated region
      $region73: #{two_channel_classifier_forward.1} parent=11 // pred_check
        %p515 = pneg %p387
      $region74: #{two_channel_classifier_forward.1} parent=11 // pred_check_branch
        %517 = sbr.rel (%p515) target = $region76
      $region75: #{two_channel_classifier_forward.1} parent=11 // pred_region
        _
      $region76: #{two_channel_classifier_forward.1} parent=11 // pred_fallthru
        _
      // Predicated region
      $region77: #{two_channel_classifier_forward.1} parent=11 // pred_check
        %p518 = pneg %p408
      $region78: #{two_channel_classifier_forward.1} parent=11 // pred_check_branch
        %520 = sbr.rel (%p518) target = $region80
      $region79: #{two_channel_classifier_forward.1} parent=11 // pred_region
        _
      $region80: #{two_channel_classifier_forward.1} parent=11 // pred_fallthru
        _
      // Predicated region
      $region81: #{two_channel_classifier_forward.1} parent=11 // pred_check
        %p521 = pneg %p429
      $region82: #{two_channel_classifier_forward.1} parent=11 // pred_check_branch
        %523 = sbr.rel (%p521) target = $region84
      $region83: #{two_channel_classifier_forward.1} parent=11 // pred_region
        _
      $region84: #{two_channel_classifier_forward.1} parent=11 // pred_fallthru
        _
    $region12: #{two_channel_classifier_forward.1} parent=5 // pred_fallthru
      _
    %p524 = scmp.lt.s32.totalorder %s25, 2
    // Predicated region
    $region85: #{two_channel_classifier_forward.1} parent=5 // pred_check
      %p525 = pneg %p524
    $region86: #{two_channel_classifier_forward.1} parent=5 // pred_check_branch
      %527 = sbr.rel (%p525) target = $region88
    $region87: #{two_channel_classifier_forward.1} parent=5 // pred_region
      // Predicated region
      $region89: #{two_channel_classifier_forward.1} parent=87 // pred_check
        %p528 = pneg %p45
      $region90: #{two_channel_classifier_forward.1} parent=87 // pred_check_branch
        %530 = sbr.rel (%p528) target = $region92
      $region91: #{two_channel_classifier_forward.1} parent=87 // pred_region
        %p531 = scmp.lt.s32.totalorder %s25, 1
        %s532 = scalar_select %p531, %s25, 1
        %s533 = smul.addr %s532, 33
        %s534 = smul.addr %s533, 8
        %s535 = scalar_lea.vmem %s0, %s534
      $region92: #{two_channel_classifier_forward.1} parent=87 // pred_fallthru
        _
    $region88: #{two_channel_classifier_forward.1} parent=5 // pred_fallthru
      _
    %p536 = scmp.le.s32.totalorder 1, %s25
    %p537 = scmp.lt.s32.totalorder %s25, 3
    %p538 = pnand %p536, %p537
    %p539 = pneg %p538
    // Predicated region
    $region93: #{two_channel_classifier_forward.1} parent=5 // pred_check
      _
    $region94: #{two_channel_classifier_forward.1} parent=5 // pred_check_branch
      %541 = sbr.rel (%p538) target = $region96
    $region95: #{two_channel_classifier_forward.1} parent=5 // pred_region
      %s542 = ssub.s32 %s25, 1
      %p543 = scmp.lt.s32.totalorder %s30, 1
      %s544 = scalar_select %p543, %s30, 1
      %s545 = smul.addr %s544, 33
      %s546 = smul.addr %s545, 8
      %s547 = scalar_lea.vmem %s0, %s546
      %p548 = pneg %p51
      %p549 = pneg %p48
      %p550 = pneg %p72
      %p551 = pneg %p69
      %p552 = pneg %p93
      %p553 = pneg %p90
      %p554 = pneg %p114
      %p555 = pneg %p111
      %p556 = pneg %p135
      %p557 = pneg %p132
      %p558 = pneg %p156
      %p559 = pneg %p153
      %p560 = pneg %p177
      %p561 = pneg %p174
      %p562 = pneg %p198
      %p563 = pneg %p195
      %p564 = pneg %p219
      %p565 = pneg %p216
      %p566 = pneg %p240
      %p567 = pneg %p237
      %p568 = pneg %p261
      %p569 = pneg %p258
      %p570 = pneg %p282
      %p571 = pneg %p279
      %p572 = pneg %p303
      %p573 = pneg %p300
      %p574 = pneg %p324
      %p575 = pneg %p321
      %p576 = pneg %p345
      %p577 = pneg %p342
      %p578 = pneg %p366
      %p579 = pneg %p363
      %p580 = pneg %p387
      %p581 = pneg %p384
      %p582 = pneg %p408
      %p583 = pneg %p405
      %p584 = pneg %p429
      %p585 = pneg %p426
      %p586 = pneg %p455
      %p587 = pneg %p452
      %p588 = scmp.lt.s32.totalorder %s30, 1
      %s589 = scalar_select %p588, %s30, 1
      %s590 = scalar_lea.vmem %s19, %s589
      %p591 = scmp.lt.s32.totalorder %s30, 1
      %s592 = scalar_select %p591, %s30, 1
      %s593 = smul.addr %s592, 33
      %s594 = smul.addr %s593, 8
      %s595 = scalar_lea.vmem %s0, %s594
      %p596 = scmp.lt.s32.totalorder %s30, 1
      %s597 = scalar_select %p596, %s30, 1
      %s598 = scalar_lea.vmem %s19, %s597
      %v599 = vld [vmem:[%s595] sm:$0xff]
      %v600 = vld [vmem:[%s595 + $0x8] sm:$0xff]
      %v601 = vld [vmem:[%s595 + $0x10] sm:$0xff]
      %v602 = vld [vmem:[%s595 + $0x18] sm:$0xff]
      %v603 = vld [vmem:[%s595 + $0x20] sm:$0xff]
      %v604 = vld [vmem:[%s595 + $0x28] sm:$0xff]
      %v605 = vld [vmem:[%s595 + $0x30] sm:$0xff]
      %v606 = vld [vmem:[%s595 + $0x38] sm:$0xff]
      %v607 = vld [vmem:[%s595 + $0x40] sm:$0xff]
      %v608 = vld [vmem:[%s595 + $0x48] sm:$0xff]
      %v609 = vld [vmem:[%s595 + $0x50] sm:$0xff]
      %v610 = vld [vmem:[%s595 + $0x58] sm:$0xff]
      %v611 = vld [vmem:[%s595 + $0x60] sm:$0xff]
      %v612 = vld [vmem:[%s595 + $0x68] sm:$0xff]
      %v613 = vld [vmem:[%s595 + $0x70] sm:$0xff]
      %v614 = vld [vmem:[%s595 + $0x78] sm:$0xff]
      %v615 = vld [vmem:[%s595 + $0x80] sm:$0xff]
      %v616 = vld [vmem:[%s595 + $0x88] sm:$0xff]
      %v617 = vld [vmem:[%s595 + $0x90] sm:$0xff]
      %v618 = vld [vmem:[%s595 + $0x98] sm:$0xff]
      %v619 = vld [vmem:[%s595 + $0xa0] sm:$0xff]
      %v620 = vld [vmem:[%s595 + $0xa8] sm:$0xff]
      %v621 = vld [vmem:[%s595 + $0xb0] sm:$0xff]
      %v622 = vld [vmem:[%s595 + $0xb8] sm:$0xff]
      %v623 = vld [vmem:[%s595 + $0xc0] sm:$0xff]
      %v624 = vld [vmem:[%s595 + $0xc8] sm:$0xff]
      %v625 = vld [vmem:[%s595 + $0xd0] sm:$0xff]
      %v626 = vld [vmem:[%s595 + $0xd8] sm:$0xff]
      %v627 = vld [vmem:[%s595 + $0xe0] sm:$0xff]
      %v628 = vld [vmem:[%s595 + $0xe8] sm:$0xff]
      %v629 = vld [vmem:[%s595 + $0xf0] sm:$0xff]
      %v630 = vld [vmem:[%s595 + $0xf8] sm:$0xff]
      %v631 = vld [vmem:[%s1] sm:$0x3]
      %v632 = vld [vmem:[%s595 + $0x1] sm:$0xff]
      %v633 = vld [vmem:[%s595 + $0x9] sm:$0xff]
      %v634 = vld [vmem:[%s595 + $0x11] sm:$0xff]
      %v635 = vld [vmem:[%s595 + $0x19] sm:$0xff]
      %v636 = vld [vmem:[%s595 + $0x21] sm:$0xff]
      %v637 = vld [vmem:[%s595 + $0x29] sm:$0xff]
      %v638 = vld [vmem:[%s595 + $0x31] sm:$0xff]
      %v639 = vld [vmem:[%s595 + $0x39] sm:$0xff]
      %v640 = vld [vmem:[%s595 + $0x41] sm:$0xff]
      %v641 = vld [vmem:[%s595 + $0x49] sm:$0xff]
      %v642 = vld [vmem:[%s595 + $0x51] sm:$0xff]
      %v643 = vld [vmem:[%s595 + $0x59] sm:$0xff]
      %v644 = vld [vmem:[%s595 + $0x61] sm:$0xff]
      %v645 = vld [vmem:[%s595 + $0x69] sm:$0xff]
      %v646 = vld [vmem:[%s595 + $0x71] sm:$0xff]
      %v647 = vld [vmem:[%s595 + $0x79] sm:$0xff]
      %v648 = vld [vmem:[%s595 + $0x81] sm:$0xff]
      %v649 = vld [vmem:[%s595 + $0x89] sm:$0xff]
      %v650 = vld [vmem:[%s595 + $0x91] sm:$0xff]
      %v651 = vld [vmem:[%s595 + $0x99] sm:$0xff]
      %v652 = vld [vmem:[%s595 + $0xa1] sm:$0xff]
      %v653 = vld [vmem:[%s595 + $0xa9] sm:$0xff]
      %v654 = vld [vmem:[%s595 + $0xb1] sm:$0xff]
      %v655 = vld [vmem:[%s595 + $0xb9] sm:$0xff]
      %v656 = vld [vmem:[%s595 + $0xc1] sm:$0xff]
      %v657 = vld [vmem:[%s595 + $0xc9] sm:$0xff]
      %v658 = vld [vmem:[%s595 + $0xd1] sm:$0xff]
      %v659 = vld [vmem:[%s595 + $0xd9] sm:$0xff]
      %v660 = vld [vmem:[%s595 + $0xe1] sm:$0xff]
      %v661 = vld [vmem:[%s595 + $0xe9] sm:$0xff]
      %v662 = vld [vmem:[%s595 + $0xf1] sm:$0xff]
      %v663 = vld [vmem:[%s595 + $0xf9] sm:$0xff]
      %s664 = scalar_lea.vmem %s1, 2
      %v665 = vld [vmem:[%s664] sm:$0x3]
      %vm666 = vcmask 15360
      %v668 = vsel %vm666, %v632, 0
      %v671 = vsel %vm666, %v633, 0
      %v674 = vsel %vm666, %v634, 0
      %v677 = vsel %vm666, %v635, 0
      %v680 = vsel %vm666, %v636, 0
      %v683 = vsel %vm666, %v637, 0
      %v686 = vsel %vm666, %v638, 0
      %v689 = vsel %vm666, %v639, 0
      %v692 = vsel %vm666, %v640, 0
      %v695 = vsel %vm666, %v641, 0
      %v698 = vsel %vm666, %v642, 0
      %v701 = vsel %vm666, %v643, 0
      %v704 = vsel %vm666, %v644, 0
      %v707 = vsel %vm666, %v645, 0
      %v710 = vsel %vm666, %v646, 0
      %v713 = vsel %vm666, %v647, 0
      %v716 = vsel %vm666, %v648, 0
      %v719 = vsel %vm666, %v649, 0
      %v722 = vsel %vm666, %v650, 0
      %v725 = vsel %vm666, %v651, 0
      %v728 = vsel %vm666, %v652, 0
      %v731 = vsel %vm666, %v653, 0
      %v734 = vsel %vm666, %v654, 0
      %v737 = vsel %vm666, %v655, 0
      %v740 = vsel %vm666, %v656, 0
      %v743 = vsel %vm666, %v657, 0
      %v746 = vsel %vm666, %v658, 0
      %v749 = vsel %vm666, %v659, 0
      %v752 = vsel %vm666, %v660, 0
      %v755 = vsel %vm666, %v661, 0
      %v758 = vsel %vm666, %v662, 0
      %v761 = vsel %vm666, %v663, 0
      %vm763 = vcmask 1041408
      %v765 = vsel %vm763, %v665, 0
      %767 = vmatprep.subr.mxu0 0.0
      %768 = vmatpush1.msra.mxu0 %v765
      %769 = vmatprep.subr.mxu0 0.0
      %770 = vmatpush1.msra.mxu0 0.0
      %771 = vmatprep.subr.mxu0 0.0
      %772 = vmatpush1.msra.mxu0 0.0
      %773 = vmatprep.subr.mxu0 0.0
      %774 = vmatpush1.msra.mxu0 0.0
      %775 = vmatprep.subr.mxu0 0.0
      %776 = vmatpush1.msra.mxu0 0.0
      %777 = vmatprep.subr.mxu0 0.0
      %778 = vmatpush1.msra.mxu0 0.0
      %779 = vmatprep.subr.mxu0 0.0
      %780 = vmatpush1.msra.mxu0 0.0
      %781 = vmatprep.subr.mxu0 0.0
      %782 = vmatpush1.msra.mxu0 0.0
      %783 = vmatprep.subr.mxu0 0.0
      %784 = vmatpush1.msra.mxu0 0.0
      %785 = vmatprep.subr.mxu0 0.0
      %786 = vmatpush1.msra.mxu0 0.0
      %787 = vmatprep.subr.mxu0 0.0
      %788 = vmatpush1.msra.mxu0 0.0
      %789 = vmatprep.subr.mxu0 0.0
      %790 = vmatpush1.msra.mxu0 0.0
      %791 = vmatprep.subr.mxu0 0.0
      %792 = vmatpush1.msra.mxu0 0.0
      %793 = vmatprep.subr.mxu0 0.0
      %794 = vmatpush1.msra.mxu0 0.0
      %795 = vmatprep.subr.mxu0 0.0
      %796 = vmatpush1.msra.mxu0 0.0
      %797 = vmatprep.subr.mxu0 0.0
      %798 = vmatpush1.msra.mxu0 0.0
      %799 = vmatprep.subr.mxu0 0.0
      %800 = vmatpush1.msra.mxu0 0.0
      %801 = vmatprep.subr.mxu0 0.0
      %802 = vmatpush1.msra.mxu0 0.0
      %803 = vmatprep.subr.mxu0 0.0
      %804 = vmatpush1.msra.mxu0 0.0
      %805 = vmatprep.subr.mxu0 0.0
      %806 = vmatpush1.msra.mxu0 0.0
      %807 = vmatprep.subr.mxu0 0.0
      %808 = vmatpush1.msra.mxu0 0.0
      %809 = vmatprep.subr.mxu0 0.0
      %810 = vmatpush1.msra.mxu0 0.0
      %811 = vmatprep.subr.mxu0 0.0
      %812 = vmatpush1.msra.mxu0 0.0
      %813 = vmatprep.subr.mxu0 0.0
      %814 = vmatpush1.msra.mxu0 0.0
      %815 = vmatprep.subr.mxu0 0.0
      %816 = vmatpush1.msra.mxu0 0.0
      %817 = vmatprep.subr.mxu0 0.0
      %818 = vmatpush1.msra.mxu0 0.0
      %819 = vmatprep.subr.mxu0 0.0
      %820 = vmatpush1.msra.mxu0 0.0
      %821 = vmatprep.subr.mxu0 0.0
      %822 = vmatpush1.msra.mxu0 0.0
      %823 = vmatprep.subr.mxu0 0.0
      %824 = vmatpush1.msra.mxu0 0.0
      %825 = vmatprep.subr.mxu0 0.0
      %826 = vmatpush1.msra.mxu0 0.0
      %827 = vmatprep.subr.mxu0 0.0
      %828 = vmatpush1.msra.mxu0 0.0
      %829 = vmatprep.subr.mxu0 0.0
      %830 = vmatpush1.msra.mxu0 0.0
      %831 = vmatprep.mubr.f32.mxu0 0.0
      %832 = vmatmul.mubr.f32.gmra.mrb[0].mxu0 %v668
      %v833 = vpop.f32.mrb[0].mxu0
      %v834 = vadd.f32 0.0, %v833
      %v835 = vpop.f32.mrb[0].mxu0
      %836 = vmatprep.mubr.f32.mxu0 0.0
      %837 = vmatmul.mubr.f32.gmra.mrb[0].mxu0 %v671
      %v838 = vpop.f32.mrb[0].mxu0
      %v839 = vadd.f32 0.0, %v838
      %v840 = vpop.f32.mrb[0].mxu0
      %841 = vmatprep.mubr.f32.mxu0 0.0
      %842 = vmatmul.mubr.f32.gmra.mrb[0].mxu0 %v674
      %v843 = vpop.f32.mrb[0].mxu0
      %v844 = vadd.f32 0.0, %v843
      %v845 = vpop.f32.mrb[0].mxu0
      %846 = vmatprep.mubr.f32.mxu0 0.0
      %847 = vmatmul.mubr.f32.gmra.mrb[0].mxu0 %v677
      %v848 = vpop.f32.mrb[0].mxu0
      %v849 = vadd.f32 0.0, %v848
      %v850 = vpop.f32.mrb[0].mxu0
      %851 = vmatprep.mubr.f32.mxu0 0.0
      %852 = vmatmul.mubr.f32.gmra.mrb[0].mxu0 %v680
      %v853 = vpop.f32.mrb[0].mxu0
      %v854 = vadd.f32 0.0, %v853
      %v855 = vpop.f32.mrb[0].mxu0
      %856 = vmatprep.mubr.f32.mxu0 0.0
      %857 = vmatmul.mubr.f32.gmra.mrb[0].mxu0 %v683
      %v858 = vpop.f32.mrb[0].mxu0
      %v859 = vadd.f32 0.0, %v858
      %v860 = vpop.f32.mrb[0].mxu0
      %861 = vmatprep.mubr.f32.mxu0 0.0
      %862 = vmatmul.mubr.f32.gmra.mrb[0].mxu0 %v686
      %v863 = vpop.f32.mrb[0].mxu0
      %v864 = vadd.f32 0.0, %v863
      %v865 = vpop.f32.mrb[0].mxu0
      %866 = vmatprep.mubr.f32.mxu0 0.0
      %867 = vmatmul.mubr.f32.gmra.mrb[0].mxu0 %v689
      %v868 = vpop.f32.mrb[0].mxu0
      %v869 = vadd.f32 0.0, %v868
      %v870 = vpop.f32.mrb[0].mxu0
      %871 = vmatprep.mubr.f32.mxu0 0.0
      %872 = vmatmul.mubr.f32.gmra.mrb[0].mxu0 %v692
      %v873 = vpop.f32.mrb[0].mxu0
      %v874 = vadd.f32 0.0, %v873
      %v875 = vpop.f32.mrb[0].mxu0
      %876 = vmatprep.mubr.f32.mxu0 0.0
      %877 = vmatmul.mubr.f32.gmra.mrb[0].mxu0 %v695
      %v878 = vpop.f32.mrb[0].mxu0
      %v879 = vadd.f32 0.0, %v878
      %v880 = vpop.f32.mrb[0].mxu0
      %881 = vmatprep.mubr.f32.mxu0 0.0
      %882 = vmatmul.mubr.f32.gmra.mrb[0].mxu0 %v698
      %v883 = vpop.f32.mrb[0].mxu0
      %v884 = vadd.f32 0.0, %v883
      %v885 = vpop.f32.mrb[0].mxu0
      %886 = vmatprep.mubr.f32.mxu0 0.0
      %887 = vmatmul.mubr.f32.gmra.mrb[0].mxu0 %v701
      %v888 = vpop.f32.mrb[0].mxu0
      %v889 = vadd.f32 0.0, %v888
      %v890 = vpop.f32.mrb[0].mxu0
      %891 = vmatprep.mubr.f32.mxu0 0.0
      %892 = vmatmul.mubr.f32.gmra.mrb[0].mxu0 %v704
      %v893 = vpop.f32.mrb[0].mxu0
      %v894 = vadd.f32 0.0, %v893
      %v895 = vpop.f32.mrb[0].mxu0
      %896 = vmatprep.mubr.f32.mxu0 0.0
      %897 = vmatmul.mubr.f32.gmra.mrb[0].mxu0 %v707
      %v898 = vpop.f32.mrb[0].mxu0
      %v899 = vadd.f32 0.0, %v898
      %v900 = vpop.f32.mrb[0].mxu0
      %901 = vmatprep.mubr.f32.mxu0 0.0
      %902 = vmatmul.mubr.f32.gmra.mrb[0].mxu0 %v710
      %v903 = vpop.f32.mrb[0].mxu0
      %v904 = vadd.f32 0.0, %v903
      %v905 = vpop.f32.mrb[0].mxu0
      %906 = vmatprep.mubr.f32.mxu0 0.0
      %907 = vmatmul.mubr.f32.gmra.mrb[0].mxu0 %v713
      %v908 = vpop.f32.mrb[0].mxu0
      %v909 = vadd.f32 0.0, %v908
      %v910 = vpop.f32.mrb[0].mxu0
      %911 = vmatprep.mubr.f32.mxu0 0.0
      %912 = vmatmul.mubr.f32.gmra.mrb[0].mxu0 %v716
      %v913 = vpop.f32.mrb[0].mxu0
      %v914 = vadd.f32 0.0, %v913
      %v915 = vpop.f32.mrb[0].mxu0
      %916 = vmatprep.mubr.f32.mxu0 0.0
      %917 = vmatmul.mubr.f32.gmra.mrb[0].mxu0 %v719
      %v918 = vpop.f32.mrb[0].mxu0
      %v919 = vadd.f32 0.0, %v918
      %v920 = vpop.f32.mrb[0].mxu0
      %921 = vmatprep.mubr.f32.mxu0 0.0
      %922 = vmatmul.mubr.f32.gmra.mrb[0].mxu0 %v722
      %v923 = vpop.f32.mrb[0].mxu0
      %v924 = vadd.f32 0.0, %v923
      %v925 = vpop.f32.mrb[0].mxu0
      %926 = vmatprep.mubr.f32.mxu0 0.0
      %927 = vmatmul.mubr.f32.gmra.mrb[0].mxu0 %v725
      %v928 = vpop.f32.mrb[0].mxu0
      %v929 = vadd.f32 0.0, %v928
      %v930 = vpop.f32.mrb[0].mxu0
      %931 = vmatprep.mubr.f32.mxu0 0.0
      %932 = vmatmul.mubr.f32.gmra.mrb[0].mxu0 %v728
      %v933 = vpop.f32.mrb[0].mxu0
      %v934 = vadd.f32 0.0, %v933
      %v935 = vpop.f32.mrb[0].mxu0
      %936 = vmatprep.mubr.f32.mxu0 0.0
      %937 = vmatmul.mubr.f32.gmra.mrb[0].mxu0 %v731
      %v938 = vpop.f32.mrb[0].mxu0
      %v939 = vadd.f32 0.0, %v938
      %v940 = vpop.f32.mrb[0].mxu0
      %941 = vmatprep.mubr.f32.mxu0 0.0
      %942 = vmatmul.mubr.f32.gmra.mrb[0].mxu0 %v734
      %v943 = vpop.f32.mrb[0].mxu0
      %v944 = vadd.f32 0.0, %v943
      %v945 = vpop.f32.mrb[0].mxu0
      %946 = vmatprep.mubr.f32.mxu0 0.0
      %947 = vmatmul.mubr.f32.gmra.mrb[0].mxu0 %v737
      %v948 = vpop.f32.mrb[0].mxu0
      %v949 = vadd.f32 0.0, %v948
      %v950 = vpop.f32.mrb[0].mxu0
      %951 = vmatprep.mubr.f32.mxu0 0.0
      %952 = vmatmul.mubr.f32.gmra.mrb[0].mxu0 %v740
      %v953 = vpop.f32.mrb[0].mxu0
      %v954 = vadd.f32 0.0, %v953
      %v955 = vpop.f32.mrb[0].mxu0
      %956 = vmatprep.mubr.f32.mxu0 0.0
      %957 = vmatmul.mubr.f32.gmra.mrb[0].mxu0 %v743
      %v958 = vpop.f32.mrb[0].mxu0
      %v959 = vadd.f32 0.0, %v958
      %v960 = vpop.f32.mrb[0].mxu0
      %961 = vmatprep.mubr.f32.mxu0 0.0
      %962 = vmatmul.mubr.f32.gmra.mrb[0].mxu0 %v746
      %v963 = vpop.f32.mrb[0].mxu0
      %v964 = vadd.f32 0.0, %v963
      %v965 = vpop.f32.mrb[0].mxu0
      %966 = vmatprep.mubr.f32.mxu0 0.0
      %967 = vmatmul.mubr.f32.gmra.mrb[0].mxu0 %v749
      %v968 = vpop.f32.mrb[0].mxu0
      %v969 = vadd.f32 0.0, %v968
      %v970 = vpop.f32.mrb[0].mxu0
      %971 = vmatprep.mubr.f32.mxu0 0.0
      %972 = vmatmul.mubr.f32.gmra.mrb[0].mxu0 %v752
      %v973 = vpop.f32.mrb[0].mxu0
      %v974 = vadd.f32 0.0, %v973
      %v975 = vpop.f32.mrb[0].mxu0
      %976 = vmatprep.mubr.f32.mxu0 0.0
      %977 = vmatmul.mubr.f32.gmra.mrb[0].mxu0 %v755
      %v978 = vpop.f32.mrb[0].mxu0
      %v979 = vadd.f32 0.0, %v978
      %v980 = vpop.f32.mrb[0].mxu0
      %981 = vmatprep.mubr.f32.mxu0 0.0
      %982 = vmatmul.mubr.f32.gmra.mrb[0].mxu0 %v758
      %v983 = vpop.f32.mrb[0].mxu0
      %v984 = vadd.f32 0.0, %v983
      %v985 = vpop.f32.mrb[0].mxu0
      %986 = vmatprep.mubr.f32.mxu0 0.0
      %987 = vmatmul.mubr.f32.gmra.mrb[0].mxu0 %v761
      %v988 = vpop.f32.mrb[0].mxu0
      %v989 = vadd.f32 0.0, %v988
      %v990 = vpop.f32.mrb[0].mxu0
      %991 = vdwg.mxu0
      %v993 = vsel %vm666, %v599, 0
      %v996 = vsel %vm666, %v600, 0
      %v999 = vsel %vm666, %v601, 0
      %v1002 = vsel %vm666, %v602, 0
      %v1005 = vsel %vm666, %v603, 0
      %v1008 = vsel %vm666, %v604, 0
      %v1011 = vsel %vm666, %v605, 0
      %v1014 = vsel %vm666, %v606, 0
      %v1017 = vsel %vm666, %v607, 0
      %v1020 = vsel %vm666, %v608, 0
      %v1023 = vsel %vm666, %v609, 0
      %v1026 = vsel %vm666, %v610, 0
      %v1029 = vsel %vm666, %v611, 0
      %v1032 = vsel %vm666, %v612, 0
      %v1035 = vsel %vm666, %v613, 0
      %v1038 = vsel %vm666, %v614, 0
      %v1041 = vsel %vm666, %v615, 0
      %v1044 = vsel %vm666, %v616, 0
      %v1047 = vsel %vm666, %v617, 0
      %v1050 = vsel %vm666, %v618, 0
      %v1053 = vsel %vm666, %v619, 0
      %v1056 = vsel %vm666, %v620, 0
      %v1059 = vsel %vm666, %v621, 0
      %v1062 = vsel %vm666, %v622, 0
      %v1065 = vsel %vm666, %v623, 0
      %v1068 = vsel %vm666, %v624, 0
      %v1071 = vsel %vm666, %v625, 0
      %v1074 = vsel %vm666, %v626, 0
      %v1077 = vsel %vm666, %v627, 0
      %v1080 = vsel %vm666, %v628, 0
      %v1083 = vsel %vm666, %v629, 0
      %v1086 = vsel %vm666, %v630, 0
      %v1089 = vsel %vm763, %v631, 0
      %1091 = vmatprep.subr.mxu0 0.0
      %1092 = vmatpush1.msra.mxu0 %v1089
      %1093 = vmatprep.subr.mxu0 0.0
      %1094 = vmatpush1.msra.mxu0 0.0
      %1095 = vmatprep.subr.mxu0 0.0
      %1096 = vmatpush1.msra.mxu0 0.0
      %1097 = vmatprep.subr.mxu0 0.0
      %1098 = vmatpush1.msra.mxu0 0.0
      %1099 = vmatprep.subr.mxu0 0.0
      %1100 = vmatpush1.msra.mxu0 0.0
      %1101 = vmatprep.subr.mxu0 0.0
      %1102 = vmatpush1.msra.mxu0 0.0
      %1103 = vmatprep.subr.mxu0 0.0
      %1104 = vmatpush1.msra.mxu0 0.0
      %1105 = vmatprep.subr.mxu0 0.0
      %1106 = vmatpush1.msra.mxu0 0.0
      %1107 = vmatprep.subr.mxu0 0.0
      %1108 = vmatpush1.msra.mxu0 0.0
      %1109 = vmatprep.subr.mxu0 0.0
      %1110 = vmatpush1.msra.mxu0 0.0
      %1111 = vmatprep.subr.mxu0 0.0
      %1112 = vmatpush1.msra.mxu0 0.0
      %1113 = vmatprep.subr.mxu0 0.0
      %1114 = vmatpush1.msra.mxu0 0.0
      %1115 = vmatprep.subr.mxu0 0.0
      %1116 = vmatpush1.msra.mxu0 0.0
      %1117 = vmatprep.subr.mxu0 0.0
      %1118 = vmatpush1.msra.mxu0 0.0
      %1119 = vmatprep.subr.mxu0 0.0
      %1120 = vmatpush1.msra.mxu0 0.0
      %1121 = vmatprep.subr.mxu0 0.0
      %1122 = vmatpush1.msra.mxu0 0.0
      %1123 = vmatprep.subr.mxu0 0.0
      %1124 = vmatpush1.msra.mxu0 0.0
      %1125 = vmatprep.subr.mxu0 0.0
      %1126 = vmatpush1.msra.mxu0 0.0
      %1127 = vmatprep.subr.mxu0 0.0
      %1128 = vmatpush1.msra.mxu0 0.0
      %1129 = vmatprep.subr.mxu0 0.0
      %1130 = vmatpush1.msra.mxu0 0.0
      %1131 = vmatprep.subr.mxu0 0.0
      %1132 = vmatpush1.msra.mxu0 0.0
      %1133 = vmatprep.subr.mxu0 0.0
      %1134 = vmatpush1.msra.mxu0 0.0
      %1135 = vmatprep.subr.mxu0 0.0
      %1136 = vmatpush1.msra.mxu0 0.0
      %1137 = vmatprep.subr.mxu0 0.0
      %1138 = vmatpush1.msra.mxu0 0.0
      %1139 = vmatprep.subr.mxu0 0.0
      %1140 = vmatpush1.msra.mxu0 0.0
      %1141 = vmatprep.subr.mxu0 0.0
      %1142 = vmatpush1.msra.mxu0 0.0
      %1143 = vmatprep.subr.mxu0 0.0
      %1144 = vmatpush1.msra.mxu0 0.0
      %1145 = vmatprep.subr.mxu0 0.0
      %1146 = vmatpush1.msra.mxu0 0.0
      %1147 = vmatprep.subr.mxu0 0.0
      %1148 = vmatpush1.msra.mxu0 0.0
      %1149 = vmatprep.subr.mxu0 0.0
      %1150 = vmatpush1.msra.mxu0 0.0
      %1151 = vmatprep.subr.mxu0 0.0
      %1152 = vmatpush1.msra.mxu0 0.0
      %1153 = vmatprep.subr.mxu0 0.0
      %1154 = vmatpush1.msra.mxu0 0.0
      %1155 = vmatprep.mubr.f32.mxu0 0.0
      %1156 = vmatmul.mubr.f32.gmra.mrb[0].mxu0 %v993
      %v1157 = vpop.f32.mrb[0].mxu0
      %v1158 = vadd.f32 %v834, %v1157
      %v1159 = vpop.f32.mrb[0].mxu0
      %1160 = vmatprep.mubr.f32.mxu0 0.0
      %1161 = vmatmul.mubr.f32.gmra.mrb[0].mxu0 %v996
      %v1162 = vpop.f32.mrb[0].mxu0
      %v1163 = vadd.f32 %v839, %v1162
      %v1164 = vpop.f32.mrb[0].mxu0
      %1165 = vmatprep.mubr.f32.mxu0 0.0
      %1166 = vmatmul.mubr.f32.gmra.mrb[0].mxu0 %v999
      %v1167 = vpop.f32.mrb[0].mxu0
      %v1168 = vadd.f32 %v844, %v1167
      %v1169 = vpop.f32.mrb[0].mxu0
      %1170 = vmatprep.mubr.f32.mxu0 0.0
      %1171 = vmatmul.mubr.f32.gmra.mrb[0].mxu0 %v1002
      %v1172 = vpop.f32.mrb[0].mxu0
      %v1173 = vadd.f32 %v849, %v1172
      %v1174 = vpop.f32.mrb[0].mxu0
      %1175 = vmatprep.mubr.f32.mxu0 0.0
      %1176 = vmatmul.mubr.f32.gmra.mrb[0].mxu0 %v1005
      %v1177 = vpop.f32.mrb[0].mxu0
      %v1178 = vadd.f32 %v854, %v1177
      %v1179 = vpop.f32.mrb[0].mxu0
      %1180 = vmatprep.mubr.f32.mxu0 0.0
      %1181 = vmatmul.mubr.f32.gmra.mrb[0].mxu0 %v1008
      %v1182 = vpop.f32.mrb[0].mxu0
      %v1183 = vadd.f32 %v859, %v1182
      %v1184 = vpop.f32.mrb[0].mxu0
      %1185 = vmatprep.mubr.f32.mxu0 0.0
      %1186 = vmatmul.mubr.f32.gmra.mrb[0].mxu0 %v1011
      %v1187 = vpop.f32.mrb[0].mxu0
      %v1188 = vadd.f32 %v864, %v1187
      %v1189 = vpop.f32.mrb[0].mxu0
      %1190 = vmatprep.mubr.f32.mxu0 0.0
      %1191 = vmatmul.mubr.f32.gmra.mrb[0].mxu0 %v1014
      %v1192 = vpop.f32.mrb[0].mxu0
      %v1193 = vadd.f32 %v869, %v1192
      %v1194 = vpop.f32.mrb[0].mxu0
      %1195 = vmatprep.mubr.f32.mxu0 0.0
      %1196 = vmatmul.mubr.f32.gmra.mrb[0].mxu0 %v1017
      %v1197 = vpop.f32.mrb[0].mxu0
      %v1198 = vadd.f32 %v874, %v1197
      %v1199 = vpop.f32.mrb[0].mxu0
      %1200 = vmatprep.mubr.f32.mxu0 0.0
      %1201 = vmatmul.mubr.f32.gmra.mrb[0].mxu0 %v1020
      %v1202 = vpop.f32.mrb[0].mxu0
      %v1203 = vadd.f32 %v879, %v1202
      %v1204 = vpop.f32.mrb[0].mxu0
      %1205 = vmatprep.mubr.f32.mxu0 0.0
      %1206 = vmatmul.mubr.f32.gmra.mrb[0].mxu0 %v1023
      %v1207 = vpop.f32.mrb[0].mxu0
      %v1208 = vadd.f32 %v884, %v1207
      %v1209 = vpop.f32.mrb[0].mxu0
      %1210 = vmatprep.mubr.f32.mxu0 0.0
      %1211 = vmatmul.mubr.f32.gmra.mrb[0].mxu0 %v1026
      %v1212 = vpop.f32.mrb[0].mxu0
      %v1213 = vadd.f32 %v889, %v1212
      %v1214 = vpop.f32.mrb[0].mxu0
      %1215 = vmatprep.mubr.f32.mxu0 0.0
      %1216 = vmatmul.mubr.f32.gmra.mrb[0].mxu0 %v1029
      %v1217 = vpop.f32.mrb[0].mxu0
      %v1218 = vadd.f32 %v894, %v1217
      %v1219 = vpop.f32.mrb[0].mxu0
      %1220 = vmatprep.mubr.f32.mxu0 0.0
      %1221 = vmatmul.mubr.f32.gmra.mrb[0].mxu0 %v1032
      %v1222 = vpop.f32.mrb[0].mxu0
      %v1223 = vadd.f32 %v899, %v1222
      %v1224 = vpop.f32.mrb[0].mxu0
      %1225 = vmatprep.mubr.f32.mxu0 0.0
      %1226 = vmatmul.mubr.f32.gmra.mrb[0].mxu0 %v1035
      %v1227 = vpop.f32.mrb[0].mxu0
      %v1228 = vadd.f32 %v904, %v1227
      %v1229 = vpop.f32.mrb[0].mxu0
      %1230 = vmatprep.mubr.f32.mxu0 0.0
      %1231 = vmatmul.mubr.f32.gmra.mrb[0].mxu0 %v1038
      %v1232 = vpop.f32.mrb[0].mxu0
      %v1233 = vadd.f32 %v909, %v1232
      %v1234 = vpop.f32.mrb[0].mxu0
      %1235 = vmatprep.mubr.f32.mxu0 0.0
      %1236 = vmatmul.mubr.f32.gmra.mrb[0].mxu0 %v1041
      %v1237 = vpop.f32.mrb[0].mxu0
      %v1238 = vadd.f32 %v914, %v1237
      %v1239 = vpop.f32.mrb[0].mxu0
      %1240 = vmatprep.mubr.f32.mxu0 0.0
      %1241 = vmatmul.mubr.f32.gmra.mrb[0].mxu0 %v1044
      %v1242 = vpop.f32.mrb[0].mxu0
      %v1243 = vadd.f32 %v919, %v1242
      %v1244 = vpop.f32.mrb[0].mxu0
      %1245 = vmatprep.mubr.f32.mxu0 0.0
      %1246 = vmatmul.mubr.f32.gmra.mrb[0].mxu0 %v1047
      %v1247 = vpop.f32.mrb[0].mxu0
      %v1248 = vadd.f32 %v924, %v1247
      %v1249 = vpop.f32.mrb[0].mxu0
      %1250 = vmatprep.mubr.f32.mxu0 0.0
      %1251 = vmatmul.mubr.f32.gmra.mrb[0].mxu0 %v1050
      %v1252 = vpop.f32.mrb[0].mxu0
      %v1253 = vadd.f32 %v929, %v1252
      %v1254 = vpop.f32.mrb[0].mxu0
      %1255 = vmatprep.mubr.f32.mxu0 0.0
      %1256 = vmatmul.mubr.f32.gmra.mrb[0].mxu0 %v1053
      %v1257 = vpop.f32.mrb[0].mxu0
      %v1258 = vadd.f32 %v934, %v1257
      %v1259 = vpop.f32.mrb[0].mxu0
      %1260 = vmatprep.mubr.f32.mxu0 0.0
      %1261 = vmatmul.mubr.f32.gmra.mrb[0].mxu0 %v1056
      %v1262 = vpop.f32.mrb[0].mxu0
      %v1263 = vadd.f32 %v939, %v1262
      %v1264 = vpop.f32.mrb[0].mxu0
      %1265 = vmatprep.mubr.f32.mxu0 0.0
      %1266 = vmatmul.mubr.f32.gmra.mrb[0].mxu0 %v1059
      %v1267 = vpop.f32.mrb[0].mxu0
      %v1268 = vadd.f32 %v944, %v1267
      %v1269 = vpop.f32.mrb[0].mxu0
      %1270 = vmatprep.mubr.f32.mxu0 0.0
      %1271 = vmatmul.mubr.f32.gmra.mrb[0].mxu0 %v1062
      %v1272 = vpop.f32.mrb[0].mxu0
      %v1273 = vadd.f32 %v949, %v1272
      %v1274 = vpop.f32.mrb[0].mxu0
      %1275 = vmatprep.mubr.f32.mxu0 0.0
      %1276 = vmatmul.mubr.f32.gmra.mrb[0].mxu0 %v1065
      %v1277 = vpop.f32.mrb[0].mxu0
      %v1278 = vadd.f32 %v954, %v1277
      %v1279 = vpop.f32.mrb[0].mxu0
      %1280 = vmatprep.mubr.f32.mxu0 0.0
      %1281 = vmatmul.mubr.f32.gmra.mrb[0].mxu0 %v1068
      %v1282 = vpop.f32.mrb[0].mxu0
      %v1283 = vadd.f32 %v959, %v1282
      %v1284 = vpop.f32.mrb[0].mxu0
      %1285 = vmatprep.mubr.f32.mxu0 0.0
      %1286 = vmatmul.mubr.f32.gmra.mrb[0].mxu0 %v1071
      %v1287 = vpop.f32.mrb[0].mxu0
      %v1288 = vadd.f32 %v964, %v1287
      %v1289 = vpop.f32.mrb[0].mxu0
      %1290 = vmatprep.mubr.f32.mxu0 0.0
      %1291 = vmatmul.mubr.f32.gmra.mrb[0].mxu0 %v1074
      %v1292 = vpop.f32.mrb[0].mxu0
      %v1293 = vadd.f32 %v969, %v1292
      %v1294 = vpop.f32.mrb[0].mxu0
      %1295 = vmatprep.mubr.f32.mxu0 0.0
      %1296 = vmatmul.mubr.f32.gmra.mrb[0].mxu0 %v1077
      %v1297 = vpop.f32.mrb[0].mxu0
      %v1298 = vadd.f32 %v974, %v1297
      %v1299 = vpop.f32.mrb[0].mxu0
      %1300 = vmatprep.mubr.f32.mxu0 0.0
      %1301 = vmatmul.mubr.f32.gmra.mrb[0].mxu0 %v1080
      %v1302 = vpop.f32.mrb[0].mxu0
      %v1303 = vadd.f32 %v979, %v1302
      %v1304 = vpop.f32.mrb[0].mxu0
      %1305 = vmatprep.mubr.f32.mxu0 0.0
      %1306 = vmatmul.mubr.f32.gmra.mrb[0].mxu0 %v1083
      %v1307 = vpop.f32.mrb[0].mxu0
      %v1308 = vadd.f32 %v984, %v1307
      %v1309 = vpop.f32.mrb[0].mxu0
      %1310 = vmatprep.mubr.f32.mxu0 0.0
      %1311 = vmatmul.mubr.f32.gmra.mrb[0].mxu0 %v1086
      %v1312 = vpop.f32.mrb[0].mxu0
      %v1313 = vadd.f32 %v989, %v1312
      %v1314 = vpop.f32.mrb[0].mxu0
      %1315 = vdwg.mxu0
      %v1316 = vld [vmem:[%s595 + $0x2] sm:$0xff]
      %v1317 = vld [vmem:[%s595 + $0xa] sm:$0xff]
      %v1318 = vld [vmem:[%s595 + $0x12] sm:$0xff]
      %v1319 = vld [vmem:[%s595 + $0x1a] sm:$0xff]
      %v1320 = vld [vmem:[%s595 + $0x22] sm:$0xff]
      %v1321 = vld [vmem:[%s595 + $0x2a] sm:$0xff]
      %v1322 = vld [vmem:[%s595 + $0x32] sm:$0xff]
      %v1323 = vld [vmem:[%s595 + $0x3a] sm:$0xff]
      %v1324 = vld [vmem:[%s595 + $0x42] sm:$0xff]
      %v1325 = vld [vmem:[%s595 + $0x4a] sm:$0xff]
      %v1326 = vld [vmem:[%s595 + $0x52] sm:$0xff]
      %v1327 = vld [vmem:[%s595 + $0x5a] sm:$0xff]
      %v1328 = vld [vmem:[%s595 + $0x62] sm:$0xff]
      %v1329 = vld [vmem:[%s595 + $0x6a] sm:$0xff]
      %v1330 = vld [vmem:[%s595 + $0x72] sm:$0xff]
      %v1331 = vld [vmem:[%s595 + $0x7a] sm:$0xff]
      %v1332 = vld [vmem:[%s595 + $0x82] sm:$0xff]
      %v1333 = vld [vmem:[%s595 + $0x8a] sm:$0xff]
      %v1334 = vld [vmem:[%s595 + $0x92] sm:$0xff]
      %v1335 = vld [vmem:[%s595 + $0x9a] sm:$0xff]
      %v1336 = vld [vmem:[%s595 + $0xa2] sm:$0xff]
      %v1337 = vld [vmem:[%s595 + $0xaa] sm:$0xff]
      %v1338 = vld [vmem:[%s595 + $0xb2] sm:$0xff]
      %v1339 = vld [vmem:[%s595 + $0xba] sm:$0xff]
      %v1340 = vld [vmem:[%s595 + $0xc2] sm:$0xff]
      %v1341 = vld [vmem:[%s595 + $0xca] sm:$0xff]
      %v1342 = vld [vmem:[%s595 + $0xd2] sm:$0xff]
      %v1343 = vld [vmem:[%s595 + $0xda] sm:$0xff]
      %v1344 = vld [vmem:[%s595 + $0xe2] sm:$0xff]
      %v1345 = vld [vmem:[%s595 + $0xea] sm:$0xff]
      %v1346 = vld [vmem:[%s595 + $0xf2] sm:$0xff]
      %v1347 = vld [vmem:[%s595 + $0xfa] sm:$0xff]
      %s1348 = scalar_lea.vmem %s1, 4
      %v1349 = vld [vmem:[%s1348] sm:$0x3]
      %v1351 = vsel %vm666, %v1316, 0
      %v1354 = vsel %vm666, %v1317, 0
      %v1357 = vsel %vm666, %v1318, 0
      %v1360 = vsel %vm666, %v1319, 0
      %v1363 = vsel %vm666, %v1320, 0
      %v1366 = vsel %vm666, %v1321, 0
      %v1369 = vsel %vm666, %v1322, 0
      %v1372 = vsel %vm666, %v1323, 0
      %v1375 = vsel %vm666, %v1324, 0
      %v1378 = vsel %vm666, %v1325, 0
      %v1381 = vsel %vm666, %v1326, 0
      %v1384 = vsel %vm666, %v1327, 0
      %v1387 = vsel %vm666, %v1328, 0
      %v1390 = vsel %vm666, %v1329, 0
      %v1393 = vsel %vm666, %v1330, 0
      %v1396 = vsel %vm666, %v1331, 0
      %v1399 = vsel %vm666, %v1332, 0
      %v1402 = vsel %vm666, %v1333, 0
      %v1405 = vsel %vm666, %v1334, 0
      %v1408 = vsel %vm666, %v1335, 0
      %v1411 = vsel %vm666, %v1336, 0
      %v1414 = vsel %vm666, %v1337, 0
      %v1417 = vsel %vm666, %v1338, 0
      %v1420 = vsel %vm666, %v1339, 0
      %v1423 = vsel %vm666, %v1340, 0
      %v1426 = vsel %vm666, %v1341, 0
      %v1429 = vsel %vm666, %v1342, 0
      %v1432 = vsel %vm666, %v1343, 0
      %v1435 = vsel %vm666, %v1344, 0
      %v1438 = vsel %vm666, %v1345, 0
      %v1441 = vsel %vm666, %v1346, 0
      %v1444 = vsel %vm666, %v1347, 0
      %v1447 = vsel %vm763, %v1349, 0
      %1449 = vmatprep.subr.mxu0 0.0
      %1450 = vmatpush1.msra.mxu0 %v1447
      %1451 = vmatprep.subr.mxu0 0.0
      %1452 = vmatpush1.msra.mxu0 0.0
      %1453 = vmatprep.subr.mxu0 0.0
      %1454 = vmatpush1.msra.mxu0 0.0
      %1455 = vmatprep.subr.mxu0 0.0
      %1456 = vmatpush1.msra.mxu0 0.0
      %1457 = vmatprep.subr.mxu0 0.0
      %1458 = vmatpush1.msra.mxu0 0.0
      %1459 = vmatprep.subr.mxu0 0.0
      %1460 = vmatpush1.msra.mxu0 0.0
      %1461 = vmatprep.subr.mxu0 0.0
      %1462 = vmatpush1.msra.mxu0 0.0
      %1463 = vmatprep.subr.mxu0 0.0
      %1464 = vmatpush1.msra.mxu0 0.0
      %1465 = vmatprep.subr.mxu0 0.0
      %1466 = vmatpush1.msra.mxu0 0.0
      %1467 = vmatprep.subr.mxu0 0.0
      %1468 = vmatpush1.msra.mxu0 0.0
      %1469 = vmatprep.subr.mxu0 0.0
      %1470 = vmatpush1.msra.mxu0 0.0
      %1471 = vmatprep.subr.mxu0 0.0
      %1472 = vmatpush1.msra.mxu0 0.0
      %1473 = vmatprep.subr.mxu0 0.0
      %1474 = vmatpush1.msra.mxu0 0.0
      %1475 = vmatprep.subr.mxu0 0.0
      %1476 = vmatpush1.msra.mxu0 0.0
      %1477 = vmatprep.subr.mxu0 0.0
      %1478 = vmatpush1.msra.mxu0 0.0
      %1479 = vmatprep.subr.mxu0 0.0
      %1480 = vmatpush1.msra.mxu0 0.0
      %1481 = vmatprep.subr.mxu0 0.0
      %1482 = vmatpush1.msra.mxu0 0.0
      %1483 = vmatprep.subr.mxu0 0.0
      %1484 = vmatpush1.msra.mxu0 0.0
      %1485 = vmatprep.subr.mxu0 0.0
      %1486 = vmatpush1.msra.mxu0 0.0
      %1487 = vmatprep.subr.mxu0 0.0
      %1488 = vmatpush1.msra.mxu0 0.0
      %1489 = vmatprep.subr.mxu0 0.0
      %1490 = vmatpush1.msra.mxu0 0.0
      %1491 = vmatprep.subr.mxu0 0.0
      %1492 = vmatpush1.msra.mxu0 0.0
      %1493 = vmatprep.subr.mxu0 0.0
      %1494 = vmatpush1.msra.mxu0 0.0
      %1495 = vmatprep.subr.mxu0 0.0
      %1496 = vmatpush1.msra.mxu0 0.0
      %1497 = vmatprep.subr.mxu0 0.0
      %1498 = vmatpush1.msra.mxu0 0.0
      %1499 = vmatprep.subr.mxu0 0.0
      %1500 = vmatpush1.msra.mxu0 0.0
      %1501 = vmatprep.subr.mxu0 0.0
      %1502 = vmatpush1.msra.mxu0 0.0
      %1503 = vmatprep.subr.mxu0 0.0
      %1504 = vmatpush1.msra.mxu0 0.0
      %1505 = vmatprep.subr.mxu0 0.0
      %1506 = vmatpush1.msra.mxu0 0.0
      %1507 = vmatprep.subr.mxu0 0.0
      %1508 = vmatpush1.msra.mxu0 0.0
      %1509 = vmatprep.subr.mxu0 0.0
      %1510 = vmatpush1.msra.mxu0 0.0
      %1511 = vmatprep.subr.mxu0 0.0
      %1512 = vmatpush1.msra.mxu0 0.0
      %1513 = vmatprep.mubr.f32.mxu0 0.0
      %1514 = vmatmul.mubr.f32.gmra.mrb[0].mxu0 %v1351
      %v1515 = vpop.f32.mrb[0].mxu0
      %v1516 = vadd.f32 0.0, %v1515
      %v1517 = vpop.f32.mrb[0].mxu0
      %1518 = vmatprep.mubr.f32.mxu0 0.0
      %1519 = vmatmul.mubr.f32.gmra.mrb[0].mxu0 %v1354
      %v1520 = vpop.f32.mrb[0].mxu0
      %v1521 = vadd.f32 0.0, %v1520
      %v1522 = vpop.f32.mrb[0].mxu0
      %1523 = vmatprep.mubr.f32.mxu0 0.0
      %1524 = vmatmul.mubr.f32.gmra.mrb[0].mxu0 %v1357
      %v1525 = vpop.f32.mrb[0].mxu0
      %v1526 = vadd.f32 0.0, %v1525
      %v1527 = vpop.f32.mrb[0].mxu0
      %1528 = vmatprep.mubr.f32.mxu0 0.0
      %1529 = vmatmul.mubr.f32.gmra.mrb[0].mxu0 %v1360
      %v1530 = vpop.f32.mrb[0].mxu0
      %v1531 = vadd.f32 0.0, %v1530
      %v1532 = vpop.f32.mrb[0].mxu0
      %1533 = vmatprep.mubr.f32.mxu0 0.0
      %1534 = vmatmul.mubr.f32.gmra.mrb[0].mxu0 %v1363
      %v1535 = vpop.f32.mrb[0].mxu0
      %v1536 = vadd.f32 0.0, %v1535
      %v1537 = vpop.f32.mrb[0].mxu0
      %1538 = vmatprep.mubr.f32.mxu0 0.0
      %1539 = vmatmul.mubr.f32.gmra.mrb[0].mxu0 %v1366
      %v1540 = vpop.f32.mrb[0].mxu0
      %v1541 = vadd.f32 0.0, %v1540
      %v1542 = vpop.f32.mrb[0].mxu0
      %1543 = vmatprep.mubr.f32.mxu0 0.0
      %1544 = vmatmul.mubr.f32.gmra.mrb[0].mxu0 %v1369
      %v1545 = vpop.f32.mrb[0].mxu0
      %v1546 = vadd.f32 0.0, %v1545
      %v1547 = vpop.f32.mrb[0].mxu0
      %1548 = vmatprep.mubr.f32.mxu0 0.0
      %1549 = vmatmul.mubr.f32.gmra.mrb[0].mxu0 %v1372
      %v1550 = vpop.f32.mrb[0].mxu0
      %v1551 = vadd.f32 0.0, %v1550
      %v1552 = vpop.f32.mrb[0].mxu0
      %1553 = vmatprep.mubr.f32.mxu0 0.0
      %1554 = vmatmul.mubr.f32.gmra.mrb[0].mxu0 %v1375
      %v1555 = vpop.f32.mrb[0].mxu0
      %v1556 = vadd.f32 0.0, %v1555
      %v1557 = vpop.f32.mrb[0].mxu0
      %1558 = vmatprep.mubr.f32.mxu0 0.0
      %1559 = vmatmul.mubr.f32.gmra.mrb[0].mxu0 %v1378
      %v1560 = vpop.f32.mrb[0].mxu0
      %v1561 = vadd.f32 0.0, %v1560
      %v1562 = vpop.f32.mrb[0].mxu0
      %1563 = vmatprep.mubr.f32.mxu0 0.0
      %1564 = vmatmul.mubr.f32.gmra.mrb[0].mxu0 %v1381
      %v1565 = vpop.f32.mrb[0].mxu0
      %v1566 = vadd.f32 0.0, %v1565
      %v1567 = vpop.f32.mrb[0].mxu0
      %1568 = vmatprep.mubr.f32.mxu0 0.0
      %1569 = vmatmul.mubr.f32.gmra.mrb[0].mxu0 %v1384
      %v1570 = vpop.f32.mrb[0].mxu0
      %v1571 = vadd.f32 0.0, %v1570
      %v1572 = vpop.f32.mrb[0].mxu0
      %1573 = vmatprep.mubr.f32.mxu0 0.0
      %1574 = vmatmul.mubr.f32.gmra.mrb[0].mxu0 %v1387
      %v1575 = vpop.f32.mrb[0].mxu0
      %v1576 = vadd.f32 0.0, %v1575
      %v1577 = vpop.f32.mrb[0].mxu0
      %1578 = vmatprep.mubr.f32.mxu0 0.0
      %1579 = vmatmul.mubr.f32.gmra.mrb[0].mxu0 %v1390
      %v1580 = vpop.f32.mrb[0].mxu0
      %v1581 = vadd.f32 0.0, %v1580
      %v1582 = vpop.f32.mrb[0].mxu0
      %1583 = vmatprep.mubr.f32.mxu0 0.0
      %1584 = vmatmul.mubr.f32.gmra.mrb[0].mxu0 %v1393
      %v1585 = vpop.f32.mrb[0].mxu0
      %v1586 = vadd.f32 0.0, %v1585
      %v1587 = vpop.f32.mrb[0].mxu0
      %1588 = vmatprep.mubr.f32.mxu0 0.0
      %1589 = vmatmul.mubr.f32.gmra.mrb[0].mxu0 %v1396
      %v1590 = vpop.f32.mrb[0].mxu0
      %v1591 = vadd.f32 0.0, %v1590
      %v1592 = vpop.f32.mrb[0].mxu0
      %1593 = vmatprep.mubr.f32.mxu0 0.0
      %1594 = vmatmul.mubr.f32.gmra.mrb[0].mxu0 %v1399
      %v1595 = vpop.f32.mrb[0].mxu0
      %v1596 = vadd.f32 0.0, %v1595
      %v1597 = vpop.f32.mrb[0].mxu0
      %1598 = vmatprep.mubr.f32.mxu0 0.0
      %1599 = vmatmul.mubr.f32.gmra.mrb[0].mxu0 %v1402
      %v1600 = vpop.f32.mrb[0].mxu0
      %v1601 = vadd.f32 0.0, %v1600
      %v1602 = vpop.f32.mrb[0].mxu0
      %1603 = vmatprep.mubr.f32.mxu0 0.0
      %1604 = vmatmul.mubr.f32.gmra.mrb[0].mxu0 %v1405
      %v1605 = vpop.f32.mrb[0].mxu0
      %v1606 = vadd.f32 0.0, %v1605
      %v1607 = vpop.f32.mrb[0].mxu0
      %1608 = vmatprep.mubr.f32.mxu0 0.0
      %1609 = vmatmul.mubr.f32.gmra.mrb[0].mxu0 %v1408
      %v1610 = vpop.f32.mrb[0].mxu0
      %v1611 = vadd.f32 0.0, %v1610
      %v1612 = vpop.f32.mrb[0].mxu0
      %1613 = vmatprep.mubr.f32.mxu0 0.0
      %1614 = vmatmul.mubr.f32.gmra.mrb[0].mxu0 %v1411
      %v1615 = vpop.f32.mrb[0].mxu0
      %v1616 = vadd.f32 0.0, %v1615
      %v1617 = vpop.f32.mrb[0].mxu0
      %1618 = vmatprep.mubr.f32.mxu0 0.0
      %1619 = vmatmul.mubr.f32.gmra.mrb[0].mxu0 %v1414
      %v1620 = vpop.f32.mrb[0].mxu0
      %v1621 = vadd.f32 0.0, %v1620
      %v1622 = vpop.f32.mrb[0].mxu0
      %1623 = vmatprep.mubr.f32.mxu0 0.0
      %1624 = vmatmul.mubr.f32.gmra.mrb[0].mxu0 %v1417
      %v1625 = vpop.f32.mrb[0].mxu0
      %v1626 = vadd.f32 0.0, %v1625
      %v1627 = vpop.f32.mrb[0].mxu0
      %1628 = vmatprep.mubr.f32.mxu0 0.0
      %1629 = vmatmul.mubr.f32.gmra.mrb[0].mxu0 %v1420
      %v1630 = vpop.f32.mrb[0].mxu0
      %v1631 = vadd.f32 0.0, %v1630
      %v1632 = vpop.f32.mrb[0].mxu0
      %1633 = vmatprep.mubr.f32.mxu0 0.0
      %1634 = vmatmul.mubr.f32.gmra.mrb[0].mxu0 %v1423
      %v1635 = vpop.f32.mrb[0].mxu0
      %v1636 = vadd.f32 0.0, %v1635
      %v1637 = vpop.f32.mrb[0].mxu0
      %1638 = vmatprep.mubr.f32.mxu0 0.0
      %1639 = vmatmul.mubr.f32.gmra.mrb[0].mxu0 %v1426
      %v1640 = vpop.f32.mrb[0].mxu0
      %v1641 = vadd.f32 0.0, %v1640
      %v1642 = vpop.f32.mrb[0].mxu0
      %1643 = vmatprep.mubr.f32.mxu0 0.0
      %1644 = vmatmul.mubr.f32.gmra.mrb[0].mxu0 %v1429
      %v1645 = vpop.f32.mrb[0].mxu0
      %v1646 = vadd.f32 0.0, %v1645
      %v1647 = vpop.f32.mrb[0].mxu0
      %1648 = vmatprep.mubr.f32.mxu0 0.0
      %1649 = vmatmul.mubr.f32.gmra.mrb[0].mxu0 %v1432
      %v1650 = vpop.f32.mrb[0].mxu0
      %v1651 = vadd.f32 0.0, %v1650
      %v1652 = vpop.f32.mrb[0].mxu0
      %1653 = vmatprep.mubr.f32.mxu0 0.0
      %1654 = vmatmul.mubr.f32.gmra.mrb[0].mxu0 %v1435
      %v1655 = vpop.f32.mrb[0].mxu0
      %v1656 = vadd.f32 0.0, %v1655
      %v1657 = vpop.f32.mrb[0].mxu0
      %1658 = vmatprep.mubr.f32.mxu0 0.0
      %1659 = vmatmul.mubr.f32.gmra.mrb[0].mxu0 %v1438
      %v1660 = vpop.f32.mrb[0].mxu0
      %v1661 = vadd.f32 0.0, %v1660
      %v1662 = vpop.f32.mrb[0].mxu0
      %1663 = vmatprep.mubr.f32.mxu0 0.0
      %1664 = vmatmul.mubr.f32.gmra.mrb[0].mxu0 %v1441
      %v1665 = vpop.f32.mrb[0].mxu0
      %v1666 = vadd.f32 0.0, %v1665
      %v1667 = vpop.f32.mrb[0].mxu0
      %1668 = vmatprep.mubr.f32.mxu0 0.0
      %1669 = vmatmul.mubr.f32.gmra.mrb[0].mxu0 %v1444
      %v1670 = vpop.f32.mrb[0].mxu0
      %v1671 = vadd.f32 0.0, %v1670
      %v1672 = vpop.f32.mrb[0].mxu0
      %1673 = vdwg.mxu0
      %v1674 = vadd.f32 %v1158, %v1516
      %v1675 = vadd.f32 %v1163, %v1521
      %v1676 = vadd.f32 %v1168, %v1526
      %v1677 = vadd.f32 %v1173, %v1531
      %v1678 = vadd.f32 %v1178, %v1536
      %v1679 = vadd.f32 %v1183, %v1541
      %v1680 = vadd.f32 %v1188, %v1546
      %v1681 = vadd.f32 %v1193, %v1551
      %v1682 = vadd.f32 %v1198, %v1556
      %v1683 = vadd.f32 %v1203, %v1561
      %v1684 = vadd.f32 %v1208, %v1566
      %v1685 = vadd.f32 %v1213, %v1571
      %v1686 = vadd.f32 %v1218, %v1576
      %v1687 = vadd.f32 %v1223, %v1581
      %v1688 = vadd.f32 %v1228, %v1586
      %v1689 = vadd.f32 %v1233, %v1591
      %v1690 = vadd.f32 %v1238, %v1596
      %v1691 = vadd.f32 %v1243, %v1601
      %v1692 = vadd.f32 %v1248, %v1606
      %v1693 = vadd.f32 %v1253, %v1611
      %v1694 = vadd.f32 %v1258, %v1616
      %v1695 = vadd.f32 %v1263, %v1621
      %v1696 = vadd.f32 %v1268, %v1626
      %v1697 = vadd.f32 %v1273, %v1631
      %v1698 = vadd.f32 %v1278, %v1636
      %v1699 = vadd.f32 %v1283, %v1641
      %v1700 = vadd.f32 %v1288, %v1646
      %v1701 = vadd.f32 %v1293, %v1651
      %v1702 = vadd.f32 %v1298, %v1656
      %v1703 = vadd.f32 %v1303, %v1661
      %v1704 = vadd.f32 %v1308, %v1666
      %v1705 = vadd.f32 %v1313, %v1671
      %v1706 = vld [vmem:[%s595 + $0x3] sm:$0xff]
      %v1707 = vld [vmem:[%s595 + $0xb] sm:$0xff]
      %v1708 = vld [vmem:[%s595 + $0x13] sm:$0xff]
      %v1709 = vld [vmem:[%s595 + $0x1b] sm:$0xff]
      %v1710 = vld [vmem:[%s595 + $0x23] sm:$0xff]
      %v1711 = vld [vmem:[%s595 + $0x2b] sm:$0xff]
      %v1712 = vld [vmem:[%s595 + $0x33] sm:$0xff]
      %v1713 = vld [vmem:[%s595 + $0x3b] sm:$0xff]
      %v1714 = vld [vmem:[%s595 + $0x43] sm:$0xff]
      %v1715 = vld [vmem:[%s595 + $0x4b] sm:$0xff]
      %v1716 = vld [vmem:[%s595 + $0x53] sm:$0xff]
      %v1717 = vld [vmem:[%s595 + $0x5b] sm:$0xff]
      %v1718 = vld [vmem:[%s595 + $0x63] sm:$0xff]
      %v1719 = vld [vmem:[%s595 + $0x6b] sm:$0xff]
      %v1720 = vld [vmem:[%s595 + $0x73] sm:$0xff]
      %v1721 = vld [vmem:[%s595 + $0x7b] sm:$0xff]
      %v1722 = vld [vmem:[%s595 + $0x83] sm:$0xff]
      %v1723 = vld [vmem:[%s595 + $0x8b] sm:$0xff]
      %v1724 = vld [vmem:[%s595 + $0x93] sm:$0xff]
      %v1725 = vld [vmem:[%s595 + $0x9b] sm:$0xff]
      %v1726 = vld [vmem:[%s595 + $0xa3] sm:$0xff]
      %v1727 = vld [vmem:[%s595 + $0xab] sm:$0xff]
      %v1728 = vld [vmem:[%s595 + $0xb3] sm:$0xff]
      %v1729 = vld [vmem:[%s595 + $0xbb] sm:$0xff]
      %v1730 = vld [vmem:[%s595 + $0xc3] sm:$0xff]
      %v1731 = vld [vmem:[%s595 + $0xcb] sm:$0xff]
      %v1732 = vld [vmem:[%s595 + $0xd3] sm:$0xff]
      %v1733 = vld [vmem:[%s595 + $0xdb] sm:$0xff]
      %v1734 = vld [vmem:[%s595 + $0xe3] sm:$0xff]
      %v1735 = vld [vmem:[%s595 + $0xeb] sm:$0xff]
      %v1736 = vld [vmem:[%s595 + $0xf3] sm:$0xff]
      %v1737 = vld [vmem:[%s595 + $0xfb] sm:$0xff]
      %s1738 = scalar_lea.vmem %s1, 6
      %v1739 = vld [vmem:[%s1738] sm:$0x3]
      %v1741 = vsel %vm666, %v1706, 0
      %v1744 = vsel %vm666, %v1707, 0
      %v1747 = vsel %vm666, %v1708, 0
      %v1750 = vsel %vm666, %v1709, 0
      %v1753 = vsel %vm666, %v1710, 0
      %v1756 = vsel %vm666, %v1711, 0
      %v1759 = vsel %vm666, %v1712, 0
      %v1762 = vsel %vm666, %v1713, 0
      %v1765 = vsel %vm666, %v1714, 0
      %v1768 = vsel %vm666, %v1715, 0
      %v1771 = vsel %vm666, %v1716, 0
      %v1774 = vsel %vm666, %v1717, 0
      %v1777 = vsel %vm666, %v1718, 0
      %v1780 = vsel %vm666, %v1719, 0
      %v1783 = vsel %vm666, %v1720, 0
      %v1786 = vsel %vm666, %v1721, 0
      %v1789 = vsel %vm666, %v1722, 0
      %v1792 = vsel %vm666, %v1723, 0
      %v1795 = vsel %vm666, %v1724, 0
      %v1798 = vsel %vm666, %v1725, 0
      %v1801 = vsel %vm666, %v1726, 0
      %v1804 = vsel %vm666, %v1727, 0
      %v1807 = vsel %vm666, %v1728, 0
      %v1810 = vsel %vm666, %v1729, 0
      %v1813 = vsel %vm666, %v1730, 0
      %v1816 = vsel %vm666, %v1731, 0
      %v1819 = vsel %vm666, %v1732, 0
      %v1822 = vsel %vm666, %v1733, 0
      %v1825 = vsel %vm666, %v1734, 0
      %v1828 = vsel %vm666, %v1735, 0
      %v1831 = vsel %vm666, %v1736, 0
      %v1834 = vsel %vm666, %v1737, 0
      %v1837 = vsel %vm763, %v1739, 0
      %1839 = vmatprep.subr.mxu0 0.0
      %1840 = vmatpush1.msra.mxu0 %v1837
      %1841 = vmatprep.subr.mxu0 0.0
      %1842 = vmatpush1.msra.mxu0 0.0
      %1843 = vmatprep.subr.mxu0 0.0
      %1844 = vmatpush1.msra.mxu0 0.0
      %1845 = vmatprep.subr.mxu0 0.0
      %1846 = vmatpush1.msra.mxu0 0.0
      %1847 = vmatprep.subr.mxu0 0.0
      %1848 = vmatpush1.msra.mxu0 0.0
      %1849 = vmatprep.subr.mxu0 0.0
      %1850 = vmatpush1.msra.mxu0 0.0
      %1851 = vmatprep.subr.mxu0 0.0
      %1852 = vmatpush1.msra.mxu0 0.0
      %1853 = vmatprep.subr.mxu0 0.0
      %1854 = vmatpush1.msra.mxu0 0.0
      %1855 = vmatprep.subr.mxu0 0.0
      %1856 = vmatpush1.msra.mxu0 0.0
      %1857 = vmatprep.subr.mxu0 0.0
      %1858 = vmatpush1.msra.mxu0 0.0
      %1859 = vmatprep.subr.mxu0 0.0
      %1860 = vmatpush1.msra.mxu0 0.0
      %1861 = vmatprep.subr.mxu0 0.0
      %1862 = vmatpush1.msra.mxu0 0.0
      %1863 = vmatprep.subr.mxu0 0.0
      %1864 = vmatpush1.msra.mxu0 0.0
      %1865 = vmatprep.subr.mxu0 0.0
      %1866 = vmatpush1.msra.mxu0 0.0
      %1867 = vmatprep.subr.mxu0 0.0
      %1868 = vmatpush1.msra.mxu0 0.0
      %1869 = vmatprep.subr.mxu0 0.0
      %1870 = vmatpush1.msra.mxu0 0.0
      %1871 = vmatprep.subr.mxu0 0.0
      %1872 = vmatpush1.msra.mxu0 0.0
      %1873 = vmatprep.subr.mxu0 0.0
      %1874 = vmatpush1.msra.mxu0 0.0
      %1875 = vmatprep.subr.mxu0 0.0
      %1876 = vmatpush1.msra.mxu0 0.0
      %1877 = vmatprep.subr.mxu0 0.0
      %1878 = vmatpush1.msra.mxu0 0.0
      %1879 = vmatprep.subr.mxu0 0.0
      %1880 = vmatpush1.msra.mxu0 0.0
      %1881 = vmatprep.subr.mxu0 0.0
      %1882 = vmatpush1.msra.mxu0 0.0
      %1883 = vmatprep.subr.mxu0 0.0
      %1884 = vmatpush1.msra.mxu0 0.0
      %1885 = vmatprep.subr.mxu0 0.0
      %1886 = vmatpush1.msra.mxu0 0.0
      %1887 = vmatprep.subr.mxu0 0.0
      %1888 = vmatpush1.msra.mxu0 0.0
      %1889 = vmatprep.subr.mxu0 0.0
      %1890 = vmatpush1.msra.mxu0 0.0
      %1891 = vmatprep.subr.mxu0 0.0
      %1892 = vmatpush1.msra.mxu0 0.0
      %1893 = vmatprep.subr.mxu0 0.0
      %1894 = vmatpush1.msra.mxu0 0.0
      %1895 = vmatprep.subr.mxu0 0.0
      %1896 = vmatpush1.msra.mxu0 0.0
      %1897 = vmatprep.subr.mxu0 0.0
      %1898 = vmatpush1.msra.mxu0 0.0
      %1899 = vmatprep.subr.mxu0 0.0
      %1900 = vmatpush1.msra.mxu0 0.0
      %1901 = vmatprep.subr.mxu0 0.0
      %1902 = vmatpush1.msra.mxu0 0.0
      %1903 = vmatprep.mubr.f32.mxu0 0.0
      %1904 = vmatmul.mubr.f32.gmra.mrb[0].mxu0 %v1741
      %v1905 = vpop.f32.mrb[0].mxu0
      %v1906 = vadd.f32 0.0, %v1905
      %v1907 = vpop.f32.mrb[0].mxu0
      %1908 = vmatprep.mubr.f32.mxu0 0.0
      %1909 = vmatmul.mubr.f32.gmra.mrb[0].mxu0 %v1744
      %v1910 = vpop.f32.mrb[0].mxu0
      %v1911 = vadd.f32 0.0, %v1910
      %v1912 = vpop.f32.mrb[0].mxu0
      %1913 = vmatprep.mubr.f32.mxu0 0.0
      %1914 = vmatmul.mubr.f32.gmra.mrb[0].mxu0 %v1747
      %v1915 = vpop.f32.mrb[0].mxu0
      %v1916 = vadd.f32 0.0, %v1915
      %v1917 = vpop.f32.mrb[0].mxu0
      %1918 = vmatprep.mubr.f32.mxu0 0.0
      %1919 = vmatmul.mubr.f32.gmra.mrb[0].mxu0 %v1750
      %v1920 = vpop.f32.mrb[0].mxu0
      %v1921 = vadd.f32 0.0, %v1920
      %v1922 = vpop.f32.mrb[0].mxu0
      %1923 = vmatprep.mubr.f32.mxu0 0.0
      %1924 = vmatmul.mubr.f32.gmra.mrb[0].mxu0 %v1753
      %v1925 = vpop.f32.mrb[0].mxu0
      %v1926 = vadd.f32 0.0, %v1925
      %v1927 = vpop.f32.mrb[0].mxu0
      %1928 = vmatprep.mubr.f32.mxu0 0.0
      %1929 = vmatmul.mubr.f32.gmra.mrb[0].mxu0 %v1756
      %v1930 = vpop.f32.mrb[0].mxu0
      %v1931 = vadd.f32 0.0, %v1930
      %v1932 = vpop.f32.mrb[0].mxu0
      %1933 = vmatprep.mubr.f32.mxu0 0.0
      %1934 = vmatmul.mubr.f32.gmra.mrb[0].mxu0 %v1759
      %v1935 = vpop.f32.mrb[0].mxu0
      %v1936 = vadd.f32 0.0, %v1935
      %v1937 = vpop.f32.mrb[0].mxu0
      %1938 = vmatprep.mubr.f32.mxu0 0.0
      %1939 = vmatmul.mubr.f32.gmra.mrb[0].mxu0 %v1762
      %v1940 = vpop.f32.mrb[0].mxu0
      %v1941 = vadd.f32 0.0, %v1940
      %v1942 = vpop.f32.mrb[0].mxu0
      %1943 = vmatprep.mubr.f32.mxu0 0.0
      %1944 = vmatmul.mubr.f32.gmra.mrb[0].mxu0 %v1765
      %v1945 = vpop.f32.mrb[0].mxu0
      %v1946 = vadd.f32 0.0, %v1945
      %v1947 = vpop.f32.mrb[0].mxu0
      %1948 = vmatprep.mubr.f32.mxu0 0.0
      %1949 = vmatmul.mubr.f32.gmra.mrb[0].mxu0 %v1768
      %v1950 = vpop.f32.mrb[0].mxu0
      %v1951 = vadd.f32 0.0, %v1950
      %v1952 = vpop.f32.mrb[0].mxu0
      %1953 = vmatprep.mubr.f32.mxu0 0.0
      %1954 = vmatmul.mubr.f32.gmra.mrb[0].mxu0 %v1771
      %v1955 = vpop.f32.mrb[0].mxu0
      %v1956 = vadd.f32 0.0, %v1955
      %v1957 = vpop.f32.mrb[0].mxu0
      %1958 = vmatprep.mubr.f32.mxu0 0.0
      %1959 = vmatmul.mubr.f32.gmra.mrb[0].mxu0 %v1774
      %v1960 = vpop.f32.mrb[0].mxu0
      %v1961 = vadd.f32 0.0, %v1960
      %v1962 = vpop.f32.mrb[0].mxu0
      %1963 = vmatprep.mubr.f32.mxu0 0.0
      %1964 = vmatmul.mubr.f32.gmra.mrb[0].mxu0 %v1777
      %v1965 = vpop.f32.mrb[0].mxu0
      %v1966 = vadd.f32 0.0, %v1965
      %v1967 = vpop.f32.mrb[0].mxu0
      %1968 = vmatprep.mubr.f32.mxu0 0.0
      %1969 = vmatmul.mubr.f32.gmra.mrb[0].mxu0 %v1780
      %v1970 = vpop.f32.mrb[0].mxu0
      %v1971 = vadd.f32 0.0, %v1970
      %v1972 = vpop.f32.mrb[0].mxu0
      %1973 = vmatprep.mubr.f32.mxu0 0.0
      %1974 = vmatmul.mubr.f32.gmra.mrb[0].mxu0 %v1783
      %v1975 = vpop.f32.mrb[0].mxu0
      %v1976 = vadd.f32 0.0, %v1975
      %v1977 = vpop.f32.mrb[0].mxu0
      %1978 = vmatprep.mubr.f32.mxu0 0.0
      %1979 = vmatmul.mubr.f32.gmra.mrb[0].mxu0 %v1786
      %v1980 = vpop.f32.mrb[0].mxu0
      %v1981 = vadd.f32 0.0, %v1980
      %v1982 = vpop.f32.mrb[0].mxu0
      %1983 = vmatprep.mubr.f32.mxu0 0.0
      %1984 = vmatmul.mubr.f32.gmra.mrb[0].mxu0 %v1789
      %v1985 = vpop.f32.mrb[0].mxu0
      %v1986 = vadd.f32 0.0, %v1985
      %v1987 = vpop.f32.mrb[0].mxu0
      %1988 = vmatprep.mubr.f32.mxu0 0.0
      %1989 = vmatmul.mubr.f32.gmra.mrb[0].mxu0 %v1792
      %v1990 = vpop.f32.mrb[0].mxu0
      %v1991 = vadd.f32 0.0, %v1990
      %v1992 = vpop.f32.mrb[0].mxu0
      %1993 = vmatprep.mubr.f32.mxu0 0.0
      %1994 = vmatmul.mubr.f32.gmra.mrb[0].mxu0 %v1795
      %v1995 = vpop.f32.mrb[0].mxu0
      %v1996 = vadd.f32 0.0, %v1995
      %v1997 = vpop.f32.mrb[0].mxu0
      %1998 = vmatprep.mubr.f32.mxu0 0.0
      %1999 = vmatmul.mubr.f32.gmra.mrb[0].mxu0 %v1798
      %v2000 = vpop.f32.mrb[0].mxu0
      %v2001 = vadd.f32 0.0, %v2000
      %v2002 = vpop.f32.mrb[0].mxu0
      %2003 = vmatprep.mubr.f32.mxu0 0.0
      %2004 = vmatmul.mubr.f32.gmra.mrb[0].mxu0 %v1801
      %v2005 = vpop.f32.mrb[0].mxu0
      %v2006 = vadd.f32 0.0, %v2005
      %v2007 = vpop.f32.mrb[0].mxu0
      %2008 = vmatprep.mubr.f32.mxu0 0.0
      %2009 = vmatmul.mubr.f32.gmra.mrb[0].mxu0 %v1804
      %v2010 = vpop.f32.mrb[0].mxu0
      %v2011 = vadd.f32 0.0, %v2010
      %v2012 = vpop.f32.mrb[0].mxu0
      %2013 = vmatprep.mubr.f32.mxu0 0.0
      %2014 = vmatmul.mubr.f32.gmra.mrb[0].mxu0 %v1807
      %v2015 = vpop.f32.mrb[0].mxu0
      %v2016 = vadd.f32 0.0, %v2015
      %v2017 = vpop.f32.mrb[0].mxu0
      %2018 = vmatprep.mubr.f32.mxu0 0.0
      %2019 = vmatmul.mubr.f32.gmra.mrb[0].mxu0 %v1810
      %v2020 = vpop.f32.mrb[0].mxu0
      %v2021 = vadd.f32 0.0, %v2020
      %v2022 = vpop.f32.mrb[0].mxu0
      %2023 = vmatprep.mubr.f32.mxu0 0.0
      %2024 = vmatmul.mubr.f32.gmra.mrb[0].mxu0 %v1813
      %v2025 = vpop.f32.mrb[0].mxu0
      %v2026 = vadd.f32 0.0, %v2025
      %v2027 = vpop.f32.mrb[0].mxu0
      %2028 = vmatprep.mubr.f32.mxu0 0.0
      %2029 = vmatmul.mubr.f32.gmra.mrb[0].mxu0 %v1816
      %v2030 = vpop.f32.mrb[0].mxu0
      %v2031 = vadd.f32 0.0, %v2030
      %v2032 = vpop.f32.mrb[0].mxu0
      %2033 = vmatprep.mubr.f32.mxu0 0.0
      %2034 = vmatmul.mubr.f32.gmra.mrb[0].mxu0 %v1819
      %v2035 = vpop.f32.mrb[0].mxu0
      %v2036 = vadd.f32 0.0, %v2035
      %v2037 = vpop.f32.mrb[0].mxu0
      %2038 = vmatprep.mubr.f32.mxu0 0.0
      %2039 = vmatmul.mubr.f32.gmra.mrb[0].mxu0 %v1822
      %v2040 = vpop.f32.mrb[0].mxu0
      %v2041 = vadd.f32 0.0, %v2040
      %v2042 = vpop.f32.mrb[0].mxu0
      %2043 = vmatprep.mubr.f32.mxu0 0.0
      %2044 = vmatmul.mubr.f32.gmra.mrb[0].mxu0 %v1825
      %v2045 = vpop.f32.mrb[0].mxu0
      %v2046 = vadd.f32 0.0, %v2045
      %v2047 = vpop.f32.mrb[0].mxu0
      %2048 = vmatprep.mubr.f32.mxu0 0.0
      %2049 = vmatmul.mubr.f32.gmra.mrb[0].mxu0 %v1828
      %v2050 = vpop.f32.mrb[0].mxu0
      %v2051 = vadd.f32 0.0, %v2050
      %v2052 = vpop.f32.mrb[0].mxu0
      %2053 = vmatprep.mubr.f32.mxu0 0.0
      %2054 = vmatmul.mubr.f32.gmra.mrb[0].mxu0 %v1831
      %v2055 = vpop.f32.mrb[0].mxu0
      %v2056 = vadd.f32 0.0, %v2055
      %v2057 = vpop.f32.mrb[0].mxu0
      %2058 = vmatprep.mubr.f32.mxu0 0.0
      %2059 = vmatmul.mubr.f32.gmra.mrb[0].mxu0 %v1834
      %v2060 = vpop.f32.mrb[0].mxu0
      %v2061 = vadd.f32 0.0, %v2060
      %v2062 = vpop.f32.mrb[0].mxu0
      %2063 = vdwg.mxu0
      %v2064 = vadd.f32 %v1674, %v1906
      %v2065 = vadd.f32 %v1675, %v1911
      %v2066 = vadd.f32 %v1676, %v1916
      %v2067 = vadd.f32 %v1677, %v1921
      %v2068 = vadd.f32 %v1678, %v1926
      %v2069 = vadd.f32 %v1679, %v1931
      %v2070 = vadd.f32 %v1680, %v1936
      %v2071 = vadd.f32 %v1681, %v1941
      %v2072 = vadd.f32 %v1682, %v1946
      %v2073 = vadd.f32 %v1683, %v1951
      %v2074 = vadd.f32 %v1684, %v1956
      %v2075 = vadd.f32 %v1685, %v1961
      %v2076 = vadd.f32 %v1686, %v1966
      %v2077 = vadd.f32 %v1687, %v1971
      %v2078 = vadd.f32 %v1688, %v1976
      %v2079 = vadd.f32 %v1689, %v1981
      %v2080 = vadd.f32 %v1690, %v1986
      %v2081 = vadd.f32 %v1691, %v1991
      %v2082 = vadd.f32 %v1692, %v1996
      %v2083 = vadd.f32 %v1693, %v2001
      %v2084 = vadd.f32 %v1694, %v2006
      %v2085 = vadd.f32 %v1695, %v2011
      %v2086 = vadd.f32 %v1696, %v2016
      %v2087 = vadd.f32 %v1697, %v2021
      %v2088 = vadd.f32 %v1698, %v2026
      %v2089 = vadd.f32 %v1699, %v2031
      %v2090 = vadd.f32 %v1700, %v2036
      %v2091 = vadd.f32 %v1701, %v2041
      %v2092 = vadd.f32 %v1702, %v2046
      %v2093 = vadd.f32 %v1703, %v2051
      %v2094 = vadd.f32 %v1704, %v2056
      %v2095 = vadd.f32 %v1705, %v2061
      %v2096 = vld [vmem:[%s595 + $0x4] sm:$0xff]
      %v2097 = vld [vmem:[%s595 + $0xc] sm:$0xff]
      %v2098 = vld [vmem:[%s595 + $0x14] sm:$0xff]
      %v2099 = vld [vmem:[%s595 + $0x1c] sm:$0xff]
      %v2100 = vld [vmem:[%s595 + $0x24] sm:$0xff]
      %v2101 = vld [vmem:[%s595 + $0x2c] sm:$0xff]
      %v2102 = vld [vmem:[%s595 + $0x34] sm:$0xff]
      %v2103 = vld [vmem:[%s595 + $0x3c] sm:$0xff]
      %v2104 = vld [vmem:[%s595 + $0x44] sm:$0xff]
      %v2105 = vld [vmem:[%s595 + $0x4c] sm:$0xff]
      %v2106 = vld [vmem:[%s595 + $0x54] sm:$0xff]
      %v2107 = vld [vmem:[%s595 + $0x5c] sm:$0xff]
      %v2108 = vld [vmem:[%s595 + $0x64] sm:$0xff]
      %v2109 = vld [vmem:[%s595 + $0x6c] sm:$0xff]
      %v2110 = vld [vmem:[%s595 + $0x74] sm:$0xff]
      %v2111 = vld [vmem:[%s595 + $0x7c] sm:$0xff]
      %v2112 = vld [vmem:[%s595 + $0x84] sm:$0xff]
      %v2113 = vld [vmem:[%s595 + $0x8c] sm:$0xff]
      %v2114 = vld [vmem:[%s595 + $0x94] sm:$0xff]
      %v2115 = vld [vmem:[%s595 + $0x9c] sm:$0xff]
      %v2116 = vld [vmem:[%s595 + $0xa4] sm:$0xff]
      %v2117 = vld [vmem:[%s595 + $0xac] sm:$0xff]
      %v2118 = vld [vmem:[%s595 + $0xb4] sm:$0xff]
      %v2119 = vld [vmem:[%s595 + $0xbc] sm:$0xff]
      %v2120 = vld [vmem:[%s595 + $0xc4] sm:$0xff]
      %v2121 = vld [vmem:[%s595 + $0xcc] sm:$0xff]
      %v2122 = vld [vmem:[%s595 + $0xd4] sm:$0xff]
      %v2123 = vld [vmem:[%s595 + $0xdc] sm:$0xff]
      %v2124 = vld [vmem:[%s595 + $0xe4] sm:$0xff]
      %v2125 = vld [vmem:[%s595 + $0xec] sm:$0xff]
      %v2126 = vld [vmem:[%s595 + $0xf4] sm:$0xff]
      %v2127 = vld [vmem:[%s595 + $0xfc] sm:$0xff]
      %s2128 = scalar_lea.vmem %s1, 8
      %v2129 = vld [vmem:[%s2128] sm:$0x3]
      %v2131 = vsel %vm666, %v2096, 0
      %v2134 = vsel %vm666, %v2097, 0
      %v2137 = vsel %vm666, %v2098, 0
      %v2140 = vsel %vm666, %v2099, 0
      %v2143 = vsel %vm666, %v2100, 0
      %v2146 = vsel %vm666, %v2101, 0
      %v2149 = vsel %vm666, %v2102, 0
      %v2152 = vsel %vm666, %v2103, 0
      %v2155 = vsel %vm666, %v2104, 0
      %v2158 = vsel %vm666, %v2105, 0
      %v2161 = vsel %vm666, %v2106, 0
      %v2164 = vsel %vm666, %v2107, 0
      %v2167 = vsel %vm666, %v2108, 0
      %v2170 = vsel %vm666, %v2109, 0
      %v2173 = vsel %vm666, %v2110, 0
      %v2176 = vsel %vm666, %v2111, 0
      %v2179 = vsel %vm666, %v2112, 0
      %v2182 = vsel %vm666, %v2113, 0
      %v2185 = vsel %vm666, %v2114, 0
      %v2188 = vsel %vm666, %v2115, 0
      %v2191 = vsel %vm666, %v2116, 0
      %v2194 = vsel %vm666, %v2117, 0
      %v2197 = vsel %vm666, %v2118, 0
      %v2200 = vsel %vm666, %v2119, 0
      %v2203 = vsel %vm666, %v2120, 0
      %v2206 = vsel %vm666, %v2121, 0
      %v2209 = vsel %vm666, %v2122, 0
      %v2212 = vsel %vm666, %v2123, 0
      %v2215 = vsel %vm666, %v2124, 0
      %v2218 = vsel %vm666, %v2125, 0
      %v2221 = vsel %vm666, %v2126, 0
      %v2224 = vsel %vm666, %v2127, 0
      %v2227 = vsel %vm763, %v2129, 0
      %2229 = vmatprep.subr.mxu0 0.0
      %2230 = vmatpush1.msra.mxu0 %v2227
      %2231 = vmatprep.subr.mxu0 0.0
      %2232 = vmatpush1.msra.mxu0 0.0
      %2233 = vmatprep.subr.mxu0 0.0
      %2234 = vmatpush1.msra.mxu0 0.0
      %2235 = vmatprep.subr.mxu0 0.0
      %2236 = vmatpush1.msra.mxu0 0.0
      %2237 = vmatprep.subr.mxu0 0.0
      %2238 = vmatpush1.msra.mxu0 0.0
      %2239 = vmatprep.subr.mxu0 0.0
      %2240 = vmatpush1.msra.mxu0 0.0
      %2241 = vmatprep.subr.mxu0 0.0
      %2242 = vmatpush1.msra.mxu0 0.0
      %2243 = vmatprep.subr.mxu0 0.0
      %2244 = vmatpush1.msra.mxu0 0.0
      %2245 = vmatprep.subr.mxu0 0.0
      %2246 = vmatpush1.msra.mxu0 0.0
      %2247 = vmatprep.subr.mxu0 0.0
      %2248 = vmatpush1.msra.mxu0 0.0
      %2249 = vmatprep.subr.mxu0 0.0
      %2250 = vmatpush1.msra.mxu0 0.0
      %2251 = vmatprep.subr.mxu0 0.0
      %2252 = vmatpush1.msra.mxu0 0.0
      %2253 = vmatprep.subr.mxu0 0.0
      %2254 = vmatpush1.msra.mxu0 0.0
      %2255 = vmatprep.subr.mxu0 0.0
      %2256 = vmatpush1.msra.mxu0 0.0
      %2257 = vmatprep.subr.mxu0 0.0
      %2258 = vmatpush1.msra.mxu0 0.0
      %2259 = vmatprep.subr.mxu0 0.0
      %2260 = vmatpush1.msra.mxu0 0.0
      %2261 = vmatprep.subr.mxu0 0.0
      %2262 = vmatpush1.msra.mxu0 0.0
      %2263 = vmatprep.subr.mxu0 0.0
      %2264 = vmatpush1.msra.mxu0 0.0
      %2265 = vmatprep.subr.mxu0 0.0
      %2266 = vmatpush1.msra.mxu0 0.0
      %2267 = vmatprep.subr.mxu0 0.0
      %2268 = vmatpush1.msra.mxu0 0.0
      %2269 = vmatprep.subr.mxu0 0.0
      %2270 = vmatpush1.msra.mxu0 0.0
      %2271 = vmatprep.subr.mxu0 0.0
      %2272 = vmatpush1.msra.mxu0 0.0
      %2273 = vmatprep.subr.mxu0 0.0
      %2274 = vmatpush1.msra.mxu0 0.0
      %2275 = vmatprep.subr.mxu0 0.0
      %2276 = vmatpush1.msra.mxu0 0.0
      %2277 = vmatprep.subr.mxu0 0.0
      %2278 = vmatpush1.msra.mxu0 0.0
      %2279 = vmatprep.subr.mxu0 0.0
      %2280 = vmatpush1.msra.mxu0 0.0
      %2281 = vmatprep.subr.mxu0 0.0
      %2282 = vmatpush1.msra.mxu0 0.0
      %2283 = vmatprep.subr.mxu0 0.0
      %2284 = vmatpush1.msra.mxu0 0.0
      %2285 = vmatprep.subr.mxu0 0.0
      %2286 = vmatpush1.msra.mxu0 0.0
      %2287 = vmatprep.subr.mxu0 0.0
      %2288 = vmatpush1.msra.mxu0 0.0
      %2289 = vmatprep.subr.mxu0 0.0
      %2290 = vmatpush1.msra.mxu0 0.0
      %2291 = vmatprep.subr.mxu0 0.0
      %2292 = vmatpush1.msra.mxu0 0.0
      %2293 = vmatprep.mubr.f32.mxu0 0.0
      %2294 = vmatmul.mubr.f32.gmra.mrb[0].mxu0 %v2131
      %v2295 = vpop.f32.mrb[0].mxu0
      %v2296 = vadd.f32 0.0, %v2295
      %v2297 = vpop.f32.mrb[0].mxu0
      %2298 = vmatprep.mubr.f32.mxu0 0.0
      %2299 = vmatmul.mubr.f32.gmra.mrb[0].mxu0 %v2134
      %v2300 = vpop.f32.mrb[0].mxu0
      %v2301 = vadd.f32 0.0, %v2300
      %v2302 = vpop.f32.mrb[0].mxu0
      %2303 = vmatprep.mubr.f32.mxu0 0.0
      %2304 = vmatmul.mubr.f32.gmra.mrb[0].mxu0 %v2137
      %v2305 = vpop.f32.mrb[0].mxu0
      %v2306 = vadd.f32 0.0, %v2305
      %v2307 = vpop.f32.mrb[0].mxu0
      %2308 = vmatprep.mubr.f32.mxu0 0.0
      %2309 = vmatmul.mubr.f32.gmra.mrb[0].mxu0 %v2140
      %v2310 = vpop.f32.mrb[0].mxu0
      %v2311 = vadd.f32 0.0, %v2310
      %v2312 = vpop.f32.mrb[0].mxu0
      %2313 = vmatprep.mubr.f32.mxu0 0.0
      %2314 = vmatmul.mubr.f32.gmra.mrb[0].mxu0 %v2143
      %v2315 = vpop.f32.mrb[0].mxu0
      %v2316 = vadd.f32 0.0, %v2315
      %v2317 = vpop.f32.mrb[0].mxu0
      %2318 = vmatprep.mubr.f32.mxu0 0.0
      %2319 = vmatmul.mubr.f32.gmra.mrb[0].mxu0 %v2146
      %v2320 = vpop.f32.mrb[0].mxu0
      %v2321 = vadd.f32 0.0, %v2320
      %v2322 = vpop.f32.mrb[0].mxu0
      %2323 = vmatprep.mubr.f32.mxu0 0.0
      %2324 = vmatmul.mubr.f32.gmra.mrb[0].mxu0 %v2149
      %v2325 = vpop.f32.mrb[0].mxu0
      %v2326 = vadd.f32 0.0, %v2325
      %v2327 = vpop.f32.mrb[0].mxu0
      %2328 = vmatprep.mubr.f32.mxu0 0.0
      %2329 = vmatmul.mubr.f32.gmra.mrb[0].mxu0 %v2152
      %v2330 = vpop.f32.mrb[0].mxu0
      %v2331 = vadd.f32 0.0, %v2330
      %v2332 = vpop.f32.mrb[0].mxu0
      %2333 = vmatprep.mubr.f32.mxu0 0.0
      %2334 = vmatmul.mubr.f32.gmra.mrb[0].mxu0 %v2155
      %v2335 = vpop.f32.mrb[0].mxu0
      %v2336 = vadd.f32 0.0, %v2335
      %v2337 = vpop.f32.mrb[0].mxu0
      %2338 = vmatprep.mubr.f32.mxu0 0.0
      %2339 = vmatmul.mubr.f32.gmra.mrb[0].mxu0 %v2158
      %v2340 = vpop.f32.mrb[0].mxu0
      %v2341 = vadd.f32 0.0, %v2340
      %v2342 = vpop.f32.mrb[0].mxu0
      %2343 = vmatprep.mubr.f32.mxu0 0.0
      %2344 = vmatmul.mubr.f32.gmra.mrb[0].mxu0 %v2161
      %v2345 = vpop.f32.mrb[0].mxu0
      %v2346 = vadd.f32 0.0, %v2345
      %v2347 = vpop.f32.mrb[0].mxu0
      %2348 = vmatprep.mubr.f32.mxu0 0.0
      %2349 = vmatmul.mubr.f32.gmra.mrb[0].mxu0 %v2164
      %v2350 = vpop.f32.mrb[0].mxu0
      %v2351 = vadd.f32 0.0, %v2350
      %v2352 = vpop.f32.mrb[0].mxu0
      %2353 = vmatprep.mubr.f32.mxu0 0.0
      %2354 = vmatmul.mubr.f32.gmra.mrb[0].mxu0 %v2167
      %v2355 = vpop.f32.mrb[0].mxu0
      %v2356 = vadd.f32 0.0, %v2355
      %v2357 = vpop.f32.mrb[0].mxu0
      %2358 = vmatprep.mubr.f32.mxu0 0.0
      %2359 = vmatmul.mubr.f32.gmra.mrb[0].mxu0 %v2170
      %v2360 = vpop.f32.mrb[0].mxu0
      %v2361 = vadd.f32 0.0, %v2360
      %v2362 = vpop.f32.mrb[0].mxu0
      %2363 = vmatprep.mubr.f32.mxu0 0.0
      %2364 = vmatmul.mubr.f32.gmra.mrb[0].mxu0 %v2173
      %v2365 = vpop.f32.mrb[0].mxu0
      %v2366 = vadd.f32 0.0, %v2365
      %v2367 = vpop.f32.mrb[0].mxu0
      %2368 = vmatprep.mubr.f32.mxu0 0.0
      %2369 = vmatmul.mubr.f32.gmra.mrb[0].mxu0 %v2176
      %v2370 = vpop.f32.mrb[0].mxu0
      %v2371 = vadd.f32 0.0, %v2370
      %v2372 = vpop.f32.mrb[0].mxu0
      %2373 = vmatprep.mubr.f32.mxu0 0.0
      %2374 = vmatmul.mubr.f32.gmra.mrb[0].mxu0 %v2179
      %v2375 = vpop.f32.mrb[0].mxu0
      %v2376 = vadd.f32 0.0, %v2375
      %v2377 = vpop.f32.mrb[0].mxu0
      %2378 = vmatprep.mubr.f32.mxu0 0.0
      %2379 = vmatmul.mubr.f32.gmra.mrb[0].mxu0 %v2182
      %v2380 = vpop.f32.mrb[0].mxu0
      %v2381 = vadd.f32 0.0, %v2380
      %v2382 = vpop.f32.mrb[0].mxu0
      %2383 = vmatprep.mubr.f32.mxu0 0.0
      %2384 = vmatmul.mubr.f32.gmra.mrb[0].mxu0 %v2185
      %v2385 = vpop.f32.mrb[0].mxu0
      %v2386 = vadd.f32 0.0, %v2385
      %v2387 = vpop.f32.mrb[0].mxu0
      %2388 = vmatprep.mubr.f32.mxu0 0.0
      %2389 = vmatmul.mubr.f32.gmra.mrb[0].mxu0 %v2188
      %v2390 = vpop.f32.mrb[0].mxu0
      %v2391 = vadd.f32 0.0, %v2390
      %v2392 = vpop.f32.mrb[0].mxu0
      %2393 = vmatprep.mubr.f32.mxu0 0.0
      %2394 = vmatmul.mubr.f32.gmra.mrb[0].mxu0 %v2191
      %v2395 = vpop.f32.mrb[0].mxu0
      %v2396 = vadd.f32 0.0, %v2395
      %v2397 = vpop.f32.mrb[0].mxu0
      %2398 = vmatprep.mubr.f32.mxu0 0.0
      %2399 = vmatmul.mubr.f32.gmra.mrb[0].mxu0 %v2194
      %v2400 = vpop.f32.mrb[0].mxu0
      %v2401 = vadd.f32 0.0, %v2400
      %v2402 = vpop.f32.mrb[0].mxu0
      %2403 = vmatprep.mubr.f32.mxu0 0.0
      %2404 = vmatmul.mubr.f32.gmra.mrb[0].mxu0 %v2197
      %v2405 = vpop.f32.mrb[0].mxu0
      %v2406 = vadd.f32 0.0, %v2405
      %v2407 = vpop.f32.mrb[0].mxu0
      %2408 = vmatprep.mubr.f32.mxu0 0.0
      %2409 = vmatmul.mubr.f32.gmra.mrb[0].mxu0 %v2200
      %v2410 = vpop.f32.mrb[0].mxu0
      %v2411 = vadd.f32 0.0, %v2410
      %v2412 = vpop.f32.mrb[0].mxu0
      %2413 = vmatprep.mubr.f32.mxu0 0.0
      %2414 = vmatmul.mubr.f32.gmra.mrb[0].mxu0 %v2203
      %v2415 = vpop.f32.mrb[0].mxu0
      %v2416 = vadd.f32 0.0, %v2415
      %v2417 = vpop.f32.mrb[0].mxu0
      %2418 = vmatprep.mubr.f32.mxu0 0.0
      %2419 = vmatmul.mubr.f32.gmra.mrb[0].mxu0 %v2206
      %v2420 = vpop.f32.mrb[0].mxu0
      %v2421 = vadd.f32 0.0, %v2420
      %v2422 = vpop.f32.mrb[0].mxu0
      %2423 = vmatprep.mubr.f32.mxu0 0.0
      %2424 = vmatmul.mubr.f32.gmra.mrb[0].mxu0 %v2209
      %v2425 = vpop.f32.mrb[0].mxu0
      %v2426 = vadd.f32 0.0, %v2425
      %v2427 = vpop.f32.mrb[0].mxu0
      %2428 = vmatprep.mubr.f32.mxu0 0.0
      %2429 = vmatmul.mubr.f32.gmra.mrb[0].mxu0 %v2212
      %v2430 = vpop.f32.mrb[0].mxu0
      %v2431 = vadd.f32 0.0, %v2430
      %v2432 = vpop.f32.mrb[0].mxu0
      %2433 = vmatprep.mubr.f32.mxu0 0.0
      %2434 = vmatmul.mubr.f32.gmra.mrb[0].mxu0 %v2215
      %v2435 = vpop.f32.mrb[0].mxu0
      %v2436 = vadd.f32 0.0, %v2435
      %v2437 = vpop.f32.mrb[0].mxu0
      %2438 = vmatprep.mubr.f32.mxu0 0.0
      %2439 = vmatmul.mubr.f32.gmra.mrb[0].mxu0 %v2218
      %v2440 = vpop.f32.mrb[0].mxu0
      %v2441 = vadd.f32 0.0, %v2440
      %v2442 = vpop.f32.mrb[0].mxu0
      %2443 = vmatprep.mubr.f32.mxu0 0.0
      %2444 = vmatmul.mubr.f32.gmra.mrb[0].mxu0 %v2221
      %v2445 = vpop.f32.mrb[0].mxu0
      %v2446 = vadd.f32 0.0, %v2445
      %v2447 = vpop.f32.mrb[0].mxu0
      %2448 = vmatprep.mubr.f32.mxu0 0.0
      %2449 = vmatmul.mubr.f32.gmra.mrb[0].mxu0 %v2224
      %v2450 = vpop.f32.mrb[0].mxu0
      %v2451 = vadd.f32 0.0, %v2450
      %v2452 = vpop.f32.mrb[0].mxu0
      %2453 = vdwg.mxu0
      %v2454 = vadd.f32 %v2064, %v2296
      %v2455 = vadd.f32 %v2065, %v2301
      %v2456 = vadd.f32 %v2066, %v2306
      %v2457 = vadd.f32 %v2067, %v2311
      %v2458 = vadd.f32 %v2068, %v2316
      %v2459 = vadd.f32 %v2069, %v2321
      %v2460 = vadd.f32 %v2070, %v2326
      %v2461 = vadd.f32 %v2071, %v2331
      %v2462 = vadd.f32 %v2072, %v2336
      %v2463 = vadd.f32 %v2073, %v2341
      %v2464 = vadd.f32 %v2074, %v2346
      %v2465 = vadd.f32 %v2075, %v2351
      %v2466 = vadd.f32 %v2076, %v2356
      %v2467 = vadd.f32 %v2077, %v2361
      %v2468 = vadd.f32 %v2078, %v2366
      %v2469 = vadd.f32 %v2079, %v2371
      %v2470 = vadd.f32 %v2080, %v2376
      %v2471 = vadd.f32 %v2081, %v2381
      %v2472 = vadd.f32 %v2082, %v2386
      %v2473 = vadd.f32 %v2083, %v2391
      %v2474 = vadd.f32 %v2084, %v2396
      %v2475 = vadd.f32 %v2085, %v2401
      %v2476 = vadd.f32 %v2086, %v2406
      %v2477 = vadd.f32 %v2087, %v2411
      %v2478 = vadd.f32 %v2088, %v2416
      %v2479 = vadd.f32 %v2089, %v2421
      %v2480 = vadd.f32 %v2090, %v2426
      %v2481 = vadd.f32 %v2091, %v2431
      %v2482 = vadd.f32 %v2092, %v2436
      %v2483 = vadd.f32 %v2093, %v2441
      %v2484 = vadd.f32 %v2094, %v2446
      %v2485 = vadd.f32 %v2095, %v2451
      %v2486 = vld [vmem:[%s595 + $0x5] sm:$0xff]
      %v2487 = vld [vmem:[%s595 + $0xd] sm:$0xff]
      %v2488 = vld [vmem:[%s595 + $0x15] sm:$0xff]
      %v2489 = vld [vmem:[%s595 + $0x1d] sm:$0xff]
      %v2490 = vld [vmem:[%s595 + $0x25] sm:$0xff]
      %v2491 = vld [vmem:[%s595 + $0x2d] sm:$0xff]
      %v2492 = vld [vmem:[%s595 + $0x35] sm:$0xff]
      %v2493 = vld [vmem:[%s595 + $0x3d] sm:$0xff]
      %v2494 = vld [vmem:[%s595 + $0x45] sm:$0xff]
      %v2495 = vld [vmem:[%s595 + $0x4d] sm:$0xff]
      %v2496 = vld [vmem:[%s595 + $0x55] sm:$0xff]
      %v2497 = vld [vmem:[%s595 + $0x5d] sm:$0xff]
      %v2498 = vld [vmem:[%s595 + $0x65] sm:$0xff]
      %v2499 = vld [vmem:[%s595 + $0x6d] sm:$0xff]
      %v2500 = vld [vmem:[%s595 + $0x75] sm:$0xff]
      %v2501 = vld [vmem:[%s595 + $0x7d] sm:$0xff]
      %v2502 = vld [vmem:[%s595 + $0x85] sm:$0xff]
      %v2503 = vld [vmem:[%s595 + $0x8d] sm:$0xff]
      %v2504 = vld [vmem:[%s595 + $0x95] sm:$0xff]
      %v2505 = vld [vmem:[%s595 + $0x9d] sm:$0xff]
      %v2506 = vld [vmem:[%s595 + $0xa5] sm:$0xff]
      %v2507 = vld [vmem:[%s595 + $0xad] sm:$0xff]
      %v2508 = vld [vmem:[%s595 + $0xb5] sm:$0xff]
      %v2509 = vld [vmem:[%s595 + $0xbd] sm:$0xff]
      %v2510 = vld [vmem:[%s595 + $0xc5] sm:$0xff]
      %v2511 = vld [vmem:[%s595 + $0xcd] sm:$0xff]
      %v2512 = vld [vmem:[%s595 + $0xd5] sm:$0xff]
      %v2513 = vld [vmem:[%s595 + $0xdd] sm:$0xff]
      %v2514 = vld [vmem:[%s595 + $0xe5] sm:$0xff]
      %v2515 = vld [vmem:[%s595 + $0xed] sm:$0xff]
      %v2516 = vld [vmem:[%s595 + $0xf5] sm:$0xff]
      %v2517 = vld [vmem:[%s595 + $0xfd] sm:$0xff]
      %s2518 = scalar_lea.vmem %s1, 10
      %v2519 = vld [vmem:[%s2518] sm:$0x3]
      %v2521 = vsel %vm666, %v2486, 0
      %v2524 = vsel %vm666, %v2487, 0
      %v2527 = vsel %vm666, %v2488, 0
      %v2530 = vsel %vm666, %v2489, 0
      %v2533 = vsel %vm666, %v2490, 0
      %v2536 = vsel %vm666, %v2491, 0
      %v2539 = vsel %vm666, %v2492, 0
      %v2542 = vsel %vm666, %v2493, 0
      %v2545 = vsel %vm666, %v2494, 0
      %v2548 = vsel %vm666, %v2495, 0
      %v2551 = vsel %vm666, %v2496, 0
      %v2554 = vsel %vm666, %v2497, 0
      %v2557 = vsel %vm666, %v2498, 0
      %v2560 = vsel %vm666, %v2499, 0
      %v2563 = vsel %vm666, %v2500, 0
      %v2566 = vsel %vm666, %v2501, 0
      %v2569 = vsel %vm666, %v2502, 0
      %v2572 = vsel %vm666, %v2503, 0
      %v2575 = vsel %vm666, %v2504, 0
      %v2578 = vsel %vm666, %v2505, 0
      %v2581 = vsel %vm666, %v2506, 0
      %v2584 = vsel %vm666, %v2507, 0
      %v2587 = vsel %vm666, %v2508, 0
      %v2590 = vsel %vm666, %v2509, 0
      %v2593 = vsel %vm666, %v2510, 0
      %v2596 = vsel %vm666, %v2511, 0
      %v2599 = vsel %vm666, %v2512, 0
      %v2602 = vsel %vm666, %v2513, 0
      %v2605 = vsel %vm666, %v2514, 0
      %v2608 = vsel %vm666, %v2515, 0
      %v2611 = vsel %vm666, %v2516, 0
      %v2614 = vsel %vm666, %v2517, 0
      %v2617 = vsel %vm763, %v2519, 0
      %2619 = vmatprep.subr.mxu0 0.0
      %2620 = vmatpush1.msra.mxu0 %v2617
      %2621 = vmatprep.subr.mxu0 0.0
      %2622 = vmatpush1.msra.mxu0 0.0
      %2623 = vmatprep.subr.mxu0 0.0
      %2624 = vmatpush1.msra.mxu0 0.0
      %2625 = vmatprep.subr.mxu0 0.0
      %2626 = vmatpush1.msra.mxu0 0.0
      %2627 = vmatprep.subr.mxu0 0.0
      %2628 = vmatpush1.msra.mxu0 0.0
      %2629 = vmatprep.subr.mxu0 0.0
      %2630 = vmatpush1.msra.mxu0 0.0
      %2631 = vmatprep.subr.mxu0 0.0
      %2632 = vmatpush1.msra.mxu0 0.0
      %2633 = vmatprep.subr.mxu0 0.0
      %2634 = vmatpush1.msra.mxu0 0.0
      %2635 = vmatprep.subr.mxu0 0.0
      %2636 = vmatpush1.msra.mxu0 0.0
      %2637 = vmatprep.subr.mxu0 0.0
      %2638 = vmatpush1.msra.mxu0 0.0
      %2639 = vmatprep.subr.mxu0 0.0
      %2640 = vmatpush1.msra.mxu0 0.0
      %2641 = vmatprep.subr.mxu0 0.0
      %2642 = vmatpush1.msra.mxu0 0.0
      %2643 = vmatprep.subr.mxu0 0.0
      %2644 = vmatpush1.msra.mxu0 0.0
      %2645 = vmatprep.subr.mxu0 0.0
      %2646 = vmatpush1.msra.mxu0 0.0
      %2647 = vmatprep.subr.mxu0 0.0
      %2648 = vmatpush1.msra.mxu0 0.0
      %2649 = vmatprep.subr.mxu0 0.0
      %2650 = vmatpush1.msra.mxu0 0.0
      %2651 = vmatprep.subr.mxu0 0.0
      %2652 = vmatpush1.msra.mxu0 0.0
      %2653 = vmatprep.subr.mxu0 0.0
      %2654 = vmatpush1.msra.mxu0 0.0
      %2655 = vmatprep.subr.mxu0 0.0
      %2656 = vmatpush1.msra.mxu0 0.0
      %2657 = vmatprep.subr.mxu0 0.0
      %2658 = vmatpush1.msra.mxu0 0.0
      %2659 = vmatprep.subr.mxu0 0.0
      %2660 = vmatpush1.msra.mxu0 0.0
      %2661 = vmatprep.subr.mxu0 0.0
      %2662 = vmatpush1.msra.mxu0 0.0
      %2663 = vmatprep.subr.mxu0 0.0
      %2664 = vmatpush1.msra.mxu0 0.0
      %2665 = vmatprep.subr.mxu0 0.0
      %2666 = vmatpush1.msra.mxu0 0.0
      %2667 = vmatprep.subr.mxu0 0.0
      %2668 = vmatpush1.msra.mxu0 0.0
      %2669 = vmatprep.subr.mxu0 0.0
      %2670 = vmatpush1.msra.mxu0 0.0
      %2671 = vmatprep.subr.mxu0 0.0
      %2672 = vmatpush1.msra.mxu0 0.0
      %2673 = vmatprep.subr.mxu0 0.0
      %2674 = vmatpush1.msra.mxu0 0.0
      %2675 = vmatprep.subr.mxu0 0.0
      %2676 = vmatpush1.msra.mxu0 0.0
      %2677 = vmatprep.subr.mxu0 0.0
      %2678 = vmatpush1.msra.mxu0 0.0
      %2679 = vmatprep.subr.mxu0 0.0
      %2680 = vmatpush1.msra.mxu0 0.0
      %2681 = vmatprep.subr.mxu0 0.0
      %2682 = vmatpush1.msra.mxu0 0.0
      %2683 = vmatprep.mubr.f32.mxu0 0.0
      %2684 = vmatmul.mubr.f32.gmra.mrb[0].mxu0 %v2521
      %v2685 = vpop.f32.mrb[0].mxu0
      %v2686 = vadd.f32 0.0, %v2685
      %v2687 = vpop.f32.mrb[0].mxu0
      %2688 = vmatprep.mubr.f32.mxu0 0.0
      %2689 = vmatmul.mubr.f32.gmra.mrb[0].mxu0 %v2524
      %v2690 = vpop.f32.mrb[0].mxu0
      %v2691 = vadd.f32 0.0, %v2690
      %v2692 = vpop.f32.mrb[0].mxu0
      %2693 = vmatprep.mubr.f32.mxu0 0.0
      %2694 = vmatmul.mubr.f32.gmra.mrb[0].mxu0 %v2527
      %v2695 = vpop.f32.mrb[0].mxu0
      %v2696 = vadd.f32 0.0, %v2695
      %v2697 = vpop.f32.mrb[0].mxu0
      %2698 = vmatprep.mubr.f32.mxu0 0.0
      %2699 = vmatmul.mubr.f32.gmra.mrb[0].mxu0 %v2530
      %v2700 = vpop.f32.mrb[0].mxu0
      %v2701 = vadd.f32 0.0, %v2700
      %v2702 = vpop.f32.mrb[0].mxu0
      %2703 = vmatprep.mubr.f32.mxu0 0.0
      %2704 = vmatmul.mubr.f32.gmra.mrb[0].mxu0 %v2533
      %v2705 = vpop.f32.mrb[0].mxu0
      %v2706 = vadd.f32 0.0, %v2705
      %v2707 = vpop.f32.mrb[0].mxu0
      %2708 = vmatprep.mubr.f32.mxu0 0.0
      %2709 = vmatmul.mubr.f32.gmra.mrb[0].mxu0 %v2536
      %v2710 = vpop.f32.mrb[0].mxu0
      %v2711 = vadd.f32 0.0, %v2710
      %v2712 = vpop.f32.mrb[0].mxu0
      %2713 = vmatprep.mubr.f32.mxu0 0.0
      %2714 = vmatmul.mubr.f32.gmra.mrb[0].mxu0 %v2539
      %v2715 = vpop.f32.mrb[0].mxu0
      %v2716 = vadd.f32 0.0, %v2715
      %v2717 = vpop.f32.mrb[0].mxu0
      %2718 = vmatprep.mubr.f32.mxu0 0.0
      %2719 = vmatmul.mubr.f32.gmra.mrb[0].mxu0 %v2542
      %v2720 = vpop.f32.mrb[0].mxu0
      %v2721 = vadd.f32 0.0, %v2720
      %v2722 = vpop.f32.mrb[0].mxu0
      %2723 = vmatprep.mubr.f32.mxu0 0.0
      %2724 = vmatmul.mubr.f32.gmra.mrb[0].mxu0 %v2545
      %v2725 = vpop.f32.mrb[0].mxu0
      %v2726 = vadd.f32 0.0, %v2725
      %v2727 = vpop.f32.mrb[0].mxu0
      %2728 = vmatprep.mubr.f32.mxu0 0.0
      %2729 = vmatmul.mubr.f32.gmra.mrb[0].mxu0 %v2548
      %v2730 = vpop.f32.mrb[0].mxu0
      %v2731 = vadd.f32 0.0, %v2730
      %v2732 = vpop.f32.mrb[0].mxu0
      %2733 = vmatprep.mubr.f32.mxu0 0.0
      %2734 = vmatmul.mubr.f32.gmra.mrb[0].mxu0 %v2551
      %v2735 = vpop.f32.mrb[0].mxu0
      %v2736 = vadd.f32 0.0, %v2735
      %v2737 = vpop.f32.mrb[0].mxu0
      %2738 = vmatprep.mubr.f32.mxu0 0.0
      %2739 = vmatmul.mubr.f32.gmra.mrb[0].mxu0 %v2554
      %v2740 = vpop.f32.mrb[0].mxu0
      %v2741 = vadd.f32 0.0, %v2740
      %v2742 = vpop.f32.mrb[0].mxu0
      %2743 = vmatprep.mubr.f32.mxu0 0.0
      %2744 = vmatmul.mubr.f32.gmra.mrb[0].mxu0 %v2557
      %v2745 = vpop.f32.mrb[0].mxu0
      %v2746 = vadd.f32 0.0, %v2745
      %v2747 = vpop.f32.mrb[0].mxu0
      %2748 = vmatprep.mubr.f32.mxu0 0.0
      %2749 = vmatmul.mubr.f32.gmra.mrb[0].mxu0 %v2560
      %v2750 = vpop.f32.mrb[0].mxu0
      %v2751 = vadd.f32 0.0, %v2750
      %v2752 = vpop.f32.mrb[0].mxu0
      %2753 = vmatprep.mubr.f32.mxu0 0.0
      %2754 = vmatmul.mubr.f32.gmra.mrb[0].mxu0 %v2563
      %v2755 = vpop.f32.mrb[0].mxu0
      %v2756 = vadd.f32 0.0, %v2755
      %v2757 = vpop.f32.mrb[0].mxu0
      %2758 = vmatprep.mubr.f32.mxu0 0.0
      %2759 = vmatmul.mubr.f32.gmra.mrb[0].mxu0 %v2566
      %v2760 = vpop.f32.mrb[0].mxu0
      %v2761 = vadd.f32 0.0, %v2760
      %v2762 = vpop.f32.mrb[0].mxu0
      %2763 = vmatprep.mubr.f32.mxu0 0.0
      %2764 = vmatmul.mubr.f32.gmra.mrb[0].mxu0 %v2569
      %v2765 = vpop.f32.mrb[0].mxu0
      %v2766 = vadd.f32 0.0, %v2765
      %v2767 = vpop.f32.mrb[0].mxu0
      %2768 = vmatprep.mubr.f32.mxu0 0.0
      %2769 = vmatmul.mubr.f32.gmra.mrb[0].mxu0 %v2572
      %v2770 = vpop.f32.mrb[0].mxu0
      %v2771 = vadd.f32 0.0, %v2770
      %v2772 = vpop.f32.mrb[0].mxu0
      %2773 = vmatprep.mubr.f32.mxu0 0.0
      %2774 = vmatmul.mubr.f32.gmra.mrb[0].mxu0 %v2575
      %v2775 = vpop.f32.mrb[0].mxu0
      %v2776 = vadd.f32 0.0, %v2775
      %v2777 = vpop.f32.mrb[0].mxu0
      %2778 = vmatprep.mubr.f32.mxu0 0.0
      %2779 = vmatmul.mubr.f32.gmra.mrb[0].mxu0 %v2578
      %v2780 = vpop.f32.mrb[0].mxu0
      %v2781 = vadd.f32 0.0, %v2780
      %v2782 = vpop.f32.mrb[0].mxu0
      %2783 = vmatprep.mubr.f32.mxu0 0.0
      %2784 = vmatmul.mubr.f32.gmra.mrb[0].mxu0 %v2581
      %v2785 = vpop.f32.mrb[0].mxu0
      %v2786 = vadd.f32 0.0, %v2785
      %v2787 = vpop.f32.mrb[0].mxu0
      %2788 = vmatprep.mubr.f32.mxu0 0.0
      %2789 = vmatmul.mubr.f32.gmra.mrb[0].mxu0 %v2584
      %v2790 = vpop.f32.mrb[0].mxu0
      %v2791 = vadd.f32 0.0, %v2790
      %v2792 = vpop.f32.mrb[0].mxu0
      %2793 = vmatprep.mubr.f32.mxu0 0.0
      %2794 = vmatmul.mubr.f32.gmra.mrb[0].mxu0 %v2587
      %v2795 = vpop.f32.mrb[0].mxu0
      %v2796 = vadd.f32 0.0, %v2795
      %v2797 = vpop.f32.mrb[0].mxu0
      %2798 = vmatprep.mubr.f32.mxu0 0.0
      %2799 = vmatmul.mubr.f32.gmra.mrb[0].mxu0 %v2590
      %v2800 = vpop.f32.mrb[0].mxu0
      %v2801 = vadd.f32 0.0, %v2800
      %v2802 = vpop.f32.mrb[0].mxu0
      %2803 = vmatprep.mubr.f32.mxu0 0.0
      %2804 = vmatmul.mubr.f32.gmra.mrb[0].mxu0 %v2593
      %v2805 = vpop.f32.mrb[0].mxu0
      %v2806 = vadd.f32 0.0, %v2805
      %v2807 = vpop.f32.mrb[0].mxu0
      %2808 = vmatprep.mubr.f32.mxu0 0.0
      %2809 = vmatmul.mubr.f32.gmra.mrb[0].mxu0 %v2596
      %v2810 = vpop.f32.mrb[0].mxu0
      %v2811 = vadd.f32 0.0, %v2810
      %v2812 = vpop.f32.mrb[0].mxu0
      %2813 = vmatprep.mubr.f32.mxu0 0.0
      %2814 = vmatmul.mubr.f32.gmra.mrb[0].mxu0 %v2599
      %v2815 = vpop.f32.mrb[0].mxu0
      %v2816 = vadd.f32 0.0, %v2815
      %v2817 = vpop.f32.mrb[0].mxu0
      %2818 = vmatprep.mubr.f32.mxu0 0.0
      %2819 = vmatmul.mubr.f32.gmra.mrb[0].mxu0 %v2602
      %v2820 = vpop.f32.mrb[0].mxu0
      %v2821 = vadd.f32 0.0, %v2820
      %v2822 = vpop.f32.mrb[0].mxu0
      %2823 = vmatprep.mubr.f32.mxu0 0.0
      %2824 = vmatmul.mubr.f32.gmra.mrb[0].mxu0 %v2605
      %v2825 = vpop.f32.mrb[0].mxu0
      %v2826 = vadd.f32 0.0, %v2825
      %v2827 = vpop.f32.mrb[0].mxu0
      %2828 = vmatprep.mubr.f32.mxu0 0.0
      %2829 = vmatmul.mubr.f32.gmra.mrb[0].mxu0 %v2608
      %v2830 = vpop.f32.mrb[0].mxu0
      %v2831 = vadd.f32 0.0, %v2830
      %v2832 = vpop.f32.mrb[0].mxu0
      %2833 = vmatprep.mubr.f32.mxu0 0.0
      %2834 = vmatmul.mubr.f32.gmra.mrb[0].mxu0 %v2611
      %v2835 = vpop.f32.mrb[0].mxu0
      %v2836 = vadd.f32 0.0, %v2835
      %v2837 = vpop.f32.mrb[0].mxu0
      %2838 = vmatprep.mubr.f32.mxu0 0.0
      %2839 = vmatmul.mubr.f32.gmra.mrb[0].mxu0 %v2614
      %v2840 = vpop.f32.mrb[0].mxu0
      %v2841 = vadd.f32 0.0, %v2840
      %v2842 = vpop.f32.mrb[0].mxu0
      %2843 = vdwg.mxu0
      %v2844 = vadd.f32 %v2454, %v2686
      %v2845 = vadd.f32 %v2455, %v2691
      %v2846 = vadd.f32 %v2456, %v2696
      %v2847 = vadd.f32 %v2457, %v2701
      %v2848 = vadd.f32 %v2458, %v2706
      %v2849 = vadd.f32 %v2459, %v2711
      %v2850 = vadd.f32 %v2460, %v2716
      %v2851 = vadd.f32 %v2461, %v2721
      %v2852 = vadd.f32 %v2462, %v2726
      %v2853 = vadd.f32 %v2463, %v2731
      %v2854 = vadd.f32 %v2464, %v2736
      %v2855 = vadd.f32 %v2465, %v2741
      %v2856 = vadd.f32 %v2466, %v2746
      %v2857 = vadd.f32 %v2467, %v2751
      %v2858 = vadd.f32 %v2468, %v2756
      %v2859 = vadd.f32 %v2469, %v2761
      %v2860 = vadd.f32 %v2470, %v2766
      %v2861 = vadd.f32 %v2471, %v2771
      %v2862 = vadd.f32 %v2472, %v2776
      %v2863 = vadd.f32 %v2473, %v2781
      %v2864 = vadd.f32 %v2474, %v2786
      %v2865 = vadd.f32 %v2475, %v2791
      %v2866 = vadd.f32 %v2476, %v2796
      %v2867 = vadd.f32 %v2477, %v2801
      %v2868 = vadd.f32 %v2478, %v2806
      %v2869 = vadd.f32 %v2479, %v2811
      %v2870 = vadd.f32 %v2480, %v2816
      %v2871 = vadd.f32 %v2481, %v2821
      %v2872 = vadd.f32 %v2482, %v2826
      %v2873 = vadd.f32 %v2483, %v2831
      %v2874 = vadd.f32 %v2484, %v2836
      %v2875 = vadd.f32 %v2485, %v2841
      %v2876 = vld [vmem:[%s595 + $0x6] sm:$0xff]
      %v2877 = vld [vmem:[%s595 + $0xe] sm:$0xff]
      %v2878 = vld [vmem:[%s595 + $0x16] sm:$0xff]
      %v2879 = vld [vmem:[%s595 + $0x1e] sm:$0xff]
      %v2880 = vld [vmem:[%s595 + $0x26] sm:$0xff]
      %v2881 = vld [vmem:[%s595 + $0x2e] sm:$0xff]
      %v2882 = vld [vmem:[%s595 + $0x36] sm:$0xff]
      %v2883 = vld [vmem:[%s595 + $0x3e] sm:$0xff]
      %v2884 = vld [vmem:[%s595 + $0x46] sm:$0xff]
      %v2885 = vld [vmem:[%s595 + $0x4e] sm:$0xff]
      %v2886 = vld [vmem:[%s595 + $0x56] sm:$0xff]
      %v2887 = vld [vmem:[%s595 + $0x5e] sm:$0xff]
      %v2888 = vld [vmem:[%s595 + $0x66] sm:$0xff]
      %v2889 = vld [vmem:[%s595 + $0x6e] sm:$0xff]
      %v2890 = vld [vmem:[%s595 + $0x76] sm:$0xff]
      %v2891 = vld [vmem:[%s595 + $0x7e] sm:$0xff]
      %v2892 = vld [vmem:[%s595 + $0x86] sm:$0xff]
      %v2893 = vld [vmem:[%s595 + $0x8e] sm:$0xff]
      %v2894 = vld [vmem:[%s595 + $0x96] sm:$0xff]
      %v2895 = vld [vmem:[%s595 + $0x9e] sm:$0xff]
      %v2896 = vld [vmem:[%s595 + $0xa6] sm:$0xff]
      %v2897 = vld [vmem:[%s595 + $0xae] sm:$0xff]
      %v2898 = vld [vmem:[%s595 + $0xb6] sm:$0xff]
      %v2899 = vld [vmem:[%s595 + $0xbe] sm:$0xff]
      %v2900 = vld [vmem:[%s595 + $0xc6] sm:$0xff]
      %v2901 = vld [vmem:[%s595 + $0xce] sm:$0xff]
      %v2902 = vld [vmem:[%s595 + $0xd6] sm:$0xff]
      %v2903 = vld [vmem:[%s595 + $0xde] sm:$0xff]
      %v2904 = vld [vmem:[%s595 + $0xe6] sm:$0xff]
      %v2905 = vld [vmem:[%s595 + $0xee] sm:$0xff]
      %v2906 = vld [vmem:[%s595 + $0xf6] sm:$0xff]
      %v2907 = vld [vmem:[%s595 + $0xfe] sm:$0xff]
      %s2908 = scalar_lea.vmem %s1, 12
      %v2909 = vld [vmem:[%s2908] sm:$0x3]
      %v2911 = vsel %vm666, %v2876, 0
      %v2914 = vsel %vm666, %v2877, 0
      %v2917 = vsel %vm666, %v2878, 0
      %v2920 = vsel %vm666, %v2879, 0
      %v2923 = vsel %vm666, %v2880, 0
      %v2926 = vsel %vm666, %v2881, 0
      %v2929 = vsel %vm666, %v2882, 0
      %v2932 = vsel %vm666, %v2883, 0
      %v2935 = vsel %vm666, %v2884, 0
      %v2938 = vsel %vm666, %v2885, 0
      %v2941 = vsel %vm666, %v2886, 0
      %v2944 = vsel %vm666, %v2887, 0
      %v2947 = vsel %vm666, %v2888, 0
      %v2950 = vsel %vm666, %v2889, 0
      %v2953 = vsel %vm666, %v2890, 0
      %v2956 = vsel %vm666, %v2891, 0
      %v2959 = vsel %vm666, %v2892, 0
      %v2962 = vsel %vm666, %v2893, 0
      %v2965 = vsel %vm666, %v2894, 0
      %v2968 = vsel %vm666, %v2895, 0
      %v2971 = vsel %vm666, %v2896, 0
      %v2974 = vsel %vm666, %v2897, 0
      %v2977 = vsel %vm666, %v2898, 0
      %v2980 = vsel %vm666, %v2899, 0
      %v2983 = vsel %vm666, %v2900, 0
      %v2986 = vsel %vm666, %v2901, 0
      %v2989 = vsel %vm666, %v2902, 0
      %v2992 = vsel %vm666, %v2903, 0
      %v2995 = vsel %vm666, %v2904, 0
      %v2998 = vsel %vm666, %v2905, 0
      %v3001 = vsel %vm666, %v2906, 0
      %v3004 = vsel %vm666, %v2907, 0
      %v3007 = vsel %vm763, %v2909, 0
      %3009 = vmatprep.subr.mxu0 0.0
      %3010 = vmatpush1.msra.mxu0 %v3007
      %3011 = vmatprep.subr.mxu0 0.0
      %3012 = vmatpush1.msra.mxu0 0.0
      %3013 = vmatprep.subr.mxu0 0.0
      %3014 = vmatpush1.msra.mxu0 0.0
      %3015 = vmatprep.subr.mxu0 0.0
      %3016 = vmatpush1.msra.mxu0 0.0
      %3017 = vmatprep.subr.mxu0 0.0
      %3018 = vmatpush1.msra.mxu0 0.0
      %3019 = vmatprep.subr.mxu0 0.0
      %3020 = vmatpush1.msra.mxu0 0.0
      %3021 = vmatprep.subr.mxu0 0.0
      %3022 = vmatpush1.msra.mxu0 0.0
      %3023 = vmatprep.subr.mxu0 0.0
      %3024 = vmatpush1.msra.mxu0 0.0
      %3025 = vmatprep.subr.mxu0 0.0
      %3026 = vmatpush1.msra.mxu0 0.0
      %3027 = vmatprep.subr.mxu0 0.0
      %3028 = vmatpush1.msra.mxu0 0.0
      %3029 = vmatprep.subr.mxu0 0.0
      %3030 = vmatpush1.msra.mxu0 0.0
      %3031 = vmatprep.subr.mxu0 0.0
      %3032 = vmatpush1.msra.mxu0 0.0
      %3033 = vmatprep.subr.mxu0 0.0
      %3034 = vmatpush1.msra.mxu0 0.0
      %3035 = vmatprep.subr.mxu0 0.0
      %3036 = vmatpush1.msra.mxu0 0.0
      %3037 = vmatprep.subr.mxu0 0.0
      %3038 = vmatpush1.msra.mxu0 0.0
      %3039 = vmatprep.subr.mxu0 0.0
      %3040 = vmatpush1.msra.mxu0 0.0
      %3041 = vmatprep.subr.mxu0 0.0
      %3042 = vmatpush1.msra.mxu0 0.0
      %3043 = vmatprep.subr.mxu0 0.0
      %3044 = vmatpush1.msra.mxu0 0.0
      %3045 = vmatprep.subr.mxu0 0.0
      %3046 = vmatpush1.msra.mxu0 0.0
      %3047 = vmatprep.subr.mxu0 0.0
      %3048 = vmatpush1.msra.mxu0 0.0
      %3049 = vmatprep.subr.mxu0 0.0
      %3050 = vmatpush1.msra.mxu0 0.0
      %3051 = vmatprep.subr.mxu0 0.0
      %3052 = vmatpush1.msra.mxu0 0.0
      %3053 = vmatprep.subr.mxu0 0.0
      %3054 = vmatpush1.msra.mxu0 0.0
      %3055 = vmatprep.subr.mxu0 0.0
      %3056 = vmatpush1.msra.mxu0 0.0
      %3057 = vmatprep.subr.mxu0 0.0
      %3058 = vmatpush1.msra.mxu0 0.0
      %3059 = vmatprep.subr.mxu0 0.0
      %3060 = vmatpush1.msra.mxu0 0.0
      %3061 = vmatprep.subr.mxu0 0.0
      %3062 = vmatpush1.msra.mxu0 0.0
      %3063 = vmatprep.subr.mxu0 0.0
      %3064 = vmatpush1.msra.mxu0 0.0
      %3065 = vmatprep.subr.mxu0 0.0
      %3066 = vmatpush1.msra.mxu0 0.0
      %3067 = vmatprep.subr.mxu0 0.0
      %3068 = vmatpush1.msra.mxu0 0.0
      %3069 = vmatprep.subr.mxu0 0.0
      %3070 = vmatpush1.msra.mxu0 0.0
      %3071 = vmatprep.subr.mxu0 0.0
      %3072 = vmatpush1.msra.mxu0 0.0
      %3073 = vmatprep.mubr.f32.mxu0 0.0
      %3074 = vmatmul.mubr.f32.gmra.mrb[0].mxu0 %v2911
      %v3075 = vpop.f32.mrb[0].mxu0
      %v3076 = vadd.f32 0.0, %v3075
      %v3077 = vpop.f32.mrb[0].mxu0
      %3078 = vmatprep.mubr.f32.mxu0 0.0
      %3079 = vmatmul.mubr.f32.gmra.mrb[0].mxu0 %v2914
      %v3080 = vpop.f32.mrb[0].mxu0
      %v3081 = vadd.f32 0.0, %v3080
      %v3082 = vpop.f32.mrb[0].mxu0
      %3083 = vmatprep.mubr.f32.mxu0 0.0
      %3084 = vmatmul.mubr.f32.gmra.mrb[0].mxu0 %v2917
      %v3085 = vpop.f32.mrb[0].mxu0
      %v3086 = vadd.f32 0.0, %v3085
      %v3087 = vpop.f32.mrb[0].mxu0
      %3088 = vmatprep.mubr.f32.mxu0 0.0
      %3089 = vmatmul.mubr.f32.gmra.mrb[0].mxu0 %v2920
      %v3090 = vpop.f32.mrb[0].mxu0
      %v3091 = vadd.f32 0.0, %v3090
      %v3092 = vpop.f32.mrb[0].mxu0
      %3093 = vmatprep.mubr.f32.mxu0 0.0
      %3094 = vmatmul.mubr.f32.gmra.mrb[0].mxu0 %v2923
      %v3095 = vpop.f32.mrb[0].mxu0
      %v3096 = vadd.f32 0.0, %v3095
      %v3097 = vpop.f32.mrb[0].mxu0
      %3098 = vmatprep.mubr.f32.mxu0 0.0
      %3099 = vmatmul.mubr.f32.gmra.mrb[0].mxu0 %v2926
      %v3100 = vpop.f32.mrb[0].mxu0
      %v3101 = vadd.f32 0.0, %v3100
      %v3102 = vpop.f32.mrb[0].mxu0
      %3103 = vmatprep.mubr.f32.mxu0 0.0
      %3104 = vmatmul.mubr.f32.gmra.mrb[0].mxu0 %v2929
      %v3105 = vpop.f32.mrb[0].mxu0
      %v3106 = vadd.f32 0.0, %v3105
      %v3107 = vpop.f32.mrb[0].mxu0
      %3108 = vmatprep.mubr.f32.mxu0 0.0
      %3109 = vmatmul.mubr.f32.gmra.mrb[0].mxu0 %v2932
      %v3110 = vpop.f32.mrb[0].mxu0
      %v3111 = vadd.f32 0.0, %v3110
      %v3112 = vpop.f32.mrb[0].mxu0
      %3113 = vmatprep.mubr.f32.mxu0 0.0
      %3114 = vmatmul.mubr.f32.gmra.mrb[0].mxu0 %v2935
      %v3115 = vpop.f32.mrb[0].mxu0
      %v3116 = vadd.f32 0.0, %v3115
      %v3117 = vpop.f32.mrb[0].mxu0
      %3118 = vmatprep.mubr.f32.mxu0 0.0
      %3119 = vmatmul.mubr.f32.gmra.mrb[0].mxu0 %v2938
      %v3120 = vpop.f32.mrb[0].mxu0
      %v3121 = vadd.f32 0.0, %v3120
      %v3122 = vpop.f32.mrb[0].mxu0
      %3123 = vmatprep.mubr.f32.mxu0 0.0
      %3124 = vmatmul.mubr.f32.gmra.mrb[0].mxu0 %v2941
      %v3125 = vpop.f32.mrb[0].mxu0
      %v3126 = vadd.f32 0.0, %v3125
      %v3127 = vpop.f32.mrb[0].mxu0
      %3128 = vmatprep.mubr.f32.mxu0 0.0
      %3129 = vmatmul.mubr.f32.gmra.mrb[0].mxu0 %v2944
      %v3130 = vpop.f32.mrb[0].mxu0
      %v3131 = vadd.f32 0.0, %v3130
      %v3132 = vpop.f32.mrb[0].mxu0
      %3133 = vmatprep.mubr.f32.mxu0 0.0
      %3134 = vmatmul.mubr.f32.gmra.mrb[0].mxu0 %v2947
      %v3135 = vpop.f32.mrb[0].mxu0
      %v3136 = vadd.f32 0.0, %v3135
      %v3137 = vpop.f32.mrb[0].mxu0
      %3138 = vmatprep.mubr.f32.mxu0 0.0
      %3139 = vmatmul.mubr.f32.gmra.mrb[0].mxu0 %v2950
      %v3140 = vpop.f32.mrb[0].mxu0
      %v3141 = vadd.f32 0.0, %v3140
      %v3142 = vpop.f32.mrb[0].mxu0
      %3143 = vmatprep.mubr.f32.mxu0 0.0
      %3144 = vmatmul.mubr.f32.gmra.mrb[0].mxu0 %v2953
      %v3145 = vpop.f32.mrb[0].mxu0
      %v3146 = vadd.f32 0.0, %v3145
      %v3147 = vpop.f32.mrb[0].mxu0
      %3148 = vmatprep.mubr.f32.mxu0 0.0
      %3149 = vmatmul.mubr.f32.gmra.mrb[0].mxu0 %v2956
      %v3150 = vpop.f32.mrb[0].mxu0
      %v3151 = vadd.f32 0.0, %v3150
      %v3152 = vpop.f32.mrb[0].mxu0
      %3153 = vmatprep.mubr.f32.mxu0 0.0
      %3154 = vmatmul.mubr.f32.gmra.mrb[0].mxu0 %v2959
      %v3155 = vpop.f32.mrb[0].mxu0
      %v3156 = vadd.f32 0.0, %v3155
      %v3157 = vpop.f32.mrb[0].mxu0
      %3158 = vmatprep.mubr.f32.mxu0 0.0
      %3159 = vmatmul.mubr.f32.gmra.mrb[0].mxu0 %v2962
      %v3160 = vpop.f32.mrb[0].mxu0
      %v3161 = vadd.f32 0.0, %v3160
      %v3162 = vpop.f32.mrb[0].mxu0
      %3163 = vmatprep.mubr.f32.mxu0 0.0
      %3164 = vmatmul.mubr.f32.gmra.mrb[0].mxu0 %v2965
      %v3165 = vpop.f32.mrb[0].mxu0
      %v3166 = vadd.f32 0.0, %v3165
      %v3167 = vpop.f32.mrb[0].mxu0
      %3168 = vmatprep.mubr.f32.mxu0 0.0
      %3169 = vmatmul.mubr.f32.gmra.mrb[0].mxu0 %v2968
      %v3170 = vpop.f32.mrb[0].mxu0
      %v3171 = vadd.f32 0.0, %v3170
      %v3172 = vpop.f32.mrb[0].mxu0
      %3173 = vmatprep.mubr.f32.mxu0 0.0
      %3174 = vmatmul.mubr.f32.gmra.mrb[0].mxu0 %v2971
      %v3175 = vpop.f32.mrb[0].mxu0
      %v3176 = vadd.f32 0.0, %v3175
      %v3177 = vpop.f32.mrb[0].mxu0
      %3178 = vmatprep.mubr.f32.mxu0 0.0
      %3179 = vmatmul.mubr.f32.gmra.mrb[0].mxu0 %v2974
      %v3180 = vpop.f32.mrb[0].mxu0
      %v3181 = vadd.f32 0.0, %v3180
      %v3182 = vpop.f32.mrb[0].mxu0
      %3183 = vmatprep.mubr.f32.mxu0 0.0
      %3184 = vmatmul.mubr.f32.gmra.mrb[0].mxu0 %v2977
      %v3185 = vpop.f32.mrb[0].mxu0
      %v3186 = vadd.f32 0.0, %v3185
      %v3187 = vpop.f32.mrb[0].mxu0
      %3188 = vmatprep.mubr.f32.mxu0 0.0
      %3189 = vmatmul.mubr.f32.gmra.mrb[0].mxu0 %v2980
      %v3190 = vpop.f32.mrb[0].mxu0
      %v3191 = vadd.f32 0.0, %v3190
      %v3192 = vpop.f32.mrb[0].mxu0
      %3193 = vmatprep.mubr.f32.mxu0 0.0
      %3194 = vmatmul.mubr.f32.gmra.mrb[0].mxu0 %v2983
      %v3195 = vpop.f32.mrb[0].mxu0
      %v3196 = vadd.f32 0.0, %v3195
      %v3197 = vpop.f32.mrb[0].mxu0
      %3198 = vmatprep.mubr.f32.mxu0 0.0
      %3199 = vmatmul.mubr.f32.gmra.mrb[0].mxu0 %v2986
      %v3200 = vpop.f32.mrb[0].mxu0
      %v3201 = vadd.f32 0.0, %v3200
      %v3202 = vpop.f32.mrb[0].mxu0
      %3203 = vmatprep.mubr.f32.mxu0 0.0
      %3204 = vmatmul.mubr.f32.gmra.mrb[0].mxu0 %v2989
      %v3205 = vpop.f32.mrb[0].mxu0
      %v3206 = vadd.f32 0.0, %v3205
      %v3207 = vpop.f32.mrb[0].mxu0
      %3208 = vmatprep.mubr.f32.mxu0 0.0
      %3209 = vmatmul.mubr.f32.gmra.mrb[0].mxu0 %v2992
      %v3210 = vpop.f32.mrb[0].mxu0
      %v3211 = vadd.f32 0.0, %v3210
      %v3212 = vpop.f32.mrb[0].mxu0
      %3213 = vmatprep.mubr.f32.mxu0 0.0
      %3214 = vmatmul.mubr.f32.gmra.mrb[0].mxu0 %v2995
      %v3215 = vpop.f32.mrb[0].mxu0
      %v3216 = vadd.f32 0.0, %v3215
      %v3217 = vpop.f32.mrb[0].mxu0
      %3218 = vmatprep.mubr.f32.mxu0 0.0
      %3219 = vmatmul.mubr.f32.gmra.mrb[0].mxu0 %v2998
      %v3220 = vpop.f32.mrb[0].mxu0
      %v3221 = vadd.f32 0.0, %v3220
      %v3222 = vpop.f32.mrb[0].mxu0
      %3223 = vmatprep.mubr.f32.mxu0 0.0
      %3224 = vmatmul.mubr.f32.gmra.mrb[0].mxu0 %v3001
      %v3225 = vpop.f32.mrb[0].mxu0
      %v3226 = vadd.f32 0.0, %v3225
      %v3227 = vpop.f32.mrb[0].mxu0
      %3228 = vmatprep.mubr.f32.mxu0 0.0
      %3229 = vmatmul.mubr.f32.gmra.mrb[0].mxu0 %v3004
      %v3230 = vpop.f32.mrb[0].mxu0
      %v3231 = vadd.f32 0.0, %v3230
      %v3232 = vpop.f32.mrb[0].mxu0
      %3233 = vdwg.mxu0
      %v3234 = vadd.f32 %v2844, %v3076
      %v3235 = vadd.f32 %v2845, %v3081
      %v3236 = vadd.f32 %v2846, %v3086
      %v3237 = vadd.f32 %v2847, %v3091
      %v3238 = vadd.f32 %v2848, %v3096
      %v3239 = vadd.f32 %v2849, %v3101
      %v3240 = vadd.f32 %v2850, %v3106
      %v3241 = vadd.f32 %v2851, %v3111
      %v3242 = vadd.f32 %v2852, %v3116
      %v3243 = vadd.f32 %v2853, %v3121
      %v3244 = vadd.f32 %v2854, %v3126
      %v3245 = vadd.f32 %v2855, %v3131
      %v3246 = vadd.f32 %v2856, %v3136
      %v3247 = vadd.f32 %v2857, %v3141
      %v3248 = vadd.f32 %v2858, %v3146
      %v3249 = vadd.f32 %v2859, %v3151
      %v3250 = vadd.f32 %v2860, %v3156
      %v3251 = vadd.f32 %v2861, %v3161
      %v3252 = vadd.f32 %v2862, %v3166
      %v3253 = vadd.f32 %v2863, %v3171
      %v3254 = vadd.f32 %v2864, %v3176
      %v3255 = vadd.f32 %v2865, %v3181
      %v3256 = vadd.f32 %v2866, %v3186
      %v3257 = vadd.f32 %v2867, %v3191
      %v3258 = vadd.f32 %v2868, %v3196
      %v3259 = vadd.f32 %v2869, %v3201
      %v3260 = vadd.f32 %v2870, %v3206
      %v3261 = vadd.f32 %v2871, %v3211
      %v3262 = vadd.f32 %v2872, %v3216
      %v3263 = vadd.f32 %v2873, %v3221
      %v3264 = vadd.f32 %v2874, %v3226
      %v3265 = vadd.f32 %v2875, %v3231
      %v3266 = vld [vmem:[%s2] sm:$0x1]
      %v3268 = vlaneseq
      %v3269 = vshrl.u32 %v3268, 7
      %v3270 = vsub.s32 0, %v3269
      %v3271 = vrot.slane %v3266, %v3270
      %v3273 = vmul.f32 %v3234, %v3271
      %v3274 = vmul.f32 %v3235, %v3271
      %v3275 = vmul.f32 %v3236, %v3271
      %v3276 = vmul.f32 %v3237, %v3271
      %v3277 = vmul.f32 %v3238, %v3271
      %v3278 = vmul.f32 %v3239, %v3271
      %v3279 = vmul.f32 %v3240, %v3271
      %v3280 = vmul.f32 %v3241, %v3271
      %v3281 = vmul.f32 %v3242, %v3271
      %v3282 = vmul.f32 %v3243, %v3271
      %v3283 = vmul.f32 %v3244, %v3271
      %v3284 = vmul.f32 %v3245, %v3271
      %v3285 = vmul.f32 %v3246, %v3271
      %v3286 = vmul.f32 %v3247, %v3271
      %v3287 = vmul.f32 %v3248, %v3271
      %v3288 = vmul.f32 %v3249, %v3271
      %v3289 = vmul.f32 %v3250, %v3271
      %v3290 = vmul.f32 %v3251, %v3271
      %v3291 = vmul.f32 %v3252, %v3271
      %v3292 = vmul.f32 %v3253, %v3271
      %v3293 = vmul.f32 %v3254, %v3271
      %v3294 = vmul.f32 %v3255, %v3271
      %v3295 = vmul.f32 %v3256, %v3271
      %v3296 = vmul.f32 %v3257, %v3271
      %v3297 = vmul.f32 %v3258, %v3271
      %v3298 = vmul.f32 %v3259, %v3271
      %v3299 = vmul.f32 %v3260, %v3271
      %v3300 = vmul.f32 %v3261, %v3271
      %v3301 = vmul.f32 %v3262, %v3271
      %v3302 = vmul.f32 %v3263, %v3271
      %v3303 = vmul.f32 %v3264, %v3271
      %v3304 = vmul.f32 %v3265, %v3271
      %v3305 = vld [vmem:[%s3] sm:$0x1]
      %v3307 = vlaneseq
      %v3308 = vshrl.u32 %v3307, 7
      %v3309 = vsub.s32 0, %v3308
      %v3310 = vrot.slane %v3305, %v3309
      %v3312 = vadd.f32 %v3273, %v3310
      %v3313 = vadd.f32 %v3274, %v3310
      %v3314 = vadd.f32 %v3275, %v3310
      %v3315 = vadd.f32 %v3276, %v3310
      %v3316 = vadd.f32 %v3277, %v3310
      %v3317 = vadd.f32 %v3278, %v3310
      %v3318 = vadd.f32 %v3279, %v3310
      %v3319 = vadd.f32 %v3280, %v3310
      %v3320 = vadd.f32 %v3281, %v3310
      %v3321 = vadd.f32 %v3282, %v3310
      %v3322 = vadd.f32 %v3283, %v3310
      %v3323 = vadd.f32 %v3284, %v3310
      %v3324 = vadd.f32 %v3285, %v3310
      %v3325 = vadd.f32 %v3286, %v3310
      %v3326 = vadd.f32 %v3287, %v3310
      %v3327 = vadd.f32 %v3288, %v3310
      %v3328 = vadd.f32 %v3289, %v3310
      %v3329 = vadd.f32 %v3290, %v3310
      %v3330 = vadd.f32 %v3291, %v3310
      %v3331 = vadd.f32 %v3292, %v3310
      %v3332 = vadd.f32 %v3293, %v3310
      %v3333 = vadd.f32 %v3294, %v3310
      %v3334 = vadd.f32 %v3295, %v3310
      %v3335 = vadd.f32 %v3296, %v3310
      %v3336 = vadd.f32 %v3297, %v3310
      %v3337 = vadd.f32 %v3298, %v3310
      %v3338 = vadd.f32 %v3299, %v3310
      %v3339 = vadd.f32 %v3300, %v3310
      %v3340 = vadd.f32 %v3301, %v3310
      %v3341 = vadd.f32 %v3302, %v3310
      %v3342 = vadd.f32 %v3303, %v3310
      %v3343 = vadd.f32 %v3304, %v3310
      %v3344 = vmax.f32 %v3312, 0.0
      %v3345 = vmax.f32 %v3313, 0.0
      %v3346 = vmax.f32 %v3314, 0.0
      %v3347 = vmax.f32 %v3315, 0.0
      %v3348 = vmax.f32 %v3316, 0.0
      %v3349 = vmax.f32 %v3317, 0.0
      %v3350 = vmax.f32 %v3318, 0.0
      %v3351 = vmax.f32 %v3319, 0.0
      %v3352 = vmax.f32 %v3320, 0.0
      %v3353 = vmax.f32 %v3321, 0.0
      %v3354 = vmax.f32 %v3322, 0.0
      %v3355 = vmax.f32 %v3323, 0.0
      %v3356 = vmax.f32 %v3324, 0.0
      %v3357 = vmax.f32 %v3325, 0.0
      %v3358 = vmax.f32 %v3326, 0.0
      %v3359 = vmax.f32 %v3327, 0.0
      %v3360 = vmax.f32 %v3328, 0.0
      %v3361 = vmax.f32 %v3329, 0.0
      %v3362 = vmax.f32 %v3330, 0.0
      %v3363 = vmax.f32 %v3331, 0.0
      %v3364 = vmax.f32 %v3332, 0.0
      %v3365 = vmax.f32 %v3333, 0.0
      %v3366 = vmax.f32 %v3334, 0.0
      %v3367 = vmax.f32 %v3335, 0.0
      %v3368 = vmax.f32 %v3336, 0.0
      %v3369 = vmax.f32 %v3337, 0.0
      %v3370 = vmax.f32 %v3338, 0.0
      %v3371 = vmax.f32 %v3339, 0.0
      %v3372 = vmax.f32 %v3340, 0.0
      %v3373 = vmax.f32 %v3341, 0.0
      %v3374 = vmax.f32 %v3342, 0.0
      %v3375 = vmax.f32 %v3343, 0.0
      %vm3376 = vcmask 261120
      %3377 = vst.msk [vmem:[#allocation2] sm:$0xff] %vm3376, %v3344
      %3378 = vst.msk [vmem:[#allocation2 + $0x8] sm:$0xff] %vm3376, %v3345
      %3379 = vst.msk [vmem:[#allocation2 + $0x10] sm:$0xff] %vm3376, %v3346
      %3380 = vst.msk [vmem:[#allocation2 + $0x18] sm:$0xff] %vm3376, %v3347
      %3381 = vst.msk [vmem:[#allocation2 + $0x20] sm:$0xff] %vm3376, %v3348
      %3382 = vst.msk [vmem:[#allocation2 + $0x28] sm:$0xff] %vm3376, %v3349
      %3383 = vst.msk [vmem:[#allocation2 + $0x30] sm:$0xff] %vm3376, %v3350
      %3384 = vst.msk [vmem:[#allocation2 + $0x38] sm:$0xff] %vm3376, %v3351
      %3385 = vst.msk [vmem:[#allocation2 + $0x40] sm:$0xff] %vm3376, %v3352
      %3386 = vst.msk [vmem:[#allocation2 + $0x48] sm:$0xff] %vm3376, %v3353
      %3387 = vst.msk [vmem:[#allocation2 + $0x50] sm:$0xff] %vm3376, %v3354
      %3388 = vst.msk [vmem:[#allocation2 + $0x58] sm:$0xff] %vm3376, %v3355
      %3389 = vst.msk [vmem:[#allocation2 + $0x60] sm:$0xff] %vm3376, %v3356
      %3390 = vst.msk [vmem:[#allocation2 + $0x68] sm:$0xff] %vm3376, %v3357
      %3391 = vst.msk [vmem:[#allocation2 + $0x70] sm:$0xff] %vm3376, %v3358
      %3392 = vst.msk [vmem:[#allocation2 + $0x78] sm:$0xff] %vm3376, %v3359
      %3393 = vst.msk [vmem:[#allocation2 + $0x80] sm:$0xff] %vm3376, %v3360
      %3394 = vst.msk [vmem:[#allocation2 + $0x88] sm:$0xff] %vm3376, %v3361
      %3395 = vst.msk [vmem:[#allocation2 + $0x90] sm:$0xff] %vm3376, %v3362
      %3396 = vst.msk [vmem:[#allocation2 + $0x98] sm:$0xff] %vm3376, %v3363
      %3397 = vst.msk [vmem:[#allocation2 + $0xa0] sm:$0xff] %vm3376, %v3364
      %3398 = vst.msk [vmem:[#allocation2 + $0xa8] sm:$0xff] %vm3376, %v3365
      %3399 = vst.msk [vmem:[#allocation2 + $0xb0] sm:$0xff] %vm3376, %v3366
      %3400 = vst.msk [vmem:[#allocation2 + $0xb8] sm:$0xff] %vm3376, %v3367
      %3401 = vst.msk [vmem:[#allocation2 + $0xc0] sm:$0xff] %vm3376, %v3368
      %3402 = vst.msk [vmem:[#allocation2 + $0xc8] sm:$0xff] %vm3376, %v3369
      %3403 = vst.msk [vmem:[#allocation2 + $0xd0] sm:$0xff] %vm3376, %v3370
      %3404 = vst.msk [vmem:[#allocation2 + $0xd8] sm:$0xff] %vm3376, %v3371
      %3405 = vst.msk [vmem:[#allocation2 + $0xe0] sm:$0xff] %vm3376, %v3372
      %3406 = vst.msk [vmem:[#allocation2 + $0xe8] sm:$0xff] %vm3376, %v3373
      %3407 = vst.msk [vmem:[#allocation2 + $0xf0] sm:$0xff] %vm3376, %v3374
      %3408 = vst.msk [vmem:[#allocation2 + $0xf8] sm:$0xff] %vm3376, %v3375
      %3409 = vst.msk [vmem:[#allocation2 + $0x100] sm:$0xff] %vm3376, 0.0
      %v3410 = vld [vmem:[#allocation2] sm:$0xff]
      %v3411 = vld [vmem:[#allocation2 + $0x8] sm:$0xff]
      %v3412 = vld [vmem:[#allocation2 + $0x10] sm:$0xff]
      %v3413 = vld [vmem:[#allocation2 + $0x18] sm:$0xff]
      %v3414 = vld [vmem:[#allocation2 + $0x20] sm:$0xff]
      %v3415 = vld [vmem:[#allocation2 + $0x28] sm:$0xff]
      %v3416 = vld [vmem:[#allocation2 + $0x30] sm:$0xff]
      %v3417 = vld [vmem:[#allocation2 + $0x38] sm:$0xff]
      %v3418 = vld [vmem:[#allocation2 + $0x40] sm:$0xff]
      %v3419 = vld [vmem:[#allocation2 + $0x48] sm:$0xff]
      %v3420 = vld [vmem:[#allocation2 + $0x50] sm:$0xff]
      %v3421 = vld [vmem:[#allocation2 + $0x58] sm:$0xff]
      %v3422 = vld [vmem:[#allocation2 + $0x60] sm:$0xff]
      %v3423 = vld [vmem:[#allocation2 + $0x68] sm:$0xff]
      %v3424 = vld [vmem:[#allocation2 + $0x70] sm:$0xff]
      %v3425 = vld [vmem:[#allocation2 + $0x78] sm:$0xff]
      %v3426 = vld [vmem:[#allocation2 + $0x80] sm:$0xff]
      %v3427 = vld [vmem:[#allocation2 + $0x88] sm:$0xff]
      %v3428 = vld [vmem:[#allocation2 + $0x90] sm:$0xff]
      %v3429 = vld [vmem:[#allocation2 + $0x98] sm:$0xff]
      %v3430 = vld [vmem:[#allocation2 + $0xa0] sm:$0xff]
      %v3431 = vld [vmem:[#allocation2 + $0xa8] sm:$0xff]
      %v3432 = vld [vmem:[#allocation2 + $0xb0] sm:$0xff]
      %v3433 = vld [vmem:[#allocation2 + $0xb8] sm:$0xff]
      %v3434 = vld [vmem:[#allocation2 + $0xc0] sm:$0xff]
      %v3435 = vld [vmem:[#allocation2 + $0xc8] sm:$0xff]
      %v3436 = vld [vmem:[#allocation2 + $0xd0] sm:$0xff]
      %v3437 = vld [vmem:[#allocation2 + $0xd8] sm:$0xff]
      %v3438 = vld [vmem:[#allocation2 + $0xe0] sm:$0xff]
      %v3439 = vld [vmem:[#allocation2 + $0xe8] sm:$0xff]
      %v3440 = vld [vmem:[#allocation2 + $0xf0] sm:$0xff]
      %v3441 = vld [vmem:[#allocation2 + $0xf8] sm:$0xff]
      %v3442 = vld [vmem:[#allocation2 + $0x1] sm:$0xff]
      %v3443 = vld [vmem:[#allocation2 + $0x9] sm:$0xff]
      %v3444 = vld [vmem:[#allocation2 + $0x11] sm:$0xff]
      %v3445 = vld [vmem:[#allocation2 + $0x19] sm:$0xff]
      %v3446 = vld [vmem:[#allocation2 + $0x21] sm:$0xff]
      %v3447 = vld [vmem:[#allocation2 + $0x29] sm:$0xff]
      %v3448 = vld [vmem:[#allocation2 + $0x31] sm:$0xff]
      %v3449 = vld [vmem:[#allocation2 + $0x39] sm:$0xff]
      %v3450 = vld [vmem:[#allocation2 + $0x41] sm:$0xff]
      %v3451 = vld [vmem:[#allocation2 + $0x49] sm:$0xff]
      %v3452 = vld [vmem:[#allocation2 + $0x51] sm:$0xff]
      %v3453 = vld [vmem:[#allocation2 + $0x59] sm:$0xff]
      %v3454 = vld [vmem:[#allocation2 + $0x61] sm:$0xff]
      %v3455 = vld [vmem:[#allocation2 + $0x69] sm:$0xff]
      %v3456 = vld [vmem:[#allocation2 + $0x71] sm:$0xff]
      %v3457 = vld [vmem:[#allocation2 + $0x79] sm:$0xff]
      %v3458 = vld [vmem:[#allocation2 + $0x81] sm:$0xff]
      %v3459 = vld [vmem:[#allocation2 + $0x89] sm:$0xff]
      %v3460 = vld [vmem:[#allocation2 + $0x91] sm:$0xff]
      %v3461 = vld [vmem:[#allocation2 + $0x99] sm:$0xff]
      %v3462 = vld [vmem:[#allocation2 + $0xa1] sm:$0xff]
      %v3463 = vld [vmem:[#allocation2 + $0xa9] sm:$0xff]
      %v3464 = vld [vmem:[#allocation2 + $0xb1] sm:$0xff]
      %v3465 = vld [vmem:[#allocation2 + $0xb9] sm:$0xff]
      %v3466 = vld [vmem:[#allocation2 + $0xc1] sm:$0xff]
      %v3467 = vld [vmem:[#allocation2 + $0xc9] sm:$0xff]
      %v3468 = vld [vmem:[#allocation2 + $0xd1] sm:$0xff]
      %v3469 = vld [vmem:[#allocation2 + $0xd9] sm:$0xff]
      %v3470 = vld [vmem:[#allocation2 + $0xe1] sm:$0xff]
      %v3471 = vld [vmem:[#allocation2 + $0xe9] sm:$0xff]
      %v3472 = vld [vmem:[#allocation2 + $0xf1] sm:$0xff]
      %v3473 = vld [vmem:[#allocation2 + $0xf9] sm:$0xff]
      %v3474 = vmax.f32 %v3410, %v3442
      %v3475 = vmax.f32 %v3411, %v3443
      %v3476 = vmax.f32 %v3412, %v3444
      %v3477 = vmax.f32 %v3413, %v3445
      %v3478 = vmax.f32 %v3414, %v3446
      %v3479 = vmax.f32 %v3415, %v3447
      %v3480 = vmax.f32 %v3416, %v3448
      %v3481 = vmax.f32 %v3417, %v3449
      %v3482 = vmax.f32 %v3418, %v3450
      %v3483 = vmax.f32 %v3419, %v3451
      %v3484 = vmax.f32 %v3420, %v3452
      %v3485 = vmax.f32 %v3421, %v3453
      %v3486 = vmax.f32 %v3422, %v3454
      %v3487 = vmax.f32 %v3423, %v3455
      %v3488 = vmax.f32 %v3424, %v3456
      %v3489 = vmax.f32 %v3425, %v3457
      %v3490 = vmax.f32 %v3426, %v3458
      %v3491 = vmax.f32 %v3427, %v3459
      %v3492 = vmax.f32 %v3428, %v3460
      %v3493 = vmax.f32 %v3429, %v3461
      %v3494 = vmax.f32 %v3430, %v3462
      %v3495 = vmax.f32 %v3431, %v3463
      %v3496 = vmax.f32 %v3432, %v3464
      %v3497 = vmax.f32 %v3433, %v3465
      %v3498 = vmax.f32 %v3434, %v3466
      %v3499 = vmax.f32 %v3435, %v3467
      %v3500 = vmax.f32 %v3436, %v3468
      %v3501 = vmax.f32 %v3437, %v3469
      %v3502 = vmax.f32 %v3438, %v3470
      %v3503 = vmax.f32 %v3439, %v3471
      %v3504 = vmax.f32 %v3440, %v3472
      %v3505 = vmax.f32 %v3441, %v3473
      %v3506 = vld [vmem:[#allocation2 + $0x2] sm:$0xff]
      %v3507 = vld [vmem:[#allocation2 + $0xa] sm:$0xff]
      %v3508 = vld [vmem:[#allocation2 + $0x12] sm:$0xff]
      %v3509 = vld [vmem:[#allocation2 + $0x1a] sm:$0xff]
      %v3510 = vld [vmem:[#allocation2 + $0x22] sm:$0xff]
      %v3511 = vld [vmem:[#allocation2 + $0x2a] sm:$0xff]
      %v3512 = vld [vmem:[#allocation2 + $0x32] sm:$0xff]
      %v3513 = vld [vmem:[#allocation2 + $0x3a] sm:$0xff]
      %v3514 = vld [vmem:[#allocation2 + $0x42] sm:$0xff]
      %v3515 = vld [vmem:[#allocation2 + $0x4a] sm:$0xff]
      %v3516 = vld [vmem:[#allocation2 + $0x52] sm:$0xff]
      %v3517 = vld [vmem:[#allocation2 + $0x5a] sm:$0xff]
      %v3518 = vld [vmem:[#allocation2 + $0x62] sm:$0xff]
      %v3519 = vld [vmem:[#allocation2 + $0x6a] sm:$0xff]
      %v3520 = vld [vmem:[#allocation2 + $0x72] sm:$0xff]
      %v3521 = vld [vmem:[#allocation2 + $0x7a] sm:$0xff]
      %v3522 = vld [vmem:[#allocation2 + $0x82] sm:$0xff]
      %v3523 = vld [vmem:[#allocation2 + $0x8a] sm:$0xff]
      %v3524 = vld [vmem:[#allocation2 + $0x92] sm:$0xff]
      %v3525 = vld [vmem:[#allocation2 + $0x9a] sm:$0xff]
      %v3526 = vld [vmem:[#allocation2 + $0xa2] sm:$0xff]
      %v3527 = vld [vmem:[#allocation2 + $0xaa] sm:$0xff]
      %v3528 = vld [vmem:[#allocation2 + $0xb2] sm:$0xff]
      %v3529 = vld [vmem:[#allocation2 + $0xba] sm:$0xff]
      %v3530 = vld [vmem:[#allocation2 + $0xc2] sm:$0xff]
      %v3531 = vld [vmem:[#allocation2 + $0xca] sm:$0xff]
      %v3532 = vld [vmem:[#allocation2 + $0xd2] sm:$0xff]
      %v3533 = vld [vmem:[#allocation2 + $0xda] sm:$0xff]
      %v3534 = vld [vmem:[#allocation2 + $0xe2] sm:$0xff]
      %v3535 = vld [vmem:[#allocation2 + $0xea] sm:$0xff]
      %v3536 = vld [vmem:[#allocation2 + $0xf2] sm:$0xff]
      %v3537 = vld [vmem:[#allocation2 + $0xfa] sm:$0xff]
      %v3538 = vmax.f32 %v3474, %v3506
      %v3539 = vmax.f32 %v3475, %v3507
      %v3540 = vmax.f32 %v3476, %v3508
      %v3541 = vmax.f32 %v3477, %v3509
      %v3542 = vmax.f32 %v3478, %v3510
      %v3543 = vmax.f32 %v3479, %v3511
      %v3544 = vmax.f32 %v3480, %v3512
      %v3545 = vmax.f32 %v3481, %v3513
      %v3546 = vmax.f32 %v3482, %v3514
      %v3547 = vmax.f32 %v3483, %v3515
      %v3548 = vmax.f32 %v3484, %v3516
      %v3549 = vmax.f32 %v3485, %v3517
      %v3550 = vmax.f32 %v3486, %v3518
      %v3551 = vmax.f32 %v3487, %v3519
      %v3552 = vmax.f32 %v3488, %v3520
      %v3553 = vmax.f32 %v3489, %v3521
      %v3554 = vmax.f32 %v3490, %v3522
      %v3555 = vmax.f32 %v3491, %v3523
      %v3556 = vmax.f32 %v3492, %v3524
      %v3557 = vmax.f32 %v3493, %v3525
      %v3558 = vmax.f32 %v3494, %v3526
      %v3559 = vmax.f32 %v3495, %v3527
      %v3560 = vmax.f32 %v3496, %v3528
      %v3561 = vmax.f32 %v3497, %v3529
      %v3562 = vmax.f32 %v3498, %v3530
      %v3563 = vmax.f32 %v3499, %v3531
      %v3564 = vmax.f32 %v3500, %v3532
      %v3565 = vmax.f32 %v3501, %v3533
      %v3566 = vmax.f32 %v3502, %v3534
      %v3567 = vmax.f32 %v3503, %v3535
      %v3568 = vmax.f32 %v3504, %v3536
      %v3569 = vmax.f32 %v3505, %v3537
      %v3570 = vld [vmem:[#allocation2 + $0x3] sm:$0xff]
      %v3571 = vld [vmem:[#allocation2 + $0xb] sm:$0xff]
      %v3572 = vld [vmem:[#allocation2 + $0x13] sm:$0xff]
      %v3573 = vld [vmem:[#allocation2 + $0x1b] sm:$0xff]
      %v3574 = vld [vmem:[#allocation2 + $0x23] sm:$0xff]
      %v3575 = vld [vmem:[#allocation2 + $0x2b] sm:$0xff]
      %v3576 = vld [vmem:[#allocation2 + $0x33] sm:$0xff]
      %v3577 = vld [vmem:[#allocation2 + $0x3b] sm:$0xff]
      %v3578 = vld [vmem:[#allocation2 + $0x43] sm:$0xff]
      %v3579 = vld [vmem:[#allocation2 + $0x4b] sm:$0xff]
      %v3580 = vld [vmem:[#allocation2 + $0x53] sm:$0xff]
      %v3581 = vld [vmem:[#allocation2 + $0x5b] sm:$0xff]
      %v3582 = vld [vmem:[#allocation2 + $0x63] sm:$0xff]
      %v3583 = vld [vmem:[#allocation2 + $0x6b] sm:$0xff]
      %v3584 = vld [vmem:[#allocation2 + $0x73] sm:$0xff]
      %v3585 = vld [vmem:[#allocation2 + $0x7b] sm:$0xff]
      %v3586 = vld [vmem:[#allocation2 + $0x83] sm:$0xff]
      %v3587 = vld [vmem:[#allocation2 + $0x8b] sm:$0xff]
      %v3588 = vld [vmem:[#allocation2 + $0x93] sm:$0xff]
      %v3589 = vld [vmem:[#allocation2 + $0x9b] sm:$0xff]
      %v3590 = vld [vmem:[#allocation2 + $0xa3] sm:$0xff]
      %v3591 = vld [vmem:[#allocation2 + $0xab] sm:$0xff]
      %v3592 = vld [vmem:[#allocation2 + $0xb3] sm:$0xff]
      %v3593 = vld [vmem:[#allocation2 + $0xbb] sm:$0xff]
      %v3594 = vld [vmem:[#allocation2 + $0xc3] sm:$0xff]
      %v3595 = vld [vmem:[#allocation2 + $0xcb] sm:$0xff]
      %v3596 = vld [vmem:[#allocation2 + $0xd3] sm:$0xff]
      %v3597 = vld [vmem:[#allocation2 + $0xdb] sm:$0xff]
      %v3598 = vld [vmem:[#allocation2 + $0xe3] sm:$0xff]
      %v3599 = vld [vmem:[#allocation2 + $0xeb] sm:$0xff]
      %v3600 = vld [vmem:[#allocation2 + $0xf3] sm:$0xff]
      %v3601 = vld [vmem:[#allocation2 + $0xfb] sm:$0xff]
      %v3602 = vmax.f32 %v3538, %v3570
      %v3603 = vmax.f32 %v3539, %v3571
      %v3604 = vmax.f32 %v3540, %v3572
      %v3605 = vmax.f32 %v3541, %v3573
      %v3606 = vmax.f32 %v3542, %v3574
      %v3607 = vmax.f32 %v3543, %v3575
      %v3608 = vmax.f32 %v3544, %v3576
      %v3609 = vmax.f32 %v3545, %v3577
      %v3610 = vmax.f32 %v3546, %v3578
      %v3611 = vmax.f32 %v3547, %v3579
      %v3612 = vmax.f32 %v3548, %v3580
      %v3613 = vmax.f32 %v3549, %v3581
      %v3614 = vmax.f32 %v3550, %v3582
      %v3615 = vmax.f32 %v3551, %v3583
      %v3616 = vmax.f32 %v3552, %v3584
      %v3617 = vmax.f32 %v3553, %v3585
      %v3618 = vmax.f32 %v3554, %v3586
      %v3619 = vmax.f32 %v3555, %v3587
      %v3620 = vmax.f32 %v3556, %v3588
      %v3621 = vmax.f32 %v3557, %v3589
      %v3622 = vmax.f32 %v3558, %v3590
      %v3623 = vmax.f32 %v3559, %v3591
      %v3624 = vmax.f32 %v3560, %v3592
      %v3625 = vmax.f32 %v3561, %v3593
      %v3626 = vmax.f32 %v3562, %v3594
      %v3627 = vmax.f32 %v3563, %v3595
      %v3628 = vmax.f32 %v3564, %v3596
      %v3629 = vmax.f32 %v3565, %v3597
      %v3630 = vmax.f32 %v3566, %v3598
      %v3631 = vmax.f32 %v3567, %v3599
      %v3632 = vmax.f32 %v3568, %v3600
      %v3633 = vmax.f32 %v3569, %v3601
      %v3634 = vld [vmem:[%s4] sm:$0xff]
      %v3635 = vld [vmem:[%s4 + $0x8] sm:$0xff]
      %v3636 = vld [vmem:[%s4 + $0x10] sm:$0xff]
      %v3637 = vld [vmem:[%s4 + $0x18] sm:$0xff]
      %v3638 = vld [vmem:[%s4 + $0x20] sm:$0xff]
      %v3639 = vld [vmem:[%s4 + $0x28] sm:$0xff]
      %v3640 = vld [vmem:[%s4 + $0x30] sm:$0xff]
      %v3641 = vld [vmem:[%s4 + $0x38] sm:$0xff]
      %v3642 = vld [vmem:[%s4 + $0x40] sm:$0xff]
      %v3643 = vld [vmem:[%s4 + $0x48] sm:$0xff]
      %v3644 = vld [vmem:[%s4 + $0x50] sm:$0xff]
      %v3645 = vld [vmem:[%s4 + $0x58] sm:$0xff]
      %v3646 = vld [vmem:[%s4 + $0x60] sm:$0xff]
      %v3647 = vld [vmem:[%s4 + $0x68] sm:$0xff]
      %v3648 = vld [vmem:[%s4 + $0x70] sm:$0xff]
      %v3649 = vld [vmem:[%s4 + $0x78] sm:$0xff]
      %3650 = vmatprep.subr.mxu0 0.0
      %3651 = vmatpush1.msra.mxu0 %v3602
      %3652 = vmatprep.subr.mxu0 0.0
      %3653 = vmatpush1.msra.mxu0 %v3603
      %3654 = vmatprep.subr.mxu0 0.0
      %3655 = vmatpush1.msra.mxu0 %v3604
      %3656 = vmatprep.subr.mxu0 0.0
      %3657 = vmatpush1.msra.mxu0 %v3605
      %3658 = vmatprep.subr.mxu0 0.0
      %3659 = vmatpush1.msra.mxu0 %v3606
      %3660 = vmatprep.subr.mxu0 0.0
      %3661 = vmatpush1.msra.mxu0 %v3607
      %3662 = vmatprep.subr.mxu0 0.0
      %3663 = vmatpush1.msra.mxu0 %v3608
      %3664 = vmatprep.subr.mxu0 0.0
      %3665 = vmatpush1.msra.mxu0 %v3609
      %3666 = vmatprep.subr.mxu0 0.0
      %3667 = vmatpush1.msra.mxu0 %v3610
      %3668 = vmatprep.subr.mxu0 0.0
      %3669 = vmatpush1.msra.mxu0 %v3611
      %3670 = vmatprep.subr.mxu0 0.0
      %3671 = vmatpush1.msra.mxu0 %v3612
      %3672 = vmatprep.subr.mxu0 0.0
      %3673 = vmatpush1.msra.mxu0 %v3613
      %3674 = vmatprep.subr.mxu0 0.0
      %3675 = vmatpush1.msra.mxu0 %v3614
      %3676 = vmatprep.subr.mxu0 0.0
      %3677 = vmatpush1.msra.mxu0 %v3615
      %3678 = vmatprep.subr.mxu0 0.0
      %3679 = vmatpush1.msra.mxu0 %v3616
      %3680 = vmatprep.subr.mxu0 0.0
      %3681 = vmatpush1.msra.mxu0 %v3617
      %3682 = vmatprep.subr.mxu0 0.0
      %3683 = vmatpush1.msra.mxu0 %v3618
      %3684 = vmatprep.subr.mxu0 0.0
      %3685 = vmatpush1.msra.mxu0 %v3619
      %3686 = vmatprep.subr.mxu0 0.0
      %3687 = vmatpush1.msra.mxu0 %v3620
      %3688 = vmatprep.subr.mxu0 0.0
      %3689 = vmatpush1.msra.mxu0 %v3621
      %3690 = vmatprep.subr.mxu0 0.0
      %3691 = vmatpush1.msra.mxu0 %v3622
      %3692 = vmatprep.subr.mxu0 0.0
      %3693 = vmatpush1.msra.mxu0 %v3623
      %3694 = vmatprep.subr.mxu0 0.0
      %3695 = vmatpush1.msra.mxu0 %v3624
      %3696 = vmatprep.subr.mxu0 0.0
      %3697 = vmatpush1.msra.mxu0 %v3625
      %3698 = vmatprep.subr.mxu0 0.0
      %3699 = vmatpush1.msra.mxu0 %v3626
      %3700 = vmatprep.subr.mxu0 0.0
      %3701 = vmatpush1.msra.mxu0 %v3627
      %3702 = vmatprep.subr.mxu0 0.0
      %3703 = vmatpush1.msra.mxu0 %v3628
      %3704 = vmatprep.subr.mxu0 0.0
      %3705 = vmatpush1.msra.mxu0 %v3629
      %3706 = vmatprep.subr.mxu0 0.0
      %3707 = vmatpush1.msra.mxu0 %v3630
      %3708 = vmatprep.subr.mxu0 0.0
      %3709 = vmatpush1.msra.mxu0 %v3631
      %3710 = vmatprep.subr.mxu0 0.0
      %3711 = vmatpush1.msra.mxu0 %v3632
      %3712 = vmatprep.subr.mxu0 0.0
      %3713 = vmatpush1.msra.mxu0 %v3633
      %3714 = vmatprep.mubr.f32.mxu0 %v3635
      %3715 = vmatmul.mubr.f32.gmra.mrb[0].mxu0 %v3634
      %v3716 = vpop.f32.mrb[0].mxu0
      %v3717 = vadd.f32 0.0, %v3716
      %v3718 = vpop.f32.mrb[0].mxu0
      %3719 = vmatprep.mubr.f32.mxu0 %v3637
      %3720 = vmatmul.mubr.f32.gmra.mrb[0].mxu0 %v3636
      %v3721 = vpop.f32.mrb[0].mxu0
      %v3722 = vadd.f32 0.0, %v3721
      %v3723 = vpop.f32.mrb[0].mxu0
      %3724 = vmatprep.mubr.f32.mxu0 %v3639
      %3725 = vmatmul.mubr.f32.gmra.mrb[0].mxu0 %v3638
      %v3726 = vpop.f32.mrb[0].mxu0
      %v3727 = vadd.f32 0.0, %v3726
      %v3728 = vpop.f32.mrb[0].mxu0
      %3729 = vmatprep.mubr.f32.mxu0 %v3641
      %3730 = vmatmul.mubr.f32.gmra.mrb[0].mxu0 %v3640
      %v3731 = vpop.f32.mrb[0].mxu0
      %v3732 = vadd.f32 0.0, %v3731
      %v3733 = vpop.f32.mrb[0].mxu0
      %3734 = vmatprep.mubr.f32.mxu0 %v3643
      %3735 = vmatmul.mubr.f32.gmra.mrb[0].mxu0 %v3642
      %v3736 = vpop.f32.mrb[0].mxu0
      %v3737 = vadd.f32 0.0, %v3736
      %v3738 = vpop.f32.mrb[0].mxu0
      %3739 = vmatprep.mubr.f32.mxu0 %v3645
      %3740 = vmatmul.mubr.f32.gmra.mrb[0].mxu0 %v3644
      %v3741 = vpop.f32.mrb[0].mxu0
      %v3742 = vadd.f32 0.0, %v3741
      %v3743 = vpop.f32.mrb[0].mxu0
      %3744 = vmatprep.mubr.f32.mxu0 %v3647
      %3745 = vmatmul.mubr.f32.gmra.mrb[0].mxu0 %v3646
      %v3746 = vpop.f32.mrb[0].mxu0
      %v3747 = vadd.f32 0.0, %v3746
      %v3748 = vpop.f32.mrb[0].mxu0
      %3749 = vmatprep.mubr.f32.mxu0 %v3649
      %3750 = vmatmul.mubr.f32.gmra.mrb[0].mxu0 %v3648
      %v3751 = vpop.f32.mrb[0].mxu0
      %v3752 = vadd.f32 0.0, %v3751
      %v3753 = vpop.f32.mrb[0].mxu0
      %3754 = vdwg.mxu0
      %3755 = vst.msk [vmem:[#allocation3] sm:$0xff] %vm3376, 0.0
      %3756 = vst.msk [vmem:[#allocation3 + $0x8] sm:$0xff] %vm3376, 0.0
      %3757 = vst.msk [vmem:[#allocation3 + $0x10] sm:$0xff] %vm3376, 0.0
      %3758 = vst.msk [vmem:[#allocation3 + $0x18] sm:$0xff] %vm3376, 0.0
      %3759 = vst.msk [vmem:[#allocation3 + $0x20] sm:$0xff] %vm3376, 0.0
      %3760 = vst.msk [vmem:[#allocation3 + $0x28] sm:$0xff] %vm3376, 0.0
      %3761 = vst.msk [vmem:[#allocation3 + $0x30] sm:$0xff] %vm3376, 0.0
      %3762 = vst.msk [vmem:[#allocation3 + $0x38] sm:$0xff] %vm3376, 0.0
      %vm3763 = vcmask 257024
      %3764 = vst.msk [vmem:[#allocation3 + $0x40] sm:$0xf] %vm3763, 0.0
      %3765 = vst.msk [vmem:[#allocation3 + $0x2] sm:$0xff] %vm3376, %v3717
      %3766 = vst.msk [vmem:[#allocation3 + $0xa] sm:$0xff] %vm3376, %v3722
      %3767 = vst.msk [vmem:[#allocation3 + $0x12] sm:$0xff] %vm3376, %v3727
      %3768 = vst.msk [vmem:[#allocation3 + $0x1a] sm:$0xff] %vm3376, %v3732
      %3769 = vst.msk [vmem:[#allocation3 + $0x22] sm:$0xff] %vm3376, %v3737
      %3770 = vst.msk [vmem:[#allocation3 + $0x2a] sm:$0xff] %vm3376, %v3742
      %3771 = vst.msk [vmem:[#allocation3 + $0x32] sm:$0xff] %vm3376, %v3747
      %3772 = vst.msk [vmem:[#allocation3 + $0x3a] sm:$0xff] %vm3376, %v3752
      %v3773 = vld [vmem:[#allocation3] sm:$0xff]
      %v3774 = vld [vmem:[#allocation3 + $0x8] sm:$0xff]
      %v3775 = vld [vmem:[#allocation3 + $0x10] sm:$0xff]
      %v3776 = vld [vmem:[#allocation3 + $0x18] sm:$0xff]
      %v3777 = vld [vmem:[#allocation3 + $0x20] sm:$0xff]
      %v3778 = vld [vmem:[#allocation3 + $0x28] sm:$0xff]
      %v3779 = vld [vmem:[#allocation3 + $0x30] sm:$0xff]
      %v3780 = vld [vmem:[#allocation3 + $0x38] sm:$0xff]
      %v3781 = vld [vmem:[%s5] sm:$0xff]
      %v3782 = vld [vmem:[%s5 + $0x8] sm:$0xff]
      %v3783 = vld [vmem:[%s5 + $0x10] sm:$0xff]
      %v3784 = vld [vmem:[%s5 + $0x18] sm:$0xff]
      %v3785 = vld [vmem:[#allocation3 + $0x1] sm:$0xff]
      %v3786 = vld [vmem:[#allocation3 + $0x9] sm:$0xff]
      %v3787 = vld [vmem:[#allocation3 + $0x11] sm:$0xff]
      %v3788 = vld [vmem:[#allocation3 + $0x19] sm:$0xff]
      %v3789 = vld [vmem:[#allocation3 + $0x21] sm:$0xff]
      %v3790 = vld [vmem:[#allocation3 + $0x29] sm:$0xff]
      %v3791 = vld [vmem:[#allocation3 + $0x31] sm:$0xff]
      %v3792 = vld [vmem:[#allocation3 + $0x39] sm:$0xff]
      %s3793 = scalar_lea.vmem %s5, 32
      %v3794 = vld [vmem:[%s3793] sm:$0xff]
      %v3795 = vld [vmem:[%s3793 + $0x8] sm:$0xff]
      %v3796 = vld [vmem:[%s3793 + $0x10] sm:$0xff]
      %v3797 = vld [vmem:[%s3793 + $0x18] sm:$0xff]
      %v3799 = vsel %vm3376, %v3785, 0
      %v3802 = vsel %vm3376, %v3786, 0
      %v3805 = vsel %vm3376, %v3787, 0
      %v3808 = vsel %vm3376, %v3788, 0
      %v3811 = vsel %vm3376, %v3789, 0
      %v3814 = vsel %vm3376, %v3790, 0
      %v3817 = vsel %vm3376, %v3791, 0
      %v3820 = vsel %vm3376, %v3792, 0
      %3822 = vmatprep.subr.mxu0 0.0
      %3823 = vmatpush1.msra.mxu0 %v3794
      %3824 = vmatprep.subr.mxu0 0.0
      %3825 = vmatpush1.msra.mxu0 %v3795
      %3826 = vmatprep.subr.mxu0 0.0
      %3827 = vmatpush1.msra.mxu0 %v3796
      %3828 = vmatprep.subr.mxu0 0.0
      %3829 = vmatpush1.msra.mxu0 %v3797
      %3830 = vmatprep.subr.mxu0 0.0
      %3831 = vmatpush1.msra.mxu0 0.0
      %3832 = vmatprep.subr.mxu0 0.0
      %3833 = vmatpush1.msra.mxu0 0.0
      %3834 = vmatprep.subr.mxu0 0.0
      %3835 = vmatpush1.msra.mxu0 0.0
      %3836 = vmatprep.subr.mxu0 0.0
      %3837 = vmatpush1.msra.mxu0 0.0
      %3838 = vmatprep.subr.mxu0 0.0
      %3839 = vmatpush1.msra.mxu0 0.0
      %3840 = vmatprep.subr.mxu0 0.0
      %3841 = vmatpush1.msra.mxu0 0.0
      %3842 = vmatprep.subr.mxu0 0.0
      %3843 = vmatpush1.msra.mxu0 0.0
      %3844 = vmatprep.subr.mxu0 0.0
      %3845 = vmatpush1.msra.mxu0 0.0
      %3846 = vmatprep.subr.mxu0 0.0
      %3847 = vmatpush1.msra.mxu0 0.0
      %3848 = vmatprep.subr.mxu0 0.0
      %3849 = vmatpush1.msra.mxu0 0.0
      %3850 = vmatprep.subr.mxu0 0.0
      %3851 = vmatpush1.msra.mxu0 0.0
      %3852 = vmatprep.subr.mxu0 0.0
      %3853 = vmatpush1.msra.mxu0 0.0
      %3854 = vmatprep.subr.mxu0 0.0
      %3855 = vmatpush1.msra.mxu0 0.0
      %3856 = vmatprep.subr.mxu0 0.0
      %3857 = vmatpush1.msra.mxu0 0.0
      %3858 = vmatprep.subr.mxu0 0.0
      %3859 = vmatpush1.msra.mxu0 0.0
      %3860 = vmatprep.subr.mxu0 0.0
      %3861 = vmatpush1.msra.mxu0 0.0
      %3862 = vmatprep.subr.mxu0 0.0
      %3863 = vmatpush1.msra.mxu0 0.0
      %3864 = vmatprep.subr.mxu0 0.0
      %3865 = vmatpush1.msra.mxu0 0.0
      %3866 = vmatprep.subr.mxu0 0.0
      %3867 = vmatpush1.msra.mxu0 0.0
      %3868 = vmatprep.subr.mxu0 0.0
      %3869 = vmatpush1.msra.mxu0 0.0
      %3870 = vmatprep.subr.mxu0 0.0
      %3871 = vmatpush1.msra.mxu0 0.0
      %3872 = vmatprep.subr.mxu0 0.0
      %3873 = vmatpush1.msra.mxu0 0.0
      %3874 = vmatprep.subr.mxu0 0.0
      %3875 = vmatpush1.msra.mxu0 0.0
      %3876 = vmatprep.subr.mxu0 0.0
      %3877 = vmatpush1.msra.mxu0 0.0
      %3878 = vmatprep.subr.mxu0 0.0
      %3879 = vmatpush1.msra.mxu0 0.0
      %3880 = vmatprep.subr.mxu0 0.0
      %3881 = vmatpush1.msra.mxu0 0.0
      %3882 = vmatprep.subr.mxu0 0.0
      %3883 = vmatpush1.msra.mxu0 0.0
      %3884 = vmatprep.subr.mxu0 0.0
      %3885 = vmatpush1.msra.mxu0 0.0
      %3886 = vmatprep.mubr.f32.mxu0 0.0
      %3887 = vmatmul.mubr.f32.gmra.mrb[0].mxu0 %v3799
      %v3888 = vpop.f32.mrb[0].mxu0
      %v3889 = vadd.f32 0.0, %v3888
      %v3890 = vpop.f32.mrb[0].mxu0
      %3891 = vmatprep.mubr.f32.mxu0 0.0
      %3892 = vmatmul.mubr.f32.gmra.mrb[0].mxu0 %v3802
      %v3893 = vpop.f32.mrb[0].mxu0
      %v3894 = vadd.f32 0.0, %v3893
      %v3895 = vpop.f32.mrb[0].mxu0
      %3896 = vmatprep.mubr.f32.mxu0 0.0
      %3897 = vmatmul.mubr.f32.gmra.mrb[0].mxu0 %v3805
      %v3898 = vpop.f32.mrb[0].mxu0
      %v3899 = vadd.f32 0.0, %v3898
      %v3900 = vpop.f32.mrb[0].mxu0
      %3901 = vmatprep.mubr.f32.mxu0 0.0
      %3902 = vmatmul.mubr.f32.gmra.mrb[0].mxu0 %v3808
      %v3903 = vpop.f32.mrb[0].mxu0
      %v3904 = vadd.f32 0.0, %v3903
      %v3905 = vpop.f32.mrb[0].mxu0
      %3906 = vmatprep.mubr.f32.mxu0 0.0
      %3907 = vmatmul.mubr.f32.gmra.mrb[0].mxu0 %v3811
      %v3908 = vpop.f32.mrb[0].mxu0
      %v3909 = vadd.f32 0.0, %v3908
      %v3910 = vpop.f32.mrb[0].mxu0
      %3911 = vmatprep.mubr.f32.mxu0 0.0
      %3912 = vmatmul.mubr.f32.gmra.mrb[0].mxu0 %v3814
      %v3913 = vpop.f32.mrb[0].mxu0
      %v3914 = vadd.f32 0.0, %v3913
      %v3915 = vpop.f32.mrb[0].mxu0
      %3916 = vmatprep.mubr.f32.mxu0 0.0
      %3917 = vmatmul.mubr.f32.gmra.mrb[0].mxu0 %v3817
      %v3918 = vpop.f32.mrb[0].mxu0
      %v3919 = vadd.f32 0.0, %v3918
      %v3920 = vpop.f32.mrb[0].mxu0
      %3921 = vmatprep.mubr.f32.mxu0 0.0
      %3922 = vmatmul.mubr.f32.gmra.mrb[0].mxu0 %v3820
      %v3923 = vpop.f32.mrb[0].mxu0
      %v3924 = vadd.f32 0.0, %v3923
      %v3925 = vpop.f32.mrb[0].mxu0
      %3926 = vdwg.mxu0
      %v3928 = vsel %vm3376, %v3773, 0
      %v3931 = vsel %vm3376, %v3774, 0
      %v3934 = vsel %vm3376, %v3775, 0
      %v3937 = vsel %vm3376, %v3776, 0
      %v3940 = vsel %vm3376, %v3777, 0
      %v3943 = vsel %vm3376, %v3778, 0
      %v3946 = vsel %vm3376, %v3779, 0
      %v3949 = vsel %vm3376, %v3780, 0
      %3951 = vmatprep.subr.mxu0 0.0
      %3952 = vmatpush1.msra.mxu0 %v3781
      %3953 = vmatprep.subr.mxu0 0.0
      %3954 = vmatpush1.msra.mxu0 %v3782
      %3955 = vmatprep.subr.mxu0 0.0
      %3956 = vmatpush1.msra.mxu0 %v3783
      %3957 = vmatprep.subr.mxu0 0.0
      %3958 = vmatpush1.msra.mxu0 %v3784
      %3959 = vmatprep.subr.mxu0 0.0
      %3960 = vmatpush1.msra.mxu0 0.0
      %3961 = vmatprep.subr.mxu0 0.0
      %3962 = vmatpush1.msra.mxu0 0.0
      %3963 = vmatprep.subr.mxu0 0.0
      %3964 = vmatpush1.msra.mxu0 0.0
      %3965 = vmatprep.subr.mxu0 0.0
      %3966 = vmatpush1.msra.mxu0 0.0
      %3967 = vmatprep.subr.mxu0 0.0
      %3968 = vmatpush1.msra.mxu0 0.0
      %3969 = vmatprep.subr.mxu0 0.0
      %3970 = vmatpush1.msra.mxu0 0.0
      %3971 = vmatprep.subr.mxu0 0.0
      %3972 = vmatpush1.msra.mxu0 0.0
      %3973 = vmatprep.subr.mxu0 0.0
      %3974 = vmatpush1.msra.mxu0 0.0
      %3975 = vmatprep.subr.mxu0 0.0
      %3976 = vmatpush1.msra.mxu0 0.0
      %3977 = vmatprep.subr.mxu0 0.0
      %3978 = vmatpush1.msra.mxu0 0.0
      %3979 = vmatprep.subr.mxu0 0.0
      %3980 = vmatpush1.msra.mxu0 0.0
      %3981 = vmatprep.subr.mxu0 0.0
      %3982 = vmatpush1.msra.mxu0 0.0
      %3983 = vmatprep.subr.mxu0 0.0
      %3984 = vmatpush1.msra.mxu0 0.0
      %3985 = vmatprep.subr.mxu0 0.0
      %3986 = vmatpush1.msra.mxu0 0.0
      %3987 = vmatprep.subr.mxu0 0.0
      %3988 = vmatpush1.msra.mxu0 0.0
      %3989 = vmatprep.subr.mxu0 0.0
      %3990 = vmatpush1.msra.mxu0 0.0
      %3991 = vmatprep.subr.mxu0 0.0
      %3992 = vmatpush1.msra.mxu0 0.0
      %3993 = vmatprep.subr.mxu0 0.0
      %3994 = vmatpush1.msra.mxu0 0.0
      %3995 = vmatprep.subr.mxu0 0.0
      %3996 = vmatpush1.msra.mxu0 0.0
      %3997 = vmatprep.subr.mxu0 0.0
      %3998 = vmatpush1.msra.mxu0 0.0
      %3999 = vmatprep.subr.mxu0 0.0
      %4000 = vmatpush1.msra.mxu0 0.0
      %4001 = vmatprep.subr.mxu0 0.0
      %4002 = vmatpush1.msra.mxu0 0.0
      %4003 = vmatprep.subr.mxu0 0.0
      %4004 = vmatpush1.msra.mxu0 0.0
      %4005 = vmatprep.subr.mxu0 0.0
      %4006 = vmatpush1.msra.mxu0 0.0
      %4007 = vmatprep.subr.mxu0 0.0
      %4008 = vmatpush1.msra.mxu0 0.0
      %4009 = vmatprep.subr.mxu0 0.0
      %4010 = vmatpush1.msra.mxu0 0.0
      %4011 = vmatprep.subr.mxu0 0.0
      %4012 = vmatpush1.msra.mxu0 0.0
      %4013 = vmatprep.subr.mxu0 0.0
      %4014 = vmatpush1.msra.mxu0 0.0
      %4015 = vmatprep.mubr.f32.mxu0 0.0
      %4016 = vmatmul.mubr.f32.gmra.mrb[0].mxu0 %v3928
      %v4017 = vpop.f32.mrb[0].mxu0
      %v4018 = vadd.f32 %v3889, %v4017
      %v4019 = vpop.f32.mrb[0].mxu0
      %4020 = vmatprep.mubr.f32.mxu0 0.0
      %4021 = vmatmul.mubr.f32.gmra.mrb[0].mxu0 %v3931
      %v4022 = vpop.f32.mrb[0].mxu0
      %v4023 = vadd.f32 %v3894, %v4022
      %v4024 = vpop.f32.mrb[0].mxu0
      %4025 = vmatprep.mubr.f32.mxu0 0.0
      %4026 = vmatmul.mubr.f32.gmra.mrb[0].mxu0 %v3934
      %v4027 = vpop.f32.mrb[0].mxu0
      %v4028 = vadd.f32 %v3899, %v4027
      %v4029 = vpop.f32.mrb[0].mxu0
      %4030 = vmatprep.mubr.f32.mxu0 0.0
      %4031 = vmatmul.mubr.f32.gmra.mrb[0].mxu0 %v3937
      %v4032 = vpop.f32.mrb[0].mxu0
      %v4033 = vadd.f32 %v3904, %v4032
      %v4034 = vpop.f32.mrb[0].mxu0
      %4035 = vmatprep.mubr.f32.mxu0 0.0
      %4036 = vmatmul.mubr.f32.gmra.mrb[0].mxu0 %v3940
      %v4037 = vpop.f32.mrb[0].mxu0
      %v4038 = vadd.f32 %v3909, %v4037
      %v4039 = vpop.f32.mrb[0].mxu0
      %4040 = vmatprep.mubr.f32.mxu0 0.0
      %4041 = vmatmul.mubr.f32.gmra.mrb[0].mxu0 %v3943
      %v4042 = vpop.f32.mrb[0].mxu0
      %v4043 = vadd.f32 %v3914, %v4042
      %v4044 = vpop.f32.mrb[0].mxu0
      %4045 = vmatprep.mubr.f32.mxu0 0.0
      %4046 = vmatmul.mubr.f32.gmra.mrb[0].mxu0 %v3946
      %v4047 = vpop.f32.mrb[0].mxu0
      %v4048 = vadd.f32 %v3919, %v4047
      %v4049 = vpop.f32.mrb[0].mxu0
      %4050 = vmatprep.mubr.f32.mxu0 0.0
      %4051 = vmatmul.mubr.f32.gmra.mrb[0].mxu0 %v3949
      %v4052 = vpop.f32.mrb[0].mxu0
      %v4053 = vadd.f32 %v3924, %v4052
      %v4054 = vpop.f32.mrb[0].mxu0
      %4055 = vdwg.mxu0
      %v4056 = vld [vmem:[#allocation3 + $0x2] sm:$0xff]
      %v4057 = vld [vmem:[#allocation3 + $0xa] sm:$0xff]
      %v4058 = vld [vmem:[#allocation3 + $0x12] sm:$0xff]
      %v4059 = vld [vmem:[#allocation3 + $0x1a] sm:$0xff]
      %v4060 = vld [vmem:[#allocation3 + $0x22] sm:$0xff]
      %v4061 = vld [vmem:[#allocation3 + $0x2a] sm:$0xff]
      %v4062 = vld [vmem:[#allocation3 + $0x32] sm:$0xff]
      %v4063 = vld [vmem:[#allocation3 + $0x3a] sm:$0xff]
      %s4064 = scalar_lea.vmem %s5, 64
      %v4065 = vld [vmem:[%s4064] sm:$0xff]
      %v4066 = vld [vmem:[%s4064 + $0x8] sm:$0xff]
      %v4067 = vld [vmem:[%s4064 + $0x10] sm:$0xff]
      %v4068 = vld [vmem:[%s4064 + $0x18] sm:$0xff]
      %v4070 = vsel %vm3376, %v4056, 0
      %v4073 = vsel %vm3376, %v4057, 0
      %v4076 = vsel %vm3376, %v4058, 0
      %v4079 = vsel %vm3376, %v4059, 0
      %v4082 = vsel %vm3376, %v4060, 0
      %v4085 = vsel %vm3376, %v4061, 0
      %v4088 = vsel %vm3376, %v4062, 0
      %v4091 = vsel %vm3376, %v4063, 0
      %4093 = vmatprep.subr.mxu0 0.0
      %4094 = vmatpush1.msra.mxu0 %v4065
      %4095 = vmatprep.subr.mxu0 0.0
      %4096 = vmatpush1.msra.mxu0 %v4066
      %4097 = vmatprep.subr.mxu0 0.0
      %4098 = vmatpush1.msra.mxu0 %v4067
      %4099 = vmatprep.subr.mxu0 0.0
      %4100 = vmatpush1.msra.mxu0 %v4068
      %4101 = vmatprep.subr.mxu0 0.0
      %4102 = vmatpush1.msra.mxu0 0.0
      %4103 = vmatprep.subr.mxu0 0.0
      %4104 = vmatpush1.msra.mxu0 0.0
      %4105 = vmatprep.subr.mxu0 0.0
      %4106 = vmatpush1.msra.mxu0 0.0
      %4107 = vmatprep.subr.mxu0 0.0
      %4108 = vmatpush1.msra.mxu0 0.0
      %4109 = vmatprep.subr.mxu0 0.0
      %4110 = vmatpush1.msra.mxu0 0.0
      %4111 = vmatprep.subr.mxu0 0.0
      %4112 = vmatpush1.msra.mxu0 0.0
      %4113 = vmatprep.subr.mxu0 0.0
      %4114 = vmatpush1.msra.mxu0 0.0
      %4115 = vmatprep.subr.mxu0 0.0
      %4116 = vmatpush1.msra.mxu0 0.0
      %4117 = vmatprep.subr.mxu0 0.0
      %4118 = vmatpush1.msra.mxu0 0.0
      %4119 = vmatprep.subr.mxu0 0.0
      %4120 = vmatpush1.msra.mxu0 0.0
      %4121 = vmatprep.subr.mxu0 0.0
      %4122 = vmatpush1.msra.mxu0 0.0
      %4123 = vmatprep.subr.mxu0 0.0
      %4124 = vmatpush1.msra.mxu0 0.0
      %4125 = vmatprep.subr.mxu0 0.0
      %4126 = vmatpush1.msra.mxu0 0.0
      %4127 = vmatprep.subr.mxu0 0.0
      %4128 = vmatpush1.msra.mxu0 0.0
      %4129 = vmatprep.subr.mxu0 0.0
      %4130 = vmatpush1.msra.mxu0 0.0
      %4131 = vmatprep.subr.mxu0 0.0
      %4132 = vmatpush1.msra.mxu0 0.0
      %4133 = vmatprep.subr.mxu0 0.0
      %4134 = vmatpush1.msra.mxu0 0.0
      %4135 = vmatprep.subr.mxu0 0.0
      %4136 = vmatpush1.msra.mxu0 0.0
      %4137 = vmatprep.subr.mxu0 0.0
      %4138 = vmatpush1.msra.mxu0 0.0
      %4139 = vmatprep.subr.mxu0 0.0
      %4140 = vmatpush1.msra.mxu0 0.0
      %4141 = vmatprep.subr.mxu0 0.0
      %4142 = vmatpush1.msra.mxu0 0.0
      %4143 = vmatprep.subr.mxu0 0.0
      %4144 = vmatpush1.msra.mxu0 0.0
      %4145 = vmatprep.subr.mxu0 0.0
      %4146 = vmatpush1.msra.mxu0 0.0
      %4147 = vmatprep.subr.mxu0 0.0
      %4148 = vmatpush1.msra.mxu0 0.0
      %4149 = vmatprep.subr.mxu0 0.0
      %4150 = vmatpush1.msra.mxu0 0.0
      %4151 = vmatprep.subr.mxu0 0.0
      %4152 = vmatpush1.msra.mxu0 0.0
      %4153 = vmatprep.subr.mxu0 0.0
      %4154 = vmatpush1.msra.mxu0 0.0
      %4155 = vmatprep.subr.mxu0 0.0
      %4156 = vmatpush1.msra.mxu0 0.0
      %4157 = vmatprep.mubr.f32.mxu0 0.0
      %4158 = vmatmul.mubr.f32.gmra.mrb[0].mxu0 %v4070
      %v4159 = vpop.f32.mrb[0].mxu0
      %v4160 = vadd.f32 0.0, %v4159
      %v4161 = vpop.f32.mrb[0].mxu0
      %4162 = vmatprep.mubr.f32.mxu0 0.0
      %4163 = vmatmul.mubr.f32.gmra.mrb[0].mxu0 %v4073
      %v4164 = vpop.f32.mrb[0].mxu0
      %v4165 = vadd.f32 0.0, %v4164
      %v4166 = vpop.f32.mrb[0].mxu0
      %4167 = vmatprep.mubr.f32.mxu0 0.0
      %4168 = vmatmul.mubr.f32.gmra.mrb[0].mxu0 %v4076
      %v4169 = vpop.f32.mrb[0].mxu0
      %v4170 = vadd.f32 0.0, %v4169
      %v4171 = vpop.f32.mrb[0].mxu0
      %4172 = vmatprep.mubr.f32.mxu0 0.0
      %4173 = vmatmul.mubr.f32.gmra.mrb[0].mxu0 %v4079
      %v4174 = vpop.f32.mrb[0].mxu0
      %v4175 = vadd.f32 0.0, %v4174
      %v4176 = vpop.f32.mrb[0].mxu0
      %4177 = vmatprep.mubr.f32.mxu0 0.0
      %4178 = vmatmul.mubr.f32.gmra.mrb[0].mxu0 %v4082
      %v4179 = vpop.f32.mrb[0].mxu0
      %v4180 = vadd.f32 0.0, %v4179
      %v4181 = vpop.f32.mrb[0].mxu0
      %4182 = vmatprep.mubr.f32.mxu0 0.0
      %4183 = vmatmul.mubr.f32.gmra.mrb[0].mxu0 %v4085
      %v4184 = vpop.f32.mrb[0].mxu0
      %v4185 = vadd.f32 0.0, %v4184
      %v4186 = vpop.f32.mrb[0].mxu0
      %4187 = vmatprep.mubr.f32.mxu0 0.0
      %4188 = vmatmul.mubr.f32.gmra.mrb[0].mxu0 %v4088
      %v4189 = vpop.f32.mrb[0].mxu0
      %v4190 = vadd.f32 0.0, %v4189
      %v4191 = vpop.f32.mrb[0].mxu0
      %4192 = vmatprep.mubr.f32.mxu0 0.0
      %4193 = vmatmul.mubr.f32.gmra.mrb[0].mxu0 %v4091
      %v4194 = vpop.f32.mrb[0].mxu0
      %v4195 = vadd.f32 0.0, %v4194
      %v4196 = vpop.f32.mrb[0].mxu0
      %4197 = vdwg.mxu0
      %v4198 = vadd.f32 %v4018, %v4160
      %v4199 = vadd.f32 %v4023, %v4165
      %v4200 = vadd.f32 %v4028, %v4170
      %v4201 = vadd.f32 %v4033, %v4175
      %v4202 = vadd.f32 %v4038, %v4180
      %v4203 = vadd.f32 %v4043, %v4185
      %v4204 = vadd.f32 %v4048, %v4190
      %v4205 = vadd.f32 %v4053, %v4195
      %v4206 = vld [vmem:[#allocation3 + $0x3] sm:$0xff]
      %v4207 = vld [vmem:[#allocation3 + $0xb] sm:$0xff]
      %v4208 = vld [vmem:[#allocation3 + $0x13] sm:$0xff]
      %v4209 = vld [vmem:[#allocation3 + $0x1b] sm:$0xff]
      %v4210 = vld [vmem:[#allocation3 + $0x23] sm:$0xff]
      %v4211 = vld [vmem:[#allocation3 + $0x2b] sm:$0xff]
      %v4212 = vld [vmem:[#allocation3 + $0x33] sm:$0xff]
      %v4213 = vld [vmem:[#allocation3 + $0x3b] sm:$0xff]
      %s4214 = scalar_lea.vmem %s5, 96
      %v4215 = vld [vmem:[%s4214] sm:$0xff]
      %v4216 = vld [vmem:[%s4214 + $0x8] sm:$0xff]
      %v4217 = vld [vmem:[%s4214 + $0x10] sm:$0xff]
      %v4218 = vld [vmem:[%s4214 + $0x18] sm:$0xff]
      %v4220 = vsel %vm3376, %v4206, 0
      %v4223 = vsel %vm3376, %v4207, 0
      %v4226 = vsel %vm3376, %v4208, 0
      %v4229 = vsel %vm3376, %v4209, 0
      %v4232 = vsel %vm3376, %v4210, 0
      %v4235 = vsel %vm3376, %v4211, 0
      %v4238 = vsel %vm3376, %v4212, 0
      %v4241 = vsel %vm3376, %v4213, 0
      %4243 = vmatprep.subr.mxu0 0.0
      %4244 = vmatpush1.msra.mxu0 %v4215
      %4245 = vmatprep.subr.mxu0 0.0
      %4246 = vmatpush1.msra.mxu0 %v4216
      %4247 = vmatprep.subr.mxu0 0.0
      %4248 = vmatpush1.msra.mxu0 %v4217
      %4249 = vmatprep.subr.mxu0 0.0
      %4250 = vmatpush1.msra.mxu0 %v4218
      %4251 = vmatprep.subr.mxu0 0.0
      %4252 = vmatpush1.msra.mxu0 0.0
      %4253 = vmatprep.subr.mxu0 0.0
      %4254 = vmatpush1.msra.mxu0 0.0
      %4255 = vmatprep.subr.mxu0 0.0
      %4256 = vmatpush1.msra.mxu0 0.0
      %4257 = vmatprep.subr.mxu0 0.0
      %4258 = vmatpush1.msra.mxu0 0.0
      %4259 = vmatprep.subr.mxu0 0.0
      %4260 = vmatpush1.msra.mxu0 0.0
      %4261 = vmatprep.subr.mxu0 0.0
      %4262 = vmatpush1.msra.mxu0 0.0
      %4263 = vmatprep.subr.mxu0 0.0
      %4264 = vmatpush1.msra.mxu0 0.0
      %4265 = vmatprep.subr.mxu0 0.0
      %4266 = vmatpush1.msra.mxu0 0.0
      %4267 = vmatprep.subr.mxu0 0.0
      %4268 = vmatpush1.msra.mxu0 0.0
      %4269 = vmatprep.subr.mxu0 0.0
      %4270 = vmatpush1.msra.mxu0 0.0
      %4271 = vmatprep.subr.mxu0 0.0
      %4272 = vmatpush1.msra.mxu0 0.0
      %4273 = vmatprep.subr.mxu0 0.0
      %4274 = vmatpush1.msra.mxu0 0.0
      %4275 = vmatprep.subr.mxu0 0.0
      %4276 = vmatpush1.msra.mxu0 0.0
      %4277 = vmatprep.subr.mxu0 0.0
      %4278 = vmatpush1.msra.mxu0 0.0
      %4279 = vmatprep.subr.mxu0 0.0
      %4280 = vmatpush1.msra.mxu0 0.0
      %4281 = vmatprep.subr.mxu0 0.0
      %4282 = vmatpush1.msra.mxu0 0.0
      %4283 = vmatprep.subr.mxu0 0.0
      %4284 = vmatpush1.msra.mxu0 0.0
      %4285 = vmatprep.subr.mxu0 0.0
      %4286 = vmatpush1.msra.mxu0 0.0
      %4287 = vmatprep.subr.mxu0 0.0
      %4288 = vmatpush1.msra.mxu0 0.0
      %4289 = vmatprep.subr.mxu0 0.0
      %4290 = vmatpush1.msra.mxu0 0.0
      %4291 = vmatprep.subr.mxu0 0.0
      %4292 = vmatpush1.msra.mxu0 0.0
      %4293 = vmatprep.subr.mxu0 0.0
      %4294 = vmatpush1.msra.mxu0 0.0
      %4295 = vmatprep.subr.mxu0 0.0
      %4296 = vmatpush1.msra.mxu0 0.0
      %4297 = vmatprep.subr.mxu0 0.0
      %4298 = vmatpush1.msra.mxu0 0.0
      %4299 = vmatprep.subr.mxu0 0.0
      %4300 = vmatpush1.msra.mxu0 0.0
      %4301 = vmatprep.subr.mxu0 0.0
      %4302 = vmatpush1.msra.mxu0 0.0
      %4303 = vmatprep.subr.mxu0 0.0
      %4304 = vmatpush1.msra.mxu0 0.0
      %4305 = vmatprep.subr.mxu0 0.0
      %4306 = vmatpush1.msra.mxu0 0.0
      %4307 = vmatprep.mubr.f32.mxu0 0.0
      %4308 = vmatmul.mubr.f32.gmra.mrb[0].mxu0 %v4220
      %v4309 = vpop.f32.mrb[0].mxu0
      %v4310 = vadd.f32 0.0, %v4309
      %v4311 = vpop.f32.mrb[0].mxu0
      %4312 = vmatprep.mubr.f32.mxu0 0.0
      %4313 = vmatmul.mubr.f32.gmra.mrb[0].mxu0 %v4223
      %v4314 = vpop.f32.mrb[0].mxu0
      %v4315 = vadd.f32 0.0, %v4314
      %v4316 = vpop.f32.mrb[0].mxu0
      %4317 = vmatprep.mubr.f32.mxu0 0.0
      %4318 = vmatmul.mubr.f32.gmra.mrb[0].mxu0 %v4226
      %v4319 = vpop.f32.mrb[0].mxu0
      %v4320 = vadd.f32 0.0, %v4319
      %v4321 = vpop.f32.mrb[0].mxu0
      %4322 = vmatprep.mubr.f32.mxu0 0.0
      %4323 = vmatmul.mubr.f32.gmra.mrb[0].mxu0 %v4229
      %v4324 = vpop.f32.mrb[0].mxu0
      %v4325 = vadd.f32 0.0, %v4324
      %v4326 = vpop.f32.mrb[0].mxu0
      %4327 = vmatprep.mubr.f32.mxu0 0.0
      %4328 = vmatmul.mubr.f32.gmra.mrb[0].mxu0 %v4232
      %v4329 = vpop.f32.mrb[0].mxu0
      %v4330 = vadd.f32 0.0, %v4329
      %v4331 = vpop.f32.mrb[0].mxu0
      %4332 = vmatprep.mubr.f32.mxu0 0.0
      %4333 = vmatmul.mubr.f32.gmra.mrb[0].mxu0 %v4235
      %v4334 = vpop.f32.mrb[0].mxu0
      %v4335 = vadd.f32 0.0, %v4334
      %v4336 = vpop.f32.mrb[0].mxu0
      %4337 = vmatprep.mubr.f32.mxu0 0.0
      %4338 = vmatmul.mubr.f32.gmra.mrb[0].mxu0 %v4238
      %v4339 = vpop.f32.mrb[0].mxu0
      %v4340 = vadd.f32 0.0, %v4339
      %v4341 = vpop.f32.mrb[0].mxu0
      %4342 = vmatprep.mubr.f32.mxu0 0.0
      %4343 = vmatmul.mubr.f32.gmra.mrb[0].mxu0 %v4241
      %v4344 = vpop.f32.mrb[0].mxu0
      %v4345 = vadd.f32 0.0, %v4344
      %v4346 = vpop.f32.mrb[0].mxu0
      %4347 = vdwg.mxu0
      %v4348 = vadd.f32 %v4198, %v4310
      %v4349 = vadd.f32 %v4199, %v4315
      %v4350 = vadd.f32 %v4200, %v4320
      %v4351 = vadd.f32 %v4201, %v4325
      %v4352 = vadd.f32 %v4202, %v4330
      %v4353 = vadd.f32 %v4203, %v4335
      %v4354 = vadd.f32 %v4204, %v4340
      %v4355 = vadd.f32 %v4205, %v4345
      %v4356 = vld [vmem:[#allocation3 + $0x4] sm:$0xff]
      %v4357 = vld [vmem:[#allocation3 + $0xc] sm:$0xff]
      %v4358 = vld [vmem:[#allocation3 + $0x14] sm:$0xff]
      %v4359 = vld [vmem:[#allocation3 + $0x1c] sm:$0xff]
      %v4360 = vld [vmem:[#allocation3 + $0x24] sm:$0xff]
      %v4361 = vld [vmem:[#allocation3 + $0x2c] sm:$0xff]
      %v4362 = vld [vmem:[#allocation3 + $0x34] sm:$0xff]
      %v4363 = vld [vmem:[#allocation3 + $0x3c] sm:$0xff]
      %s4364 = scalar_lea.vmem %s5, 128
      %v4365 = vld [vmem:[%s4364] sm:$0xff]
      %v4366 = vld [vmem:[%s4364 + $0x8] sm:$0xff]
      %v4367 = vld [vmem:[%s4364 + $0x10] sm:$0xff]
      %v4368 = vld [vmem:[%s4364 + $0x18] sm:$0xff]
      %v4370 = vsel %vm3376, %v4356, 0
      %v4373 = vsel %vm3376, %v4357, 0
      %v4376 = vsel %vm3376, %v4358, 0
      %v4379 = vsel %vm3376, %v4359, 0
      %v4382 = vsel %vm3376, %v4360, 0
      %v4385 = vsel %vm3376, %v4361, 0
      %v4388 = vsel %vm3376, %v4362, 0
      %v4391 = vsel %vm3376, %v4363, 0
      %4393 = vmatprep.subr.mxu0 0.0
      %4394 = vmatpush1.msra.mxu0 %v4365
      %4395 = vmatprep.subr.mxu0 0.0
      %4396 = vmatpush1.msra.mxu0 %v4366
      %4397 = vmatprep.subr.mxu0 0.0
      %4398 = vmatpush1.msra.mxu0 %v4367
      %4399 = vmatprep.subr.mxu0 0.0
      %4400 = vmatpush1.msra.mxu0 %v4368
      %4401 = vmatprep.subr.mxu0 0.0
      %4402 = vmatpush1.msra.mxu0 0.0
      %4403 = vmatprep.subr.mxu0 0.0
      %4404 = vmatpush1.msra.mxu0 0.0
      %4405 = vmatprep.subr.mxu0 0.0
      %4406 = vmatpush1.msra.mxu0 0.0
      %4407 = vmatprep.subr.mxu0 0.0
      %4408 = vmatpush1.msra.mxu0 0.0
      %4409 = vmatprep.subr.mxu0 0.0
      %4410 = vmatpush1.msra.mxu0 0.0
      %4411 = vmatprep.subr.mxu0 0.0
      %4412 = vmatpush1.msra.mxu0 0.0
      %4413 = vmatprep.subr.mxu0 0.0
      %4414 = vmatpush1.msra.mxu0 0.0
      %4415 = vmatprep.subr.mxu0 0.0
      %4416 = vmatpush1.msra.mxu0 0.0
      %4417 = vmatprep.subr.mxu0 0.0
      %4418 = vmatpush1.msra.mxu0 0.0
      %4419 = vmatprep.subr.mxu0 0.0
      %4420 = vmatpush1.msra.mxu0 0.0
      %4421 = vmatprep.subr.mxu0 0.0
      %4422 = vmatpush1.msra.mxu0 0.0
      %4423 = vmatprep.subr.mxu0 0.0
      %4424 = vmatpush1.msra.mxu0 0.0
      %4425 = vmatprep.subr.mxu0 0.0
      %4426 = vmatpush1.msra.mxu0 0.0
      %4427 = vmatprep.subr.mxu0 0.0
      %4428 = vmatpush1.msra.mxu0 0.0
      %4429 = vmatprep.subr.mxu0 0.0
      %4430 = vmatpush1.msra.mxu0 0.0
      %4431 = vmatprep.subr.mxu0 0.0
      %4432 = vmatpush1.msra.mxu0 0.0
      %4433 = vmatprep.subr.mxu0 0.0
      %4434 = vmatpush1.msra.mxu0 0.0
      %4435 = vmatprep.subr.mxu0 0.0
      %4436 = vmatpush1.msra.mxu0 0.0
      %4437 = vmatprep.subr.mxu0 0.0
      %4438 = vmatpush1.msra.mxu0 0.0
      %4439 = vmatprep.subr.mxu0 0.0
      %4440 = vmatpush1.msra.mxu0 0.0
      %4441 = vmatprep.subr.mxu0 0.0
      %4442 = vmatpush1.msra.mxu0 0.0
      %4443 = vmatprep.subr.mxu0 0.0
      %4444 = vmatpush1.msra.mxu0 0.0
      %4445 = vmatprep.subr.mxu0 0.0
      %4446 = vmatpush1.msra.mxu0 0.0
      %4447 = vmatprep.subr.mxu0 0.0
      %4448 = vmatpush1.msra.mxu0 0.0
      %4449 = vmatprep.subr.mxu0 0.0
      %4450 = vmatpush1.msra.mxu0 0.0
      %4451 = vmatprep.subr.mxu0 0.0
      %4452 = vmatpush1.msra.mxu0 0.0
      %4453 = vmatprep.subr.mxu0 0.0
      %4454 = vmatpush1.msra.mxu0 0.0
      %4455 = vmatprep.subr.mxu0 0.0
      %4456 = vmatpush1.msra.mxu0 0.0
      %4457 = vmatprep.mubr.f32.mxu0 0.0
      %4458 = vmatmul.mubr.f32.gmra.mrb[0].mxu0 %v4370
      %v4459 = vpop.f32.mrb[0].mxu0
      %v4460 = vadd.f32 0.0, %v4459
      %v4461 = vpop.f32.mrb[0].mxu0
      %4462 = vmatprep.mubr.f32.mxu0 0.0
      %4463 = vmatmul.mubr.f32.gmra.mrb[0].mxu0 %v4373
      %v4464 = vpop.f32.mrb[0].mxu0
      %v4465 = vadd.f32 0.0, %v4464
      %v4466 = vpop.f32.mrb[0].mxu0
      %4467 = vmatprep.mubr.f32.mxu0 0.0
      %4468 = vmatmul.mubr.f32.gmra.mrb[0].mxu0 %v4376
      %v4469 = vpop.f32.mrb[0].mxu0
      %v4470 = vadd.f32 0.0, %v4469
      %v4471 = vpop.f32.mrb[0].mxu0
      %4472 = vmatprep.mubr.f32.mxu0 0.0
      %4473 = vmatmul.mubr.f32.gmra.mrb[0].mxu0 %v4379
      %v4474 = vpop.f32.mrb[0].mxu0
      %v4475 = vadd.f32 0.0, %v4474
      %v4476 = vpop.f32.mrb[0].mxu0
      %4477 = vmatprep.mubr.f32.mxu0 0.0
      %4478 = vmatmul.mubr.f32.gmra.mrb[0].mxu0 %v4382
      %v4479 = vpop.f32.mrb[0].mxu0
      %v4480 = vadd.f32 0.0, %v4479
      %v4481 = vpop.f32.mrb[0].mxu0
      %4482 = vmatprep.mubr.f32.mxu0 0.0
      %4483 = vmatmul.mubr.f32.gmra.mrb[0].mxu0 %v4385
      %v4484 = vpop.f32.mrb[0].mxu0
      %v4485 = vadd.f32 0.0, %v4484
      %v4486 = vpop.f32.mrb[0].mxu0
      %4487 = vmatprep.mubr.f32.mxu0 0.0
      %4488 = vmatmul.mubr.f32.gmra.mrb[0].mxu0 %v4388
      %v4489 = vpop.f32.mrb[0].mxu0
      %v4490 = vadd.f32 0.0, %v4489
      %v4491 = vpop.f32.mrb[0].mxu0
      %4492 = vmatprep.mubr.f32.mxu0 0.0
      %4493 = vmatmul.mubr.f32.gmra.mrb[0].mxu0 %v4391
      %v4494 = vpop.f32.mrb[0].mxu0
      %v4495 = vadd.f32 0.0, %v4494
      %v4496 = vpop.f32.mrb[0].mxu0
      %4497 = vdwg.mxu0
      %v4498 = vadd.f32 %v4348, %v4460
      %v4499 = vadd.f32 %v4349, %v4465
      %v4500 = vadd.f32 %v4350, %v4470
      %v4501 = vadd.f32 %v4351, %v4475
      %v4502 = vadd.f32 %v4352, %v4480
      %v4503 = vadd.f32 %v4353, %v4485
      %v4504 = vadd.f32 %v4354, %v4490
      %v4505 = vadd.f32 %v4355, %v4495
      %v4506 = vld [vmem:[%s6] sm:$0x1]
      %v4508 = vlaneseq
      %v4509 = vshrl.u32 %v4508, 7
      %v4510 = vsub.s32 0, %v4509
      %v4511 = vrot.slane %v4506, %v4510
      %v4513 = vmul.f32 %v4498, %v4511
      %v4514 = vmul.f32 %v4499, %v4511
      %v4515 = vmul.f32 %v4500, %v4511
      %v4516 = vmul.f32 %v4501, %v4511
      %v4517 = vmul.f32 %v4502, %v4511
      %v4518 = vmul.f32 %v4503, %v4511
      %v4519 = vmul.f32 %v4504, %v4511
      %v4520 = vmul.f32 %v4505, %v4511
      %v4521 = vld [vmem:[%s7] sm:$0x1]
      %v4523 = vlaneseq
      %v4524 = vshrl.u32 %v4523, 7
      %v4525 = vsub.s32 0, %v4524
      %v4526 = vrot.slane %v4521, %v4525
      %v4528 = vadd.f32 %v4513, %v4526
      %v4529 = vadd.f32 %v4514, %v4526
      %v4530 = vadd.f32 %v4515, %v4526
      %v4531 = vadd.f32 %v4516, %v4526
      %v4532 = vadd.f32 %v4517, %v4526
      %v4533 = vadd.f32 %v4518, %v4526
      %v4534 = vadd.f32 %v4519, %v4526
      %v4535 = vadd.f32 %v4520, %v4526
      %v4536 = vmax.f32 %v4528, 0.0
      %v4537 = vmax.f32 %v4529, 0.0
      %v4538 = vmax.f32 %v4530, 0.0
      %v4539 = vmax.f32 %v4531, 0.0
      %v4540 = vmax.f32 %v4532, 0.0
      %v4541 = vmax.f32 %v4533, 0.0
      %v4542 = vmax.f32 %v4534, 0.0
      %v4543 = vmax.f32 %v4535, 0.0
      %vm4544 = vcmask 523264
      %4545 = vst.msk [vmem:[#allocation4] sm:$0xff] %vm4544, %v4536
      %4546 = vst.msk [vmem:[#allocation4 + $0x8] sm:$0xff] %vm4544, %v4537
      %4547 = vst.msk [vmem:[#allocation4 + $0x10] sm:$0xff] %vm4544, %v4538
      %4548 = vst.msk [vmem:[#allocation4 + $0x18] sm:$0xff] %vm4544, %v4539
      %4549 = vst.msk [vmem:[#allocation4 + $0x20] sm:$0xff] %vm4544, %v4540
      %4550 = vst.msk [vmem:[#allocation4 + $0x28] sm:$0xff] %vm4544, %v4541
      %4551 = vst.msk [vmem:[#allocation4 + $0x30] sm:$0xff] %vm4544, %v4542
      %4552 = vst.msk [vmem:[#allocation4 + $0x38] sm:$0xff] %vm4544, %v4543
      %4553 = vst.msk [vmem:[#allocation4 + $0x40] sm:$0xff] %vm4544, 0.0
      %v4554 = vld [vmem:[#allocation4] sm:$0xff]
      %v4555 = vld [vmem:[#allocation4 + $0x8] sm:$0xff]
      %v4556 = vld [vmem:[#allocation4 + $0x10] sm:$0xff]
      %v4557 = vld [vmem:[#allocation4 + $0x18] sm:$0xff]
      %v4558 = vld [vmem:[#allocation4 + $0x20] sm:$0xff]
      %v4559 = vld [vmem:[#allocation4 + $0x28] sm:$0xff]
      %v4560 = vld [vmem:[#allocation4 + $0x30] sm:$0xff]
      %v4561 = vld [vmem:[#allocation4 + $0x38] sm:$0xff]
      %v4562 = vld [vmem:[#allocation4 + $0x1] sm:$0xff]
      %v4563 = vld [vmem:[#allocation4 + $0x9] sm:$0xff]
      %v4564 = vld [vmem:[#allocation4 + $0x11] sm:$0xff]
      %v4565 = vld [vmem:[#allocation4 + $0x19] sm:$0xff]
      %v4566 = vld [vmem:[#allocation4 + $0x21] sm:$0xff]
      %v4567 = vld [vmem:[#allocation4 + $0x29] sm:$0xff]
      %v4568 = vld [vmem:[#allocation4 + $0x31] sm:$0xff]
      %v4569 = vld [vmem:[#allocation4 + $0x39] sm:$0xff]
      %v4570 = vmax.f32 %v4554, %v4562
      %v4571 = vmax.f32 %v4555, %v4563
      %v4572 = vmax.f32 %v4556, %v4564
      %v4573 = vmax.f32 %v4557, %v4565
      %v4574 = vmax.f32 %v4558, %v4566
      %v4575 = vmax.f32 %v4559, %v4567
      %v4576 = vmax.f32 %v4560, %v4568
      %v4577 = vmax.f32 %v4561, %v4569
      %v4578 = vld [vmem:[#allocation4 + $0x2] sm:$0xff]
      %v4579 = vld [vmem:[#allocation4 + $0xa] sm:$0xff]
      %v4580 = vld [vmem:[#allocation4 + $0x12] sm:$0xff]
      %v4581 = vld [vmem:[#allocation4 + $0x1a] sm:$0xff]
      %v4582 = vld [vmem:[#allocation4 + $0x22] sm:$0xff]
      %v4583 = vld [vmem:[#allocation4 + $0x2a] sm:$0xff]
      %v4584 = vld [vmem:[#allocation4 + $0x32] sm:$0xff]
      %v4585 = vld [vmem:[#allocation4 + $0x3a] sm:$0xff]
      %v4586 = vmax.f32 %v4570, %v4578
      %v4587 = vmax.f32 %v4571, %v4579
      %v4588 = vmax.f32 %v4572, %v4580
      %v4589 = vmax.f32 %v4573, %v4581
      %v4590 = vmax.f32 %v4574, %v4582
      %v4591 = vmax.f32 %v4575, %v4583
      %v4592 = vmax.f32 %v4576, %v4584
      %v4593 = vmax.f32 %v4577, %v4585
      %v4594 = vld [vmem:[#allocation4 + $0x3] sm:$0xff]
      %v4595 = vld [vmem:[#allocation4 + $0xb] sm:$0xff]
      %v4596 = vld [vmem:[#allocation4 + $0x13] sm:$0xff]
      %v4597 = vld [vmem:[#allocation4 + $0x1b] sm:$0xff]
      %v4598 = vld [vmem:[#allocation4 + $0x23] sm:$0xff]
      %v4599 = vld [vmem:[#allocation4 + $0x2b] sm:$0xff]
      %v4600 = vld [vmem:[#allocation4 + $0x33] sm:$0xff]
      %v4601 = vld [vmem:[#allocation4 + $0x3b] sm:$0xff]
      %v4602 = vmax.f32 %v4586, %v4594
      %v4603 = vmax.f32 %v4587, %v4595
      %v4604 = vmax.f32 %v4588, %v4596
      %v4605 = vmax.f32 %v4589, %v4597
      %v4606 = vmax.f32 %v4590, %v4598
      %v4607 = vmax.f32 %v4591, %v4599
      %v4608 = vmax.f32 %v4592, %v4600
      %v4609 = vmax.f32 %v4593, %v4601
      %v4610 = vld [vmem:[%s8] sm:$0xff]
      %v4611 = vld [vmem:[%s8 + $0x8] sm:$0xff]
      %v4613 = vsel %vm4544, %v4610, 0
      %v4616 = vsel %vm4544, %v4611, 0
      %4618 = vmatprep.subr.mxu0 0.0
      %4619 = vmatpush1.msra.mxu0 %v4602
      %4620 = vmatprep.subr.mxu0 0.0
      %4621 = vmatpush1.msra.mxu0 %v4603
      %4622 = vmatprep.subr.mxu0 0.0
      %4623 = vmatpush1.msra.mxu0 %v4604
      %4624 = vmatprep.subr.mxu0 0.0
      %4625 = vmatpush1.msra.mxu0 %v4605
      %4626 = vmatprep.subr.mxu0 0.0
      %4627 = vmatpush1.msra.mxu0 %v4606
      %4628 = vmatprep.subr.mxu0 0.0
      %4629 = vmatpush1.msra.mxu0 %v4607
      %4630 = vmatprep.subr.mxu0 0.0
      %4631 = vmatpush1.msra.mxu0 %v4608
      %4632 = vmatprep.subr.mxu0 0.0
      %4633 = vmatpush1.msra.mxu0 %v4609
      %4634 = vmatprep.subr.mxu0 0.0
      %4635 = vmatpush1.msra.mxu0 0.0
      %4636 = vmatprep.subr.mxu0 0.0
      %4637 = vmatpush1.msra.mxu0 0.0
      %4638 = vmatprep.subr.mxu0 0.0
      %4639 = vmatpush1.msra.mxu0 0.0
      %4640 = vmatprep.subr.mxu0 0.0
      %4641 = vmatpush1.msra.mxu0 0.0
      %4642 = vmatprep.subr.mxu0 0.0
      %4643 = vmatpush1.msra.mxu0 0.0
      %4644 = vmatprep.subr.mxu0 0.0
      %4645 = vmatpush1.msra.mxu0 0.0
      %4646 = vmatprep.subr.mxu0 0.0
      %4647 = vmatpush1.msra.mxu0 0.0
      %4648 = vmatprep.subr.mxu0 0.0
      %4649 = vmatpush1.msra.mxu0 0.0
      %4650 = vmatprep.subr.mxu0 0.0
      %4651 = vmatpush1.msra.mxu0 0.0
      %4652 = vmatprep.subr.mxu0 0.0
      %4653 = vmatpush1.msra.mxu0 0.0
      %4654 = vmatprep.subr.mxu0 0.0
      %4655 = vmatpush1.msra.mxu0 0.0
      %4656 = vmatprep.subr.mxu0 0.0
      %4657 = vmatpush1.msra.mxu0 0.0
      %4658 = vmatprep.subr.mxu0 0.0
      %4659 = vmatpush1.msra.mxu0 0.0
      %4660 = vmatprep.subr.mxu0 0.0
      %4661 = vmatpush1.msra.mxu0 0.0
      %4662 = vmatprep.subr.mxu0 0.0
      %4663 = vmatpush1.msra.mxu0 0.0
      %4664 = vmatprep.subr.mxu0 0.0
      %4665 = vmatpush1.msra.mxu0 0.0
      %4666 = vmatprep.subr.mxu0 0.0
      %4667 = vmatpush1.msra.mxu0 0.0
      %4668 = vmatprep.subr.mxu0 0.0
      %4669 = vmatpush1.msra.mxu0 0.0
      %4670 = vmatprep.subr.mxu0 0.0
      %4671 = vmatpush1.msra.mxu0 0.0
      %4672 = vmatprep.subr.mxu0 0.0
      %4673 = vmatpush1.msra.mxu0 0.0
      %4674 = vmatprep.subr.mxu0 0.0
      %4675 = vmatpush1.msra.mxu0 0.0
      %4676 = vmatprep.subr.mxu0 0.0
      %4677 = vmatpush1.msra.mxu0 0.0
      %4678 = vmatprep.subr.mxu0 0.0
      %4679 = vmatpush1.msra.mxu0 0.0
      %4680 = vmatprep.subr.mxu0 0.0
      %4681 = vmatpush1.msra.mxu0 0.0
      %4682 = vmatprep.mubr.f32.mxu0 0.0
      %4683 = vmatmul.mubr.f32.gmra.mrb[0].mxu0 %v4613
      %v4684 = vpop.f32.mrb[0].mxu0
      %v4685 = vadd.f32 0.0, %v4684
      %v4686 = vpop.f32.mrb[0].mxu0
      %4687 = vmatprep.mubr.f32.mxu0 0.0
      %4688 = vmatmul.mubr.f32.gmra.mrb[0].mxu0 %v4616
      %v4689 = vpop.f32.mrb[0].mxu0
      %v4690 = vadd.f32 0.0, %v4689
      %v4691 = vpop.f32.mrb[0].mxu0
      %4692 = vdwg.mxu0
      %4693 = vst.msk [vmem:[#allocation5] sm:$0xff] %vm4544, 0.0
      %4694 = vst.msk [vmem:[#allocation5 + $0x8] sm:$0xff] %vm4544, 0.0
      %vm4695 = vcmask 517120
      %4696 = vst.msk [vmem:[#allocation5 + $0x10] sm:$0x3] %vm4695, 0.0
      %4697 = vst.msk [vmem:[#allocation5 + $0x1] sm:$0xff] %vm4544, %v4685
      %4698 = vst.msk [vmem:[#allocation5 + $0x9] sm:$0xff] %vm4544, %v4690
      %v4699 = vld [vmem:[#allocation5] sm:$0xff]
      %v4700 = vld [vmem:[#allocation5 + $0x8] sm:$0xff]
      %v4701 = vld [vmem:[%s9] sm:$0xff]
      %v4702 = vld [vmem:[%s9 + $0x8] sm:$0xff]
      %v4703 = vld [vmem:[%s9 + $0x10] sm:$0xff]
      %v4704 = vld [vmem:[%s9 + $0x18] sm:$0xff]
      %v4705 = vld [vmem:[%s9 + $0x20] sm:$0xff]
      %v4706 = vld [vmem:[%s9 + $0x28] sm:$0xff]
      %v4707 = vld [vmem:[%s9 + $0x30] sm:$0xff]
      %v4708 = vld [vmem:[%s9 + $0x38] sm:$0xff]
      %v4709 = vld [vmem:[#allocation5 + $0x1] sm:$0xff]
      %v4710 = vld [vmem:[#allocation5 + $0x9] sm:$0xff]
      %s4711 = scalar_lea.vmem %s9, 64
      %v4712 = vld [vmem:[%s4711] sm:$0xff]
      %v4713 = vld [vmem:[%s4711 + $0x8] sm:$0xff]
      %v4714 = vld [vmem:[%s4711 + $0x10] sm:$0xff]
      %v4715 = vld [vmem:[%s4711 + $0x18] sm:$0xff]
      %v4716 = vld [vmem:[%s4711 + $0x20] sm:$0xff]
      %v4717 = vld [vmem:[%s4711 + $0x28] sm:$0xff]
      %v4718 = vld [vmem:[%s4711 + $0x30] sm:$0xff]
      %v4719 = vld [vmem:[%s4711 + $0x38] sm:$0xff]
      %v4721 = vsel %vm4544, %v4709, 0
      %v4724 = vsel %vm4544, %v4710, 0
      %4726 = vmatprep.subr.mxu0 0.0
      %4727 = vmatpush1.msra.mxu0 %v4712
      %4728 = vmatprep.subr.mxu0 0.0
      %4729 = vmatpush1.msra.mxu0 %v4713
      %4730 = vmatprep.subr.mxu0 0.0
      %4731 = vmatpush1.msra.mxu0 %v4714
      %4732 = vmatprep.subr.mxu0 0.0
      %4733 = vmatpush1.msra.mxu0 %v4715
      %4734 = vmatprep.subr.mxu0 0.0
      %4735 = vmatpush1.msra.mxu0 %v4716
      %4736 = vmatprep.subr.mxu0 0.0
      %4737 = vmatpush1.msra.mxu0 %v4717
      %4738 = vmatprep.subr.mxu0 0.0
      %4739 = vmatpush1.msra.mxu0 %v4718
      %4740 = vmatprep.subr.mxu0 0.0
      %4741 = vmatpush1.msra.mxu0 %v4719
      %4742 = vmatprep.subr.mxu0 0.0
      %4743 = vmatpush1.msra.mxu0 0.0
      %4744 = vmatprep.subr.mxu0 0.0
      %4745 = vmatpush1.msra.mxu0 0.0
      %4746 = vmatprep.subr.mxu0 0.0
      %4747 = vmatpush1.msra.mxu0 0.0
      %4748 = vmatprep.subr.mxu0 0.0
      %4749 = vmatpush1.msra.mxu0 0.0
      %4750 = vmatprep.subr.mxu0 0.0
      %4751 = vmatpush1.msra.mxu0 0.0
      %4752 = vmatprep.subr.mxu0 0.0
      %4753 = vmatpush1.msra.mxu0 0.0
      %4754 = vmatprep.subr.mxu0 0.0
      %4755 = vmatpush1.msra.mxu0 0.0
      %4756 = vmatprep.subr.mxu0 0.0
      %4757 = vmatpush1.msra.mxu0 0.0
      %4758 = vmatprep.subr.mxu0 0.0
      %4759 = vmatpush1.msra.mxu0 0.0
      %4760 = vmatprep.subr.mxu0 0.0
      %4761 = vmatpush1.msra.mxu0 0.0
      %4762 = vmatprep.subr.mxu0 0.0
      %4763 = vmatpush1.msra.mxu0 0.0
      %4764 = vmatprep.subr.mxu0 0.0
      %4765 = vmatpush1.msra.mxu0 0.0
      %4766 = vmatprep.subr.mxu0 0.0
      %4767 = vmatpush1.msra.mxu0 0.0
      %4768 = vmatprep.subr.mxu0 0.0
      %4769 = vmatpush1.msra.mxu0 0.0
      %4770 = vmatprep.subr.mxu0 0.0
      %4771 = vmatpush1.msra.mxu0 0.0
      %4772 = vmatprep.subr.mxu0 0.0
      %4773 = vmatpush1.msra.mxu0 0.0
      %4774 = vmatprep.subr.mxu0 0.0
      %4775 = vmatpush1.msra.mxu0 0.0
      %4776 = vmatprep.subr.mxu0 0.0
      %4777 = vmatpush1.msra.mxu0 0.0
      %4778 = vmatprep.subr.mxu0 0.0
      %4779 = vmatpush1.msra.mxu0 0.0
      %4780 = vmatprep.subr.mxu0 0.0
      %4781 = vmatpush1.msra.mxu0 0.0
      %4782 = vmatprep.subr.mxu0 0.0
      %4783 = vmatpush1.msra.mxu0 0.0
      %4784 = vmatprep.subr.mxu0 0.0
      %4785 = vmatpush1.msra.mxu0 0.0
      %4786 = vmatprep.subr.mxu0 0.0
      %4787 = vmatpush1.msra.mxu0 0.0
      %4788 = vmatprep.subr.mxu0 0.0
      %4789 = vmatpush1.msra.mxu0 0.0
      %4790 = vmatprep.mubr.f32.mxu0 0.0
      %4791 = vmatmul.mubr.f32.gmra.mrb[0].mxu0 %v4721
      %v4792 = vpop.f32.mrb[0].mxu0
      %v4793 = vadd.f32 0.0, %v4792
      %v4794 = vpop.f32.mrb[0].mxu0
      %4795 = vmatprep.mubr.f32.mxu0 0.0
      %4796 = vmatmul.mubr.f32.gmra.mrb[0].mxu0 %v4724
      %v4797 = vpop.f32.mrb[0].mxu0
      %v4798 = vadd.f32 0.0, %v4797
      %v4799 = vpop.f32.mrb[0].mxu0
      %4800 = vdwg.mxu0
      %v4802 = vsel %vm4544, %v4699, 0
      %v4805 = vsel %vm4544, %v4700, 0
      %4807 = vmatprep.subr.mxu0 0.0
      %4808 = vmatpush1.msra.mxu0 %v4701
      %4809 = vmatprep.subr.mxu0 0.0
      %4810 = vmatpush1.msra.mxu0 %v4702
      %4811 = vmatprep.subr.mxu0 0.0
      %4812 = vmatpush1.msra.mxu0 %v4703
      %4813 = vmatprep.subr.mxu0 0.0
      %4814 = vmatpush1.msra.mxu0 %v4704
      %4815 = vmatprep.subr.mxu0 0.0
      %4816 = vmatpush1.msra.mxu0 %v4705
      %4817 = vmatprep.subr.mxu0 0.0
      %4818 = vmatpush1.msra.mxu0 %v4706
      %4819 = vmatprep.subr.mxu0 0.0
      %4820 = vmatpush1.msra.mxu0 %v4707
      %4821 = vmatprep.subr.mxu0 0.0
      %4822 = vmatpush1.msra.mxu0 %v4708
      %4823 = vmatprep.subr.mxu0 0.0
      %4824 = vmatpush1.msra.mxu0 0.0
      %4825 = vmatprep.subr.mxu0 0.0
      %4826 = vmatpush1.msra.mxu0 0.0
      %4827 = vmatprep.subr.mxu0 0.0
      %4828 = vmatpush1.msra.mxu0 0.0
      %4829 = vmatprep.subr.mxu0 0.0
      %4830 = vmatpush1.msra.mxu0 0.0
      %4831 = vmatprep.subr.mxu0 0.0
      %4832 = vmatpush1.msra.mxu0 0.0
      %4833 = vmatprep.subr.mxu0 0.0
      %4834 = vmatpush1.msra.mxu0 0.0
      %4835 = vmatprep.subr.mxu0 0.0
      %4836 = vmatpush1.msra.mxu0 0.0
      %4837 = vmatprep.subr.mxu0 0.0
      %4838 = vmatpush1.msra.mxu0 0.0
      %4839 = vmatprep.subr.mxu0 0.0
      %4840 = vmatpush1.msra.mxu0 0.0
      %4841 = vmatprep.subr.mxu0 0.0
      %4842 = vmatpush1.msra.mxu0 0.0
      %4843 = vmatprep.subr.mxu0 0.0
      %4844 = vmatpush1.msra.mxu0 0.0
      %4845 = vmatprep.subr.mxu0 0.0
      %4846 = vmatpush1.msra.mxu0 0.0
      %4847 = vmatprep.subr.mxu0 0.0
      %4848 = vmatpush1.msra.mxu0 0.0
      %4849 = vmatprep.subr.mxu0 0.0
      %4850 = vmatpush1.msra.mxu0 0.0
      %4851 = vmatprep.subr.mxu0 0.0
      %4852 = vmatpush1.msra.mxu0 0.0
      %4853 = vmatprep.subr.mxu0 0.0
      %4854 = vmatpush1.msra.mxu0 0.0
      %4855 = vmatprep.subr.mxu0 0.0
      %4856 = vmatpush1.msra.mxu0 0.0
      %4857 = vmatprep.subr.mxu0 0.0
      %4858 = vmatpush1.msra.mxu0 0.0
      %4859 = vmatprep.subr.mxu0 0.0
      %4860 = vmatpush1.msra.mxu0 0.0
      %4861 = vmatprep.subr.mxu0 0.0
      %4862 = vmatpush1.msra.mxu0 0.0
      %4863 = vmatprep.subr.mxu0 0.0
      %4864 = vmatpush1.msra.mxu0 0.0
      %4865 = vmatprep.subr.mxu0 0.0
      %4866 = vmatpush1.msra.mxu0 0.0
      %4867 = vmatprep.subr.mxu0 0.0
      %4868 = vmatpush1.msra.mxu0 0.0
      %4869 = vmatprep.subr.mxu0 0.0
      %4870 = vmatpush1.msra.mxu0 0.0
      %4871 = vmatprep.mubr.f32.mxu0 0.0
      %4872 = vmatmul.mubr.f32.gmra.mrb[0].mxu0 %v4802
      %v4873 = vpop.f32.mrb[0].mxu0
      %v4874 = vadd.f32 %v4793, %v4873
      %v4875 = vpop.f32.mrb[0].mxu0
      %4876 = vmatprep.mubr.f32.mxu0 0.0
      %4877 = vmatmul.mubr.f32.gmra.mrb[0].mxu0 %v4805
      %v4878 = vpop.f32.mrb[0].mxu0
      %v4879 = vadd.f32 %v4798, %v4878
      %v4880 = vpop.f32.mrb[0].mxu0
      %4881 = vdwg.mxu0
      %v4882 = vld [vmem:[#allocation5 + $0x2] sm:$0xff]
      %v4883 = vld [vmem:[#allocation5 + $0xa] sm:$0xff]
      %s4884 = scalar_lea.vmem %s9, 128
      %v4885 = vld [vmem:[%s4884] sm:$0xff]
      %v4886 = vld [vmem:[%s4884 + $0x8] sm:$0xff]
      %v4887 = vld [vmem:[%s4884 + $0x10] sm:$0xff]
      %v4888 = vld [vmem:[%s4884 + $0x18] sm:$0xff]
      %v4889 = vld [vmem:[%s4884 + $0x20] sm:$0xff]
      %v4890 = vld [vmem:[%s4884 + $0x28] sm:$0xff]
      %v4891 = vld [vmem:[%s4884 + $0x30] sm:$0xff]
      %v4892 = vld [vmem:[%s4884 + $0x38] sm:$0xff]
      %v4894 = vsel %vm4544, %v4882, 0
      %v4897 = vsel %vm4544, %v4883, 0
      %4899 = vmatprep.subr.mxu0 0.0
      %4900 = vmatpush1.msra.mxu0 %v4885
      %4901 = vmatprep.subr.mxu0 0.0
      %4902 = vmatpush1.msra.mxu0 %v4886
      %4903 = vmatprep.subr.mxu0 0.0
      %4904 = vmatpush1.msra.mxu0 %v4887
      %4905 = vmatprep.subr.mxu0 0.0
      %4906 = vmatpush1.msra.mxu0 %v4888
      %4907 = vmatprep.subr.mxu0 0.0
      %4908 = vmatpush1.msra.mxu0 %v4889
      %4909 = vmatprep.subr.mxu0 0.0
      %4910 = vmatpush1.msra.mxu0 %v4890
      %4911 = vmatprep.subr.mxu0 0.0
      %4912 = vmatpush1.msra.mxu0 %v4891
      %4913 = vmatprep.subr.mxu0 0.0
      %4914 = vmatpush1.msra.mxu0 %v4892
      %4915 = vmatprep.subr.mxu0 0.0
      %4916 = vmatpush1.msra.mxu0 0.0
      %4917 = vmatprep.subr.mxu0 0.0
      %4918 = vmatpush1.msra.mxu0 0.0
      %4919 = vmatprep.subr.mxu0 0.0
      %4920 = vmatpush1.msra.mxu0 0.0
      %4921 = vmatprep.subr.mxu0 0.0
      %4922 = vmatpush1.msra.mxu0 0.0
      %4923 = vmatprep.subr.mxu0 0.0
      %4924 = vmatpush1.msra.mxu0 0.0
      %4925 = vmatprep.subr.mxu0 0.0
      %4926 = vmatpush1.msra.mxu0 0.0
      %4927 = vmatprep.subr.mxu0 0.0
      %4928 = vmatpush1.msra.mxu0 0.0
      %4929 = vmatprep.subr.mxu0 0.0
      %4930 = vmatpush1.msra.mxu0 0.0
      %4931 = vmatprep.subr.mxu0 0.0
      %4932 = vmatpush1.msra.mxu0 0.0
      %4933 = vmatprep.subr.mxu0 0.0
      %4934 = vmatpush1.msra.mxu0 0.0
      %4935 = vmatprep.subr.mxu0 0.0
      %4936 = vmatpush1.msra.mxu0 0.0
      %4937 = vmatprep.subr.mxu0 0.0
      %4938 = vmatpush1.msra.mxu0 0.0
      %4939 = vmatprep.subr.mxu0 0.0
      %4940 = vmatpush1.msra.mxu0 0.0
      %4941 = vmatprep.subr.mxu0 0.0
      %4942 = vmatpush1.msra.mxu0 0.0
      %4943 = vmatprep.subr.mxu0 0.0
      %4944 = vmatpush1.msra.mxu0 0.0
      %4945 = vmatprep.subr.mxu0 0.0
      %4946 = vmatpush1.msra.mxu0 0.0
      %4947 = vmatprep.subr.mxu0 0.0
      %4948 = vmatpush1.msra.mxu0 0.0
      %4949 = vmatprep.subr.mxu0 0.0
      %4950 = vmatpush1.msra.mxu0 0.0
      %4951 = vmatprep.subr.mxu0 0.0
      %4952 = vmatpush1.msra.mxu0 0.0
      %4953 = vmatprep.subr.mxu0 0.0
      %4954 = vmatpush1.msra.mxu0 0.0
      %4955 = vmatprep.subr.mxu0 0.0
      %4956 = vmatpush1.msra.mxu0 0.0
      %4957 = vmatprep.subr.mxu0 0.0
      %4958 = vmatpush1.msra.mxu0 0.0
      %4959 = vmatprep.subr.mxu0 0.0
      %4960 = vmatpush1.msra.mxu0 0.0
      %4961 = vmatprep.subr.mxu0 0.0
      %4962 = vmatpush1.msra.mxu0 0.0
      %4963 = vmatprep.mubr.f32.mxu0 0.0
      %4964 = vmatmul.mubr.f32.gmra.mrb[0].mxu0 %v4894
      %v4965 = vpop.f32.mrb[0].mxu0
      %v4966 = vadd.f32 0.0, %v4965
      %v4967 = vpop.f32.mrb[0].mxu0
      %4968 = vmatprep.mubr.f32.mxu0 0.0
      %4969 = vmatmul.mubr.f32.gmra.mrb[0].mxu0 %v4897
      %v4970 = vpop.f32.mrb[0].mxu0
      %v4971 = vadd.f32 0.0, %v4970
      %v4972 = vpop.f32.mrb[0].mxu0
      %4973 = vdwg.mxu0
      %v4974 = vadd.f32 %v4874, %v4966
      %v4975 = vadd.f32 %v4879, %v4971
      %v4976 = vld [vmem:[%s10] sm:$0x1]
      %v4978 = vlaneseq
      %v4979 = vshrl.u32 %v4978, 7
      %v4980 = vsub.s32 0, %v4979
      %v4981 = vrot.slane %v4976, %v4980
      %v4983 = vmul.f32 %v4974, %v4981
      %v4984 = vmul.f32 %v4975, %v4981
      %v4985 = vld [vmem:[%s11] sm:$0x1]
      %v4987 = vlaneseq
      %v4988 = vshrl.u32 %v4987, 7
      %v4989 = vsub.s32 0, %v4988
      %v4990 = vrot.slane %v4985, %v4989
      %v4992 = vadd.f32 %v4983, %v4990
      %v4993 = vadd.f32 %v4984, %v4990
      %v4994 = vmax.f32 %v4992, 0.0
      %v4995 = vmax.f32 %v4993, 0.0
      %v4996 = vld [vmem:[%s12] sm:$0xff]
      %vm4997 = vcmask 130048
      %v4999 = vsel %vm4997, %v4996, 0
      %5001 = vmatprep.subr.mxu0 0.0
      %5002 = vmatpush1.msra.mxu0 %v4994
      %5003 = vmatprep.subr.mxu0 0.0
      %5004 = vmatpush1.msra.mxu0 %v4995
      %5005 = vmatprep.subr.mxu0 0.0
      %5006 = vmatpush1.msra.mxu0 0.0
      %5007 = vmatprep.subr.mxu0 0.0
      %5008 = vmatpush1.msra.mxu0 0.0
      %5009 = vmatprep.subr.mxu0 0.0
      %5010 = vmatpush1.msra.mxu0 0.0
      %5011 = vmatprep.subr.mxu0 0.0
      %5012 = vmatpush1.msra.mxu0 0.0
      %5013 = vmatprep.subr.mxu0 0.0
      %5014 = vmatpush1.msra.mxu0 0.0
      %5015 = vmatprep.subr.mxu0 0.0
      %5016 = vmatpush1.msra.mxu0 0.0
      %5017 = vmatprep.subr.mxu0 0.0
      %5018 = vmatpush1.msra.mxu0 0.0
      %5019 = vmatprep.subr.mxu0 0.0
      %5020 = vmatpush1.msra.mxu0 0.0
      %5021 = vmatprep.subr.mxu0 0.0
      %5022 = vmatpush1.msra.mxu0 0.0
      %5023 = vmatprep.subr.mxu0 0.0
      %5024 = vmatpush1.msra.mxu0 0.0
      %5025 = vmatprep.subr.mxu0 0.0
      %5026 = vmatpush1.msra.mxu0 0.0
      %5027 = vmatprep.subr.mxu0 0.0
      %5028 = vmatpush1.msra.mxu0 0.0
      %5029 = vmatprep.subr.mxu0 0.0
      %5030 = vmatpush1.msra.mxu0 0.0
      %5031 = vmatprep.subr.mxu0 0.0
      %5032 = vmatpush1.msra.mxu0 0.0
      %5033 = vmatprep.subr.mxu0 0.0
      %5034 = vmatpush1.msra.mxu0 0.0
      %5035 = vmatprep.subr.mxu0 0.0
      %5036 = vmatpush1.msra.mxu0 0.0
      %5037 = vmatprep.subr.mxu0 0.0
      %5038 = vmatpush1.msra.mxu0 0.0
      %5039 = vmatprep.subr.mxu0 0.0
      %5040 = vmatpush1.msra.mxu0 0.0
      %5041 = vmatprep.subr.mxu0 0.0
      %5042 = vmatpush1.msra.mxu0 0.0
      %5043 = vmatprep.subr.mxu0 0.0
      %5044 = vmatpush1.msra.mxu0 0.0
      %5045 = vmatprep.subr.mxu0 0.0
      %5046 = vmatpush1.msra.mxu0 0.0
      %5047 = vmatprep.subr.mxu0 0.0
      %5048 = vmatpush1.msra.mxu0 0.0
      %5049 = vmatprep.subr.mxu0 0.0
      %5050 = vmatpush1.msra.mxu0 0.0
      %5051 = vmatprep.subr.mxu0 0.0
      %5052 = vmatpush1.msra.mxu0 0.0
      %5053 = vmatprep.subr.mxu0 0.0
      %5054 = vmatpush1.msra.mxu0 0.0
      %5055 = vmatprep.subr.mxu0 0.0
      %5056 = vmatpush1.msra.mxu0 0.0
      %5057 = vmatprep.subr.mxu0 0.0
      %5058 = vmatpush1.msra.mxu0 0.0
      %5059 = vmatprep.subr.mxu0 0.0
      %5060 = vmatpush1.msra.mxu0 0.0
      %5061 = vmatprep.subr.mxu0 0.0
      %5062 = vmatpush1.msra.mxu0 0.0
      %5063 = vmatprep.subr.mxu0 0.0
      %5064 = vmatpush1.msra.mxu0 0.0
      %5065 = vmatprep.mubr.f32.mxu0 0.0
      %5066 = vmatmul.mubr.f32.gmra.mrb[0].mxu0 %v4999
      %v5067 = vpop.f32.mrb[0].mxu0
      %v5068 = vadd.f32 0.0, %v5067
      %v5069 = vpop.f32.mrb[0].mxu0
      %5070 = vdwg.mxu0
      %v5071 = vld [vmem:[%s13] sm:$0xff]
      %v5072 = vld [vmem:[%s13 + $0x8] sm:$0xff]
      %v5073 = vld [vmem:[%s13 + $0x10] sm:$0xff]
      %v5074 = vld [vmem:[%s13 + $0x18] sm:$0xff]
      %v5075 = vld [vmem:[%s13 + $0x20] sm:$0xff]
      %v5076 = vld [vmem:[%s13 + $0x28] sm:$0xff]
      %v5077 = vld [vmem:[%s13 + $0x30] sm:$0xff]
      %v5078 = vld [vmem:[%s13 + $0x38] sm:$0xff]
      %v5079 = vld [vmem:[%s13 + $0x40] sm:$0xff]
      %v5080 = vld [vmem:[%s13 + $0x48] sm:$0xff]
      %v5081 = vld [vmem:[%s13 + $0x50] sm:$0xff]
      %v5082 = vld [vmem:[%s13 + $0x58] sm:$0xff]
      %v5083 = vld [vmem:[%s13 + $0x60] sm:$0xff]
      %v5084 = vld [vmem:[%s13 + $0x68] sm:$0xff]
      %v5085 = vld [vmem:[%s13 + $0x70] sm:$0xff]
      %v5086 = vld [vmem:[%s13 + $0x78] sm:$0xff]
      %v5087 = vld [vmem:[%s13 + $0x80] sm:$0xff]
      %v5088 = vld [vmem:[%s13 + $0x88] sm:$0xff]
      %v5089 = vld [vmem:[%s13 + $0x90] sm:$0xff]
      %v5090 = vld [vmem:[%s13 + $0x98] sm:$0xff]
      %v5091 = vld [vmem:[%s13 + $0xa0] sm:$0xff]
      %v5092 = vld [vmem:[%s13 + $0xa8] sm:$0xff]
      %v5093 = vld [vmem:[%s13 + $0xb0] sm:$0xff]
      %v5094 = vld [vmem:[%s13 + $0xb8] sm:$0xff]
      %v5095 = vld [vmem:[%s13 + $0xc0] sm:$0xff]
      %v5096 = vld [vmem:[%s13 + $0xc8] sm:$0xff]
      %v5097 = vld [vmem:[%s13 + $0xd0] sm:$0xff]
      %v5098 = vld [vmem:[%s13 + $0xd8] sm:$0xff]
      %v5099 = vld [vmem:[%s13 + $0xe0] sm:$0xff]
      %v5100 = vld [vmem:[%s13 + $0xe8] sm:$0xff]
      %v5101 = vld [vmem:[%s13 + $0xf0] sm:$0xff]
      %v5102 = vld [vmem:[%s13 + $0xf8] sm:$0xff]
      %v5103 = vld [vmem:[%s13 + $0x100] sm:$0xff]
      %v5104 = vld [vmem:[%s13 + $0x108] sm:$0xff]
      %v5105 = vld [vmem:[%s13 + $0x110] sm:$0xff]
      %v5106 = vld [vmem:[%s13 + $0x118] sm:$0xff]
      %v5107 = vld [vmem:[%s13 + $0x120] sm:$0xff]
      %v5108 = vld [vmem:[%s13 + $0x128] sm:$0xff]
      %v5109 = vld [vmem:[%s13 + $0x130] sm:$0xff]
      %v5110 = vld [vmem:[%s13 + $0x138] sm:$0xff]
      %v5111 = vld [vmem:[%s13 + $0x140] sm:$0xff]
      %v5112 = vld [vmem:[%s13 + $0x148] sm:$0xff]
      %v5113 = vld [vmem:[%s13 + $0x150] sm:$0xff]
      %v5114 = vld [vmem:[%s13 + $0x158] sm:$0xff]
      %v5115 = vld [vmem:[%s13 + $0x160] sm:$0xff]
      %v5116 = vld [vmem:[%s13 + $0x168] sm:$0xff]
      %v5117 = vld [vmem:[%s13 + $0x170] sm:$0xff]
      %v5118 = vld [vmem:[%s13 + $0x178] sm:$0xff]
      %v5119 = vld [vmem:[%s13 + $0x180] sm:$0xff]
      %v5120 = vld [vmem:[%s13 + $0x188] sm:$0xff]
      %v5121 = vld [vmem:[%s13 + $0x190] sm:$0xff]
      %v5122 = vld [vmem:[%s13 + $0x198] sm:$0xff]
      %v5123 = vld [vmem:[%s13 + $0x1a0] sm:$0xff]
      %v5124 = vld [vmem:[%s13 + $0x1a8] sm:$0xff]
      %v5125 = vld [vmem:[%s13 + $0x1b0] sm:$0xff]
      %v5126 = vld [vmem:[%s13 + $0x1b8] sm:$0xff]
      %v5127 = vld [vmem:[%s13 + $0x1c0] sm:$0xff]
      %v5128 = vld [vmem:[%s13 + $0x1c8] sm:$0xff]
      %v5129 = vld [vmem:[%s13 + $0x1d0] sm:$0xff]
      %v5130 = vld [vmem:[%s13 + $0x1d8] sm:$0xff]
      %v5131 = vld [vmem:[%s13 + $0x1e0] sm:$0xff]
      %v5132 = vld [vmem:[%s13 + $0x1e8] sm:$0xff]
      %v5133 = vld [vmem:[%s13 + $0x1f0] sm:$0xff]
      %v5134 = vld [vmem:[%s13 + $0x1f8] sm:$0xff]
      %v5135 = vld [vmem:[%s13 + $0x200] sm:$0xff]
      %v5136 = vld [vmem:[%s13 + $0x208] sm:$0xff]
      %v5137 = vld [vmem:[%s13 + $0x210] sm:$0xff]
      %v5138 = vld [vmem:[%s13 + $0x218] sm:$0xff]
      %v5139 = vld [vmem:[%s13 + $0x220] sm:$0xff]
      %v5140 = vld [vmem:[%s13 + $0x228] sm:$0xff]
      %v5141 = vld [vmem:[%s13 + $0x230] sm:$0xff]
      %v5142 = vld [vmem:[%s13 + $0x238] sm:$0xff]
      %v5143 = vld [vmem:[%s13 + $0x240] sm:$0xff]
      %v5144 = vld [vmem:[%s13 + $0x248] sm:$0xff]
      %v5145 = vld [vmem:[%s13 + $0x250] sm:$0xff]
      %v5146 = vld [vmem:[%s13 + $0x258] sm:$0xff]
      %v5147 = vld [vmem:[%s13 + $0x260] sm:$0xff]
      %v5148 = vld [vmem:[%s13 + $0x268] sm:$0xff]
      %v5149 = vld [vmem:[%s13 + $0x270] sm:$0xff]
      %v5150 = vld [vmem:[%s13 + $0x278] sm:$0xff]
      %v5151 = vld [vmem:[%s13 + $0x280] sm:$0xff]
      %v5152 = vld [vmem:[%s13 + $0x288] sm:$0xff]
      %v5153 = vld [vmem:[%s13 + $0x290] sm:$0xff]
      %v5154 = vld [vmem:[%s13 + $0x298] sm:$0xff]
      %v5155 = vld [vmem:[%s13 + $0x2a0] sm:$0xff]
      %v5156 = vld [vmem:[%s13 + $0x2a8] sm:$0xff]
      %v5157 = vld [vmem:[%s13 + $0x2b0] sm:$0xff]
      %v5158 = vld [vmem:[%s13 + $0x2b8] sm:$0xff]
      %v5159 = vld [vmem:[%s13 + $0x2c0] sm:$0xff]
      %v5160 = vld [vmem:[%s13 + $0x2c8] sm:$0xff]
      %v5161 = vld [vmem:[%s13 + $0x2d0] sm:$0xff]
      %v5162 = vld [vmem:[%s13 + $0x2d8] sm:$0xff]
      %v5163 = vld [vmem:[%s13 + $0x2e0] sm:$0xff]
      %v5164 = vld [vmem:[%s13 + $0x2e8] sm:$0xff]
      %v5165 = vld [vmem:[%s13 + $0x2f0] sm:$0xff]
      %v5166 = vld [vmem:[%s13 + $0x2f8] sm:$0xff]
      %v5167 = vld [vmem:[%s13 + $0x300] sm:$0xff]
      %v5168 = vld [vmem:[%s13 + $0x308] sm:$0xff]
      %v5169 = vld [vmem:[%s13 + $0x310] sm:$0xff]
      %v5170 = vld [vmem:[%s13 + $0x318] sm:$0xff]
      %v5171 = vld [vmem:[%s13 + $0x320] sm:$0xff]
      %v5172 = vld [vmem:[%s13 + $0x328] sm:$0xff]
      %v5173 = vld [vmem:[%s13 + $0x330] sm:$0xff]
      %v5174 = vld [vmem:[%s13 + $0x338] sm:$0xff]
      %v5175 = vld [vmem:[%s13 + $0x340] sm:$0xff]
      %v5176 = vld [vmem:[%s13 + $0x348] sm:$0xff]
      %v5177 = vld [vmem:[%s13 + $0x350] sm:$0xff]
      %v5178 = vld [vmem:[%s13 + $0x358] sm:$0xff]
      %v5179 = vld [vmem:[%s13 + $0x360] sm:$0xff]
      %v5180 = vld [vmem:[%s13 + $0x368] sm:$0xff]
      %v5181 = vld [vmem:[%s13 + $0x370] sm:$0xff]
      %v5182 = vld [vmem:[%s13 + $0x378] sm:$0xff]
      %v5183 = vld [vmem:[%s13 + $0x380] sm:$0xff]
      %v5184 = vld [vmem:[%s13 + $0x388] sm:$0xff]
      %v5185 = vld [vmem:[%s13 + $0x390] sm:$0xff]
      %v5186 = vld [vmem:[%s13 + $0x398] sm:$0xff]
      %v5187 = vld [vmem:[%s13 + $0x3a0] sm:$0xff]
      %v5188 = vld [vmem:[%s13 + $0x3a8] sm:$0xff]
      %v5189 = vld [vmem:[%s13 + $0x3b0] sm:$0xff]
      %v5190 = vld [vmem:[%s13 + $0x3b8] sm:$0xff]
      %v5191 = vld [vmem:[%s13 + $0x3c0] sm:$0xff]
      %v5192 = vld [vmem:[%s13 + $0x3c8] sm:$0xff]
      %v5193 = vld [vmem:[%s13 + $0x3d0] sm:$0xff]
      %v5194 = vld [vmem:[%s13 + $0x3d8] sm:$0xff]
      %v5195 = vld [vmem:[%s13 + $0x3e0] sm:$0xff]
      %v5196 = vld [vmem:[%s13 + $0x3e8] sm:$0xff]
      %v5197 = vld [vmem:[%s13 + $0x3f0] sm:$0xff]
      %v5198 = vld [vmem:[%s13 + $0x3f8] sm:$0xff]
      %v5199 = vld [vmem:[%s13 + $0x400] sm:$0xff]
      %v5200 = vld [vmem:[%s13 + $0x408] sm:$0xff]
      %v5201 = vld [vmem:[%s13 + $0x410] sm:$0xff]
      %v5202 = vld [vmem:[%s13 + $0x418] sm:$0xff]
      %v5203 = vld [vmem:[%s13 + $0x420] sm:$0xff]
      %v5204 = vld [vmem:[%s13 + $0x428] sm:$0xff]
      %v5205 = vld [vmem:[%s13 + $0x430] sm:$0xff]
      %v5206 = vld [vmem:[%s13 + $0x438] sm:$0xff]
      %v5207 = vld [vmem:[%s13 + $0x440] sm:$0xff]
      %v5208 = vld [vmem:[%s13 + $0x448] sm:$0xff]
      %v5209 = vld [vmem:[%s13 + $0x450] sm:$0xff]
      %v5210 = vld [vmem:[%s13 + $0x458] sm:$0xff]
      %v5211 = vld [vmem:[%s13 + $0x460] sm:$0xff]
      %v5212 = vld [vmem:[%s13 + $0x468] sm:$0xff]
      %v5213 = vld [vmem:[%s13 + $0x470] sm:$0xff]
      %v5214 = vld [vmem:[%s13 + $0x478] sm:$0xff]
      %v5215 = vld [vmem:[%s13 + $0x480] sm:$0xff]
      %v5216 = vld [vmem:[%s13 + $0x488] sm:$0xff]
      %v5217 = vld [vmem:[%s13 + $0x490] sm:$0xff]
      %v5218 = vld [vmem:[%s13 + $0x498] sm:$0xff]
      %v5219 = vld [vmem:[%s13 + $0x4a0] sm:$0xff]
      %v5220 = vld [vmem:[%s13 + $0x4a8] sm:$0xff]
      %v5221 = vld [vmem:[%s13 + $0x4b0] sm:$0xff]
      %v5222 = vld [vmem:[%s13 + $0x4b8] sm:$0xff]
      %v5223 = vld [vmem:[%s13 + $0x4c0] sm:$0xff]
      %v5224 = vld [vmem:[%s13 + $0x4c8] sm:$0xff]
      %v5225 = vld [vmem:[%s13 + $0x4d0] sm:$0xff]
      %v5226 = vld [vmem:[%s13 + $0x4d8] sm:$0xff]
      %v5227 = vld [vmem:[%s13 + $0x4e0] sm:$0xff]
      %v5228 = vld [vmem:[%s13 + $0x4e8] sm:$0xff]
      %v5229 = vld [vmem:[%s13 + $0x4f0] sm:$0xff]
      %v5230 = vld [vmem:[%s13 + $0x4f8] sm:$0xff]
      %v5231 = vld [vmem:[%s13 + $0x500] sm:$0xff]
      %v5232 = vld [vmem:[%s13 + $0x508] sm:$0xff]
      %v5233 = vld [vmem:[%s13 + $0x510] sm:$0xff]
      %v5234 = vld [vmem:[%s13 + $0x518] sm:$0xff]
      %v5235 = vld [vmem:[%s13 + $0x520] sm:$0xff]
      %v5236 = vld [vmem:[%s13 + $0x528] sm:$0xff]
      %v5237 = vld [vmem:[%s13 + $0x530] sm:$0xff]
      %v5238 = vld [vmem:[%s13 + $0x538] sm:$0xff]
      %v5239 = vld [vmem:[%s13 + $0x540] sm:$0xff]
      %v5240 = vld [vmem:[%s13 + $0x548] sm:$0xff]
      %v5241 = vld [vmem:[%s13 + $0x550] sm:$0xff]
      %v5242 = vld [vmem:[%s13 + $0x558] sm:$0xff]
      %v5243 = vld [vmem:[%s13 + $0x560] sm:$0xff]
      %v5244 = vld [vmem:[%s13 + $0x568] sm:$0xff]
      %v5245 = vld [vmem:[%s13 + $0x570] sm:$0xff]
      %v5246 = vld [vmem:[%s13 + $0x578] sm:$0xff]
      %v5247 = vld [vmem:[%s13 + $0x580] sm:$0xff]
      %v5248 = vld [vmem:[%s13 + $0x588] sm:$0xff]
      %v5249 = vld [vmem:[%s13 + $0x590] sm:$0xff]
      %v5250 = vld [vmem:[%s13 + $0x598] sm:$0xff]
      %v5251 = vld [vmem:[%s13 + $0x5a0] sm:$0xff]
      %v5252 = vld [vmem:[%s13 + $0x5a8] sm:$0xff]
      %v5253 = vld [vmem:[%s13 + $0x5b0] sm:$0xff]
      %v5254 = vld [vmem:[%s13 + $0x5b8] sm:$0xff]
      %v5255 = vld [vmem:[%s13 + $0x5c0] sm:$0xff]
      %v5256 = vld [vmem:[%s13 + $0x5c8] sm:$0xff]
      %v5257 = vld [vmem:[%s13 + $0x5d0] sm:$0xff]
      %v5258 = vld [vmem:[%s13 + $0x5d8] sm:$0xff]
      %v5259 = vld [vmem:[%s13 + $0x5e0] sm:$0xff]
      %v5260 = vld [vmem:[%s13 + $0x5e8] sm:$0xff]
      %v5261 = vld [vmem:[%s13 + $0x5f0] sm:$0xff]
      %v5262 = vld [vmem:[%s13 + $0x5f8] sm:$0xff]
      %v5263 = vld [vmem:[%s13 + $0x600] sm:$0xff]
      %v5264 = vld [vmem:[%s13 + $0x608] sm:$0xff]
      %v5265 = vld [vmem:[%s13 + $0x610] sm:$0xff]
      %v5266 = vld [vmem:[%s13 + $0x618] sm:$0xff]
      %v5267 = vld [vmem:[%s13 + $0x620] sm:$0xff]
      %v5268 = vld [vmem:[%s13 + $0x628] sm:$0xff]
      %v5269 = vld [vmem:[%s13 + $0x630] sm:$0xff]
      %v5270 = vld [vmem:[%s13 + $0x638] sm:$0xff]
      %v5271 = vld [vmem:[%s13 + $0x640] sm:$0xff]
      %v5272 = vld [vmem:[%s13 + $0x648] sm:$0xff]
      %v5273 = vld [vmem:[%s13 + $0x650] sm:$0xff]
      %v5274 = vld [vmem:[%s13 + $0x658] sm:$0xff]
      %v5275 = vld [vmem:[%s13 + $0x660] sm:$0xff]
      %v5276 = vld [vmem:[%s13 + $0x668] sm:$0xff]
      %v5277 = vld [vmem:[%s13 + $0x670] sm:$0xff]
      %v5278 = vld [vmem:[%s13 + $0x678] sm:$0xff]
      %v5279 = vld [vmem:[%s13 + $0x680] sm:$0xff]
      %v5280 = vld [vmem:[%s13 + $0x688] sm:$0xff]
      %v5281 = vld [vmem:[%s13 + $0x690] sm:$0xff]
      %v5282 = vld [vmem:[%s13 + $0x698] sm:$0xff]
      %v5283 = vld [vmem:[%s13 + $0x6a0] sm:$0xff]
      %v5284 = vld [vmem:[%s13 + $0x6a8] sm:$0xff]
      %v5285 = vld [vmem:[%s13 + $0x6b0] sm:$0xff]
      %v5286 = vld [vmem:[%s13 + $0x6b8] sm:$0xff]
      %v5287 = vld [vmem:[%s13 + $0x6c0] sm:$0xff]
      %v5288 = vld [vmem:[%s13 + $0x6c8] sm:$0xff]
      %v5289 = vld [vmem:[%s13 + $0x6d0] sm:$0xff]
      %v5290 = vld [vmem:[%s13 + $0x6d8] sm:$0xff]
      %v5291 = vld [vmem:[%s13 + $0x6e0] sm:$0xff]
      %v5292 = vld [vmem:[%s13 + $0x6e8] sm:$0xff]
      %v5293 = vld [vmem:[%s13 + $0x6f0] sm:$0xff]
      %v5294 = vld [vmem:[%s13 + $0x6f8] sm:$0xff]
      %v5295 = vld [vmem:[%s13 + $0x700] sm:$0xff]
      %v5296 = vld [vmem:[%s13 + $0x708] sm:$0xff]
      %v5297 = vld [vmem:[%s13 + $0x710] sm:$0xff]
      %v5298 = vld [vmem:[%s13 + $0x718] sm:$0xff]
      %v5299 = vld [vmem:[%s13 + $0x720] sm:$0xff]
      %v5300 = vld [vmem:[%s13 + $0x728] sm:$0xff]
      %v5301 = vld [vmem:[%s13 + $0x730] sm:$0xff]
      %v5302 = vld [vmem:[%s13 + $0x738] sm:$0xff]
      %v5303 = vld [vmem:[%s13 + $0x740] sm:$0xff]
      %v5304 = vld [vmem:[%s13 + $0x748] sm:$0xff]
      %v5305 = vld [vmem:[%s13 + $0x750] sm:$0xff]
      %v5306 = vld [vmem:[%s13 + $0x758] sm:$0xff]
      %v5307 = vld [vmem:[%s13 + $0x760] sm:$0xff]
      %v5308 = vld [vmem:[%s13 + $0x768] sm:$0xff]
      %v5309 = vld [vmem:[%s13 + $0x770] sm:$0xff]
      %v5310 = vld [vmem:[%s13 + $0x778] sm:$0xff]
      %v5311 = vld [vmem:[%s13 + $0x780] sm:$0xff]
      %v5312 = vld [vmem:[%s13 + $0x788] sm:$0xff]
      %v5313 = vld [vmem:[%s13 + $0x790] sm:$0xff]
      %v5314 = vld [vmem:[%s13 + $0x798] sm:$0xff]
      %v5315 = vld [vmem:[%s13 + $0x7a0] sm:$0xff]
      %v5316 = vld [vmem:[%s13 + $0x7a8] sm:$0xff]
      %v5317 = vld [vmem:[%s13 + $0x7b0] sm:$0xff]
      %v5318 = vld [vmem:[%s13 + $0x7b8] sm:$0xff]
      %v5319 = vld [vmem:[%s13 + $0x7c0] sm:$0xff]
      %v5320 = vld [vmem:[%s13 + $0x7c8] sm:$0xff]
      %v5321 = vld [vmem:[%s13 + $0x7d0] sm:$0xff]
      %v5322 = vld [vmem:[%s13 + $0x7d8] sm:$0xff]
      %v5323 = vld [vmem:[%s13 + $0x7e0] sm:$0xff]
      %v5324 = vld [vmem:[%s13 + $0x7e8] sm:$0xff]
      %v5325 = vld [vmem:[%s13 + $0x7f0] sm:$0xff]
      %v5326 = vld [vmem:[%s13 + $0x7f8] sm:$0xff]
      %5327 = vmatprep.subr.mxu0 %v5072
      %5328 = vmatpush1.msra.mxu0 %v5071
      %5329 = vmatprep.subr.mxu0 %v5088
      %5330 = vmatpush1.msra.mxu0 %v5087
      %5331 = vmatprep.subr.mxu0 %v5104
      %5332 = vmatpush1.msra.mxu0 %v5103
      %5333 = vmatprep.subr.mxu0 %v5120
      %5334 = vmatpush1.msra.mxu0 %v5119
      %5335 = vmatprep.subr.mxu0 %v5136
      %5336 = vmatpush1.msra.mxu0 %v5135
      %5337 = vmatprep.subr.mxu0 %v5152
      %5338 = vmatpush1.msra.mxu0 %v5151
      %5339 = vmatprep.subr.mxu0 %v5168
      %5340 = vmatpush1.msra.mxu0 %v5167
      %5341 = vmatprep.subr.mxu0 %v5184
      %5342 = vmatpush1.msra.mxu0 %v5183
      %5343 = vmatprep.subr.mxu0 %v5200
      %5344 = vmatpush1.msra.mxu0 %v5199
      %5345 = vmatprep.subr.mxu0 %v5216
      %5346 = vmatpush1.msra.mxu0 %v5215
      %5347 = vmatprep.subr.mxu0 %v5232
      %5348 = vmatpush1.msra.mxu0 %v5231
      %5349 = vmatprep.subr.mxu0 %v5248
      %5350 = vmatpush1.msra.mxu0 %v5247
      %5351 = vmatprep.subr.mxu0 %v5264
      %5352 = vmatpush1.msra.mxu0 %v5263
      %5353 = vmatprep.subr.mxu0 %v5280
      %5354 = vmatpush1.msra.mxu0 %v5279
      %5355 = vmatprep.subr.mxu0 %v5296
      %5356 = vmatpush1.msra.mxu0 %v5295
      %5357 = vmatprep.subr.mxu0 %v5312
      %5358 = vmatpush1.msra.mxu0 %v5311
      %5359 = vmatprep.subr.mxu0 0.0
      %5360 = vmatpush1.msra.mxu0 0.0
      %5361 = vmatprep.subr.mxu0 0.0
      %5362 = vmatpush1.msra.mxu0 0.0
      %5363 = vmatprep.subr.mxu0 0.0
      %5364 = vmatpush1.msra.mxu0 0.0
      %5365 = vmatprep.subr.mxu0 0.0
      %5366 = vmatpush1.msra.mxu0 0.0
      %5367 = vmatprep.subr.mxu0 0.0
      %5368 = vmatpush1.msra.mxu0 0.0
      %5369 = vmatprep.subr.mxu0 0.0
      %5370 = vmatpush1.msra.mxu0 0.0
      %5371 = vmatprep.subr.mxu0 0.0
      %5372 = vmatpush1.msra.mxu0 0.0
      %5373 = vmatprep.subr.mxu0 0.0
      %5374 = vmatpush1.msra.mxu0 0.0
      %5375 = vmatprep.subr.mxu0 0.0
      %5376 = vmatpush1.msra.mxu0 0.0
      %5377 = vmatprep.subr.mxu0 0.0
      %5378 = vmatpush1.msra.mxu0 0.0
      %5379 = vmatprep.subr.mxu0 0.0
      %5380 = vmatpush1.msra.mxu0 0.0
      %5381 = vmatprep.subr.mxu0 0.0
      %5382 = vmatpush1.msra.mxu0 0.0
      %5383 = vmatprep.subr.mxu0 0.0
      %5384 = vmatpush1.msra.mxu0 0.0
      %5385 = vmatprep.subr.mxu0 0.0
      %5386 = vmatpush1.msra.mxu0 0.0
      %5387 = vmatprep.subr.mxu0 0.0
      %5388 = vmatpush1.msra.mxu0 0.0
      %5389 = vmatprep.subr.mxu0 0.0
      %5390 = vmatpush1.msra.mxu0 0.0
      %5391 = vmatprep.mubr.f32.mxu0 0.0
      %5392 = vmatmul.mubr.f32.gmra.mrb[0].mxu0 %v5068
      %v5393 = vpop.f32.mrb[0].mxu0
      %v5394 = vadd.f32 0.0, %v5393
      %v5395 = vpop.f32.mrb[0].mxu0
      %v5396 = vadd.f32 0.0, %v5395
      %5397 = vdwg.mxu0
      %5398 = vmatprep.subr.mxu0 %v5074
      %5399 = vmatpush1.msra.mxu0 %v5073
      %5400 = vmatprep.subr.mxu0 %v5090
      %5401 = vmatpush1.msra.mxu0 %v5089
      %5402 = vmatprep.subr.mxu0 %v5106
      %5403 = vmatpush1.msra.mxu0 %v5105
      %5404 = vmatprep.subr.mxu0 %v5122
      %5405 = vmatpush1.msra.mxu0 %v5121
      %5406 = vmatprep.subr.mxu0 %v5138
      %5407 = vmatpush1.msra.mxu0 %v5137
      %5408 = vmatprep.subr.mxu0 %v5154
      %5409 = vmatpush1.msra.mxu0 %v5153
      %5410 = vmatprep.subr.mxu0 %v5170
      %5411 = vmatpush1.msra.mxu0 %v5169
      %5412 = vmatprep.subr.mxu0 %v5186
      %5413 = vmatpush1.msra.mxu0 %v5185
      %5414 = vmatprep.subr.mxu0 %v5202
      %5415 = vmatpush1.msra.mxu0 %v5201
      %5416 = vmatprep.subr.mxu0 %v5218
      %5417 = vmatpush1.msra.mxu0 %v5217
      %5418 = vmatprep.subr.mxu0 %v5234
      %5419 = vmatpush1.msra.mxu0 %v5233
      %5420 = vmatprep.subr.mxu0 %v5250
      %5421 = vmatpush1.msra.mxu0 %v5249
      %5422 = vmatprep.subr.mxu0 %v5266
      %5423 = vmatpush1.msra.mxu0 %v5265
      %5424 = vmatprep.subr.mxu0 %v5282
      %5425 = vmatpush1.msra.mxu0 %v5281
      %5426 = vmatprep.subr.mxu0 %v5298
      %5427 = vmatpush1.msra.mxu0 %v5297
      %5428 = vmatprep.subr.mxu0 %v5314
      %5429 = vmatpush1.msra.mxu0 %v5313
      %5430 = vmatprep.subr.mxu0 0.0
      %5431 = vmatpush1.msra.mxu0 0.0
      %5432 = vmatprep.subr.mxu0 0.0
      %5433 = vmatpush1.msra.mxu0 0.0
      %5434 = vmatprep.subr.mxu0 0.0
      %5435 = vmatpush1.msra.mxu0 0.0
      %5436 = vmatprep.subr.mxu0 0.0
      %5437 = vmatpush1.msra.mxu0 0.0
      %5438 = vmatprep.subr.mxu0 0.0
      %5439 = vmatpush1.msra.mxu0 0.0
      %5440 = vmatprep.subr.mxu0 0.0
      %5441 = vmatpush1.msra.mxu0 0.0
      %5442 = vmatprep.subr.mxu0 0.0
      %5443 = vmatpush1.msra.mxu0 0.0
      %5444 = vmatprep.subr.mxu0 0.0
      %5445 = vmatpush1.msra.mxu0 0.0
      %5446 = vmatprep.subr.mxu0 0.0
      %5447 = vmatpush1.msra.mxu0 0.0
      %5448 = vmatprep.subr.mxu0 0.0
      %5449 = vmatpush1.msra.mxu0 0.0
      %5450 = vmatprep.subr.mxu0 0.0
      %5451 = vmatpush1.msra.mxu0 0.0
      %5452 = vmatprep.subr.mxu0 0.0
      %5453 = vmatpush1.msra.mxu0 0.0
      %5454 = vmatprep.subr.mxu0 0.0
      %5455 = vmatpush1.msra.mxu0 0.0
      %5456 = vmatprep.subr.mxu0 0.0
      %5457 = vmatpush1.msra.mxu0 0.0
      %5458 = vmatprep.subr.mxu0 0.0
      %5459 = vmatpush1.msra.mxu0 0.0
      %5460 = vmatprep.subr.mxu0 0.0
      %5461 = vmatpush1.msra.mxu0 0.0
      %5462 = vmatprep.mubr.f32.mxu0 0.0
      %5463 = vmatmul.mubr.f32.gmra.mrb[0].mxu0 %v5068
      %v5464 = vpop.f32.mrb[0].mxu0
      %v5465 = vadd.f32 0.0, %v5464
      %v5466 = vpop.f32.mrb[0].mxu0
      %v5467 = vadd.f32 0.0, %v5466
      %5468 = vdwg.mxu0
      %5469 = vmatprep.subr.mxu0 %v5076
      %5470 = vmatpush1.msra.mxu0 %v5075
      %5471 = vmatprep.subr.mxu0 %v5092
      %5472 = vmatpush1.msra.mxu0 %v5091
      %5473 = vmatprep.subr.mxu0 %v5108
      %5474 = vmatpush1.msra.mxu0 %v5107
      %5475 = vmatprep.subr.mxu0 %v5124
      %5476 = vmatpush1.msra.mxu0 %v5123
      %5477 = vmatprep.subr.mxu0 %v5140
      %5478 = vmatpush1.msra.mxu0 %v5139
      %5479 = vmatprep.subr.mxu0 %v5156
      %5480 = vmatpush1.msra.mxu0 %v5155
      %5481 = vmatprep.subr.mxu0 %v5172
      %5482 = vmatpush1.msra.mxu0 %v5171
      %5483 = vmatprep.subr.mxu0 %v5188
      %5484 = vmatpush1.msra.mxu0 %v5187
      %5485 = vmatprep.subr.mxu0 %v5204
      %5486 = vmatpush1.msra.mxu0 %v5203
      %5487 = vmatprep.subr.mxu0 %v5220
      %5488 = vmatpush1.msra.mxu0 %v5219
      %5489 = vmatprep.subr.mxu0 %v5236
      %5490 = vmatpush1.msra.mxu0 %v5235
      %5491 = vmatprep.subr.mxu0 %v5252
      %5492 = vmatpush1.msra.mxu0 %v5251
      %5493 = vmatprep.subr.mxu0 %v5268
      %5494 = vmatpush1.msra.mxu0 %v5267
      %5495 = vmatprep.subr.mxu0 %v5284
      %5496 = vmatpush1.msra.mxu0 %v5283
      %5497 = vmatprep.subr.mxu0 %v5300
      %5498 = vmatpush1.msra.mxu0 %v5299
      %5499 = vmatprep.subr.mxu0 %v5316
      %5500 = vmatpush1.msra.mxu0 %v5315
      %5501 = vmatprep.subr.mxu0 0.0
      %5502 = vmatpush1.msra.mxu0 0.0
      %5503 = vmatprep.subr.mxu0 0.0
      %5504 = vmatpush1.msra.mxu0 0.0
      %5505 = vmatprep.subr.mxu0 0.0
      %5506 = vmatpush1.msra.mxu0 0.0
      %5507 = vmatprep.subr.mxu0 0.0
      %5508 = vmatpush1.msra.mxu0 0.0
      %5509 = vmatprep.subr.mxu0 0.0
      %5510 = vmatpush1.msra.mxu0 0.0
      %5511 = vmatprep.subr.mxu0 0.0
      %5512 = vmatpush1.msra.mxu0 0.0
      %5513 = vmatprep.subr.mxu0 0.0
      %5514 = vmatpush1.msra.mxu0 0.0
      %5515 = vmatprep.subr.mxu0 0.0
      %5516 = vmatpush1.msra.mxu0 0.0
      %5517 = vmatprep.subr.mxu0 0.0
      %5518 = vmatpush1.msra.mxu0 0.0
      %5519 = vmatprep.subr.mxu0 0.0
      %5520 = vmatpush1.msra.mxu0 0.0
      %5521 = vmatprep.subr.mxu0 0.0
      %5522 = vmatpush1.msra.mxu0 0.0
      %5523 = vmatprep.subr.mxu0 0.0
      %5524 = vmatpush1.msra.mxu0 0.0
      %5525 = vmatprep.subr.mxu0 0.0
      %5526 = vmatpush1.msra.mxu0 0.0
      %5527 = vmatprep.subr.mxu0 0.0
      %5528 = vmatpush1.msra.mxu0 0.0
      %5529 = vmatprep.subr.mxu0 0.0
      %5530 = vmatpush1.msra.mxu0 0.0
      %5531 = vmatprep.subr.mxu0 0.0
      %5532 = vmatpush1.msra.mxu0 0.0
      %5533 = vmatprep.mubr.f32.mxu0 0.0
      %5534 = vmatmul.mubr.f32.gmra.mrb[0].mxu0 %v5068
      %v5535 = vpop.f32.mrb[0].mxu0
      %v5536 = vadd.f32 0.0, %v5535
      %v5537 = vpop.f32.mrb[0].mxu0
      %v5538 = vadd.f32 0.0, %v5537
      %5539 = vdwg.mxu0
      %5540 = vmatprep.subr.mxu0 %v5078
      %5541 = vmatpush1.msra.mxu0 %v5077
      %5542 = vmatprep.subr.mxu0 %v5094
      %5543 = vmatpush1.msra.mxu0 %v5093
      %5544 = vmatprep.subr.mxu0 %v5110
      %5545 = vmatpush1.msra.mxu0 %v5109
      %5546 = vmatprep.subr.mxu0 %v5126
      %5547 = vmatpush1.msra.mxu0 %v5125
      %5548 = vmatprep.subr.mxu0 %v5142
      %5549 = vmatpush1.msra.mxu0 %v5141
      %5550 = vmatprep.subr.mxu0 %v5158
      %5551 = vmatpush1.msra.mxu0 %v5157
      %5552 = vmatprep.subr.mxu0 %v5174
      %5553 = vmatpush1.msra.mxu0 %v5173
      %5554 = vmatprep.subr.mxu0 %v5190
      %5555 = vmatpush1.msra.mxu0 %v5189
      %5556 = vmatprep.subr.mxu0 %v5206
      %5557 = vmatpush1.msra.mxu0 %v5205
      %5558 = vmatprep.subr.mxu0 %v5222
      %5559 = vmatpush1.msra.mxu0 %v5221
      %5560 = vmatprep.subr.mxu0 %v5238
      %5561 = vmatpush1.msra.mxu0 %v5237
      %5562 = vmatprep.subr.mxu0 %v5254
      %5563 = vmatpush1.msra.mxu0 %v5253
      %5564 = vmatprep.subr.mxu0 %v5270
      %5565 = vmatpush1.msra.mxu0 %v5269
      %5566 = vmatprep.subr.mxu0 %v5286
      %5567 = vmatpush1.msra.mxu0 %v5285
      %5568 = vmatprep.subr.mxu0 %v5302
      %5569 = vmatpush1.msra.mxu0 %v5301
      %5570 = vmatprep.subr.mxu0 %v5318
      %5571 = vmatpush1.msra.mxu0 %v5317
      %5572 = vmatprep.subr.mxu0 0.0
      %5573 = vmatpush1.msra.mxu0 0.0
      %5574 = vmatprep.subr.mxu0 0.0
      %5575 = vmatpush1.msra.mxu0 0.0
      %5576 = vmatprep.subr.mxu0 0.0
      %5577 = vmatpush1.msra.mxu0 0.0
      %5578 = vmatprep.subr.mxu0 0.0
      %5579 = vmatpush1.msra.mxu0 0.0
      %5580 = vmatprep.subr.mxu0 0.0
      %5581 = vmatpush1.msra.mxu0 0.0
      %5582 = vmatprep.subr.mxu0 0.0
      %5583 = vmatpush1.msra.mxu0 0.0
      %5584 = vmatprep.subr.mxu0 0.0
      %5585 = vmatpush1.msra.mxu0 0.0
      %5586 = vmatprep.subr.mxu0 0.0
      %5587 = vmatpush1.msra.mxu0 0.0
      %5588 = vmatprep.subr.mxu0 0.0
      %5589 = vmatpush1.msra.mxu0 0.0
      %5590 = vmatprep.subr.mxu0 0.0
      %5591 = vmatpush1.msra.mxu0 0.0
      %5592 = vmatprep.subr.mxu0 0.0
      %5593 = vmatpush1.msra.mxu0 0.0
      %5594 = vmatprep.subr.mxu0 0.0
      %5595 = vmatpush1.msra.mxu0 0.0
      %5596 = vmatprep.subr.mxu0 0.0
      %5597 = vmatpush1.msra.mxu0 0.0
      %5598 = vmatprep.subr.mxu0 0.0
      %5599 = vmatpush1.msra.mxu0 0.0
      %5600 = vmatprep.subr.mxu0 0.0
      %5601 = vmatpush1.msra.mxu0 0.0
      %5602 = vmatprep.subr.mxu0 0.0
      %5603 = vmatpush1.msra.mxu0 0.0
      %5604 = vmatprep.mubr.f32.mxu0 0.0
      %5605 = vmatmul.mubr.f32.gmra.mrb[0].mxu0 %v5068
      %v5606 = vpop.f32.mrb[0].mxu0
      %v5607 = vadd.f32 0.0, %v5606
      %v5608 = vpop.f32.mrb[0].mxu0
      %v5609 = vadd.f32 0.0, %v5608
      %5610 = vdwg.mxu0
      %5611 = vmatprep.subr.mxu0 %v5080
      %5612 = vmatpush1.msra.mxu0 %v5079
      %5613 = vmatprep.subr.mxu0 %v5096
      %5614 = vmatpush1.msra.mxu0 %v5095
      %5615 = vmatprep.subr.mxu0 %v5112
      %5616 = vmatpush1.msra.mxu0 %v5111
      %5617 = vmatprep.subr.mxu0 %v5128
      %5618 = vmatpush1.msra.mxu0 %v5127
      %5619 = vmatprep.subr.mxu0 %v5144
      %5620 = vmatpush1.msra.mxu0 %v5143
      %5621 = vmatprep.subr.mxu0 %v5160
      %5622 = vmatpush1.msra.mxu0 %v5159
      %5623 = vmatprep.subr.mxu0 %v5176
      %5624 = vmatpush1.msra.mxu0 %v5175
      %5625 = vmatprep.subr.mxu0 %v5192
      %5626 = vmatpush1.msra.mxu0 %v5191
      %5627 = vmatprep.subr.mxu0 %v5208
      %5628 = vmatpush1.msra.mxu0 %v5207
      %5629 = vmatprep.subr.mxu0 %v5224
      %5630 = vmatpush1.msra.mxu0 %v5223
      %5631 = vmatprep.subr.mxu0 %v5240
      %5632 = vmatpush1.msra.mxu0 %v5239
      %5633 = vmatprep.subr.mxu0 %v5256
      %5634 = vmatpush1.msra.mxu0 %v5255
      %5635 = vmatprep.subr.mxu0 %v5272
      %5636 = vmatpush1.msra.mxu0 %v5271
      %5637 = vmatprep.subr.mxu0 %v5288
      %5638 = vmatpush1.msra.mxu0 %v5287
      %5639 = vmatprep.subr.mxu0 %v5304
      %5640 = vmatpush1.msra.mxu0 %v5303
      %5641 = vmatprep.subr.mxu0 %v5320
      %5642 = vmatpush1.msra.mxu0 %v5319
      %5643 = vmatprep.subr.mxu0 0.0
      %5644 = vmatpush1.msra.mxu0 0.0
      %5645 = vmatprep.subr.mxu0 0.0
      %5646 = vmatpush1.msra.mxu0 0.0
      %5647 = vmatprep.subr.mxu0 0.0
      %5648 = vmatpush1.msra.mxu0 0.0
      %5649 = vmatprep.subr.mxu0 0.0
      %5650 = vmatpush1.msra.mxu0 0.0
      %5651 = vmatprep.subr.mxu0 0.0
      %5652 = vmatpush1.msra.mxu0 0.0
      %5653 = vmatprep.subr.mxu0 0.0
      %5654 = vmatpush1.msra.mxu0 0.0
      %5655 = vmatprep.subr.mxu0 0.0
      %5656 = vmatpush1.msra.mxu0 0.0
      %5657 = vmatprep.subr.mxu0 0.0
      %5658 = vmatpush1.msra.mxu0 0.0
      %5659 = vmatprep.subr.mxu0 0.0
      %5660 = vmatpush1.msra.mxu0 0.0
      %5661 = vmatprep.subr.mxu0 0.0
      %5662 = vmatpush1.msra.mxu0 0.0
      %5663 = vmatprep.subr.mxu0 0.0
      %5664 = vmatpush1.msra.mxu0 0.0
      %5665 = vmatprep.subr.mxu0 0.0
      %5666 = vmatpush1.msra.mxu0 0.0
      %5667 = vmatprep.subr.mxu0 0.0
      %5668 = vmatpush1.msra.mxu0 0.0
      %5669 = vmatprep.subr.mxu0 0.0
      %5670 = vmatpush1.msra.mxu0 0.0
      %5671 = vmatprep.subr.mxu0 0.0
      %5672 = vmatpush1.msra.mxu0 0.0
      %5673 = vmatprep.subr.mxu0 0.0
      %5674 = vmatpush1.msra.mxu0 0.0
      %5675 = vmatprep.mubr.f32.mxu0 0.0
      %5676 = vmatmul.mubr.f32.gmra.mrb[0].mxu0 %v5068
      %v5677 = vpop.f32.mrb[0].mxu0
      %v5678 = vadd.f32 0.0, %v5677
      %v5679 = vpop.f32.mrb[0].mxu0
      %v5680 = vadd.f32 0.0, %v5679
      %5681 = vdwg.mxu0
      %5682 = vmatprep.subr.mxu0 %v5082
      %5683 = vmatpush1.msra.mxu0 %v5081
      %5684 = vmatprep.subr.mxu0 %v5098
      %5685 = vmatpush1.msra.mxu0 %v5097
      %5686 = vmatprep.subr.mxu0 %v5114
      %5687 = vmatpush1.msra.mxu0 %v5113
      %5688 = vmatprep.subr.mxu0 %v5130
      %5689 = vmatpush1.msra.mxu0 %v5129
      %5690 = vmatprep.subr.mxu0 %v5146
      %5691 = vmatpush1.msra.mxu0 %v5145
      %5692 = vmatprep.subr.mxu0 %v5162
      %5693 = vmatpush1.msra.mxu0 %v5161
      %5694 = vmatprep.subr.mxu0 %v5178
      %5695 = vmatpush1.msra.mxu0 %v5177
      %5696 = vmatprep.subr.mxu0 %v5194
      %5697 = vmatpush1.msra.mxu0 %v5193
      %5698 = vmatprep.subr.mxu0 %v5210
      %5699 = vmatpush1.msra.mxu0 %v5209
      %5700 = vmatprep.subr.mxu0 %v5226
      %5701 = vmatpush1.msra.mxu0 %v5225
      %5702 = vmatprep.subr.mxu0 %v5242
      %5703 = vmatpush1.msra.mxu0 %v5241
      %5704 = vmatprep.subr.mxu0 %v5258
      %5705 = vmatpush1.msra.mxu0 %v5257
      %5706 = vmatprep.subr.mxu0 %v5274
      %5707 = vmatpush1.msra.mxu0 %v5273
      %5708 = vmatprep.subr.mxu0 %v5290
      %5709 = vmatpush1.msra.mxu0 %v5289
      %5710 = vmatprep.subr.mxu0 %v5306
      %5711 = vmatpush1.msra.mxu0 %v5305
      %5712 = vmatprep.subr.mxu0 %v5322
      %5713 = vmatpush1.msra.mxu0 %v5321
      %5714 = vmatprep.subr.mxu0 0.0
      %5715 = vmatpush1.msra.mxu0 0.0
      %5716 = vmatprep.subr.mxu0 0.0
      %5717 = vmatpush1.msra.mxu0 0.0
      %5718 = vmatprep.subr.mxu0 0.0
      %5719 = vmatpush1.msra.mxu0 0.0
      %5720 = vmatprep.subr.mxu0 0.0
      %5721 = vmatpush1.msra.mxu0 0.0
      %5722 = vmatprep.subr.mxu0 0.0
      %5723 = vmatpush1.msra.mxu0 0.0
      %5724 = vmatprep.subr.mxu0 0.0
      %5725 = vmatpush1.msra.mxu0 0.0
      %5726 = vmatprep.subr.mxu0 0.0
      %5727 = vmatpush1.msra.mxu0 0.0
      %5728 = vmatprep.subr.mxu0 0.0
      %5729 = vmatpush1.msra.mxu0 0.0
      %5730 = vmatprep.subr.mxu0 0.0
      %5731 = vmatpush1.msra.mxu0 0.0
      %5732 = vmatprep.subr.mxu0 0.0
      %5733 = vmatpush1.msra.mxu0 0.0
      %5734 = vmatprep.subr.mxu0 0.0
      %5735 = vmatpush1.msra.mxu0 0.0
      %5736 = vmatprep.subr.mxu0 0.0
      %5737 = vmatpush1.msra.mxu0 0.0
      %5738 = vmatprep.subr.mxu0 0.0
      %5739 = vmatpush1.msra.mxu0 0.0
      %5740 = vmatprep.subr.mxu0 0.0
      %5741 = vmatpush1.msra.mxu0 0.0
      %5742 = vmatprep.subr.mxu0 0.0
      %5743 = vmatpush1.msra.mxu0 0.0
      %5744 = vmatprep.subr.mxu0 0.0
      %5745 = vmatpush1.msra.mxu0 0.0
      %5746 = vmatprep.mubr.f32.mxu0 0.0
      %5747 = vmatmul.mubr.f32.gmra.mrb[0].mxu0 %v5068
      %v5748 = vpop.f32.mrb[0].mxu0
      %v5749 = vadd.f32 0.0, %v5748
      %v5750 = vpop.f32.mrb[0].mxu0
      %v5751 = vadd.f32 0.0, %v5750
      %5752 = vdwg.mxu0
      %5753 = vmatprep.subr.mxu0 %v5084
      %5754 = vmatpush1.msra.mxu0 %v5083
      %5755 = vmatprep.subr.mxu0 %v5100
      %5756 = vmatpush1.msra.mxu0 %v5099
      %5757 = vmatprep.subr.mxu0 %v5116
      %5758 = vmatpush1.msra.mxu0 %v5115
      %5759 = vmatprep.subr.mxu0 %v5132
      %5760 = vmatpush1.msra.mxu0 %v5131
      %5761 = vmatprep.subr.mxu0 %v5148
      %5762 = vmatpush1.msra.mxu0 %v5147
      %5763 = vmatprep.subr.mxu0 %v5164
      %5764 = vmatpush1.msra.mxu0 %v5163
      %5765 = vmatprep.subr.mxu0 %v5180
      %5766 = vmatpush1.msra.mxu0 %v5179
      %5767 = vmatprep.subr.mxu0 %v5196
      %5768 = vmatpush1.msra.mxu0 %v5195
      %5769 = vmatprep.subr.mxu0 %v5212
      %5770 = vmatpush1.msra.mxu0 %v5211
      %5771 = vmatprep.subr.mxu0 %v5228
      %5772 = vmatpush1.msra.mxu0 %v5227
      %5773 = vmatprep.subr.mxu0 %v5244
      %5774 = vmatpush1.msra.mxu0 %v5243
      %5775 = vmatprep.subr.mxu0 %v5260
      %5776 = vmatpush1.msra.mxu0 %v5259
      %5777 = vmatprep.subr.mxu0 %v5276
      %5778 = vmatpush1.msra.mxu0 %v5275
      %5779 = vmatprep.subr.mxu0 %v5292
      %5780 = vmatpush1.msra.mxu0 %v5291
      %5781 = vmatprep.subr.mxu0 %v5308
      %5782 = vmatpush1.msra.mxu0 %v5307
      %5783 = vmatprep.subr.mxu0 %v5324
      %5784 = vmatpush1.msra.mxu0 %v5323
      %5785 = vmatprep.subr.mxu0 0.0
      %5786 = vmatpush1.msra.mxu0 0.0
      %5787 = vmatprep.subr.mxu0 0.0
      %5788 = vmatpush1.msra.mxu0 0.0
      %5789 = vmatprep.subr.mxu0 0.0
      %5790 = vmatpush1.msra.mxu0 0.0
      %5791 = vmatprep.subr.mxu0 0.0
      %5792 = vmatpush1.msra.mxu0 0.0
      %5793 = vmatprep.subr.mxu0 0.0
      %5794 = vmatpush1.msra.mxu0 0.0
      %5795 = vmatprep.subr.mxu0 0.0
      %5796 = vmatpush1.msra.mxu0 0.0
      %5797 = vmatprep.subr.mxu0 0.0
      %5798 = vmatpush1.msra.mxu0 0.0
      %5799 = vmatprep.subr.mxu0 0.0
      %5800 = vmatpush1.msra.mxu0 0.0
      %5801 = vmatprep.subr.mxu0 0.0
      %5802 = vmatpush1.msra.mxu0 0.0
      %5803 = vmatprep.subr.mxu0 0.0
      %5804 = vmatpush1.msra.mxu0 0.0
      %5805 = vmatprep.subr.mxu0 0.0
      %5806 = vmatpush1.msra.mxu0 0.0
      %5807 = vmatprep.subr.mxu0 0.0
      %5808 = vmatpush1.msra.mxu0 0.0
      %5809 = vmatprep.subr.mxu0 0.0
      %5810 = vmatpush1.msra.mxu0 0.0
      %5811 = vmatprep.subr.mxu0 0.0
      %5812 = vmatpush1.msra.mxu0 0.0
      %5813 = vmatprep.subr.mxu0 0.0
      %5814 = vmatpush1.msra.mxu0 0.0
      %5815 = vmatprep.subr.mxu0 0.0
      %5816 = vmatpush1.msra.mxu0 0.0
      %5817 = vmatprep.mubr.f32.mxu0 0.0
      %5818 = vmatmul.mubr.f32.gmra.mrb[0].mxu0 %v5068
      %v5819 = vpop.f32.mrb[0].mxu0
      %v5820 = vadd.f32 0.0, %v5819
      %v5821 = vpop.f32.mrb[0].mxu0
      %v5822 = vadd.f32 0.0, %v5821
      %5823 = vdwg.mxu0
      %5824 = vmatprep.subr.mxu0 %v5086
      %5825 = vmatpush1.msra.mxu0 %v5085
      %5826 = vmatprep.subr.mxu0 %v5102
      %5827 = vmatpush1.msra.mxu0 %v5101
      %5828 = vmatprep.subr.mxu0 %v5118
      %5829 = vmatpush1.msra.mxu0 %v5117
      %5830 = vmatprep.subr.mxu0 %v5134
      %5831 = vmatpush1.msra.mxu0 %v5133
      %5832 = vmatprep.subr.mxu0 %v5150
      %5833 = vmatpush1.msra.mxu0 %v5149
      %5834 = vmatprep.subr.mxu0 %v5166
      %5835 = vmatpush1.msra.mxu0 %v5165
      %5836 = vmatprep.subr.mxu0 %v5182
      %5837 = vmatpush1.msra.mxu0 %v5181
      %5838 = vmatprep.subr.mxu0 %v5198
      %5839 = vmatpush1.msra.mxu0 %v5197
      %5840 = vmatprep.subr.mxu0 %v5214
      %5841 = vmatpush1.msra.mxu0 %v5213
      %5842 = vmatprep.subr.mxu0 %v5230
      %5843 = vmatpush1.msra.mxu0 %v5229
      %5844 = vmatprep.subr.mxu0 %v5246
      %5845 = vmatpush1.msra.mxu0 %v5245
      %5846 = vmatprep.subr.mxu0 %v5262
      %5847 = vmatpush1.msra.mxu0 %v5261
      %5848 = vmatprep.subr.mxu0 %v5278
      %5849 = vmatpush1.msra.mxu0 %v5277
      %5850 = vmatprep.subr.mxu0 %v5294
      %5851 = vmatpush1.msra.mxu0 %v5293
      %5852 = vmatprep.subr.mxu0 %v5310
      %5853 = vmatpush1.msra.mxu0 %v5309
      %5854 = vmatprep.subr.mxu0 %v5326
      %5855 = vmatpush1.msra.mxu0 %v5325
      %5856 = vmatprep.subr.mxu0 0.0
      %5857 = vmatpush1.msra.mxu0 0.0
      %5858 = vmatprep.subr.mxu0 0.0
      %5859 = vmatpush1.msra.mxu0 0.0
      %5860 = vmatprep.subr.mxu0 0.0
      %5861 = vmatpush1.msra.mxu0 0.0
      %5862 = vmatprep.subr.mxu0 0.0
      %5863 = vmatpush1.msra.mxu0 0.0
      %5864 = vmatprep.subr.mxu0 0.0
      %5865 = vmatpush1.msra.mxu0 0.0
      %5866 = vmatprep.subr.mxu0 0.0
      %5867 = vmatpush1.msra.mxu0 0.0
      %5868 = vmatprep.subr.mxu0 0.0
      %5869 = vmatpush1.msra.mxu0 0.0
      %5870 = vmatprep.subr.mxu0 0.0
      %5871 = vmatpush1.msra.mxu0 0.0
      %5872 = vmatprep.subr.mxu0 0.0
      %5873 = vmatpush1.msra.mxu0 0.0
      %5874 = vmatprep.subr.mxu0 0.0
      %5875 = vmatpush1.msra.mxu0 0.0
      %5876 = vmatprep.subr.mxu0 0.0
      %5877 = vmatpush1.msra.mxu0 0.0
      %5878 = vmatprep.subr.mxu0 0.0
      %5879 = vmatpush1.msra.mxu0 0.0
      %5880 = vmatprep.subr.mxu0 0.0
      %5881 = vmatpush1.msra.mxu0 0.0
      %5882 = vmatprep.subr.mxu0 0.0
      %5883 = vmatpush1.msra.mxu0 0.0
      %5884 = vmatprep.subr.mxu0 0.0
      %5885 = vmatpush1.msra.mxu0 0.0
      %5886 = vmatprep.subr.mxu0 0.0
      %5887 = vmatpush1.msra.mxu0 0.0
      %5888 = vmatprep.mubr.f32.mxu0 0.0
      %5889 = vmatmul.mubr.f32.gmra.mrb[0].mxu0 %v5068
      %v5890 = vpop.f32.mrb[0].mxu0
      %v5891 = vadd.f32 0.0, %v5890
      %v5892 = vpop.f32.mrb[0].mxu0
      %v5893 = vadd.f32 0.0, %v5892
      %5894 = vdwg.mxu0
      %v5895 = vld [vmem:[%s14] sm:$0x3]
      %v5898 = vcombine.low %v5394, %v5396
      %v5900 = vunpack.c.l.s4 1966171168
      %v5901 = vunpack.c.0.s8 %v5900
      %v5902 = vlaneseq
      %v5903 = vshrl.u32 %v5902, 7
      %v5904 = vsub.s32 %v5901, %v5903
      %v5905 = vrot.slane %v5898, %v5904
      %v5907 = vunpack.c.l.s4 1966171168
      %v5908 = vunpack.c.0.s8 %v5907
      %v5909 = vlaneseq
      %v5910 = vshrl.u32 %v5909, 7
      %v5911 = vsub.s32 %v5908, %v5910
      %v5912 = vrot.slane %v5905, %v5911
      %v5914 = vadd.f32 %v5895, %v5912
      %v5917 = vcombine.low %v5465, %v5467
      %v5919 = vunpack.c.l.s4 1966171168
      %v5920 = vunpack.c.0.s8 %v5919
      %v5921 = vlaneseq
      %v5922 = vshrl.u32 %v5921, 7
      %v5923 = vsub.s32 %v5920, %v5922
      %v5924 = vrot.slane %v5917, %v5923
      %v5925 = vcombine.high %v5924, %v5924
      %v5927 = vunpack.c.l.s4 1966171168
      %v5928 = vunpack.c.0.s8 %v5927
      %v5929 = vlaneseq
      %v5930 = vshrl.u32 %v5929, 7
      %v5931 = vsub.s32 %v5928, %v5930
      %v5932 = vrot.slane %v5925, %v5931
      %v5934 = vadd.f32 %v5914, %v5932
      %v5937 = vcombine.low %v5536, %v5538
      %v5939 = vunpack.c.l.s4 1966171168
      %v5940 = vunpack.c.0.s8 %v5939
      %v5941 = vlaneseq
      %v5942 = vshrl.u32 %v5941, 7
      %v5943 = vsub.s32 %v5940, %v5942
      %v5944 = vrot.slane %v5937, %v5943
      %v5946 = vunpack.c.l.s4 1966171168
      %v5947 = vunpack.c.0.s8 %v5946
      %v5948 = vlaneseq
      %v5949 = vshrl.u32 %v5948, 7
      %v5950 = vsub.s32 %v5947, %v5949
      %v5951 = vrot.slane %v5944, %v5950
      %v5952 = vcombine.high %v5951, %v5951
      %v5954 = vadd.f32 %v5934, %v5952
      %v5957 = vcombine.low %v5607, %v5609
      %v5959 = vunpack.c.l.s4 1966171168
      %v5960 = vunpack.c.0.s8 %v5959
      %v5961 = vlaneseq
      %v5962 = vshrl.u32 %v5961, 7
      %v5963 = vsub.s32 %v5960, %v5962
      %v5964 = vrot.slane %v5957, %v5963
      %v5965 = vcombine.high %v5964, %v5964
      %v5967 = vunpack.c.l.s4 1966171168
      %v5968 = vunpack.c.0.s8 %v5967
      %v5969 = vlaneseq
      %v5970 = vshrl.u32 %v5969, 7
      %v5971 = vsub.s32 %v5968, %v5970
      %v5972 = vrot.slane %v5965, %v5971
      %v5973 = vcombine.high %v5972, %v5972
      %v5975 = vadd.f32 %v5954, %v5973
      %v5978 = vcombine.high %v5678, %v5680
      %v5980 = vunpack.c.l.s4 1966171168
      %v5981 = vunpack.c.0.s8 %v5980
      %v5982 = vlaneseq
      %v5983 = vshrl.u32 %v5982, 7
      %v5984 = vsub.s32 %v5981, %v5983
      %v5985 = vrot.slane %v5978, %v5984
      %v5987 = vunpack.c.l.s4 1966171168
      %v5988 = vunpack.c.0.s8 %v5987
      %v5989 = vlaneseq
      %v5990 = vshrl.u32 %v5989, 7
      %v5991 = vsub.s32 %v5988, %v5990
      %v5992 = vrot.slane %v5985, %v5991
      %v5994 = vadd.f32 %v5975, %v5992
      %v5997 = vcombine.high %v5749, %v5751
      %v5999 = vunpack.c.l.s4 1966171168
      %v6000 = vunpack.c.0.s8 %v5999
      %v6001 = vlaneseq
      %v6002 = vshrl.u32 %v6001, 7
      %v6003 = vsub.s32 %v6000, %v6002
      %v6004 = vrot.slane %v5997, %v6003
      %v6005 = vcombine.high %v6004, %v6004
      %v6007 = vunpack.c.l.s4 1966171168
      %v6008 = vunpack.c.0.s8 %v6007
      %v6009 = vlaneseq
      %v6010 = vshrl.u32 %v6009, 7
      %v6011 = vsub.s32 %v6008, %v6010
      %v6012 = vrot.slane %v6005, %v6011
      %v6014 = vadd.f32 %v5994, %v6012
      %v6017 = vcombine.high %v5820, %v5822
      %v6019 = vunpack.c.l.s4 1966171168
      %v6020 = vunpack.c.0.s8 %v6019
      %v6021 = vlaneseq
      %v6022 = vshrl.u32 %v6021, 7
      %v6023 = vsub.s32 %v6020, %v6022
      %v6024 = vrot.slane %v6017, %v6023
      %v6026 = vunpack.c.l.s4 1966171168
      %v6027 = vunpack.c.0.s8 %v6026
      %v6028 = vlaneseq
      %v6029 = vshrl.u32 %v6028, 7
      %v6030 = vsub.s32 %v6027, %v6029
      %v6031 = vrot.slane %v6024, %v6030
      %v6032 = vcombine.high %v6031, %v6031
      %v6034 = vadd.f32 %v6014, %v6032
      %v6037 = vcombine.high %v5891, %v5893
      %v6039 = vunpack.c.l.s4 1966171168
      %v6040 = vunpack.c.0.s8 %v6039
      %v6041 = vlaneseq
      %v6042 = vshrl.u32 %v6041, 7
      %v6043 = vsub.s32 %v6040, %v6042
      %v6044 = vrot.slane %v6037, %v6043
      %v6045 = vcombine.high %v6044, %v6044
      %v6047 = vunpack.c.l.s4 1966171168
      %v6048 = vunpack.c.0.s8 %v6047
      %v6049 = vlaneseq
      %v6050 = vshrl.u32 %v6049, 7
      %v6051 = vsub.s32 %v6048, %v6050
      %v6052 = vrot.slane %v6045, %v6051
      %v6053 = vcombine.high %v6052, %v6052
      %v6055 = vadd.f32 %v6034, %v6053
      %v6056 = vmax.f32 %v6055, 0.0
      %v6057 = vld [vmem:[%s15] sm:$0xff]
      %v6058 = vld [vmem:[%s15 + $0x8] sm:$0xff]
      %v6059 = vld [vmem:[%s15 + $0x10] sm:$0xff]
      %v6060 = vld [vmem:[%s15 + $0x18] sm:$0xff]
      %v6061 = vld [vmem:[%s15 + $0x20] sm:$0xff]
      %v6062 = vld [vmem:[%s15 + $0x28] sm:$0xff]
      %v6063 = vld [vmem:[%s15 + $0x30] sm:$0xff]
      %v6064 = vld [vmem:[%s15 + $0x38] sm:$0xff]
      %v6065 = vld [vmem:[%s15 + $0x40] sm:$0xff]
      %v6066 = vld [vmem:[%s15 + $0x48] sm:$0xff]
      %v6067 = vld [vmem:[%s15 + $0x50] sm:$0xff]
      %v6068 = vld [vmem:[%s15 + $0x58] sm:$0xff]
      %v6069 = vld [vmem:[%s15 + $0x60] sm:$0xff]
      %v6070 = vld [vmem:[%s15 + $0x68] sm:$0xff]
      %v6071 = vld [vmem:[%s15 + $0x70] sm:$0xff]
      %v6072 = vld [vmem:[%s15 + $0x78] sm:$0xff]
      %v6073 = vld [vmem:[%s15 + $0x80] sm:$0xff]
      %v6074 = vld [vmem:[%s15 + $0x88] sm:$0xff]
      %v6075 = vld [vmem:[%s15 + $0x90] sm:$0xff]
      %v6076 = vld [vmem:[%s15 + $0x98] sm:$0xff]
      %v6077 = vld [vmem:[%s15 + $0xa0] sm:$0xff]
      %v6078 = vld [vmem:[%s15 + $0xa8] sm:$0xff]
      %v6079 = vld [vmem:[%s15 + $0xb0] sm:$0xff]
      %v6080 = vld [vmem:[%s15 + $0xb8] sm:$0xff]
      %v6081 = vld [vmem:[%s15 + $0xc0] sm:$0xff]
      %v6082 = vld [vmem:[%s15 + $0xc8] sm:$0xff]
      %v6083 = vld [vmem:[%s15 + $0xd0] sm:$0xff]
      %v6084 = vld [vmem:[%s15 + $0xd8] sm:$0xff]
      %v6085 = vld [vmem:[%s15 + $0xe0] sm:$0xff]
      %v6086 = vld [vmem:[%s15 + $0xe8] sm:$0xff]
      %v6087 = vld [vmem:[%s15 + $0xf0] sm:$0xff]
      %v6088 = vld [vmem:[%s15 + $0xf8] sm:$0xff]
      %v6089 = vld [vmem:[%s16] sm:$0x1]
      %v6091 = vlaneseq
      %v6092 = vshrl.u32 %v6091, 7
      %v6093 = vsub.s32 0, %v6092
      %v6094 = vrot.slane %v6056, %v6093
      %v6095 = vlaneseq
      %v6096 = vshrl.u32 %v6095, 7
      %v6097 = vsub.s32 1, %v6096
      %v6098 = vrot.slane %v6056, %v6097
      %6101 = vmatprep.subr.mxu0 0.0
      %6102 = vmatpush1.msra.mxu0 %v6057
      %6103 = vmatprep.subr.mxu0 0.0
      %6104 = vmatpush1.msra.mxu0 %v6058
      %6105 = vmatprep.subr.mxu0 0.0
      %6106 = vmatpush1.msra.mxu0 %v6059
      %6107 = vmatprep.subr.mxu0 0.0
      %6108 = vmatpush1.msra.mxu0 %v6060
      %6109 = vmatprep.subr.mxu0 0.0
      %6110 = vmatpush1.msra.mxu0 %v6061
      %6111 = vmatprep.subr.mxu0 0.0
      %6112 = vmatpush1.msra.mxu0 %v6062
      %6113 = vmatprep.subr.mxu0 0.0
      %6114 = vmatpush1.msra.mxu0 %v6063
      %6115 = vmatprep.subr.mxu0 0.0
      %6116 = vmatpush1.msra.mxu0 %v6064
      %6117 = vmatprep.subr.mxu0 0.0
      %6118 = vmatpush1.msra.mxu0 %v6065
      %6119 = vmatprep.subr.mxu0 0.0
      %6120 = vmatpush1.msra.mxu0 %v6066
      %6121 = vmatprep.subr.mxu0 0.0
      %6122 = vmatpush1.msra.mxu0 %v6067
      %6123 = vmatprep.subr.mxu0 0.0
      %6124 = vmatpush1.msra.mxu0 %v6068
      %6125 = vmatprep.subr.mxu0 0.0
      %6126 = vmatpush1.msra.mxu0 %v6069
      %6127 = vmatprep.subr.mxu0 0.0
      %6128 = vmatpush1.msra.mxu0 %v6070
      %6129 = vmatprep.subr.mxu0 0.0
      %6130 = vmatpush1.msra.mxu0 %v6071
      %6131 = vmatprep.subr.mxu0 0.0
      %6132 = vmatpush1.msra.mxu0 %v6072
      %6133 = vmatprep.subr.mxu0 0.0
      %6134 = vmatpush1.msra.mxu0 %v6073
      %6135 = vmatprep.subr.mxu0 0.0
      %6136 = vmatpush1.msra.mxu0 %v6074
      %6137 = vmatprep.subr.mxu0 0.0
      %6138 = vmatpush1.msra.mxu0 %v6075
      %6139 = vmatprep.subr.mxu0 0.0
      %6140 = vmatpush1.msra.mxu0 %v6076
      %6141 = vmatprep.subr.mxu0 0.0
      %6142 = vmatpush1.msra.mxu0 %v6077
      %6143 = vmatprep.subr.mxu0 0.0
      %6144 = vmatpush1.msra.mxu0 %v6078
      %6145 = vmatprep.subr.mxu0 0.0
      %6146 = vmatpush1.msra.mxu0 %v6079
      %6147 = vmatprep.subr.mxu0 0.0
      %6148 = vmatpush1.msra.mxu0 %v6080
      %6149 = vmatprep.subr.mxu0 0.0
      %6150 = vmatpush1.msra.mxu0 %v6081
      %6151 = vmatprep.subr.mxu0 0.0
      %6152 = vmatpush1.msra.mxu0 %v6082
      %6153 = vmatprep.subr.mxu0 0.0
      %6154 = vmatpush1.msra.mxu0 %v6083
      %6155 = vmatprep.subr.mxu0 0.0
      %6156 = vmatpush1.msra.mxu0 %v6084
      %6157 = vmatprep.subr.mxu0 0.0
      %6158 = vmatpush1.msra.mxu0 %v6085
      %6159 = vmatprep.subr.mxu0 0.0
      %6160 = vmatpush1.msra.mxu0 %v6086
      %6161 = vmatprep.subr.mxu0 0.0
      %6162 = vmatpush1.msra.mxu0 %v6087
      %6163 = vmatprep.subr.mxu0 0.0
      %6164 = vmatpush1.msra.mxu0 %v6088
      %6165 = vmatprep.mubr.f32.mxu0 %v6098
      %6166 = vmatmul.mubr.f32.gmra.mrb[0].mxu0 %v6094
      %v6167 = vpop.f32.mrb[0].mxu0
      %v6168 = vadd.f32 %v6089, %v6167
      %v6169 = vpop.f32.mrb[0].mxu0
      %6170 = vdwg.mxu0
      %v6171 = vmax.f32 %v6168, 0.0
      %v6172 = vld [vmem:[%s17] sm:$0xff]
      %v6173 = vld [vmem:[%s17 + $0x8] sm:$0xff]
      %v6174 = vld [vmem:[%s17 + $0x10] sm:$0xff]
      %v6175 = vld [vmem:[%s17 + $0x18] sm:$0xff]
      %v6176 = vld [vmem:[%s17 + $0x20] sm:$0xff]
      %v6177 = vld [vmem:[%s17 + $0x28] sm:$0xff]
      %v6178 = vld [vmem:[%s17 + $0x30] sm:$0xff]
      %v6179 = vld [vmem:[%s17 + $0x38] sm:$0xff]
      %v6180 = vld [vmem:[%s18] sm:$0x1]
      %v6182 = vsel %vm4544, %v6171, 0
      %6184 = vmatprep.subr.mxu0 0.0
      %6185 = vmatpush1.msra.mxu0 %v6172
      %6186 = vmatprep.subr.mxu0 0.0
      %6187 = vmatpush1.msra.mxu0 %v6173
      %6188 = vmatprep.subr.mxu0 0.0
      %6189 = vmatpush1.msra.mxu0 %v6174
      %6190 = vmatprep.subr.mxu0 0.0
      %6191 = vmatpush1.msra.mxu0 %v6175
      %6192 = vmatprep.subr.mxu0 0.0
      %6193 = vmatpush1.msra.mxu0 %v6176
      %6194 = vmatprep.subr.mxu0 0.0
      %6195 = vmatpush1.msra.mxu0 %v6177
      %6196 = vmatprep.subr.mxu0 0.0
      %6197 = vmatpush1.msra.mxu0 %v6178
      %6198 = vmatprep.subr.mxu0 0.0
      %6199 = vmatpush1.msra.mxu0 %v6179
      %6200 = vmatprep.subr.mxu0 0.0
      %6201 = vmatpush1.msra.mxu0 0.0
      %6202 = vmatprep.subr.mxu0 0.0
      %6203 = vmatpush1.msra.mxu0 0.0
      %6204 = vmatprep.subr.mxu0 0.0
      %6205 = vmatpush1.msra.mxu0 0.0
      %6206 = vmatprep.subr.mxu0 0.0
      %6207 = vmatpush1.msra.mxu0 0.0
      %6208 = vmatprep.subr.mxu0 0.0
      %6209 = vmatpush1.msra.mxu0 0.0
      %6210 = vmatprep.subr.mxu0 0.0
      %6211 = vmatpush1.msra.mxu0 0.0
      %6212 = vmatprep.subr.mxu0 0.0
      %6213 = vmatpush1.msra.mxu0 0.0
      %6214 = vmatprep.subr.mxu0 0.0
      %6215 = vmatpush1.msra.mxu0 0.0
      %6216 = vmatprep.subr.mxu0 0.0
      %6217 = vmatpush1.msra.mxu0 0.0
      %6218 = vmatprep.subr.mxu0 0.0
      %6219 = vmatpush1.msra.mxu0 0.0
      %6220 = vmatprep.subr.mxu0 0.0
      %6221 = vmatpush1.msra.mxu0 0.0
      %6222 = vmatprep.subr.mxu0 0.0
      %6223 = vmatpush1.msra.mxu0 0.0
      %6224 = vmatprep.subr.mxu0 0.0
      %6225 = vmatpush1.msra.mxu0 0.0
      %6226 = vmatprep.subr.mxu0 0.0
      %6227 = vmatpush1.msra.mxu0 0.0
      %6228 = vmatprep.subr.mxu0 0.0
      %6229 = vmatpush1.msra.mxu0 0.0
      %6230 = vmatprep.subr.mxu0 0.0
      %6231 = vmatpush1.msra.mxu0 0.0
      %6232 = vmatprep.subr.mxu0 0.0
      %6233 = vmatpush1.msra.mxu0 0.0
      %6234 = vmatprep.subr.mxu0 0.0
      %6235 = vmatpush1.msra.mxu0 0.0
      %6236 = vmatprep.subr.mxu0 0.0
      %6237 = vmatpush1.msra.mxu0 0.0
      %6238 = vmatprep.subr.mxu0 0.0
      %6239 = vmatpush1.msra.mxu0 0.0
      %6240 = vmatprep.subr.mxu0 0.0
      %6241 = vmatpush1.msra.mxu0 0.0
      %6242 = vmatprep.subr.mxu0 0.0
      %6243 = vmatpush1.msra.mxu0 0.0
      %6244 = vmatprep.subr.mxu0 0.0
      %6245 = vmatpush1.msra.mxu0 0.0
      %6246 = vmatprep.subr.mxu0 0.0
      %6247 = vmatpush1.msra.mxu0 0.0
      %6248 = vmatprep.mubr.f32.mxu0 0.0
      %6249 = vmatmul.mubr.f32.gmra.mrb[0].mxu0 %v6182
      %v6250 = vpop.f32.mrb[0].mxu0
      %v6251 = vadd.f32 %v6180, %v6250
      %v6252 = vpop.f32.mrb[0].mxu0
      %6253 = vdwg.mxu0
      %6254 = vst [vmem:[%s598] sm:$0x1] %v6251
      %p6255 = scmp.lt.s32.totalorder %s30, 1
      %s6256 = scalar_select %p6255, %s30, 1
      %s6257 = scalar_lea.vmem %s19, %s6256
      // Predicated region
      $region97: #{two_channel_classifier_forward.1} parent=95 // pred_check
        %p6258 = pneg %p452
      $region98: #{two_channel_classifier_forward.1} parent=95 // pred_check_branch
        %6260 = sbr.rel (%p6258) target = $region100
      $region99: #{two_channel_classifier_forward.1} parent=95 // pred_region
        _
      $region100: #{two_channel_classifier_forward.1} parent=95 // pred_fallthru
        _
    $region96: #{two_channel_classifier_forward.1} parent=5 // pred_fallthru
      _
    %p6261 = scmp.le.s32.totalorder 2, %s25
    // Predicated region
    $region101: #{two_channel_classifier_forward.1} parent=5 // pred_check
      %p6262 = pneg %p6261
    $region102: #{two_channel_classifier_forward.1} parent=5 // pred_check_branch
      %6264 = sbr.rel (%p6262) target = $region104
    $region103: #{two_channel_classifier_forward.1} parent=5 // pred_region
      %s6265 = ssub.s32 %s25, 2
      // Predicated region
      $region105: #{two_channel_classifier_forward.1} parent=103 // pred_check
        %p6266 = pneg %p458
      $region106: #{two_channel_classifier_forward.1} parent=103 // pred_check_branch
        %6268 = sbr.rel (%p6266) target = $region108
      $region107: #{two_channel_classifier_forward.1} parent=103 // pred_region
        %p6269 = scmp.lt.s32.totalorder %s31, 1
        %s6270 = scalar_select %p6269, %s31, 1
        %s6271 = scalar_lea.vmem %s19, %s6270
      $region108: #{two_channel_classifier_forward.1} parent=103 // pred_fallthru
        _
    $region104: #{two_channel_classifier_forward.1} parent=5 // pred_fallthru
      _
  $region6: #{two_channel_classifier_forward.1} parent=0 // loop_footer
    %s29 = sadd.s32 1, %s25
  $region7: #{two_channel_classifier_forward.1} parent=0 // loop_footer_branch
    %24 = sbr.rel target = $region3
  $region8: #{two_channel_classifier_forward.1} parent=0 // loop_exit
    _

</llo_original>
